<compile_context>
chip_gen: v6e
topology: v6e:2x2x1
jax: 0.10.0
libtpu: 0.0.40
codegen_flags: <defaults>
</compile_context>

<pallas_src>
import math
import numpy as np

import jax
import jax.numpy as jnp
from jax.experimental import pallas as pl
from jax.experimental.pallas import tpu as pltpu

# ----------------------------- small config -----------------------------
B = 2                     # batch
P_PTS = 128               # number of points
C_IN = 3                  # point feature channels
R = 16                    # voxel resolution (input_size)
PATCH = 4                 # patch size
G = R // PATCH            # patches per axis
T = G * G * G             # tokens (64)
D = 48                    # hidden size (divisible by 6 and by num_heads)
H = 4                     # num heads
HD = D // H               # head dim (12)
M = 4 * D                 # mlp hidden dim (mlp_ratio = 4)
DEPTH = 2                 # number of DiT blocks
NUM_CLASSES = 1
FREQ = 256                # frequency_embedding_size
C_OUT = C_IN              # learn_sigma = False
POUT = PATCH ** 3 * C_OUT            # 192
POUT_PAD = 256                       # lane-dense padded output width
K_PATCH = C_IN * PATCH ** 3          # 192
NCHUNK = 6 * DEPTH + 2               # adaLN chunks: 6 per block + final (shift, scale)
EPS = 1e-6


# ----------------------------- sincos pos embed (numpy, ported) ---------
def get_1d_sincos_pos_embed_from_grid(embed_dim, pos):
    assert embed_dim % 2 == 0
    omega = np.arange(embed_dim // 2, dtype=np.float64)
    omega /= embed_dim / 2.0
    omega = 1.0 / 10000 ** omega
    pos = pos.reshape(-1)
    out = np.einsum('m,d->md', pos, omega)
    emb_sin = np.sin(out)
    emb_cos = np.cos(out)
    return np.concatenate([emb_sin, emb_cos], axis=1)


def get_3d_sincos_pos_embed_from_grid(embed_dim, grid):
    assert embed_dim % 3 == 0
    emb_x = get_1d_sincos_pos_embed_from_grid(embed_dim // 3, grid[0])
    emb_y = get_1d_sincos_pos_embed_from_grid(embed_dim // 3, grid[1])
    emb_z = get_1d_sincos_pos_embed_from_grid(embed_dim // 3, grid[2])
    return np.concatenate([emb_x, emb_y, emb_z], axis=1)


def get_3d_sincos_pos_embed(embed_dim, grid_size):
    grid_x = np.arange(grid_size, dtype=np.float32)
    grid_y = np.arange(grid_size, dtype=np.float32)
    grid_z = np.arange(grid_size, dtype=np.float32)
    grid = np.meshgrid(grid_x, grid_y, grid_z, indexing='ij')
    grid = np.stack(grid, axis=0)
    grid = grid.reshape([3, 1, grid_size, grid_size, grid_size])
    return get_3d_sincos_pos_embed_from_grid(embed_dim, grid)


# ----------------------------- in-kernel helpers -------------------------
def _layer_norm(v):
    mu = jnp.mean(v, axis=-1, keepdims=True)
    var = jnp.mean(jnp.square(v - mu), axis=-1, keepdims=True)
    return (v - mu) * jax.lax.rsqrt(var + EPS)


def _silu(v):
    return v * jax.nn.sigmoid(v)


# ----------------------------- fused DiT kernel --------------------------
def dit_fused_kernel(tf_ref, ye_ref, xp_ref,
                     pw_ref, pb_ref, pe_ref,
                     tw1_ref, tb1_ref, tw2_ref, tb2_ref,
                     aw_ref, ab_ref,
                     wqkv_ref, bqkv_ref, wo_ref, bo_ref,
                     w1_ref, b1_ref, w2_ref, b2_ref,
                     fw_ref, fb_ref,
                     o_ref):
    """One program per batch element: conditioning + patch embed + DEPTH DiT
    blocks + final layer, all weights VMEM-resident, bf16 GEMMs / f32 accum."""
    f32 = jnp.float32
    bf16 = jnp.bfloat16

    # ---- conditioning: t_embedder MLP (Linear -> SiLU -> Linear) + label emb ----
    h = jnp.dot(tf_ref[0].astype(bf16), tw1_ref[...],
                preferred_element_type=f32) + tb1_ref[...]
    h = _silu(h)
    c = (jnp.dot(h.astype(bf16), tw2_ref[...], preferred_element_type=f32)
         + tb2_ref[...] + ye_ref[0])                         # (1, D)
    sc = _silu(c).astype(bf16)                               # (1, D)

    def mod(idx):
        # adaLN modulation chunk idx: SiLU(c) @ W_idx + b_idx  -> (1, D)
        return (jnp.dot(sc, aw_ref[idx], preferred_element_type=f32)
                + ab_ref[idx])

    # ---- patch embedding + (frozen) 3D sincos positional embedding ----
    x = (jnp.dot(xp_ref[0].astype(bf16), pw_ref[...], preferred_element_type=f32)
         + pb_ref[...] + pe_ref[...])                        # (T, D)

    attn_scale = 1.0 / math.sqrt(HD)

    # ---- DEPTH DiT blocks, unrolled (weights resident, activations in values) ----
    for d in range(DEPTH):
        shift_msa, scale_msa, gate_msa = mod(6 * d + 0), mod(6 * d + 1), mod(6 * d + 2)
        shift_mlp, scale_mlp, gate_mlp = mod(6 * d + 3), mod(6 * d + 4), mod(6 * d + 5)

        # --- attention branch: fused QKV, per-head output-proj accumulation ---
        xm = _layer_norm(x) * (1.0 + scale_msa) + shift_msa
        qkv = (jnp.dot(xm.astype(bf16), wqkv_ref[d], preferred_element_type=f32)
               + bqkv_ref[d])                                # (T, 3D)
        attn = jnp.zeros((T, D), f32)
        for hh in range(H):
            q = qkv[:, hh * HD:(hh + 1) * HD]
            k = qkv[:, D + hh * HD:D + (hh + 1) * HD]
            v = qkv[:, 2 * D + hh * HD:2 * D + (hh + 1) * HD]
            s = jax.lax.dot_general((q * attn_scale).astype(bf16), k.astype(bf16),
                                    (((1,), (1,)), ((), ())),
                                    preferred_element_type=f32)   # (T, T)
            s = s - jnp.max(s, axis=-1, keepdims=True)
            pr = jnp.exp(s)
            pr = pr * pl.reciprocal(jnp.sum(pr, axis=-1, keepdims=True), approx=True)
            pv = jnp.dot(pr.astype(bf16), v.astype(bf16),
                         preferred_element_type=f32)              # (T, HD)
            # fold the per-head slice of the output projection into the GEMM
            # (avoids a lane-axis concatenate of 12-lane fragments)
            attn = attn + jnp.dot(pv.astype(bf16), wo_ref[d, hh],
                                  preferred_element_type=f32)     # (T, D)
        x = x + gate_msa * (attn + bo_ref[d])

        # --- MLP branch (tanh GELU -> EUP slot; tiny deviation vs exact erf) ---
        xm2 = _layer_norm(x) * (1.0 + scale_mlp) + shift_mlp
        h1 = (jnp.dot(xm2.astype(bf16), w1_ref[d], preferred_element_type=f32)
              + b1_ref[d])
        h1 = jax.nn.gelu(h1, approximate=True)
        h2 = (jnp.dot(h1.astype(bf16), w2_ref[d], preferred_element_type=f32)
              + b2_ref[d])
        x = x + gate_mlp * h2

    # ---- final adaLN + linear (columns padded to 256 for lane-dense stores) ----
    shift_f, scale_f = mod(6 * DEPTH + 0), mod(6 * DEPTH + 1)
    xf = _layer_norm(x) * (1.0 + scale_f) + shift_f
    o_ref[0] = (jnp.dot(xf.astype(bf16), fw_ref[...], preferred_element_type=f32)
                + fb_ref[...])


# ----------------------------- pallas_call wrapper -----------------------
def dit_transformer(xp, t_freq, y_emb, p):
    bf16 = jnp.bfloat16
    # bf16 matmul operands (f32 accumulation happens in-kernel); biases / pos
    # embed / modulation adds stay f32.
    inputs = [
        t_freq.reshape(B, 1, FREQ),
        y_emb.reshape(B, 1, D),
        xp,
        p['patch_w'].astype(bf16), p['patch_b'], p['pos_embed'],
        p['t_w1'].astype(bf16), p['t_b1'], p['t_w2'].astype(bf16), p['t_b2'],
        p['ada_w'].astype(bf16), p['ada_b'],
        p['wqkv'].astype(bf16), p['bqkv'],
        p['wo'].reshape(DEPTH, H, HD, D).astype(bf16), p['bo'],
        p['w1'].astype(bf16), p['b1'], p['w2'].astype(bf16), p['b2'],
        p['f_w'].astype(bf16), p['f_b'],
    ]

    def batched_spec(arr):
        nd = arr.ndim
        return pl.BlockSpec((1,) + arr.shape[1:],
                            lambda b, _n=nd: (b,) + (0,) * (_n - 1))

    def const_spec(arr):
        nd = arr.ndim
        return pl.BlockSpec(arr.shape, lambda b, _n=nd: (0,) * _n)

    in_specs = [batched_spec(inputs[0]), batched_spec(inputs[1]), batched_spec(inputs[2])]
    in_specs += [const_spec(a) for a in inputs[3:]]

    out = pl.pallas_call(
        dit_fused_kernel,
        out_shape=jax.ShapeDtypeStruct((B, T, POUT_PAD), jnp.float32),
        grid_spec=pltpu.PrefetchScalarGridSpec(
            num_scalar_prefetch=0,
            grid=(B,),                      # v7x: one batch element per TensorCore
            in_specs=in_specs,
            out_specs=pl.BlockSpec((1, T, POUT_PAD), lambda b: (b, 0, 0))),
        compiler_params=pltpu.CompilerParams(
            dimension_semantics=("parallel",)),
    )(*inputs)
    return out[:, :, :POUT]                 # strip the lane padding


# ----------------------------- plain-JAX glue -----------------------------
# TODO(synk): PVCNN's avg_voxelize / trilinear_devoxelize are data-dependent
# scatter/gather CUDA ops; reproduced in plain JAX (scatter-mean expressed as a
# one-hot matmul so it maps onto the MXU instead of a serialized scatter).
def voxelize(features, coords, r):
    # features, coords: (B, C, P)
    norm = coords - jnp.mean(coords, axis=2, keepdims=True)
    scale = jnp.max(jnp.linalg.norm(norm, axis=1, keepdims=True),
                    axis=2, keepdims=True) * 2.0
    norm = norm / scale + 0.5
    norm = jnp.clip(norm * r, 0.0, r - 1.0)
    vox_idx = jnp.round(norm).astype(jnp.int32)                       # (B, 3, P)
    flat = vox_idx[:, 0] * (r * r) + vox_idx[:, 1] * r + vox_idx[:, 2]  # (B, P)

    # one-hot is exactly 0/1 -> bf16 is exact and halves the dominant HBM tensor
    onehot = (flat[:, :, None] ==
              jnp.arange(r ** 3, dtype=jnp.int32)[None, None, :]).astype(jnp.bfloat16)
    sums = jnp.einsum('bcp,bpv->bcv', features.astype(jnp.bfloat16), onehot,
                      preferred_element_type=jnp.float32)             # scatter-add as matmul
    cnt = jnp.sum(onehot, axis=1).astype(jnp.float32)                 # counts <= P, exact
    grid = sums / jnp.maximum(cnt, 1.0)[:, None, :]
    return grid.reshape(features.shape[0], features.shape[1], r, r, r), norm


def trilinear_devoxelize_jax(grid, coords, r):
    Bn, C = grid.shape[:2]
    gflat = grid.reshape(Bn, C, r ** 3)
    c = jnp.clip(coords, 0.0, r - 1.0)
    lo = jnp.floor(c)
    frac = c - lo
    lo_i = lo.astype(jnp.int32)
    hi_i = jnp.minimum(lo_i + 1, r - 1)
    x0, y0, z0 = lo_i[:, 0], lo_i[:, 1], lo_i[:, 2]
    x1, y1, z1 = hi_i[:, 0], hi_i[:, 1], hi_i[:, 2]
    xd, yd, zd = frac[:, 0], frac[:, 1], frac[:, 2]

    def gather(xi, yi, zi):
        idx = xi * r * r + yi * r + zi
        idx = jnp.broadcast_to(idx[:, None, :], (Bn, C, idx.shape[-1]))
        return jnp.take_along_axis(gflat, idx, axis=2)

    def w(a):
        return a[:, None, :]

    out = (gather(x0, y0, z0) * w((1 - xd) * (1 - yd) * (1 - zd))
           + gather(x0, y0, z1) * w((1 - xd) * (1 - yd) * zd)
           + gather(x0, y1, z0) * w((1 - xd) * yd * (1 - zd))
           + gather(x0, y1, z1) * w((1 - xd) * yd * zd)
           + gather(x1, y0, z0) * w(xd * (1 - yd) * (1 - zd))
           + gather(x1, y0, z1) * w(xd * (1 - yd) * zd)
           + gather(x1, y1, z0) * w(xd * yd * (1 - zd))
           + gather(x1, y1, z1) * w(xd * yd * zd))
    return out


def extract_patches(vox, p):
    # (B, C, R, R, R) -> (B, T, C*p^3), feature order (c, dx, dy, dz) = Conv3d flatten order
    Bn, C, Rr = vox.shape[0], vox.shape[1], vox.shape[2]
    g = Rr // p
    x = vox.reshape(Bn, C, g, p, g, p, g, p)
    x = jnp.transpose(x, (0, 2, 4, 6, 1, 3, 5, 7))
    return x.reshape(Bn, g * g * g, C * p * p * p)


def unpatchify(x0, p, g, c):
    Bn = x0.shape[0]
    x0 = x0.reshape(Bn, g, g, g, p, p, p, c)
    x0 = jnp.einsum('nxyzpqrc->ncxpyqzr', x0)
    return x0.reshape(Bn, c, g * p, g * p, g * p)


def timestep_embedding(t, dim, max_period=10000):
    half = dim // 2
    freqs = jnp.exp(-math.log(max_period) *
                    jnp.arange(half, dtype=jnp.float32) / half)
    args = t[:, None].astype(jnp.float32) * freqs[None]
    return jnp.concatenate([jnp.cos(args), jnp.sin(args)], axis=-1)


# ----------------------------- parameters ---------------------------------
def init_params(key):
    keys = jax.random.split(key, 64)
    cnt = [0]

    def nrm(shape, std=0.02):
        k = keys[cnt[0]]
        cnt[0] += 1
        return jax.random.normal(k, shape, jnp.float32) * std

    params = {
        # patch embed: Conv3d weight (D,C,p,p,p) flattened+transposed -> (K_PATCH, D)
        'patch_w': nrm((K_PATCH, D)),
        'patch_b': nrm((1, D)),
        # timestep embedder MLP
        't_w1': nrm((FREQ, D)), 't_b1': nrm((1, D)),
        't_w2': nrm((D, D)),    't_b2': nrm((1, D)),
        # label embedding table (+1 for CFG null class)
        'y_table': nrm((NUM_CLASSES + 1, D)),
        # adaLN modulation weights for all blocks + final layer, stored (NCHUNK, D, D):
        # chunk order = [blk0: shift_msa, scale_msa, gate_msa, shift_mlp, scale_mlp,
        # gate_mlp | blk1: ... | final: shift, scale]  (= each PyTorch Linear(D, k*D)
        # weight transposed and chunked along columns).
        'ada_w': nrm((NCHUNK, D, D)), 'ada_b': nrm((NCHUNK, 1, D)),
        # final layer linear, padded POUT=192 -> 256 columns (lane-dense stores)
        'f_w': jnp.pad(nrm((D, POUT)), ((0, 0), (0, POUT_PAD - POUT))),
        'f_b': jnp.pad(nrm((1, POUT)), ((0, 0), (0, POUT_PAD - POUT))),
        # per-block weights, stacked along DEPTH.  QKV fused: columns = [q | k | v],
        # heads contiguous inside each (timm Attention qkv layout).
        'wqkv': nrm((DEPTH, D, 3 * D)), 'bqkv': nrm((DEPTH, 1, 3 * D)),
        'wo': nrm((DEPTH, D, D)),       'bo': nrm((DEPTH, 1, D)),
        'w1': nrm((DEPTH, D, M)),       'b1': nrm((DEPTH, 1, M)),
        'w2': nrm((DEPTH, M, D)),       'b2': nrm((DEPTH, 1, D)),
    }
    params['pos_embed'] = jnp.asarray(get_3d_sincos_pos_embed(D, G), dtype=jnp.float32)  # (T, D)
    return params


# ----------------------------- forward -------------------------------------
def dit_forward(params, x_points, t, y):
    features, coords = x_points, x_points
    vox, norm_coords = voxelize(features, coords, R)          # (B,C,R,R,R), (B,3,P)
    xp = extract_patches(vox, PATCH)                          # (B,T,K)

    t_freq = timestep_embedding(t, FREQ)                      # (B,256)
    y_emb = params['y_table'][y]                              # (B,D)  eval mode: no label dropout

    x = dit_transformer(xp, t_freq, y_emb, params)            # (B,T,POUT)

    vox_out = unpatchify(x, PATCH, G, C_OUT)                  # (B,C,R,R,R)
    out = trilinear_devoxelize_jax(vox_out, norm_coords, R)   # (B,C,P)
    return out


if __name__ == "__main__":
    key = jax.random.PRNGKey(0)
    k_param, k_x, k_t = jax.random.split(key, 3)
    params = init_params(k_param)

    x_points = jax.random.normal(k_x, (B, C_IN, P_PTS), jnp.float32)
    t = jax.random.uniform(k_t, (B,), jnp.float32, 0.0, 1000.0)
    y = jnp.zeros((B,), jnp.int32)

    out = jax.jit(dit_forward)(params, x_points, t, y)
    out = jax.block_until_ready(out)
    assert out.shape == (B, C_OUT, P_PTS), out.shape
    assert bool(jnp.all(jnp.isfinite(out)))
    print("KERNEL_OK")
</pallas_src>

<mosaic_0001>
module attributes {stable_mosaic.version = 11 : i64} {
  func.func @dit_fused_kernel(%arg0: i32, %arg1: memref<1x1x256xf32, #tpu.memory_space<vmem>>, %arg2: memref<1x1x48xf32, #tpu.memory_space<vmem>>, %arg3: memref<1x64x192xf32, #tpu.memory_space<vmem>>, %arg4: memref<192x48xbf16, #tpu.memory_space<vmem>>, %arg5: memref<1x48xf32, #tpu.memory_space<vmem>>, %arg6: memref<64x48xf32, #tpu.memory_space<vmem>>, %arg7: memref<256x48xbf16, #tpu.memory_space<vmem>>, %arg8: memref<1x48xf32, #tpu.memory_space<vmem>>, %arg9: memref<48x48xbf16, #tpu.memory_space<vmem>>, %arg10: memref<1x48xf32, #tpu.memory_space<vmem>>, %arg11: memref<14x48x48xbf16, #tpu.memory_space<vmem>>, %arg12: memref<14x1x48xf32, #tpu.memory_space<vmem>>, %arg13: memref<2x48x144xbf16, #tpu.memory_space<vmem>>, %arg14: memref<2x1x144xf32, #tpu.memory_space<vmem>>, %arg15: memref<2x4x12x48xbf16, #tpu.memory_space<vmem>>, %arg16: memref<2x1x48xf32, #tpu.memory_space<vmem>>, %arg17: memref<2x48x192xbf16, #tpu.memory_space<vmem>>, %arg18: memref<2x1x192xf32, #tpu.memory_space<vmem>>, %arg19: memref<2x192x48xbf16, #tpu.memory_space<vmem>>, %arg20: memref<2x1x48xf32, #tpu.memory_space<vmem>>, %arg21: memref<48x256xbf16, #tpu.memory_space<vmem>>, %arg22: memref<1x256xf32, #tpu.memory_space<vmem>>, %arg23: memref<1x64x256xf32, #tpu.memory_space<vmem>>) attributes {dimension_semantics = [#tpu.dimension_semantics<parallel>], iteration_bounds = array<i64: 2>, scalar_prefetch = 0 : i64, scratch_operands = 0 : i64, tpu.core_type = #tpu.core_type<tc>, window_params = [{transform_indices = @transform_0, window_bounds = array<i64: 1, 1, 256>}, {transform_indices = @transform_1, window_bounds = array<i64: 1, 1, 48>}, {transform_indices = @transform_2, window_bounds = array<i64: 1, 64, 192>}, {pipeline_mode = #tpu.pipeline_mode<synchronous>, transform_indices = @transform_3, window_bounds = array<i64: 192, 48>}, {pipeline_mode = #tpu.pipeline_mode<synchronous>, transform_indices = @transform_4, window_bounds = array<i64: 1, 48>}, {pipeline_mode = #tpu.pipeline_mode<synchronous>, transform_indices = @transform_5, window_bounds = array<i64: 64, 48>}, {pipeline_mode = #tpu.pipeline_mode<synchronous>, transform_indices = @transform_6, window_bounds = array<i64: 256, 48>}, {pipeline_mode = #tpu.pipeline_mode<synchronous>, transform_indices = @transform_7, window_bounds = array<i64: 1, 48>}, {pipeline_mode = #tpu.pipeline_mode<synchronous>, transform_indices = @transform_8, window_bounds = array<i64: 48, 48>}, {pipeline_mode = #tpu.pipeline_mode<synchronous>, transform_indices = @transform_9, window_bounds = array<i64: 1, 48>}, {pipeline_mode = #tpu.pipeline_mode<synchronous>, transform_indices = @transform_10, window_bounds = array<i64: 14, 48, 48>}, {pipeline_mode = #tpu.pipeline_mode<synchronous>, transform_indices = @transform_11, window_bounds = array<i64: 14, 1, 48>}, {pipeline_mode = #tpu.pipeline_mode<synchronous>, transform_indices = @transform_12, window_bounds = array<i64: 2, 48, 144>}, {pipeline_mode = #tpu.pipeline_mode<synchronous>, transform_indices = @transform_13, window_bounds = array<i64: 2, 1, 144>}, {pipeline_mode = #tpu.pipeline_mode<synchronous>, transform_indices = @transform_14, window_bounds = array<i64: 2, 4, 12, 48>}, {pipeline_mode = #tpu.pipeline_mode<synchronous>, transform_indices = @transform_15, window_bounds = array<i64: 2, 1, 48>}, {pipeline_mode = #tpu.pipeline_mode<synchronous>, transform_indices = @transform_16, window_bounds = array<i64: 2, 48, 192>}, {pipeline_mode = #tpu.pipeline_mode<synchronous>, transform_indices = @transform_17, window_bounds = array<i64: 2, 1, 192>}, {pipeline_mode = #tpu.pipeline_mode<synchronous>, transform_indices = @transform_18, window_bounds = array<i64: 2, 192, 48>}, {pipeline_mode = #tpu.pipeline_mode<synchronous>, transform_indices = @transform_19, window_bounds = array<i64: 2, 1, 48>}, {pipeline_mode = #tpu.pipeline_mode<synchronous>, transform_indices = @transform_20, window_bounds = array<i64: 48, 256>}, {pipeline_mode = #tpu.pipeline_mode<synchronous>, transform_indices = @transform_21, window_bounds = array<i64: 1, 256>}, {transform_indices = @transform_22, window_bounds = array<i64: 1, 64, 256>}]} {
    %c0 = arith.constant 0 : index
    %c0_0 = arith.constant 0 : index
    %c0_1 = arith.constant 0 : index
    %0 = vector.load %arg1[%c0, %c0_0, %c0_1] : memref<1x1x256xf32, #tpu.memory_space<vmem>>, vector<1x1x256xf32>
    %1 = vector.shape_cast %0 : vector<1x1x256xf32> to vector<1x256xf32>
    %2 = arith.truncf %1 : vector<1x256xf32> to vector<1x256xbf16>
    %c0_2 = arith.constant 0 : index
    %c0_3 = arith.constant 0 : index
    %3 = vector.load %arg7[%c0_2, %c0_3] : memref<256x48xbf16, #tpu.memory_space<vmem>>, vector<256x48xbf16>
    %cst = arith.constant dense<0.000000e+00> : vector<1x48xf32>
    %4 = tpu.matmul %2, %3, %cst {dimension_numbers = #tpu.dot_dimension_numbers<[1], [0], [0], [1], [0, 0, 1, 1], [], []>} : vector<1x256xbf16>, vector<256x48xbf16>, vector<1x48xf32> -> vector<1x48xf32>
    %c0_4 = arith.constant 0 : index
    %c0_5 = arith.constant 0 : index
    %5 = vector.load %arg8[%c0_4, %c0_5] : memref<1x48xf32, #tpu.memory_space<vmem>>, vector<1x48xf32>
    %6 = arith.addf %4, %5 : vector<1x48xf32>
    %7 = arith.negf %6 : vector<1x48xf32>
    %8 = math.exp %7 : vector<1x48xf32>
    %cst_6 = arith.constant 1.000000e+00 : f32
    %9 = vector.broadcast %cst_6 : f32 to vector<1x48xf32>
    %10 = arith.addf %9, %8 : vector<1x48xf32>
    %11 = arith.divf %9, %10 : vector<1x48xf32>
    %12 = arith.mulf %6, %11 : vector<1x48xf32>
    %13 = arith.truncf %12 : vector<1x48xf32> to vector<1x48xbf16>
    %c0_7 = arith.constant 0 : index
    %c0_8 = arith.constant 0 : index
    %14 = vector.load %arg9[%c0_7, %c0_8] : memref<48x48xbf16, #tpu.memory_space<vmem>>, vector<48x48xbf16>
    %cst_9 = arith.constant dense<0.000000e+00> : vector<1x48xf32>
    %15 = tpu.matmul %13, %14, %cst_9 {dimension_numbers = #tpu.dot_dimension_numbers<[1], [0], [0], [1], [0, 0, 1, 1], [], []>} : vector<1x48xbf16>, vector<48x48xbf16>, vector<1x48xf32> -> vector<1x48xf32>
    %c0_10 = arith.constant 0 : index
    %c0_11 = arith.constant 0 : index
    %16 = vector.load %arg10[%c0_10, %c0_11] : memref<1x48xf32, #tpu.memory_space<vmem>>, vector<1x48xf32>
    %17 = arith.addf %15, %16 : vector<1x48xf32>
    %c0_12 = arith.constant 0 : index
    %c0_13 = arith.constant 0 : index
    %c0_14 = arith.constant 0 : index
    %18 = vector.load %arg2[%c0_12, %c0_13, %c0_14] : memref<1x1x48xf32, #tpu.memory_space<vmem>>, vector<1x1x48xf32>
    %19 = vector.shape_cast %18 : vector<1x1x48xf32> to vector<1x48xf32>
    %20 = arith.addf %17, %19 : vector<1x48xf32>
    %21 = arith.negf %20 : vector<1x48xf32>
    %22 = math.exp %21 : vector<1x48xf32>
    %cst_15 = arith.constant 1.000000e+00 : f32
    %23 = vector.broadcast %cst_15 : f32 to vector<1x48xf32>
    %24 = arith.addf %23, %22 : vector<1x48xf32>
    %25 = arith.divf %23, %24 : vector<1x48xf32>
    %26 = arith.mulf %20, %25 : vector<1x48xf32>
    %27 = arith.truncf %26 : vector<1x48xf32> to vector<1x48xbf16>
    %c0_16 = arith.constant 0 : index
    %c0_17 = arith.constant 0 : index
    %c0_18 = arith.constant 0 : index
    %28 = vector.load %arg3[%c0_16, %c0_17, %c0_18] : memref<1x64x192xf32, #tpu.memory_space<vmem>>, vector<1x64x192xf32>
    %29 = vector.shape_cast %28 : vector<1x64x192xf32> to vector<64x192xf32>
    %30 = arith.truncf %29 : vector<64x192xf32> to vector<64x192xbf16>
    %c0_19 = arith.constant 0 : index
    %c0_20 = arith.constant 0 : index
    %31 = vector.load %arg4[%c0_19, %c0_20] : memref<192x48xbf16, #tpu.memory_space<vmem>>, vector<192x48xbf16>
    %cst_21 = arith.constant dense<0.000000e+00> : vector<64x48xf32>
    %32 = tpu.matmul %30, %31, %cst_21 {dimension_numbers = #tpu.dot_dimension_numbers<[1], [0], [0], [1], [0, 0, 1, 1], [], []>} : vector<64x192xbf16>, vector<192x48xbf16>, vector<64x48xf32> -> vector<64x48xf32>
    %c0_22 = arith.constant 0 : index
    %c0_23 = arith.constant 0 : index
    %33 = vector.load %arg5[%c0_22, %c0_23] : memref<1x48xf32, #tpu.memory_space<vmem>>, vector<1x48xf32>
    %34 = vector.broadcast %33 : vector<1x48xf32> to vector<64x48xf32>
    %35 = arith.addf %32, %34 : vector<64x48xf32>
    %c0_24 = arith.constant 0 : index
    %c0_25 = arith.constant 0 : index
    %36 = vector.load %arg6[%c0_24, %c0_25] : memref<64x48xf32, #tpu.memory_space<vmem>>, vector<64x48xf32>
    %37 = arith.addf %35, %36 : vector<64x48xf32>
    %c0_26 = arith.constant 0 : index
    %c0_27 = arith.constant 0 : index
    %c0_28 = arith.constant 0 : index
    %38 = vector.load %arg11[%c0_26, %c0_27, %c0_28] : memref<14x48x48xbf16, #tpu.memory_space<vmem>>, vector<1x48x48xbf16>
    %39 = vector.shape_cast %38 : vector<1x48x48xbf16> to vector<48x48xbf16>
    %cst_29 = arith.constant dense<0.000000e+00> : vector<1x48xf32>
    %40 = tpu.matmul %27, %39, %cst_29 {dimension_numbers = #tpu.dot_dimension_numbers<[1], [0], [0], [1], [0, 0, 1, 1], [], []>} : vector<1x48xbf16>, vector<48x48xbf16>, vector<1x48xf32> -> vector<1x48xf32>
    %c0_30 = arith.constant 0 : index
    %c0_31 = arith.constant 0 : index
    %c0_32 = arith.constant 0 : index
    %41 = vector.load %arg12[%c0_30, %c0_31, %c0_32] : memref<14x1x48xf32, #tpu.memory_space<vmem>>, vector<1x1x48xf32>
    %42 = vector.shape_cast %41 : vector<1x1x48xf32> to vector<1x48xf32>
    %43 = arith.addf %40, %42 : vector<1x48xf32>
    %c1 = arith.constant 1 : index
    %c0_33 = arith.constant 0 : index
    %c0_34 = arith.constant 0 : index
    %44 = vector.load %arg11[%c1, %c0_33, %c0_34] : memref<14x48x48xbf16, #tpu.memory_space<vmem>>, vector<1x48x48xbf16>
    %45 = vector.shape_cast %44 : vector<1x48x48xbf16> to vector<48x48xbf16>
    %cst_35 = arith.constant dense<0.000000e+00> : vector<1x48xf32>
    %46 = tpu.matmul %27, %45, %cst_35 {dimension_numbers = #tpu.dot_dimension_numbers<[1], [0], [0], [1], [0, 0, 1, 1], [], []>} : vector<1x48xbf16>, vector<48x48xbf16>, vector<1x48xf32> -> vector<1x48xf32>
    %c1_36 = arith.constant 1 : index
    %c0_37 = arith.constant 0 : index
    %c0_38 = arith.constant 0 : index
    %47 = vector.load %arg12[%c1_36, %c0_37, %c0_38] : memref<14x1x48xf32, #tpu.memory_space<vmem>>, vector<1x1x48xf32>
    %48 = vector.shape_cast %47 : vector<1x1x48xf32> to vector<1x48xf32>
    %49 = arith.addf %46, %48 : vector<1x48xf32>
    %c2 = arith.constant 2 : index
    %c0_39 = arith.constant 0 : index
    %c0_40 = arith.constant 0 : index
    %50 = vector.load %arg11[%c2, %c0_39, %c0_40] : memref<14x48x48xbf16, #tpu.memory_space<vmem>>, vector<1x48x48xbf16>
    %51 = vector.shape_cast %50 : vector<1x48x48xbf16> to vector<48x48xbf16>
    %cst_41 = arith.constant dense<0.000000e+00> : vector<1x48xf32>
    %52 = tpu.matmul %27, %51, %cst_41 {dimension_numbers = #tpu.dot_dimension_numbers<[1], [0], [0], [1], [0, 0, 1, 1], [], []>} : vector<1x48xbf16>, vector<48x48xbf16>, vector<1x48xf32> -> vector<1x48xf32>
    %c2_42 = arith.constant 2 : index
    %c0_43 = arith.constant 0 : index
    %c0_44 = arith.constant 0 : index
    %53 = vector.load %arg12[%c2_42, %c0_43, %c0_44] : memref<14x1x48xf32, #tpu.memory_space<vmem>>, vector<1x1x48xf32>
    %54 = vector.shape_cast %53 : vector<1x1x48xf32> to vector<1x48xf32>
    %55 = arith.addf %52, %54 : vector<1x48xf32>
    %c3 = arith.constant 3 : index
    %c0_45 = arith.constant 0 : index
    %c0_46 = arith.constant 0 : index
    %56 = vector.load %arg11[%c3, %c0_45, %c0_46] : memref<14x48x48xbf16, #tpu.memory_space<vmem>>, vector<1x48x48xbf16>
    %57 = vector.shape_cast %56 : vector<1x48x48xbf16> to vector<48x48xbf16>
    %cst_47 = arith.constant dense<0.000000e+00> : vector<1x48xf32>
    %58 = tpu.matmul %27, %57, %cst_47 {dimension_numbers = #tpu.dot_dimension_numbers<[1], [0], [0], [1], [0, 0, 1, 1], [], []>} : vector<1x48xbf16>, vector<48x48xbf16>, vector<1x48xf32> -> vector<1x48xf32>
    %c3_48 = arith.constant 3 : index
    %c0_49 = arith.constant 0 : index
    %c0_50 = arith.constant 0 : index
    %59 = vector.load %arg12[%c3_48, %c0_49, %c0_50] : memref<14x1x48xf32, #tpu.memory_space<vmem>>, vector<1x1x48xf32>
    %60 = vector.shape_cast %59 : vector<1x1x48xf32> to vector<1x48xf32>
    %61 = arith.addf %58, %60 : vector<1x48xf32>
    %c4 = arith.constant 4 : index
    %c0_51 = arith.constant 0 : index
    %c0_52 = arith.constant 0 : index
    %62 = vector.load %arg11[%c4, %c0_51, %c0_52] : memref<14x48x48xbf16, #tpu.memory_space<vmem>>, vector<1x48x48xbf16>
    %63 = vector.shape_cast %62 : vector<1x48x48xbf16> to vector<48x48xbf16>
    %cst_53 = arith.constant dense<0.000000e+00> : vector<1x48xf32>
    %64 = tpu.matmul %27, %63, %cst_53 {dimension_numbers = #tpu.dot_dimension_numbers<[1], [0], [0], [1], [0, 0, 1, 1], [], []>} : vector<1x48xbf16>, vector<48x48xbf16>, vector<1x48xf32> -> vector<1x48xf32>
    %c4_54 = arith.constant 4 : index
    %c0_55 = arith.constant 0 : index
    %c0_56 = arith.constant 0 : index
    %65 = vector.load %arg12[%c4_54, %c0_55, %c0_56] : memref<14x1x48xf32, #tpu.memory_space<vmem>>, vector<1x1x48xf32>
    %66 = vector.shape_cast %65 : vector<1x1x48xf32> to vector<1x48xf32>
    %67 = arith.addf %64, %66 : vector<1x48xf32>
    %c5 = arith.constant 5 : index
    %c0_57 = arith.constant 0 : index
    %c0_58 = arith.constant 0 : index
    %68 = vector.load %arg11[%c5, %c0_57, %c0_58] : memref<14x48x48xbf16, #tpu.memory_space<vmem>>, vector<1x48x48xbf16>
    %69 = vector.shape_cast %68 : vector<1x48x48xbf16> to vector<48x48xbf16>
    %cst_59 = arith.constant dense<0.000000e+00> : vector<1x48xf32>
    %70 = tpu.matmul %27, %69, %cst_59 {dimension_numbers = #tpu.dot_dimension_numbers<[1], [0], [0], [1], [0, 0, 1, 1], [], []>} : vector<1x48xbf16>, vector<48x48xbf16>, vector<1x48xf32> -> vector<1x48xf32>
    %c5_60 = arith.constant 5 : index
    %c0_61 = arith.constant 0 : index
    %c0_62 = arith.constant 0 : index
    %71 = vector.load %arg12[%c5_60, %c0_61, %c0_62] : memref<14x1x48xf32, #tpu.memory_space<vmem>>, vector<1x1x48xf32>
    %72 = vector.shape_cast %71 : vector<1x1x48xf32> to vector<1x48xf32>
    %73 = arith.addf %70, %72 : vector<1x48xf32>
    %cst_63 = arith.constant dense<0.000000e+00> : vector<64xf32>
    %74 = vector.multi_reduction <add>, %37, %cst_63 [1] : vector<64x48xf32> to vector<64xf32>
    %75 = vector.shape_cast %74 : vector<64xf32> to vector<64x1xf32>
    %cst_64 = arith.constant 4.800000e+01 : f32
    %76 = vector.broadcast %cst_64 : f32 to vector<64x1xf32>
    %77 = arith.divf %75, %76 : vector<64x1xf32>
    %78 = vector.broadcast %77 : vector<64x1xf32> to vector<64x48xf32>
    %79 = arith.subf %37, %78 : vector<64x48xf32>
    %80 = arith.mulf %79, %79 : vector<64x48xf32>
    %cst_65 = arith.constant dense<0.000000e+00> : vector<64xf32>
    %81 = vector.multi_reduction <add>, %80, %cst_65 [1] : vector<64x48xf32> to vector<64xf32>
    %82 = vector.shape_cast %81 : vector<64xf32> to vector<64x1xf32>
    %cst_66 = arith.constant 4.800000e+01 : f32
    %83 = vector.broadcast %cst_66 : f32 to vector<64x1xf32>
    %84 = arith.divf %82, %83 : vector<64x1xf32>
    %85 = vector.broadcast %77 : vector<64x1xf32> to vector<64x48xf32>
    %86 = arith.subf %37, %85 : vector<64x48xf32>
    %cst_67 = arith.constant 9.99999997E-7 : f32
    %87 = vector.broadcast %cst_67 : f32 to vector<64x1xf32>
    %88 = arith.addf %84, %87 : vector<64x1xf32>
    %89 = math.rsqrt %88 : vector<64x1xf32>
    %90 = vector.broadcast %89 : vector<64x1xf32> to vector<64x48xf32>
    %91 = arith.mulf %86, %90 : vector<64x48xf32>
    %cst_68 = arith.constant 1.000000e+00 : f32
    %92 = vector.broadcast %cst_68 : f32 to vector<1x48xf32>
    %93 = arith.addf %92, %49 : vector<1x48xf32>
    %94 = vector.broadcast %93 : vector<1x48xf32> to vector<64x48xf32>
    %95 = arith.mulf %91, %94 : vector<64x48xf32>
    %96 = vector.broadcast %43 : vector<1x48xf32> to vector<64x48xf32>
    %97 = arith.addf %95, %96 : vector<64x48xf32>
    %98 = arith.truncf %97 : vector<64x48xf32> to vector<64x48xbf16>
    %c0_69 = arith.constant 0 : index
    %c0_70 = arith.constant 0 : index
    %c0_71 = arith.constant 0 : index
    %99 = vector.load %arg13[%c0_69, %c0_70, %c0_71] : memref<2x48x144xbf16, #tpu.memory_space<vmem>>, vector<1x48x144xbf16>
    %100 = vector.shape_cast %99 : vector<1x48x144xbf16> to vector<48x144xbf16>
    %cst_72 = arith.constant dense<0.000000e+00> : vector<64x144xf32>
    %101 = tpu.matmul %98, %100, %cst_72 {dimension_numbers = #tpu.dot_dimension_numbers<[1], [0], [0], [1], [0, 0, 1, 1], [], []>} : vector<64x48xbf16>, vector<48x144xbf16>, vector<64x144xf32> -> vector<64x144xf32>
    %c0_73 = arith.constant 0 : index
    %c0_74 = arith.constant 0 : index
    %c0_75 = arith.constant 0 : index
    %102 = vector.load %arg14[%c0_73, %c0_74, %c0_75] : memref<2x1x144xf32, #tpu.memory_space<vmem>>, vector<1x1x144xf32>
    %103 = vector.shape_cast %102 : vector<1x1x144xf32> to vector<1x144xf32>
    %104 = vector.broadcast %103 : vector<1x144xf32> to vector<64x144xf32>
    %105 = arith.addf %101, %104 : vector<64x144xf32>
    %cst_76 = arith.constant 0.000000e+00 : f32
    %106 = vector.broadcast %cst_76 : f32 to vector<64x48xf32>
    %107 = vector.extract_strided_slice %105 {offsets = [0, 0], sizes = [64, 12], strides = [1, 1]} : vector<64x144xf32> to vector<64x12xf32>
    %108 = vector.extract_strided_slice %105 {offsets = [0, 48], sizes = [64, 12], strides = [1, 1]} : vector<64x144xf32> to vector<64x12xf32>
    %109 = vector.extract_strided_slice %105 {offsets = [0, 96], sizes = [64, 12], strides = [1, 1]} : vector<64x144xf32> to vector<64x12xf32>
    %cst_77 = arith.constant 0.288675129 : f32
    %110 = vector.broadcast %cst_77 : f32 to vector<64x12xf32>
    %111 = arith.mulf %107, %110 : vector<64x12xf32>
    %112 = arith.truncf %111 : vector<64x12xf32> to vector<64x12xbf16>
    %113 = arith.truncf %108 : vector<64x12xf32> to vector<64x12xbf16>
    %cst_78 = arith.constant dense<0.000000e+00> : vector<64x64xf32>
    %114 = tpu.matmul %112, %113, %cst_78 {dimension_numbers = #tpu.dot_dimension_numbers<[1], [1], [0], [0], [0, 0, 1, 0], [], []>} : vector<64x12xbf16>, vector<64x12xbf16>, vector<64x64xf32> -> vector<64x64xf32>
    %cst_79 = arith.constant dense<0xFF800000> : vector<64xf32>
    %115 = vector.multi_reduction <maximumf>, %114, %cst_79 [1] : vector<64x64xf32> to vector<64xf32>
    %116 = vector.shape_cast %115 : vector<64xf32> to vector<64x1xf32>
    %117 = vector.broadcast %116 : vector<64x1xf32> to vector<64x64xf32>
    %118 = arith.subf %114, %117 : vector<64x64xf32>
    %119 = math.exp %118 : vector<64x64xf32>
    %cst_80 = arith.constant dense<0.000000e+00> : vector<64xf32>
    %120 = vector.multi_reduction <add>, %119, %cst_80 [1] : vector<64x64xf32> to vector<64xf32>
    %121 = vector.shape_cast %120 : vector<64xf32> to vector<64x1xf32>
    %122 = tpu.reciprocal %121 {approx = true} : vector<64x1xf32> -> vector<64x1xf32>
    %123 = vector.broadcast %122 : vector<64x1xf32> to vector<64x64xf32>
    %124 = arith.mulf %119, %123 : vector<64x64xf32>
    %125 = arith.truncf %124 : vector<64x64xf32> to vector<64x64xbf16>
    %126 = arith.truncf %109 : vector<64x12xf32> to vector<64x12xbf16>
    %cst_81 = arith.constant dense<0.000000e+00> : vector<64x12xf32>
    %127 = tpu.matmul %125, %126, %cst_81 {dimension_numbers = #tpu.dot_dimension_numbers<[1], [0], [0], [1], [0, 0, 1, 1], [], []>} : vector<64x64xbf16>, vector<64x12xbf16>, vector<64x12xf32> -> vector<64x12xf32>
    %128 = arith.truncf %127 : vector<64x12xf32> to vector<64x12xbf16>
    %c0_82 = arith.constant 0 : index
    %c0_83 = arith.constant 0 : index
    %c0_84 = arith.constant 0 : index
    %c0_85 = arith.constant 0 : index
    %129 = vector.load %arg15[%c0_82, %c0_83, %c0_84, %c0_85] : memref<2x4x12x48xbf16, #tpu.memory_space<vmem>>, vector<1x1x12x48xbf16>
    %130 = vector.shape_cast %129 : vector<1x1x12x48xbf16> to vector<12x48xbf16>
    %cst_86 = arith.constant dense<0.000000e+00> : vector<64x48xf32>
    %131 = tpu.matmul %128, %130, %cst_86 {dimension_numbers = #tpu.dot_dimension_numbers<[1], [0], [0], [1], [0, 0, 1, 1], [], []>} : vector<64x12xbf16>, vector<12x48xbf16>, vector<64x48xf32> -> vector<64x48xf32>
    %132 = arith.addf %106, %131 : vector<64x48xf32>
    %133 = vector.extract_strided_slice %105 {offsets = [0, 12], sizes = [64, 12], strides = [1, 1]} : vector<64x144xf32> to vector<64x12xf32>
    %134 = vector.extract_strided_slice %105 {offsets = [0, 60], sizes = [64, 12], strides = [1, 1]} : vector<64x144xf32> to vector<64x12xf32>
    %135 = vector.extract_strided_slice %105 {offsets = [0, 108], sizes = [64, 12], strides = [1, 1]} : vector<64x144xf32> to vector<64x12xf32>
    %cst_87 = arith.constant 0.288675129 : f32
    %136 = vector.broadcast %cst_87 : f32 to vector<64x12xf32>
    %137 = arith.mulf %133, %136 : vector<64x12xf32>
    %138 = arith.truncf %137 : vector<64x12xf32> to vector<64x12xbf16>
    %139 = arith.truncf %134 : vector<64x12xf32> to vector<64x12xbf16>
    %cst_88 = arith.constant dense<0.000000e+00> : vector<64x64xf32>
    %140 = tpu.matmul %138, %139, %cst_88 {dimension_numbers = #tpu.dot_dimension_numbers<[1], [1], [0], [0], [0, 0, 1, 0], [], []>} : vector<64x12xbf16>, vector<64x12xbf16>, vector<64x64xf32> -> vector<64x64xf32>
    %cst_89 = arith.constant dense<0xFF800000> : vector<64xf32>
    %141 = vector.multi_reduction <maximumf>, %140, %cst_89 [1] : vector<64x64xf32> to vector<64xf32>
    %142 = vector.shape_cast %141 : vector<64xf32> to vector<64x1xf32>
    %143 = vector.broadcast %142 : vector<64x1xf32> to vector<64x64xf32>
    %144 = arith.subf %140, %143 : vector<64x64xf32>
    %145 = math.exp %144 : vector<64x64xf32>
    %cst_90 = arith.constant dense<0.000000e+00> : vector<64xf32>
    %146 = vector.multi_reduction <add>, %145, %cst_90 [1] : vector<64x64xf32> to vector<64xf32>
    %147 = vector.shape_cast %146 : vector<64xf32> to vector<64x1xf32>
    %148 = tpu.reciprocal %147 {approx = true} : vector<64x1xf32> -> vector<64x1xf32>
    %149 = vector.broadcast %148 : vector<64x1xf32> to vector<64x64xf32>
    %150 = arith.mulf %145, %149 : vector<64x64xf32>
    %151 = arith.truncf %150 : vector<64x64xf32> to vector<64x64xbf16>
    %152 = arith.truncf %135 : vector<64x12xf32> to vector<64x12xbf16>
    %cst_91 = arith.constant dense<0.000000e+00> : vector<64x12xf32>
    %153 = tpu.matmul %151, %152, %cst_91 {dimension_numbers = #tpu.dot_dimension_numbers<[1], [0], [0], [1], [0, 0, 1, 1], [], []>} : vector<64x64xbf16>, vector<64x12xbf16>, vector<64x12xf32> -> vector<64x12xf32>
    %154 = arith.truncf %153 : vector<64x12xf32> to vector<64x12xbf16>
    %c0_92 = arith.constant 0 : index
    %c1_93 = arith.constant 1 : index
    %c0_94 = arith.constant 0 : index
    %c0_95 = arith.constant 0 : index
    %155 = vector.load %arg15[%c0_92, %c1_93, %c0_94, %c0_95] : memref<2x4x12x48xbf16, #tpu.memory_space<vmem>>, vector<1x1x12x48xbf16>
    %156 = vector.shape_cast %155 : vector<1x1x12x48xbf16> to vector<12x48xbf16>
    %cst_96 = arith.constant dense<0.000000e+00> : vector<64x48xf32>
    %157 = tpu.matmul %154, %156, %cst_96 {dimension_numbers = #tpu.dot_dimension_numbers<[1], [0], [0], [1], [0, 0, 1, 1], [], []>} : vector<64x12xbf16>, vector<12x48xbf16>, vector<64x48xf32> -> vector<64x48xf32>
    %158 = arith.addf %132, %157 : vector<64x48xf32>
    %159 = vector.extract_strided_slice %105 {offsets = [0, 24], sizes = [64, 12], strides = [1, 1]} : vector<64x144xf32> to vector<64x12xf32>
    %160 = vector.extract_strided_slice %105 {offsets = [0, 72], sizes = [64, 12], strides = [1, 1]} : vector<64x144xf32> to vector<64x12xf32>
    %161 = vector.extract_strided_slice %105 {offsets = [0, 120], sizes = [64, 12], strides = [1, 1]} : vector<64x144xf32> to vector<64x12xf32>
    %cst_97 = arith.constant 0.288675129 : f32
    %162 = vector.broadcast %cst_97 : f32 to vector<64x12xf32>
    %163 = arith.mulf %159, %162 : vector<64x12xf32>
    %164 = arith.truncf %163 : vector<64x12xf32> to vector<64x12xbf16>
    %165 = arith.truncf %160 : vector<64x12xf32> to vector<64x12xbf16>
    %cst_98 = arith.constant dense<0.000000e+00> : vector<64x64xf32>
    %166 = tpu.matmul %164, %165, %cst_98 {dimension_numbers = #tpu.dot_dimension_numbers<[1], [1], [0], [0], [0, 0, 1, 0], [], []>} : vector<64x12xbf16>, vector<64x12xbf16>, vector<64x64xf32> -> vector<64x64xf32>
    %cst_99 = arith.constant dense<0xFF800000> : vector<64xf32>
    %167 = vector.multi_reduction <maximumf>, %166, %cst_99 [1] : vector<64x64xf32> to vector<64xf32>
    %168 = vector.shape_cast %167 : vector<64xf32> to vector<64x1xf32>
    %169 = vector.broadcast %168 : vector<64x1xf32> to vector<64x64xf32>
    %170 = arith.subf %166, %169 : vector<64x64xf32>
    %171 = math.exp %170 : vector<64x64xf32>
    %cst_100 = arith.constant dense<0.000000e+00> : vector<64xf32>
    %172 = vector.multi_reduction <add>, %171, %cst_100 [1] : vector<64x64xf32> to vector<64xf32>
    %173 = vector.shape_cast %172 : vector<64xf32> to vector<64x1xf32>
    %174 = tpu.reciprocal %173 {approx = true} : vector<64x1xf32> -> vector<64x1xf32>
    %175 = vector.broadcast %174 : vector<64x1xf32> to vector<64x64xf32>
    %176 = arith.mulf %171, %175 : vector<64x64xf32>
    %177 = arith.truncf %176 : vector<64x64xf32> to vector<64x64xbf16>
    %178 = arith.truncf %161 : vector<64x12xf32> to vector<64x12xbf16>
    %cst_101 = arith.constant dense<0.000000e+00> : vector<64x12xf32>
    %179 = tpu.matmul %177, %178, %cst_101 {dimension_numbers = #tpu.dot_dimension_numbers<[1], [0], [0], [1], [0, 0, 1, 1], [], []>} : vector<64x64xbf16>, vector<64x12xbf16>, vector<64x12xf32> -> vector<64x12xf32>
    %180 = arith.truncf %179 : vector<64x12xf32> to vector<64x12xbf16>
    %c0_102 = arith.constant 0 : index
    %c2_103 = arith.constant 2 : index
    %c0_104 = arith.constant 0 : index
    %c0_105 = arith.constant 0 : index
    %181 = vector.load %arg15[%c0_102, %c2_103, %c0_104, %c0_105] : memref<2x4x12x48xbf16, #tpu.memory_space<vmem>>, vector<1x1x12x48xbf16>
    %182 = vector.shape_cast %181 : vector<1x1x12x48xbf16> to vector<12x48xbf16>
    %cst_106 = arith.constant dense<0.000000e+00> : vector<64x48xf32>
    %183 = tpu.matmul %180, %182, %cst_106 {dimension_numbers = #tpu.dot_dimension_numbers<[1], [0], [0], [1], [0, 0, 1, 1], [], []>} : vector<64x12xbf16>, vector<12x48xbf16>, vector<64x48xf32> -> vector<64x48xf32>
    %184 = arith.addf %158, %183 : vector<64x48xf32>
    %185 = vector.extract_strided_slice %105 {offsets = [0, 36], sizes = [64, 12], strides = [1, 1]} : vector<64x144xf32> to vector<64x12xf32>
    %186 = vector.extract_strided_slice %105 {offsets = [0, 84], sizes = [64, 12], strides = [1, 1]} : vector<64x144xf32> to vector<64x12xf32>
    %187 = vector.extract_strided_slice %105 {offsets = [0, 132], sizes = [64, 12], strides = [1, 1]} : vector<64x144xf32> to vector<64x12xf32>
    %cst_107 = arith.constant 0.288675129 : f32
    %188 = vector.broadcast %cst_107 : f32 to vector<64x12xf32>
    %189 = arith.mulf %185, %188 : vector<64x12xf32>
    %190 = arith.truncf %189 : vector<64x12xf32> to vector<64x12xbf16>
    %191 = arith.truncf %186 : vector<64x12xf32> to vector<64x12xbf16>
    %cst_108 = arith.constant dense<0.000000e+00> : vector<64x64xf32>
    %192 = tpu.matmul %190, %191, %cst_108 {dimension_numbers = #tpu.dot_dimension_numbers<[1], [1], [0], [0], [0, 0, 1, 0], [], []>} : vector<64x12xbf16>, vector<64x12xbf16>, vector<64x64xf32> -> vector<64x64xf32>
    %cst_109 = arith.constant dense<0xFF800000> : vector<64xf32>
    %193 = vector.multi_reduction <maximumf>, %192, %cst_109 [1] : vector<64x64xf32> to vector<64xf32>
    %194 = vector.shape_cast %193 : vector<64xf32> to vector<64x1xf32>
    %195 = vector.broadcast %194 : vector<64x1xf32> to vector<64x64xf32>
    %196 = arith.subf %192, %195 : vector<64x64xf32>
    %197 = math.exp %196 : vector<64x64xf32>
    %cst_110 = arith.constant dense<0.000000e+00> : vector<64xf32>
    %198 = vector.multi_reduction <add>, %197, %cst_110 [1] : vector<64x64xf32> to vector<64xf32>
    %199 = vector.shape_cast %198 : vector<64xf32> to vector<64x1xf32>
    %200 = tpu.reciprocal %199 {approx = true} : vector<64x1xf32> -> vector<64x1xf32>
    %201 = vector.broadcast %200 : vector<64x1xf32> to vector<64x64xf32>
    %202 = arith.mulf %197, %201 : vector<64x64xf32>
    %203 = arith.truncf %202 : vector<64x64xf32> to vector<64x64xbf16>
    %204 = arith.truncf %187 : vector<64x12xf32> to vector<64x12xbf16>
    %cst_111 = arith.constant dense<0.000000e+00> : vector<64x12xf32>
    %205 = tpu.matmul %203, %204, %cst_111 {dimension_numbers = #tpu.dot_dimension_numbers<[1], [0], [0], [1], [0, 0, 1, 1], [], []>} : vector<64x64xbf16>, vector<64x12xbf16>, vector<64x12xf32> -> vector<64x12xf32>
    %206 = arith.truncf %205 : vector<64x12xf32> to vector<64x12xbf16>
    %c0_112 = arith.constant 0 : index
    %c3_113 = arith.constant 3 : index
    %c0_114 = arith.constant 0 : index
    %c0_115 = arith.constant 0 : index
    %207 = vector.load %arg15[%c0_112, %c3_113, %c0_114, %c0_115] : memref<2x4x12x48xbf16, #tpu.memory_space<vmem>>, vector<1x1x12x48xbf16>
    %208 = vector.shape_cast %207 : vector<1x1x12x48xbf16> to vector<12x48xbf16>
    %cst_116 = arith.constant dense<0.000000e+00> : vector<64x48xf32>
    %209 = tpu.matmul %206, %208, %cst_116 {dimension_numbers = #tpu.dot_dimension_numbers<[1], [0], [0], [1], [0, 0, 1, 1], [], []>} : vector<64x12xbf16>, vector<12x48xbf16>, vector<64x48xf32> -> vector<64x48xf32>
    %210 = arith.addf %184, %209 : vector<64x48xf32>
    %c0_117 = arith.constant 0 : index
    %c0_118 = arith.constant 0 : index
    %c0_119 = arith.constant 0 : index
    %211 = vector.load %arg16[%c0_117, %c0_118, %c0_119] : memref<2x1x48xf32, #tpu.memory_space<vmem>>, vector<1x1x48xf32>
    %212 = vector.shape_cast %211 : vector<1x1x48xf32> to vector<1x48xf32>
    %213 = vector.broadcast %212 : vector<1x48xf32> to vector<64x48xf32>
    %214 = arith.addf %210, %213 : vector<64x48xf32>
    %215 = vector.broadcast %55 : vector<1x48xf32> to vector<64x48xf32>
    %216 = arith.mulf %215, %214 : vector<64x48xf32>
    %217 = arith.addf %37, %216 : vector<64x48xf32>
    %cst_120 = arith.constant dense<0.000000e+00> : vector<64xf32>
    %218 = vector.multi_reduction <add>, %217, %cst_120 [1] : vector<64x48xf32> to vector<64xf32>
    %219 = vector.shape_cast %218 : vector<64xf32> to vector<64x1xf32>
    %cst_121 = arith.constant 4.800000e+01 : f32
    %220 = vector.broadcast %cst_121 : f32 to vector<64x1xf32>
    %221 = arith.divf %219, %220 : vector<64x1xf32>
    %222 = vector.broadcast %221 : vector<64x1xf32> to vector<64x48xf32>
    %223 = arith.subf %217, %222 : vector<64x48xf32>
    %224 = arith.mulf %223, %223 : vector<64x48xf32>
    %cst_122 = arith.constant dense<0.000000e+00> : vector<64xf32>
    %225 = vector.multi_reduction <add>, %224, %cst_122 [1] : vector<64x48xf32> to vector<64xf32>
    %226 = vector.shape_cast %225 : vector<64xf32> to vector<64x1xf32>
    %cst_123 = arith.constant 4.800000e+01 : f32
    %227 = vector.broadcast %cst_123 : f32 to vector<64x1xf32>
    %228 = arith.divf %226, %227 : vector<64x1xf32>
    %229 = vector.broadcast %221 : vector<64x1xf32> to vector<64x48xf32>
    %230 = arith.subf %217, %229 : vector<64x48xf32>
    %cst_124 = arith.constant 9.99999997E-7 : f32
    %231 = vector.broadcast %cst_124 : f32 to vector<64x1xf32>
    %232 = arith.addf %228, %231 : vector<64x1xf32>
    %233 = math.rsqrt %232 : vector<64x1xf32>
    %234 = vector.broadcast %233 : vector<64x1xf32> to vector<64x48xf32>
    %235 = arith.mulf %230, %234 : vector<64x48xf32>
    %cst_125 = arith.constant 1.000000e+00 : f32
    %236 = vector.broadcast %cst_125 : f32 to vector<1x48xf32>
    %237 = arith.addf %236, %67 : vector<1x48xf32>
    %238 = vector.broadcast %237 : vector<1x48xf32> to vector<64x48xf32>
    %239 = arith.mulf %235, %238 : vector<64x48xf32>
    %240 = vector.broadcast %61 : vector<1x48xf32> to vector<64x48xf32>
    %241 = arith.addf %239, %240 : vector<64x48xf32>
    %242 = arith.truncf %241 : vector<64x48xf32> to vector<64x48xbf16>
    %c0_126 = arith.constant 0 : index
    %c0_127 = arith.constant 0 : index
    %c0_128 = arith.constant 0 : index
    %243 = vector.load %arg17[%c0_126, %c0_127, %c0_128] : memref<2x48x192xbf16, #tpu.memory_space<vmem>>, vector<1x48x192xbf16>
    %244 = vector.shape_cast %243 : vector<1x48x192xbf16> to vector<48x192xbf16>
    %cst_129 = arith.constant dense<0.000000e+00> : vector<64x192xf32>
    %245 = tpu.matmul %242, %244, %cst_129 {dimension_numbers = #tpu.dot_dimension_numbers<[1], [0], [0], [1], [0, 0, 1, 1], [], []>} : vector<64x48xbf16>, vector<48x192xbf16>, vector<64x192xf32> -> vector<64x192xf32>
    %c0_130 = arith.constant 0 : index
    %c0_131 = arith.constant 0 : index
    %c0_132 = arith.constant 0 : index
    %246 = vector.load %arg18[%c0_130, %c0_131, %c0_132] : memref<2x1x192xf32, #tpu.memory_space<vmem>>, vector<1x1x192xf32>
    %247 = vector.shape_cast %246 : vector<1x1x192xf32> to vector<1x192xf32>
    %248 = vector.broadcast %247 : vector<1x192xf32> to vector<64x192xf32>
    %249 = arith.addf %245, %248 : vector<64x192xf32>
    %250 = arith.mulf %249, %249 : vector<64x192xf32>
    %251 = arith.mulf %249, %250 : vector<64x192xf32>
    %cst_133 = arith.constant 4.471500e-02 : f32
    %252 = vector.broadcast %cst_133 : f32 to vector<64x192xf32>
    %253 = arith.mulf %252, %251 : vector<64x192xf32>
    %254 = arith.addf %249, %253 : vector<64x192xf32>
    %cst_134 = arith.constant 0.797884583 : f32
    %255 = vector.broadcast %cst_134 : f32 to vector<64x192xf32>
    %256 = arith.mulf %255, %254 : vector<64x192xf32>
    %257 = math.tanh %256 : vector<64x192xf32>
    %cst_135 = arith.constant 1.000000e+00 : f32
    %258 = vector.broadcast %cst_135 : f32 to vector<64x192xf32>
    %259 = arith.addf %258, %257 : vector<64x192xf32>
    %cst_136 = arith.constant 5.000000e-01 : f32
    %260 = vector.broadcast %cst_136 : f32 to vector<64x192xf32>
    %261 = arith.mulf %260, %259 : vector<64x192xf32>
    %262 = arith.mulf %249, %261 : vector<64x192xf32>
    %263 = arith.truncf %262 : vector<64x192xf32> to vector<64x192xbf16>
    %c0_137 = arith.constant 0 : index
    %c0_138 = arith.constant 0 : index
    %c0_139 = arith.constant 0 : index
    %264 = vector.load %arg19[%c0_137, %c0_138, %c0_139] : memref<2x192x48xbf16, #tpu.memory_space<vmem>>, vector<1x192x48xbf16>
    %265 = vector.shape_cast %264 : vector<1x192x48xbf16> to vector<192x48xbf16>
    %cst_140 = arith.constant dense<0.000000e+00> : vector<64x48xf32>
    %266 = tpu.matmul %263, %265, %cst_140 {dimension_numbers = #tpu.dot_dimension_numbers<[1], [0], [0], [1], [0, 0, 1, 1], [], []>} : vector<64x192xbf16>, vector<192x48xbf16>, vector<64x48xf32> -> vector<64x48xf32>
    %c0_141 = arith.constant 0 : index
    %c0_142 = arith.constant 0 : index
    %c0_143 = arith.constant 0 : index
    %267 = vector.load %arg20[%c0_141, %c0_142, %c0_143] : memref<2x1x48xf32, #tpu.memory_space<vmem>>, vector<1x1x48xf32>
    %268 = vector.shape_cast %267 : vector<1x1x48xf32> to vector<1x48xf32>
    %269 = vector.broadcast %268 : vector<1x48xf32> to vector<64x48xf32>
    %270 = arith.addf %266, %269 : vector<64x48xf32>
    %271 = vector.broadcast %73 : vector<1x48xf32> to vector<64x48xf32>
    %272 = arith.mulf %271, %270 : vector<64x48xf32>
    %273 = arith.addf %217, %272 : vector<64x48xf32>
    %c6 = arith.constant 6 : index
    %c0_144 = arith.constant 0 : index
    %c0_145 = arith.constant 0 : index
    %274 = vector.load %arg11[%c6, %c0_144, %c0_145] : memref<14x48x48xbf16, #tpu.memory_space<vmem>>, vector<1x48x48xbf16>
    %275 = vector.shape_cast %274 : vector<1x48x48xbf16> to vector<48x48xbf16>
    %cst_146 = arith.constant dense<0.000000e+00> : vector<1x48xf32>
    %276 = tpu.matmul %27, %275, %cst_146 {dimension_numbers = #tpu.dot_dimension_numbers<[1], [0], [0], [1], [0, 0, 1, 1], [], []>} : vector<1x48xbf16>, vector<48x48xbf16>, vector<1x48xf32> -> vector<1x48xf32>
    %c6_147 = arith.constant 6 : index
    %c0_148 = arith.constant 0 : index
    %c0_149 = arith.constant 0 : index
    %277 = vector.load %arg12[%c6_147, %c0_148, %c0_149] : memref<14x1x48xf32, #tpu.memory_space<vmem>>, vector<1x1x48xf32>
    %278 = vector.shape_cast %277 : vector<1x1x48xf32> to vector<1x48xf32>
    %279 = arith.addf %276, %278 : vector<1x48xf32>
    %c7 = arith.constant 7 : index
    %c0_150 = arith.constant 0 : index
    %c0_151 = arith.constant 0 : index
    %280 = vector.load %arg11[%c7, %c0_150, %c0_151] : memref<14x48x48xbf16, #tpu.memory_space<vmem>>, vector<1x48x48xbf16>
    %281 = vector.shape_cast %280 : vector<1x48x48xbf16> to vector<48x48xbf16>
    %cst_152 = arith.constant dense<0.000000e+00> : vector<1x48xf32>
    %282 = tpu.matmul %27, %281, %cst_152 {dimension_numbers = #tpu.dot_dimension_numbers<[1], [0], [0], [1], [0, 0, 1, 1], [], []>} : vector<1x48xbf16>, vector<48x48xbf16>, vector<1x48xf32> -> vector<1x48xf32>
    %c7_153 = arith.constant 7 : index
    %c0_154 = arith.constant 0 : index
    %c0_155 = arith.constant 0 : index
    %283 = vector.load %arg12[%c7_153, %c0_154, %c0_155] : memref<14x1x48xf32, #tpu.memory_space<vmem>>, vector<1x1x48xf32>
    %284 = vector.shape_cast %283 : vector<1x1x48xf32> to vector<1x48xf32>
    %285 = arith.addf %282, %284 : vector<1x48xf32>
    %c8 = arith.constant 8 : index
    %c0_156 = arith.constant 0 : index
    %c0_157 = arith.constant 0 : index
    %286 = vector.load %arg11[%c8, %c0_156, %c0_157] : memref<14x48x48xbf16, #tpu.memory_space<vmem>>, vector<1x48x48xbf16>
    %287 = vector.shape_cast %286 : vector<1x48x48xbf16> to vector<48x48xbf16>
    %cst_158 = arith.constant dense<0.000000e+00> : vector<1x48xf32>
    %288 = tpu.matmul %27, %287, %cst_158 {dimension_numbers = #tpu.dot_dimension_numbers<[1], [0], [0], [1], [0, 0, 1, 1], [], []>} : vector<1x48xbf16>, vector<48x48xbf16>, vector<1x48xf32> -> vector<1x48xf32>
    %c8_159 = arith.constant 8 : index
    %c0_160 = arith.constant 0 : index
    %c0_161 = arith.constant 0 : index
    %289 = vector.load %arg12[%c8_159, %c0_160, %c0_161] : memref<14x1x48xf32, #tpu.memory_space<vmem>>, vector<1x1x48xf32>
    %290 = vector.shape_cast %289 : vector<1x1x48xf32> to vector<1x48xf32>
    %291 = arith.addf %288, %290 : vector<1x48xf32>
    %c9 = arith.constant 9 : index
    %c0_162 = arith.constant 0 : index
    %c0_163 = arith.constant 0 : index
    %292 = vector.load %arg11[%c9, %c0_162, %c0_163] : memref<14x48x48xbf16, #tpu.memory_space<vmem>>, vector<1x48x48xbf16>
    %293 = vector.shape_cast %292 : vector<1x48x48xbf16> to vector<48x48xbf16>
    %cst_164 = arith.constant dense<0.000000e+00> : vector<1x48xf32>
    %294 = tpu.matmul %27, %293, %cst_164 {dimension_numbers = #tpu.dot_dimension_numbers<[1], [0], [0], [1], [0, 0, 1, 1], [], []>} : vector<1x48xbf16>, vector<48x48xbf16>, vector<1x48xf32> -> vector<1x48xf32>
    %c9_165 = arith.constant 9 : index
    %c0_166 = arith.constant 0 : index
    %c0_167 = arith.constant 0 : index
    %295 = vector.load %arg12[%c9_165, %c0_166, %c0_167] : memref<14x1x48xf32, #tpu.memory_space<vmem>>, vector<1x1x48xf32>
    %296 = vector.shape_cast %295 : vector<1x1x48xf32> to vector<1x48xf32>
    %297 = arith.addf %294, %296 : vector<1x48xf32>
    %c10 = arith.constant 10 : index
    %c0_168 = arith.constant 0 : index
    %c0_169 = arith.constant 0 : index
    %298 = vector.load %arg11[%c10, %c0_168, %c0_169] : memref<14x48x48xbf16, #tpu.memory_space<vmem>>, vector<1x48x48xbf16>
    %299 = vector.shape_cast %298 : vector<1x48x48xbf16> to vector<48x48xbf16>
    %cst_170 = arith.constant dense<0.000000e+00> : vector<1x48xf32>
    %300 = tpu.matmul %27, %299, %cst_170 {dimension_numbers = #tpu.dot_dimension_numbers<[1], [0], [0], [1], [0, 0, 1, 1], [], []>} : vector<1x48xbf16>, vector<48x48xbf16>, vector<1x48xf32> -> vector<1x48xf32>
    %c10_171 = arith.constant 10 : index
    %c0_172 = arith.constant 0 : index
    %c0_173 = arith.constant 0 : index
    %301 = vector.load %arg12[%c10_171, %c0_172, %c0_173] : memref<14x1x48xf32, #tpu.memory_space<vmem>>, vector<1x1x48xf32>
    %302 = vector.shape_cast %301 : vector<1x1x48xf32> to vector<1x48xf32>
    %303 = arith.addf %300, %302 : vector<1x48xf32>
    %c11 = arith.constant 11 : index
    %c0_174 = arith.constant 0 : index
    %c0_175 = arith.constant 0 : index
    %304 = vector.load %arg11[%c11, %c0_174, %c0_175] : memref<14x48x48xbf16, #tpu.memory_space<vmem>>, vector<1x48x48xbf16>
    %305 = vector.shape_cast %304 : vector<1x48x48xbf16> to vector<48x48xbf16>
    %cst_176 = arith.constant dense<0.000000e+00> : vector<1x48xf32>
    %306 = tpu.matmul %27, %305, %cst_176 {dimension_numbers = #tpu.dot_dimension_numbers<[1], [0], [0], [1], [0, 0, 1, 1], [], []>} : vector<1x48xbf16>, vector<48x48xbf16>, vector<1x48xf32> -> vector<1x48xf32>
    %c11_177 = arith.constant 11 : index
    %c0_178 = arith.constant 0 : index
    %c0_179 = arith.constant 0 : index
    %307 = vector.load %arg12[%c11_177, %c0_178, %c0_179] : memref<14x1x48xf32, #tpu.memory_space<vmem>>, vector<1x1x48xf32>
    %308 = vector.shape_cast %307 : vector<1x1x48xf32> to vector<1x48xf32>
    %309 = arith.addf %306, %308 : vector<1x48xf32>
    %cst_180 = arith.constant dense<0.000000e+00> : vector<64xf32>
    %310 = vector.multi_reduction <add>, %273, %cst_180 [1] : vector<64x48xf32> to vector<64xf32>
    %311 = vector.shape_cast %310 : vector<64xf32> to vector<64x1xf32>
    %cst_181 = arith.constant 4.800000e+01 : f32
    %312 = vector.broadcast %cst_181 : f32 to vector<64x1xf32>
    %313 = arith.divf %311, %312 : vector<64x1xf32>
    %314 = vector.broadcast %313 : vector<64x1xf32> to vector<64x48xf32>
    %315 = arith.subf %273, %314 : vector<64x48xf32>
    %316 = arith.mulf %315, %315 : vector<64x48xf32>
    %cst_182 = arith.constant dense<0.000000e+00> : vector<64xf32>
    %317 = vector.multi_reduction <add>, %316, %cst_182 [1] : vector<64x48xf32> to vector<64xf32>
    %318 = vector.shape_cast %317 : vector<64xf32> to vector<64x1xf32>
    %cst_183 = arith.constant 4.800000e+01 : f32
    %319 = vector.broadcast %cst_183 : f32 to vector<64x1xf32>
    %320 = arith.divf %318, %319 : vector<64x1xf32>
    %321 = vector.broadcast %313 : vector<64x1xf32> to vector<64x48xf32>
    %322 = arith.subf %273, %321 : vector<64x48xf32>
    %cst_184 = arith.constant 9.99999997E-7 : f32
    %323 = vector.broadcast %cst_184 : f32 to vector<64x1xf32>
    %324 = arith.addf %320, %323 : vector<64x1xf32>
    %325 = math.rsqrt %324 : vector<64x1xf32>
    %326 = vector.broadcast %325 : vector<64x1xf32> to vector<64x48xf32>
    %327 = arith.mulf %322, %326 : vector<64x48xf32>
    %cst_185 = arith.constant 1.000000e+00 : f32
    %328 = vector.broadcast %cst_185 : f32 to vector<1x48xf32>
    %329 = arith.addf %328, %285 : vector<1x48xf32>
    %330 = vector.broadcast %329 : vector<1x48xf32> to vector<64x48xf32>
    %331 = arith.mulf %327, %330 : vector<64x48xf32>
    %332 = vector.broadcast %279 : vector<1x48xf32> to vector<64x48xf32>
    %333 = arith.addf %331, %332 : vector<64x48xf32>
    %334 = arith.truncf %333 : vector<64x48xf32> to vector<64x48xbf16>
    %c1_186 = arith.constant 1 : index
    %c0_187 = arith.constant 0 : index
    %c0_188 = arith.constant 0 : index
    %335 = vector.load %arg13[%c1_186, %c0_187, %c0_188] : memref<2x48x144xbf16, #tpu.memory_space<vmem>>, vector<1x48x144xbf16>
    %336 = vector.shape_cast %335 : vector<1x48x144xbf16> to vector<48x144xbf16>
    %cst_189 = arith.constant dense<0.000000e+00> : vector<64x144xf32>
    %337 = tpu.matmul %334, %336, %cst_189 {dimension_numbers = #tpu.dot_dimension_numbers<[1], [0], [0], [1], [0, 0, 1, 1], [], []>} : vector<64x48xbf16>, vector<48x144xbf16>, vector<64x144xf32> -> vector<64x144xf32>
    %c1_190 = arith.constant 1 : index
    %c0_191 = arith.constant 0 : index
    %c0_192 = arith.constant 0 : index
    %338 = vector.load %arg14[%c1_190, %c0_191, %c0_192] : memref<2x1x144xf32, #tpu.memory_space<vmem>>, vector<1x1x144xf32>
    %339 = vector.shape_cast %338 : vector<1x1x144xf32> to vector<1x144xf32>
    %340 = vector.broadcast %339 : vector<1x144xf32> to vector<64x144xf32>
    %341 = arith.addf %337, %340 : vector<64x144xf32>
    %cst_193 = arith.constant 0.000000e+00 : f32
    %342 = vector.broadcast %cst_193 : f32 to vector<64x48xf32>
    %343 = vector.extract_strided_slice %341 {offsets = [0, 0], sizes = [64, 12], strides = [1, 1]} : vector<64x144xf32> to vector<64x12xf32>
    %344 = vector.extract_strided_slice %341 {offsets = [0, 48], sizes = [64, 12], strides = [1, 1]} : vector<64x144xf32> to vector<64x12xf32>
    %345 = vector.extract_strided_slice %341 {offsets = [0, 96], sizes = [64, 12], strides = [1, 1]} : vector<64x144xf32> to vector<64x12xf32>
    %cst_194 = arith.constant 0.288675129 : f32
    %346 = vector.broadcast %cst_194 : f32 to vector<64x12xf32>
    %347 = arith.mulf %343, %346 : vector<64x12xf32>
    %348 = arith.truncf %347 : vector<64x12xf32> to vector<64x12xbf16>
    %349 = arith.truncf %344 : vector<64x12xf32> to vector<64x12xbf16>
    %cst_195 = arith.constant dense<0.000000e+00> : vector<64x64xf32>
    %350 = tpu.matmul %348, %349, %cst_195 {dimension_numbers = #tpu.dot_dimension_numbers<[1], [1], [0], [0], [0, 0, 1, 0], [], []>} : vector<64x12xbf16>, vector<64x12xbf16>, vector<64x64xf32> -> vector<64x64xf32>
    %cst_196 = arith.constant dense<0xFF800000> : vector<64xf32>
    %351 = vector.multi_reduction <maximumf>, %350, %cst_196 [1] : vector<64x64xf32> to vector<64xf32>
    %352 = vector.shape_cast %351 : vector<64xf32> to vector<64x1xf32>
    %353 = vector.broadcast %352 : vector<64x1xf32> to vector<64x64xf32>
    %354 = arith.subf %350, %353 : vector<64x64xf32>
    %355 = math.exp %354 : vector<64x64xf32>
    %cst_197 = arith.constant dense<0.000000e+00> : vector<64xf32>
    %356 = vector.multi_reduction <add>, %355, %cst_197 [1] : vector<64x64xf32> to vector<64xf32>
    %357 = vector.shape_cast %356 : vector<64xf32> to vector<64x1xf32>
    %358 = tpu.reciprocal %357 {approx = true} : vector<64x1xf32> -> vector<64x1xf32>
    %359 = vector.broadcast %358 : vector<64x1xf32> to vector<64x64xf32>
    %360 = arith.mulf %355, %359 : vector<64x64xf32>
    %361 = arith.truncf %360 : vector<64x64xf32> to vector<64x64xbf16>
    %362 = arith.truncf %345 : vector<64x12xf32> to vector<64x12xbf16>
    %cst_198 = arith.constant dense<0.000000e+00> : vector<64x12xf32>
    %363 = tpu.matmul %361, %362, %cst_198 {dimension_numbers = #tpu.dot_dimension_numbers<[1], [0], [0], [1], [0, 0, 1, 1], [], []>} : vector<64x64xbf16>, vector<64x12xbf16>, vector<64x12xf32> -> vector<64x12xf32>
    %364 = arith.truncf %363 : vector<64x12xf32> to vector<64x12xbf16>
    %c1_199 = arith.constant 1 : index
    %c0_200 = arith.constant 0 : index
    %c0_201 = arith.constant 0 : index
    %c0_202 = arith.constant 0 : index
    %365 = vector.load %arg15[%c1_199, %c0_200, %c0_201, %c0_202] : memref<2x4x12x48xbf16, #tpu.memory_space<vmem>>, vector<1x1x12x48xbf16>
    %366 = vector.shape_cast %365 : vector<1x1x12x48xbf16> to vector<12x48xbf16>
    %cst_203 = arith.constant dense<0.000000e+00> : vector<64x48xf32>
    %367 = tpu.matmul %364, %366, %cst_203 {dimension_numbers = #tpu.dot_dimension_numbers<[1], [0], [0], [1], [0, 0, 1, 1], [], []>} : vector<64x12xbf16>, vector<12x48xbf16>, vector<64x48xf32> -> vector<64x48xf32>
    %368 = arith.addf %342, %367 : vector<64x48xf32>
    %369 = vector.extract_strided_slice %341 {offsets = [0, 12], sizes = [64, 12], strides = [1, 1]} : vector<64x144xf32> to vector<64x12xf32>
    %370 = vector.extract_strided_slice %341 {offsets = [0, 60], sizes = [64, 12], strides = [1, 1]} : vector<64x144xf32> to vector<64x12xf32>
    %371 = vector.extract_strided_slice %341 {offsets = [0, 108], sizes = [64, 12], strides = [1, 1]} : vector<64x144xf32> to vector<64x12xf32>
    %cst_204 = arith.constant 0.288675129 : f32
    %372 = vector.broadcast %cst_204 : f32 to vector<64x12xf32>
    %373 = arith.mulf %369, %372 : vector<64x12xf32>
    %374 = arith.truncf %373 : vector<64x12xf32> to vector<64x12xbf16>
    %375 = arith.truncf %370 : vector<64x12xf32> to vector<64x12xbf16>
    %cst_205 = arith.constant dense<0.000000e+00> : vector<64x64xf32>
    %376 = tpu.matmul %374, %375, %cst_205 {dimension_numbers = #tpu.dot_dimension_numbers<[1], [1], [0], [0], [0, 0, 1, 0], [], []>} : vector<64x12xbf16>, vector<64x12xbf16>, vector<64x64xf32> -> vector<64x64xf32>
    %cst_206 = arith.constant dense<0xFF800000> : vector<64xf32>
    %377 = vector.multi_reduction <maximumf>, %376, %cst_206 [1] : vector<64x64xf32> to vector<64xf32>
    %378 = vector.shape_cast %377 : vector<64xf32> to vector<64x1xf32>
    %379 = vector.broadcast %378 : vector<64x1xf32> to vector<64x64xf32>
    %380 = arith.subf %376, %379 : vector<64x64xf32>
    %381 = math.exp %380 : vector<64x64xf32>
    %cst_207 = arith.constant dense<0.000000e+00> : vector<64xf32>
    %382 = vector.multi_reduction <add>, %381, %cst_207 [1] : vector<64x64xf32> to vector<64xf32>
    %383 = vector.shape_cast %382 : vector<64xf32> to vector<64x1xf32>
    %384 = tpu.reciprocal %383 {approx = true} : vector<64x1xf32> -> vector<64x1xf32>
    %385 = vector.broadcast %384 : vector<64x1xf32> to vector<64x64xf32>
    %386 = arith.mulf %381, %385 : vector<64x64xf32>
    %387 = arith.truncf %386 : vector<64x64xf32> to vector<64x64xbf16>
    %388 = arith.truncf %371 : vector<64x12xf32> to vector<64x12xbf16>
    %cst_208 = arith.constant dense<0.000000e+00> : vector<64x12xf32>
    %389 = tpu.matmul %387, %388, %cst_208 {dimension_numbers = #tpu.dot_dimension_numbers<[1], [0], [0], [1], [0, 0, 1, 1], [], []>} : vector<64x64xbf16>, vector<64x12xbf16>, vector<64x12xf32> -> vector<64x12xf32>
    %390 = arith.truncf %389 : vector<64x12xf32> to vector<64x12xbf16>
    %c1_209 = arith.constant 1 : index
    %c1_210 = arith.constant 1 : index
    %c0_211 = arith.constant 0 : index
    %c0_212 = arith.constant 0 : index
    %391 = vector.load %arg15[%c1_209, %c1_210, %c0_211, %c0_212] : memref<2x4x12x48xbf16, #tpu.memory_space<vmem>>, vector<1x1x12x48xbf16>
    %392 = vector.shape_cast %391 : vector<1x1x12x48xbf16> to vector<12x48xbf16>
    %cst_213 = arith.constant dense<0.000000e+00> : vector<64x48xf32>
    %393 = tpu.matmul %390, %392, %cst_213 {dimension_numbers = #tpu.dot_dimension_numbers<[1], [0], [0], [1], [0, 0, 1, 1], [], []>} : vector<64x12xbf16>, vector<12x48xbf16>, vector<64x48xf32> -> vector<64x48xf32>
    %394 = arith.addf %368, %393 : vector<64x48xf32>
    %395 = vector.extract_strided_slice %341 {offsets = [0, 24], sizes = [64, 12], strides = [1, 1]} : vector<64x144xf32> to vector<64x12xf32>
    %396 = vector.extract_strided_slice %341 {offsets = [0, 72], sizes = [64, 12], strides = [1, 1]} : vector<64x144xf32> to vector<64x12xf32>
    %397 = vector.extract_strided_slice %341 {offsets = [0, 120], sizes = [64, 12], strides = [1, 1]} : vector<64x144xf32> to vector<64x12xf32>
    %cst_214 = arith.constant 0.288675129 : f32
    %398 = vector.broadcast %cst_214 : f32 to vector<64x12xf32>
    %399 = arith.mulf %395, %398 : vector<64x12xf32>
    %400 = arith.truncf %399 : vector<64x12xf32> to vector<64x12xbf16>
    %401 = arith.truncf %396 : vector<64x12xf32> to vector<64x12xbf16>
    %cst_215 = arith.constant dense<0.000000e+00> : vector<64x64xf32>
    %402 = tpu.matmul %400, %401, %cst_215 {dimension_numbers = #tpu.dot_dimension_numbers<[1], [1], [0], [0], [0, 0, 1, 0], [], []>} : vector<64x12xbf16>, vector<64x12xbf16>, vector<64x64xf32> -> vector<64x64xf32>
    %cst_216 = arith.constant dense<0xFF800000> : vector<64xf32>
    %403 = vector.multi_reduction <maximumf>, %402, %cst_216 [1] : vector<64x64xf32> to vector<64xf32>
    %404 = vector.shape_cast %403 : vector<64xf32> to vector<64x1xf32>
    %405 = vector.broadcast %404 : vector<64x1xf32> to vector<64x64xf32>
    %406 = arith.subf %402, %405 : vector<64x64xf32>
    %407 = math.exp %406 : vector<64x64xf32>
    %cst_217 = arith.constant dense<0.000000e+00> : vector<64xf32>
    %408 = vector.multi_reduction <add>, %407, %cst_217 [1] : vector<64x64xf32> to vector<64xf32>
    %409 = vector.shape_cast %408 : vector<64xf32> to vector<64x1xf32>
    %410 = tpu.reciprocal %409 {approx = true} : vector<64x1xf32> -> vector<64x1xf32>
    %411 = vector.broadcast %410 : vector<64x1xf32> to vector<64x64xf32>
    %412 = arith.mulf %407, %411 : vector<64x64xf32>
    %413 = arith.truncf %412 : vector<64x64xf32> to vector<64x64xbf16>
    %414 = arith.truncf %397 : vector<64x12xf32> to vector<64x12xbf16>
    %cst_218 = arith.constant dense<0.000000e+00> : vector<64x12xf32>
    %415 = tpu.matmul %413, %414, %cst_218 {dimension_numbers = #tpu.dot_dimension_numbers<[1], [0], [0], [1], [0, 0, 1, 1], [], []>} : vector<64x64xbf16>, vector<64x12xbf16>, vector<64x12xf32> -> vector<64x12xf32>
    %416 = arith.truncf %415 : vector<64x12xf32> to vector<64x12xbf16>
    %c1_219 = arith.constant 1 : index
    %c2_220 = arith.constant 2 : index
    %c0_221 = arith.constant 0 : index
    %c0_222 = arith.constant 0 : index
    %417 = vector.load %arg15[%c1_219, %c2_220, %c0_221, %c0_222] : memref<2x4x12x48xbf16, #tpu.memory_space<vmem>>, vector<1x1x12x48xbf16>
    %418 = vector.shape_cast %417 : vector<1x1x12x48xbf16> to vector<12x48xbf16>
    %cst_223 = arith.constant dense<0.000000e+00> : vector<64x48xf32>
    %419 = tpu.matmul %416, %418, %cst_223 {dimension_numbers = #tpu.dot_dimension_numbers<[1], [0], [0], [1], [0, 0, 1, 1], [], []>} : vector<64x12xbf16>, vector<12x48xbf16>, vector<64x48xf32> -> vector<64x48xf32>
    %420 = arith.addf %394, %419 : vector<64x48xf32>
    %421 = vector.extract_strided_slice %341 {offsets = [0, 36], sizes = [64, 12], strides = [1, 1]} : vector<64x144xf32> to vector<64x12xf32>
    %422 = vector.extract_strided_slice %341 {offsets = [0, 84], sizes = [64, 12], strides = [1, 1]} : vector<64x144xf32> to vector<64x12xf32>
    %423 = vector.extract_strided_slice %341 {offsets = [0, 132], sizes = [64, 12], strides = [1, 1]} : vector<64x144xf32> to vector<64x12xf32>
    %cst_224 = arith.constant 0.288675129 : f32
    %424 = vector.broadcast %cst_224 : f32 to vector<64x12xf32>
    %425 = arith.mulf %421, %424 : vector<64x12xf32>
    %426 = arith.truncf %425 : vector<64x12xf32> to vector<64x12xbf16>
    %427 = arith.truncf %422 : vector<64x12xf32> to vector<64x12xbf16>
    %cst_225 = arith.constant dense<0.000000e+00> : vector<64x64xf32>
    %428 = tpu.matmul %426, %427, %cst_225 {dimension_numbers = #tpu.dot_dimension_numbers<[1], [1], [0], [0], [0, 0, 1, 0], [], []>} : vector<64x12xbf16>, vector<64x12xbf16>, vector<64x64xf32> -> vector<64x64xf32>
    %cst_226 = arith.constant dense<0xFF800000> : vector<64xf32>
    %429 = vector.multi_reduction <maximumf>, %428, %cst_226 [1] : vector<64x64xf32> to vector<64xf32>
    %430 = vector.shape_cast %429 : vector<64xf32> to vector<64x1xf32>
    %431 = vector.broadcast %430 : vector<64x1xf32> to vector<64x64xf32>
    %432 = arith.subf %428, %431 : vector<64x64xf32>
    %433 = math.exp %432 : vector<64x64xf32>
    %cst_227 = arith.constant dense<0.000000e+00> : vector<64xf32>
    %434 = vector.multi_reduction <add>, %433, %cst_227 [1] : vector<64x64xf32> to vector<64xf32>
    %435 = vector.shape_cast %434 : vector<64xf32> to vector<64x1xf32>
    %436 = tpu.reciprocal %435 {approx = true} : vector<64x1xf32> -> vector<64x1xf32>
    %437 = vector.broadcast %436 : vector<64x1xf32> to vector<64x64xf32>
    %438 = arith.mulf %433, %437 : vector<64x64xf32>
    %439 = arith.truncf %438 : vector<64x64xf32> to vector<64x64xbf16>
    %440 = arith.truncf %423 : vector<64x12xf32> to vector<64x12xbf16>
    %cst_228 = arith.constant dense<0.000000e+00> : vector<64x12xf32>
    %441 = tpu.matmul %439, %440, %cst_228 {dimension_numbers = #tpu.dot_dimension_numbers<[1], [0], [0], [1], [0, 0, 1, 1], [], []>} : vector<64x64xbf16>, vector<64x12xbf16>, vector<64x12xf32> -> vector<64x12xf32>
    %442 = arith.truncf %441 : vector<64x12xf32> to vector<64x12xbf16>
    %c1_229 = arith.constant 1 : index
    %c3_230 = arith.constant 3 : index
    %c0_231 = arith.constant 0 : index
    %c0_232 = arith.constant 0 : index
    %443 = vector.load %arg15[%c1_229, %c3_230, %c0_231, %c0_232] : memref<2x4x12x48xbf16, #tpu.memory_space<vmem>>, vector<1x1x12x48xbf16>
    %444 = vector.shape_cast %443 : vector<1x1x12x48xbf16> to vector<12x48xbf16>
    %cst_233 = arith.constant dense<0.000000e+00> : vector<64x48xf32>
    %445 = tpu.matmul %442, %444, %cst_233 {dimension_numbers = #tpu.dot_dimension_numbers<[1], [0], [0], [1], [0, 0, 1, 1], [], []>} : vector<64x12xbf16>, vector<12x48xbf16>, vector<64x48xf32> -> vector<64x48xf32>
    %446 = arith.addf %420, %445 : vector<64x48xf32>
    %c1_234 = arith.constant 1 : index
    %c0_235 = arith.constant 0 : index
    %c0_236 = arith.constant 0 : index
    %447 = vector.load %arg16[%c1_234, %c0_235, %c0_236] : memref<2x1x48xf32, #tpu.memory_space<vmem>>, vector<1x1x48xf32>
    %448 = vector.shape_cast %447 : vector<1x1x48xf32> to vector<1x48xf32>
    %449 = vector.broadcast %448 : vector<1x48xf32> to vector<64x48xf32>
    %450 = arith.addf %446, %449 : vector<64x48xf32>
    %451 = vector.broadcast %291 : vector<1x48xf32> to vector<64x48xf32>
    %452 = arith.mulf %451, %450 : vector<64x48xf32>
    %453 = arith.addf %273, %452 : vector<64x48xf32>
    %cst_237 = arith.constant dense<0.000000e+00> : vector<64xf32>
    %454 = vector.multi_reduction <add>, %453, %cst_237 [1] : vector<64x48xf32> to vector<64xf32>
    %455 = vector.shape_cast %454 : vector<64xf32> to vector<64x1xf32>
    %cst_238 = arith.constant 4.800000e+01 : f32
    %456 = vector.broadcast %cst_238 : f32 to vector<64x1xf32>
    %457 = arith.divf %455, %456 : vector<64x1xf32>
    %458 = vector.broadcast %457 : vector<64x1xf32> to vector<64x48xf32>
    %459 = arith.subf %453, %458 : vector<64x48xf32>
    %460 = arith.mulf %459, %459 : vector<64x48xf32>
    %cst_239 = arith.constant dense<0.000000e+00> : vector<64xf32>
    %461 = vector.multi_reduction <add>, %460, %cst_239 [1] : vector<64x48xf32> to vector<64xf32>
    %462 = vector.shape_cast %461 : vector<64xf32> to vector<64x1xf32>
    %cst_240 = arith.constant 4.800000e+01 : f32
    %463 = vector.broadcast %cst_240 : f32 to vector<64x1xf32>
    %464 = arith.divf %462, %463 : vector<64x1xf32>
    %465 = vector.broadcast %457 : vector<64x1xf32> to vector<64x48xf32>
    %466 = arith.subf %453, %465 : vector<64x48xf32>
    %cst_241 = arith.constant 9.99999997E-7 : f32
    %467 = vector.broadcast %cst_241 : f32 to vector<64x1xf32>
    %468 = arith.addf %464, %467 : vector<64x1xf32>
    %469 = math.rsqrt %468 : vector<64x1xf32>
    %470 = vector.broadcast %469 : vector<64x1xf32> to vector<64x48xf32>
    %471 = arith.mulf %466, %470 : vector<64x48xf32>
    %cst_242 = arith.constant 1.000000e+00 : f32
    %472 = vector.broadcast %cst_242 : f32 to vector<1x48xf32>
    %473 = arith.addf %472, %303 : vector<1x48xf32>
    %474 = vector.broadcast %473 : vector<1x48xf32> to vector<64x48xf32>
    %475 = arith.mulf %471, %474 : vector<64x48xf32>
    %476 = vector.broadcast %297 : vector<1x48xf32> to vector<64x48xf32>
    %477 = arith.addf %475, %476 : vector<64x48xf32>
    %478 = arith.truncf %477 : vector<64x48xf32> to vector<64x48xbf16>
    %c1_243 = arith.constant 1 : index
    %c0_244 = arith.constant 0 : index
    %c0_245 = arith.constant 0 : index
    %479 = vector.load %arg17[%c1_243, %c0_244, %c0_245] : memref<2x48x192xbf16, #tpu.memory_space<vmem>>, vector<1x48x192xbf16>
    %480 = vector.shape_cast %479 : vector<1x48x192xbf16> to vector<48x192xbf16>
    %cst_246 = arith.constant dense<0.000000e+00> : vector<64x192xf32>
    %481 = tpu.matmul %478, %480, %cst_246 {dimension_numbers = #tpu.dot_dimension_numbers<[1], [0], [0], [1], [0, 0, 1, 1], [], []>} : vector<64x48xbf16>, vector<48x192xbf16>, vector<64x192xf32> -> vector<64x192xf32>
    %c1_247 = arith.constant 1 : index
    %c0_248 = arith.constant 0 : index
    %c0_249 = arith.constant 0 : index
    %482 = vector.load %arg18[%c1_247, %c0_248, %c0_249] : memref<2x1x192xf32, #tpu.memory_space<vmem>>, vector<1x1x192xf32>
    %483 = vector.shape_cast %482 : vector<1x1x192xf32> to vector<1x192xf32>
    %484 = vector.broadcast %483 : vector<1x192xf32> to vector<64x192xf32>
    %485 = arith.addf %481, %484 : vector<64x192xf32>
    %486 = arith.mulf %485, %485 : vector<64x192xf32>
    %487 = arith.mulf %485, %486 : vector<64x192xf32>
    %cst_250 = arith.constant 4.471500e-02 : f32
    %488 = vector.broadcast %cst_250 : f32 to vector<64x192xf32>
    %489 = arith.mulf %488, %487 : vector<64x192xf32>
    %490 = arith.addf %485, %489 : vector<64x192xf32>
    %cst_251 = arith.constant 0.797884583 : f32
    %491 = vector.broadcast %cst_251 : f32 to vector<64x192xf32>
    %492 = arith.mulf %491, %490 : vector<64x192xf32>
    %493 = math.tanh %492 : vector<64x192xf32>
    %cst_252 = arith.constant 1.000000e+00 : f32
    %494 = vector.broadcast %cst_252 : f32 to vector<64x192xf32>
    %495 = arith.addf %494, %493 : vector<64x192xf32>
    %cst_253 = arith.constant 5.000000e-01 : f32
    %496 = vector.broadcast %cst_253 : f32 to vector<64x192xf32>
    %497 = arith.mulf %496, %495 : vector<64x192xf32>
    %498 = arith.mulf %485, %497 : vector<64x192xf32>
    %499 = arith.truncf %498 : vector<64x192xf32> to vector<64x192xbf16>
    %c1_254 = arith.constant 1 : index
    %c0_255 = arith.constant 0 : index
    %c0_256 = arith.constant 0 : index
    %500 = vector.load %arg19[%c1_254, %c0_255, %c0_256] : memref<2x192x48xbf16, #tpu.memory_space<vmem>>, vector<1x192x48xbf16>
    %501 = vector.shape_cast %500 : vector<1x192x48xbf16> to vector<192x48xbf16>
    %cst_257 = arith.constant dense<0.000000e+00> : vector<64x48xf32>
    %502 = tpu.matmul %499, %501, %cst_257 {dimension_numbers = #tpu.dot_dimension_numbers<[1], [0], [0], [1], [0, 0, 1, 1], [], []>} : vector<64x192xbf16>, vector<192x48xbf16>, vector<64x48xf32> -> vector<64x48xf32>
    %c1_258 = arith.constant 1 : index
    %c0_259 = arith.constant 0 : index
    %c0_260 = arith.constant 0 : index
    %503 = vector.load %arg20[%c1_258, %c0_259, %c0_260] : memref<2x1x48xf32, #tpu.memory_space<vmem>>, vector<1x1x48xf32>
    %504 = vector.shape_cast %503 : vector<1x1x48xf32> to vector<1x48xf32>
    %505 = vector.broadcast %504 : vector<1x48xf32> to vector<64x48xf32>
    %506 = arith.addf %502, %505 : vector<64x48xf32>
    %507 = vector.broadcast %309 : vector<1x48xf32> to vector<64x48xf32>
    %508 = arith.mulf %507, %506 : vector<64x48xf32>
    %509 = arith.addf %453, %508 : vector<64x48xf32>
    %c12 = arith.constant 12 : index
    %c0_261 = arith.constant 0 : index
    %c0_262 = arith.constant 0 : index
    %510 = vector.load %arg11[%c12, %c0_261, %c0_262] : memref<14x48x48xbf16, #tpu.memory_space<vmem>>, vector<1x48x48xbf16>
    %511 = vector.shape_cast %510 : vector<1x48x48xbf16> to vector<48x48xbf16>
    %cst_263 = arith.constant dense<0.000000e+00> : vector<1x48xf32>
    %512 = tpu.matmul %27, %511, %cst_263 {dimension_numbers = #tpu.dot_dimension_numbers<[1], [0], [0], [1], [0, 0, 1, 1], [], []>} : vector<1x48xbf16>, vector<48x48xbf16>, vector<1x48xf32> -> vector<1x48xf32>
    %c12_264 = arith.constant 12 : index
    %c0_265 = arith.constant 0 : index
    %c0_266 = arith.constant 0 : index
    %513 = vector.load %arg12[%c12_264, %c0_265, %c0_266] : memref<14x1x48xf32, #tpu.memory_space<vmem>>, vector<1x1x48xf32>
    %514 = vector.shape_cast %513 : vector<1x1x48xf32> to vector<1x48xf32>
    %515 = arith.addf %512, %514 : vector<1x48xf32>
    %c13 = arith.constant 13 : index
    %c0_267 = arith.constant 0 : index
    %c0_268 = arith.constant 0 : index
    %516 = vector.load %arg11[%c13, %c0_267, %c0_268] : memref<14x48x48xbf16, #tpu.memory_space<vmem>>, vector<1x48x48xbf16>
    %517 = vector.shape_cast %516 : vector<1x48x48xbf16> to vector<48x48xbf16>
    %cst_269 = arith.constant dense<0.000000e+00> : vector<1x48xf32>
    %518 = tpu.matmul %27, %517, %cst_269 {dimension_numbers = #tpu.dot_dimension_numbers<[1], [0], [0], [1], [0, 0, 1, 1], [], []>} : vector<1x48xbf16>, vector<48x48xbf16>, vector<1x48xf32> -> vector<1x48xf32>
    %c13_270 = arith.constant 13 : index
    %c0_271 = arith.constant 0 : index
    %c0_272 = arith.constant 0 : index
    %519 = vector.load %arg12[%c13_270, %c0_271, %c0_272] : memref<14x1x48xf32, #tpu.memory_space<vmem>>, vector<1x1x48xf32>
    %520 = vector.shape_cast %519 : vector<1x1x48xf32> to vector<1x48xf32>
    %521 = arith.addf %518, %520 : vector<1x48xf32>
    %cst_273 = arith.constant dense<0.000000e+00> : vector<64xf32>
    %522 = vector.multi_reduction <add>, %509, %cst_273 [1] : vector<64x48xf32> to vector<64xf32>
    %523 = vector.shape_cast %522 : vector<64xf32> to vector<64x1xf32>
    %cst_274 = arith.constant 4.800000e+01 : f32
    %524 = vector.broadcast %cst_274 : f32 to vector<64x1xf32>
    %525 = arith.divf %523, %524 : vector<64x1xf32>
    %526 = vector.broadcast %525 : vector<64x1xf32> to vector<64x48xf32>
    %527 = arith.subf %509, %526 : vector<64x48xf32>
    %528 = arith.mulf %527, %527 : vector<64x48xf32>
    %cst_275 = arith.constant dense<0.000000e+00> : vector<64xf32>
    %529 = vector.multi_reduction <add>, %528, %cst_275 [1] : vector<64x48xf32> to vector<64xf32>
    %530 = vector.shape_cast %529 : vector<64xf32> to vector<64x1xf32>
    %cst_276 = arith.constant 4.800000e+01 : f32
    %531 = vector.broadcast %cst_276 : f32 to vector<64x1xf32>
    %532 = arith.divf %530, %531 : vector<64x1xf32>
    %533 = vector.broadcast %525 : vector<64x1xf32> to vector<64x48xf32>
    %534 = arith.subf %509, %533 : vector<64x48xf32>
    %cst_277 = arith.constant 9.99999997E-7 : f32
    %535 = vector.broadcast %cst_277 : f32 to vector<64x1xf32>
    %536 = arith.addf %532, %535 : vector<64x1xf32>
    %537 = math.rsqrt %536 : vector<64x1xf32>
    %538 = vector.broadcast %537 : vector<64x1xf32> to vector<64x48xf32>
    %539 = arith.mulf %534, %538 : vector<64x48xf32>
    %cst_278 = arith.constant 1.000000e+00 : f32
    %540 = vector.broadcast %cst_278 : f32 to vector<1x48xf32>
    %541 = arith.addf %540, %521 : vector<1x48xf32>
    %542 = vector.broadcast %541 : vector<1x48xf32> to vector<64x48xf32>
    %543 = arith.mulf %539, %542 : vector<64x48xf32>
    %544 = vector.broadcast %515 : vector<1x48xf32> to vector<64x48xf32>
    %545 = arith.addf %543, %544 : vector<64x48xf32>
    %546 = arith.truncf %545 : vector<64x48xf32> to vector<64x48xbf16>
    %c0_279 = arith.constant 0 : index
    %c0_280 = arith.constant 0 : index
    %547 = vector.load %arg21[%c0_279, %c0_280] : memref<48x256xbf16, #tpu.memory_space<vmem>>, vector<48x256xbf16>
    %cst_281 = arith.constant dense<0.000000e+00> : vector<64x256xf32>
    %548 = tpu.matmul %546, %547, %cst_281 {dimension_numbers = #tpu.dot_dimension_numbers<[1], [0], [0], [1], [0, 0, 1, 1], [], []>} : vector<64x48xbf16>, vector<48x256xbf16>, vector<64x256xf32> -> vector<64x256xf32>
    %c0_282 = arith.constant 0 : index
    %c0_283 = arith.constant 0 : index
    %549 = vector.load %arg22[%c0_282, %c0_283] : memref<1x256xf32, #tpu.memory_space<vmem>>, vector<1x256xf32>
    %550 = vector.broadcast %549 : vector<1x256xf32> to vector<64x256xf32>
    %551 = arith.addf %548, %550 : vector<64x256xf32>
    %c0_284 = arith.constant 0 : index
    %c0_285 = arith.constant 0 : index
    %c0_286 = arith.constant 0 : index
    %552 = vector.load %arg23[%c0_284, %c0_285, %c0_286] : memref<1x64x256xf32, #tpu.memory_space<vmem>>, vector<1x64x256xf32>
    %553 = vector.shape_cast %552 : vector<1x64x256xf32> to vector<64x256xf32>
    %554 = vector.shape_cast %551 : vector<64x256xf32> to vector<1x64x256xf32>
    tpu.vector_store %arg23[%c0_284, %c0_285, %c0_286], %554 {strides = array<i32>} : memref<1x64x256xf32, #tpu.memory_space<vmem>>, vector<1x64x256xf32>,
    return
  }
  func.func @transform_0(%arg0: i32) -> (i32, i32, i32) {
    %c0_i32 = arith.constant 0 : i32
    %c0_i32_0 = arith.constant 0 : i32
    %c0_i32_1 = arith.constant 0 : i32
    return %arg0, %c0_i32, %c0_i32_0 : i32, i32, i32
  }
  func.func @transform_1(%arg0: i32) -> (i32, i32, i32) {
    %c0_i32 = arith.constant 0 : i32
    %c0_i32_0 = arith.constant 0 : i32
    %c0_i32_1 = arith.constant 0 : i32
    return %arg0, %c0_i32, %c0_i32_0 : i32, i32, i32
  }
  func.func @transform_2(%arg0: i32) -> (i32, i32, i32) {
    %c0_i32 = arith.constant 0 : i32
    %c0_i32_0 = arith.constant 0 : i32
    %c0_i32_1 = arith.constant 0 : i32
    return %arg0, %c0_i32, %c0_i32_0 : i32, i32, i32
  }
  func.func @transform_3(%arg0: i32) -> (i32, i32) {
    %c0_i32 = arith.constant 0 : i32
    %c0_i32_0 = arith.constant 0 : i32
    %c0_i32_1 = arith.constant 0 : i32
    return %c0_i32, %c0_i32_0 : i32, i32
  }
  func.func @transform_4(%arg0: i32) -> (i32, i32) {
    %c0_i32 = arith.constant 0 : i32
    %c0_i32_0 = arith.constant 0 : i32
    %c0_i32_1 = arith.constant 0 : i32
    return %c0_i32, %c0_i32_0 : i32, i32
  }
  func.func @transform_5(%arg0: i32) -> (i32, i32) {
    %c0_i32 = arith.constant 0 : i32
    %c0_i32_0 = arith.constant 0 : i32
    %c0_i32_1 = arith.constant 0 : i32
    return %c0_i32, %c0_i32_0 : i32, i32
  }
  func.func @transform_6(%arg0: i32) -> (i32, i32) {
    %c0_i32 = arith.constant 0 : i32
    %c0_i32_0 = arith.constant 0 : i32
    %c0_i32_1 = arith.constant 0 : i32
    return %c0_i32, %c0_i32_0 : i32, i32
  }
  func.func @transform_7(%arg0: i32) -> (i32, i32) {
    %c0_i32 = arith.constant 0 : i32
    %c0_i32_0 = arith.constant 0 : i32
    %c0_i32_1 = arith.constant 0 : i32
    return %c0_i32, %c0_i32_0 : i32, i32
  }
  func.func @transform_8(%arg0: i32) -> (i32, i32) {
    %c0_i32 = arith.constant 0 : i32
    %c0_i32_0 = arith.constant 0 : i32
    %c0_i32_1 = arith.constant 0 : i32
    return %c0_i32, %c0_i32_0 : i32, i32
  }
  func.func @transform_9(%arg0: i32) -> (i32, i32) {
    %c0_i32 = arith.constant 0 : i32
    %c0_i32_0 = arith.constant 0 : i32
    %c0_i32_1 = arith.constant 0 : i32
    return %c0_i32, %c0_i32_0 : i32, i32
  }
  func.func @transform_10(%arg0: i32) -> (i32, i32, i32) {
    %c0_i32 = arith.constant 0 : i32
    %c0_i32_0 = arith.constant 0 : i32
    %c0_i32_1 = arith.constant 0 : i32
    %c0_i32_2 = arith.constant 0 : i32
    return %c0_i32, %c0_i32_0, %c0_i32_1 : i32, i32, i32
  }
  func.func @transform_11(%arg0: i32) -> (i32, i32, i32) {
    %c0_i32 = arith.constant 0 : i32
    %c0_i32_0 = arith.constant 0 : i32
    %c0_i32_1 = arith.constant 0 : i32
    %c0_i32_2 = arith.constant 0 : i32
    return %c0_i32, %c0_i32_0, %c0_i32_1 : i32, i32, i32
  }
  func.func @transform_12(%arg0: i32) -> (i32, i32, i32) {
    %c0_i32 = arith.constant 0 : i32
    %c0_i32_0 = arith.constant 0 : i32
    %c0_i32_1 = arith.constant 0 : i32
    %c0_i32_2 = arith.constant 0 : i32
    return %c0_i32, %c0_i32_0, %c0_i32_1 : i32, i32, i32
  }
  func.func @transform_13(%arg0: i32) -> (i32, i32, i32) {
    %c0_i32 = arith.constant 0 : i32
    %c0_i32_0 = arith.constant 0 : i32
    %c0_i32_1 = arith.constant 0 : i32
    %c0_i32_2 = arith.constant 0 : i32
    return %c0_i32, %c0_i32_0, %c0_i32_1 : i32, i32, i32
  }
  func.func @transform_14(%arg0: i32) -> (i32, i32, i32, i32) {
    %c0_i32 = arith.constant 0 : i32
    %c0_i32_0 = arith.constant 0 : i32
    %c0_i32_1 = arith.constant 0 : i32
    %c0_i32_2 = arith.constant 0 : i32
    %c0_i32_3 = arith.constant 0 : i32
    return %c0_i32, %c0_i32_0, %c0_i32_1, %c0_i32_2 : i32, i32, i32, i32
  }
  func.func @transform_15(%arg0: i32) -> (i32, i32, i32) {
    %c0_i32 = arith.constant 0 : i32
    %c0_i32_0 = arith.constant 0 : i32
    %c0_i32_1 = arith.constant 0 : i32
    %c0_i32_2 = arith.constant 0 : i32
    return %c0_i32, %c0_i32_0, %c0_i32_1 : i32, i32, i32
  }
  func.func @transform_16(%arg0: i32) -> (i32, i32, i32) {
    %c0_i32 = arith.constant 0 : i32
    %c0_i32_0 = arith.constant 0 : i32
    %c0_i32_1 = arith.constant 0 : i32
    %c0_i32_2 = arith.constant 0 : i32
    return %c0_i32, %c0_i32_0, %c0_i32_1 : i32, i32, i32
  }
  func.func @transform_17(%arg0: i32) -> (i32, i32, i32) {
    %c0_i32 = arith.constant 0 : i32
    %c0_i32_0 = arith.constant 0 : i32
    %c0_i32_1 = arith.constant 0 : i32
    %c0_i32_2 = arith.constant 0 : i32
    return %c0_i32, %c0_i32_0, %c0_i32_1 : i32, i32, i32
  }
  func.func @transform_18(%arg0: i32) -> (i32, i32, i32) {
    %c0_i32 = arith.constant 0 : i32
    %c0_i32_0 = arith.constant 0 : i32
    %c0_i32_1 = arith.constant 0 : i32
    %c0_i32_2 = arith.constant 0 : i32
    return %c0_i32, %c0_i32_0, %c0_i32_1 : i32, i32, i32
  }
  func.func @transform_19(%arg0: i32) -> (i32, i32, i32) {
    %c0_i32 = arith.constant 0 : i32
    %c0_i32_0 = arith.constant 0 : i32
    %c0_i32_1 = arith.constant 0 : i32
    %c0_i32_2 = arith.constant 0 : i32
    return %c0_i32, %c0_i32_0, %c0_i32_1 : i32, i32, i32
  }
  func.func @transform_20(%arg0: i32) -> (i32, i32) {
    %c0_i32 = arith.constant 0 : i32
    %c0_i32_0 = arith.constant 0 : i32
    %c0_i32_1 = arith.constant 0 : i32
    return %c0_i32, %c0_i32_0 : i32, i32
  }
  func.func @transform_21(%arg0: i32) -> (i32, i32) {
    %c0_i32 = arith.constant 0 : i32
    %c0_i32_0 = arith.constant 0 : i32
    %c0_i32_1 = arith.constant 0 : i32
    return %c0_i32, %c0_i32_0 : i32, i32
  }
  func.func @transform_22(%arg0: i32) -> (i32, i32, i32) {
    %c0_i32 = arith.constant 0 : i32
    %c0_i32_0 = arith.constant 0 : i32
    %c0_i32_1 = arith.constant 0 : i32
    return %arg0, %c0_i32, %c0_i32_0 : i32, i32, i32
  }
}

</mosaic_0001>

<llo_original>
// kernel: dit_forward.1
$region0: #{dit_forward.1}
  #allocation0 [shape = 'u32[]', space=smem, size = 0x4, offset = 0x4, fixed_abs, tag = 'smem constant byte address 0x4 - core index']
  #allocation1 [shape = 'u32[144,128]{1,0:T(1,128)}', space=vmem, size = 0x12000, scoped, tag = 'internal scratch']
  %s0 = inlined_call_operand.vmem [shape: f32[2,1,256], index: 0, kind: input, shape index: {}]
  %s1 = inlined_call_operand.vmem [shape: f32[2,1,48], index: 1, kind: input, shape index: {}]
  %s2 = inlined_call_operand.vmem [shape: f32[2,64,192], index: 2, kind: input, shape index: {}]
  %s3 = inlined_call_operand.vmem [shape: bf16[192,48], index: 3, kind: input, shape index: {}]
  %s4 = inlined_call_operand.vmem [shape: f32[1,48], index: 4, kind: input, shape index: {}]
  %s5 = inlined_call_operand.vmem [shape: f32[64,48], index: 5, kind: input, shape index: {}]
  %s6 = inlined_call_operand.vmem [shape: bf16[256,48], index: 6, kind: input, shape index: {}]
  %s7 = inlined_call_operand.vmem [shape: f32[1,48], index: 7, kind: input, shape index: {}]
  %s8 = inlined_call_operand.vmem [shape: bf16[48,48], index: 8, kind: input, shape index: {}]
  %s9 = inlined_call_operand.vmem [shape: f32[1,48], index: 9, kind: input, shape index: {}]
  %s10 = inlined_call_operand.vmem [shape: bf16[14,48,48], index: 10, kind: input, shape index: {}]
  %s11 = inlined_call_operand.vmem [shape: f32[14,1,48], index: 11, kind: input, shape index: {}]
  %s12 = inlined_call_operand.vmem [shape: bf16[2,48,144], index: 12, kind: input, shape index: {}]
  %s13 = inlined_call_operand.vmem [shape: f32[2,1,144], index: 13, kind: input, shape index: {}]
  %s14 = inlined_call_operand.vmem [shape: bf16[2,4,12,48], index: 14, kind: input, shape index: {}]
  %s15 = inlined_call_operand.vmem [shape: f32[2,1,48], index: 15, kind: input, shape index: {}]
  %s16 = inlined_call_operand.vmem [shape: bf16[2,48,192], index: 16, kind: input, shape index: {}]
  %s17 = inlined_call_operand.vmem [shape: f32[2,1,192], index: 17, kind: input, shape index: {}]
  %s18 = inlined_call_operand.vmem [shape: bf16[2,192,48], index: 18, kind: input, shape index: {}]
  %s19 = inlined_call_operand.vmem [shape: f32[2,1,48], index: 19, kind: input, shape index: {}]
  %s20 = inlined_call_operand.vmem [shape: bf16[48,256], index: 20, kind: input, shape index: {}]
  %s21 = inlined_call_operand.vmem [shape: f32[1,256], index: 21, kind: input, shape index: {}]
  %s22 = inlined_call_operand.vmem [shape: f32[2,64,256], index: 22, kind: output, shape index: {}]
  %s23 = sld [smem:[#allocation0]]
  $region121: #{dit_forward.1} parent=0
    _
  %s25 = ssub.s32 1, %s23
  %s26 = scalar_select 0, %s25, %s23
  loop: start=0, step=1, limit=4
  $region2: #{dit_forward.1} parent=0 // loop_pre_header
    _
  $region3: #{dit_forward.1} parent=0 // loop_header
    %s28 = sphi 0, %s32
    %p29 = scmp.ge.s32.totalorder %s28, 4
    %s38 = sphi 0, %s40
    %s41 = sphi 0, %s38
    %s42 = sphi 0, %s41
    %s58 = sphi 0, %s42
    %s64 = sphi 0, %s66
    %s67 = sphi 0, %s64
    %s68 = sphi 0, %s67
    %s84 = sphi 0, %s68
    %s90 = sphi 0, %s92
    %s93 = sphi 0, %s90
    %s94 = sphi 0, %s93
    %s110 = sphi 0, %s94
    %s114 = sphi 0, %s114
    %s116 = sphi 0, %s114
    %s117 = sphi 0, %s116
    %s131 = sphi 0, %s117
    %s135 = sphi 0, %s135
    %s137 = sphi 0, %s135
    %s138 = sphi 0, %s137
    %s152 = sphi 0, %s138
    %s156 = sphi 0, %s156
    %s158 = sphi 0, %s156
    %s159 = sphi 0, %s158
    %s173 = sphi 0, %s159
    %s177 = sphi 0, %s177
    %s179 = sphi 0, %s177
    %s180 = sphi 0, %s179
    %s194 = sphi 0, %s180
    %s198 = sphi 0, %s198
    %s200 = sphi 0, %s198
    %s201 = sphi 0, %s200
    %s215 = sphi 0, %s201
    %s219 = sphi 0, %s219
    %s221 = sphi 0, %s219
    %s222 = sphi 0, %s221
    %s236 = sphi 0, %s222
    %s240 = sphi 0, %s240
    %s242 = sphi 0, %s240
    %s243 = sphi 0, %s242
    %s257 = sphi 0, %s243
    %s261 = sphi 0, %s261
    %s263 = sphi 0, %s261
    %s264 = sphi 0, %s263
    %s278 = sphi 0, %s264
    %s282 = sphi 0, %s282
    %s284 = sphi 0, %s282
    %s285 = sphi 0, %s284
    %s299 = sphi 0, %s285
    %s303 = sphi 0, %s303
    %s305 = sphi 0, %s303
    %s306 = sphi 0, %s305
    %s320 = sphi 0, %s306
    %s324 = sphi 0, %s324
    %s326 = sphi 0, %s324
    %s327 = sphi 0, %s326
    %s341 = sphi 0, %s327
    %s345 = sphi 0, %s345
    %s347 = sphi 0, %s345
    %s348 = sphi 0, %s347
    %s362 = sphi 0, %s348
    %s366 = sphi 0, %s366
    %s368 = sphi 0, %s366
    %s369 = sphi 0, %s368
    %s383 = sphi 0, %s369
    %s387 = sphi 0, %s387
    %s389 = sphi 0, %s387
    %s390 = sphi 0, %s389
    %s404 = sphi 0, %s390
    %s408 = sphi 0, %s408
    %s410 = sphi 0, %s408
    %s411 = sphi 0, %s410
    %s425 = sphi 0, %s411
    %s429 = sphi 0, %s429
    %s431 = sphi 0, %s429
    %s432 = sphi 0, %s431
    %s446 = sphi 0, %s432
    %s450 = sphi 0, %s450
    %s452 = sphi 0, %s450
    %s453 = sphi 0, %s452
    %s467 = sphi 0, %s453
    %s471 = sphi 0, %s471
    %s473 = sphi 0, %s471
    %s474 = sphi 0, %s473
    %s488 = sphi 0, %s474
    %s492 = sphi 0, %s492
    %s494 = sphi 0, %s492
    %s495 = sphi 0, %s494
    %s509 = sphi 0, %s495
    %s515 = sphi 0, %s517
    %s518 = sphi 0, %s515
    %s519 = sphi 0, %s518
    %s535 = sphi 0, %s519
  $region4: #{dit_forward.1} parent=0 // loop_header_branch
    %31 = sbr.rel (%p29) target = $region8
  $region5: #{dit_forward.1} parent=0 // loop_body
    %s33 = ssub.s32 %s28, 1
    %s34 = ssub.s32 %s28, 2
    %s35 = sadd.s32 %s28, 1
    %s36 = ssub.s32 %s28, %s35
    %p37 = scmp.eq.s32.totalorder %s36, 0
    %s39 = sadd.s32 %s38, 1
    %s40 = scalar_select %p37, %s38, %s39
    %p43 = pneg %p37
    %p44 = scmp.eq.s32.totalorder %s28, 1
    %p45 = por %p43, %p44
    %p46 = scmp.ne.s32.totalorder %s38, %s41
    %p47 = scmp.eq.s32.totalorder %s28, 0
    %p48 = por %p46, %p47
    %p49 = scmp.ne.s32.totalorder %s38, %s41
    %p50 = scmp.eq.s32.totalorder %s33, 1
    %p51 = por %p49, %p50
    %p52 = scmp.ne.s32.totalorder %s41, %s42
    %p53 = scmp.eq.s32.totalorder %s33, 0
    %p54 = por %p52, %p53
    %p55 = scmp.ne.s32.totalorder %s41, %s42
    %p56 = scmp.eq.s32.totalorder %s34, 1
    %p57 = por %p55, %p56
    %p59 = scmp.ne.s32.totalorder %s42, %s58
    %p60 = scmp.eq.s32.totalorder %s34, 0
    %p61 = por %p59, %p60
    %s62 = ssub.s32 %s28, %s35
    %p63 = scmp.eq.s32.totalorder %s62, 0
    %s65 = sadd.s32 %s64, 1
    %s66 = scalar_select %p63, %s64, %s65
    %p69 = pneg %p63
    %p70 = scmp.eq.s32.totalorder %s28, 1
    %p71 = por %p69, %p70
    %p72 = scmp.ne.s32.totalorder %s64, %s67
    %p73 = scmp.eq.s32.totalorder %s28, 0
    %p74 = por %p72, %p73
    %p75 = scmp.ne.s32.totalorder %s64, %s67
    %p76 = scmp.eq.s32.totalorder %s33, 1
    %p77 = por %p75, %p76
    %p78 = scmp.ne.s32.totalorder %s67, %s68
    %p79 = scmp.eq.s32.totalorder %s33, 0
    %p80 = por %p78, %p79
    %p81 = scmp.ne.s32.totalorder %s67, %s68
    %p82 = scmp.eq.s32.totalorder %s34, 1
    %p83 = por %p81, %p82
    %p85 = scmp.ne.s32.totalorder %s68, %s84
    %p86 = scmp.eq.s32.totalorder %s34, 0
    %p87 = por %p85, %p86
    %s88 = ssub.s32 %s28, %s35
    %p89 = scmp.eq.s32.totalorder %s88, 0
    %s91 = sadd.s32 %s90, 1
    %s92 = scalar_select %p89, %s90, %s91
    %p95 = pneg %p89
    %p96 = scmp.eq.s32.totalorder %s28, 1
    %p97 = por %p95, %p96
    %p98 = scmp.ne.s32.totalorder %s90, %s93
    %p99 = scmp.eq.s32.totalorder %s28, 0
    %p100 = por %p98, %p99
    %p101 = scmp.ne.s32.totalorder %s90, %s93
    %p102 = scmp.eq.s32.totalorder %s33, 1
    %p103 = por %p101, %p102
    %p104 = scmp.ne.s32.totalorder %s93, %s94
    %p105 = scmp.eq.s32.totalorder %s33, 0
    %p106 = por %p104, %p105
    %p107 = scmp.ne.s32.totalorder %s93, %s94
    %p108 = scmp.eq.s32.totalorder %s34, 1
    %p109 = por %p107, %p108
    %p111 = scmp.ne.s32.totalorder %s94, %s110
    %p112 = scmp.eq.s32.totalorder %s34, 0
    %p113 = por %p111, %p112
    %s115 = sadd.s32 %s114, 1
    %p118 = scmp.eq.s32.totalorder %s28, 1
    %p119 = scmp.ne.s32.totalorder %s114, %s116
    %p120 = scmp.eq.s32.totalorder %s28, 0
    %p121 = por %p119, %p120
    %p122 = scmp.ne.s32.totalorder %s114, %s116
    %p123 = scmp.eq.s32.totalorder %s33, 1
    %p124 = por %p122, %p123
    %p125 = scmp.ne.s32.totalorder %s116, %s117
    %p126 = scmp.eq.s32.totalorder %s33, 0
    %p127 = por %p125, %p126
    %p128 = scmp.ne.s32.totalorder %s116, %s117
    %p129 = scmp.eq.s32.totalorder %s34, 1
    %p130 = por %p128, %p129
    %p132 = scmp.ne.s32.totalorder %s117, %s131
    %p133 = scmp.eq.s32.totalorder %s34, 0
    %p134 = por %p132, %p133
    %s136 = sadd.s32 %s135, 1
    %p139 = scmp.eq.s32.totalorder %s28, 1
    %p140 = scmp.ne.s32.totalorder %s135, %s137
    %p141 = scmp.eq.s32.totalorder %s28, 0
    %p142 = por %p140, %p141
    %p143 = scmp.ne.s32.totalorder %s135, %s137
    %p144 = scmp.eq.s32.totalorder %s33, 1
    %p145 = por %p143, %p144
    %p146 = scmp.ne.s32.totalorder %s137, %s138
    %p147 = scmp.eq.s32.totalorder %s33, 0
    %p148 = por %p146, %p147
    %p149 = scmp.ne.s32.totalorder %s137, %s138
    %p150 = scmp.eq.s32.totalorder %s34, 1
    %p151 = por %p149, %p150
    %p153 = scmp.ne.s32.totalorder %s138, %s152
    %p154 = scmp.eq.s32.totalorder %s34, 0
    %p155 = por %p153, %p154
    %s157 = sadd.s32 %s156, 1
    %p160 = scmp.eq.s32.totalorder %s28, 1
    %p161 = scmp.ne.s32.totalorder %s156, %s158
    %p162 = scmp.eq.s32.totalorder %s28, 0
    %p163 = por %p161, %p162
    %p164 = scmp.ne.s32.totalorder %s156, %s158
    %p165 = scmp.eq.s32.totalorder %s33, 1
    %p166 = por %p164, %p165
    %p167 = scmp.ne.s32.totalorder %s158, %s159
    %p168 = scmp.eq.s32.totalorder %s33, 0
    %p169 = por %p167, %p168
    %p170 = scmp.ne.s32.totalorder %s158, %s159
    %p171 = scmp.eq.s32.totalorder %s34, 1
    %p172 = por %p170, %p171
    %p174 = scmp.ne.s32.totalorder %s159, %s173
    %p175 = scmp.eq.s32.totalorder %s34, 0
    %p176 = por %p174, %p175
    %s178 = sadd.s32 %s177, 1
    %p181 = scmp.eq.s32.totalorder %s28, 1
    %p182 = scmp.ne.s32.totalorder %s177, %s179
    %p183 = scmp.eq.s32.totalorder %s28, 0
    %p184 = por %p182, %p183
    %p185 = scmp.ne.s32.totalorder %s177, %s179
    %p186 = scmp.eq.s32.totalorder %s33, 1
    %p187 = por %p185, %p186
    %p188 = scmp.ne.s32.totalorder %s179, %s180
    %p189 = scmp.eq.s32.totalorder %s33, 0
    %p190 = por %p188, %p189
    %p191 = scmp.ne.s32.totalorder %s179, %s180
    %p192 = scmp.eq.s32.totalorder %s34, 1
    %p193 = por %p191, %p192
    %p195 = scmp.ne.s32.totalorder %s180, %s194
    %p196 = scmp.eq.s32.totalorder %s34, 0
    %p197 = por %p195, %p196
    %s199 = sadd.s32 %s198, 1
    %p202 = scmp.eq.s32.totalorder %s28, 1
    %p203 = scmp.ne.s32.totalorder %s198, %s200
    %p204 = scmp.eq.s32.totalorder %s28, 0
    %p205 = por %p203, %p204
    %p206 = scmp.ne.s32.totalorder %s198, %s200
    %p207 = scmp.eq.s32.totalorder %s33, 1
    %p208 = por %p206, %p207
    %p209 = scmp.ne.s32.totalorder %s200, %s201
    %p210 = scmp.eq.s32.totalorder %s33, 0
    %p211 = por %p209, %p210
    %p212 = scmp.ne.s32.totalorder %s200, %s201
    %p213 = scmp.eq.s32.totalorder %s34, 1
    %p214 = por %p212, %p213
    %p216 = scmp.ne.s32.totalorder %s201, %s215
    %p217 = scmp.eq.s32.totalorder %s34, 0
    %p218 = por %p216, %p217
    %s220 = sadd.s32 %s219, 1
    %p223 = scmp.eq.s32.totalorder %s28, 1
    %p224 = scmp.ne.s32.totalorder %s219, %s221
    %p225 = scmp.eq.s32.totalorder %s28, 0
    %p226 = por %p224, %p225
    %p227 = scmp.ne.s32.totalorder %s219, %s221
    %p228 = scmp.eq.s32.totalorder %s33, 1
    %p229 = por %p227, %p228
    %p230 = scmp.ne.s32.totalorder %s221, %s222
    %p231 = scmp.eq.s32.totalorder %s33, 0
    %p232 = por %p230, %p231
    %p233 = scmp.ne.s32.totalorder %s221, %s222
    %p234 = scmp.eq.s32.totalorder %s34, 1
    %p235 = por %p233, %p234
    %p237 = scmp.ne.s32.totalorder %s222, %s236
    %p238 = scmp.eq.s32.totalorder %s34, 0
    %p239 = por %p237, %p238
    %s241 = sadd.s32 %s240, 1
    %p244 = scmp.eq.s32.totalorder %s28, 1
    %p245 = scmp.ne.s32.totalorder %s240, %s242
    %p246 = scmp.eq.s32.totalorder %s28, 0
    %p247 = por %p245, %p246
    %p248 = scmp.ne.s32.totalorder %s240, %s242
    %p249 = scmp.eq.s32.totalorder %s33, 1
    %p250 = por %p248, %p249
    %p251 = scmp.ne.s32.totalorder %s242, %s243
    %p252 = scmp.eq.s32.totalorder %s33, 0
    %p253 = por %p251, %p252
    %p254 = scmp.ne.s32.totalorder %s242, %s243
    %p255 = scmp.eq.s32.totalorder %s34, 1
    %p256 = por %p254, %p255
    %p258 = scmp.ne.s32.totalorder %s243, %s257
    %p259 = scmp.eq.s32.totalorder %s34, 0
    %p260 = por %p258, %p259
    %s262 = sadd.s32 %s261, 1
    %p265 = scmp.eq.s32.totalorder %s28, 1
    %p266 = scmp.ne.s32.totalorder %s261, %s263
    %p267 = scmp.eq.s32.totalorder %s28, 0
    %p268 = por %p266, %p267
    %p269 = scmp.ne.s32.totalorder %s261, %s263
    %p270 = scmp.eq.s32.totalorder %s33, 1
    %p271 = por %p269, %p270
    %p272 = scmp.ne.s32.totalorder %s263, %s264
    %p273 = scmp.eq.s32.totalorder %s33, 0
    %p274 = por %p272, %p273
    %p275 = scmp.ne.s32.totalorder %s263, %s264
    %p276 = scmp.eq.s32.totalorder %s34, 1
    %p277 = por %p275, %p276
    %p279 = scmp.ne.s32.totalorder %s264, %s278
    %p280 = scmp.eq.s32.totalorder %s34, 0
    %p281 = por %p279, %p280
    %s283 = sadd.s32 %s282, 1
    %p286 = scmp.eq.s32.totalorder %s28, 1
    %p287 = scmp.ne.s32.totalorder %s282, %s284
    %p288 = scmp.eq.s32.totalorder %s28, 0
    %p289 = por %p287, %p288
    %p290 = scmp.ne.s32.totalorder %s282, %s284
    %p291 = scmp.eq.s32.totalorder %s33, 1
    %p292 = por %p290, %p291
    %p293 = scmp.ne.s32.totalorder %s284, %s285
    %p294 = scmp.eq.s32.totalorder %s33, 0
    %p295 = por %p293, %p294
    %p296 = scmp.ne.s32.totalorder %s284, %s285
    %p297 = scmp.eq.s32.totalorder %s34, 1
    %p298 = por %p296, %p297
    %p300 = scmp.ne.s32.totalorder %s285, %s299
    %p301 = scmp.eq.s32.totalorder %s34, 0
    %p302 = por %p300, %p301
    %s304 = sadd.s32 %s303, 1
    %p307 = scmp.eq.s32.totalorder %s28, 1
    %p308 = scmp.ne.s32.totalorder %s303, %s305
    %p309 = scmp.eq.s32.totalorder %s28, 0
    %p310 = por %p308, %p309
    %p311 = scmp.ne.s32.totalorder %s303, %s305
    %p312 = scmp.eq.s32.totalorder %s33, 1
    %p313 = por %p311, %p312
    %p314 = scmp.ne.s32.totalorder %s305, %s306
    %p315 = scmp.eq.s32.totalorder %s33, 0
    %p316 = por %p314, %p315
    %p317 = scmp.ne.s32.totalorder %s305, %s306
    %p318 = scmp.eq.s32.totalorder %s34, 1
    %p319 = por %p317, %p318
    %p321 = scmp.ne.s32.totalorder %s306, %s320
    %p322 = scmp.eq.s32.totalorder %s34, 0
    %p323 = por %p321, %p322
    %s325 = sadd.s32 %s324, 1
    %p328 = scmp.eq.s32.totalorder %s28, 1
    %p329 = scmp.ne.s32.totalorder %s324, %s326
    %p330 = scmp.eq.s32.totalorder %s28, 0
    %p331 = por %p329, %p330
    %p332 = scmp.ne.s32.totalorder %s324, %s326
    %p333 = scmp.eq.s32.totalorder %s33, 1
    %p334 = por %p332, %p333
    %p335 = scmp.ne.s32.totalorder %s326, %s327
    %p336 = scmp.eq.s32.totalorder %s33, 0
    %p337 = por %p335, %p336
    %p338 = scmp.ne.s32.totalorder %s326, %s327
    %p339 = scmp.eq.s32.totalorder %s34, 1
    %p340 = por %p338, %p339
    %p342 = scmp.ne.s32.totalorder %s327, %s341
    %p343 = scmp.eq.s32.totalorder %s34, 0
    %p344 = por %p342, %p343
    %s346 = sadd.s32 %s345, 1
    %p349 = scmp.eq.s32.totalorder %s28, 1
    %p350 = scmp.ne.s32.totalorder %s345, %s347
    %p351 = scmp.eq.s32.totalorder %s28, 0
    %p352 = por %p350, %p351
    %p353 = scmp.ne.s32.totalorder %s345, %s347
    %p354 = scmp.eq.s32.totalorder %s33, 1
    %p355 = por %p353, %p354
    %p356 = scmp.ne.s32.totalorder %s347, %s348
    %p357 = scmp.eq.s32.totalorder %s33, 0
    %p358 = por %p356, %p357
    %p359 = scmp.ne.s32.totalorder %s347, %s348
    %p360 = scmp.eq.s32.totalorder %s34, 1
    %p361 = por %p359, %p360
    %p363 = scmp.ne.s32.totalorder %s348, %s362
    %p364 = scmp.eq.s32.totalorder %s34, 0
    %p365 = por %p363, %p364
    %s367 = sadd.s32 %s366, 1
    %p370 = scmp.eq.s32.totalorder %s28, 1
    %p371 = scmp.ne.s32.totalorder %s366, %s368
    %p372 = scmp.eq.s32.totalorder %s28, 0
    %p373 = por %p371, %p372
    %p374 = scmp.ne.s32.totalorder %s366, %s368
    %p375 = scmp.eq.s32.totalorder %s33, 1
    %p376 = por %p374, %p375
    %p377 = scmp.ne.s32.totalorder %s368, %s369
    %p378 = scmp.eq.s32.totalorder %s33, 0
    %p379 = por %p377, %p378
    %p380 = scmp.ne.s32.totalorder %s368, %s369
    %p381 = scmp.eq.s32.totalorder %s34, 1
    %p382 = por %p380, %p381
    %p384 = scmp.ne.s32.totalorder %s369, %s383
    %p385 = scmp.eq.s32.totalorder %s34, 0
    %p386 = por %p384, %p385
    %s388 = sadd.s32 %s387, 1
    %p391 = scmp.eq.s32.totalorder %s28, 1
    %p392 = scmp.ne.s32.totalorder %s387, %s389
    %p393 = scmp.eq.s32.totalorder %s28, 0
    %p394 = por %p392, %p393
    %p395 = scmp.ne.s32.totalorder %s387, %s389
    %p396 = scmp.eq.s32.totalorder %s33, 1
    %p397 = por %p395, %p396
    %p398 = scmp.ne.s32.totalorder %s389, %s390
    %p399 = scmp.eq.s32.totalorder %s33, 0
    %p400 = por %p398, %p399
    %p401 = scmp.ne.s32.totalorder %s389, %s390
    %p402 = scmp.eq.s32.totalorder %s34, 1
    %p403 = por %p401, %p402
    %p405 = scmp.ne.s32.totalorder %s390, %s404
    %p406 = scmp.eq.s32.totalorder %s34, 0
    %p407 = por %p405, %p406
    %s409 = sadd.s32 %s408, 1
    %p412 = scmp.eq.s32.totalorder %s28, 1
    %p413 = scmp.ne.s32.totalorder %s408, %s410
    %p414 = scmp.eq.s32.totalorder %s28, 0
    %p415 = por %p413, %p414
    %p416 = scmp.ne.s32.totalorder %s408, %s410
    %p417 = scmp.eq.s32.totalorder %s33, 1
    %p418 = por %p416, %p417
    %p419 = scmp.ne.s32.totalorder %s410, %s411
    %p420 = scmp.eq.s32.totalorder %s33, 0
    %p421 = por %p419, %p420
    %p422 = scmp.ne.s32.totalorder %s410, %s411
    %p423 = scmp.eq.s32.totalorder %s34, 1
    %p424 = por %p422, %p423
    %p426 = scmp.ne.s32.totalorder %s411, %s425
    %p427 = scmp.eq.s32.totalorder %s34, 0
    %p428 = por %p426, %p427
    %s430 = sadd.s32 %s429, 1
    %p433 = scmp.eq.s32.totalorder %s28, 1
    %p434 = scmp.ne.s32.totalorder %s429, %s431
    %p435 = scmp.eq.s32.totalorder %s28, 0
    %p436 = por %p434, %p435
    %p437 = scmp.ne.s32.totalorder %s429, %s431
    %p438 = scmp.eq.s32.totalorder %s33, 1
    %p439 = por %p437, %p438
    %p440 = scmp.ne.s32.totalorder %s431, %s432
    %p441 = scmp.eq.s32.totalorder %s33, 0
    %p442 = por %p440, %p441
    %p443 = scmp.ne.s32.totalorder %s431, %s432
    %p444 = scmp.eq.s32.totalorder %s34, 1
    %p445 = por %p443, %p444
    %p447 = scmp.ne.s32.totalorder %s432, %s446
    %p448 = scmp.eq.s32.totalorder %s34, 0
    %p449 = por %p447, %p448
    %s451 = sadd.s32 %s450, 1
    %p454 = scmp.eq.s32.totalorder %s28, 1
    %p455 = scmp.ne.s32.totalorder %s450, %s452
    %p456 = scmp.eq.s32.totalorder %s28, 0
    %p457 = por %p455, %p456
    %p458 = scmp.ne.s32.totalorder %s450, %s452
    %p459 = scmp.eq.s32.totalorder %s33, 1
    %p460 = por %p458, %p459
    %p461 = scmp.ne.s32.totalorder %s452, %s453
    %p462 = scmp.eq.s32.totalorder %s33, 0
    %p463 = por %p461, %p462
    %p464 = scmp.ne.s32.totalorder %s452, %s453
    %p465 = scmp.eq.s32.totalorder %s34, 1
    %p466 = por %p464, %p465
    %p468 = scmp.ne.s32.totalorder %s453, %s467
    %p469 = scmp.eq.s32.totalorder %s34, 0
    %p470 = por %p468, %p469
    %s472 = sadd.s32 %s471, 1
    %p475 = scmp.eq.s32.totalorder %s28, 1
    %p476 = scmp.ne.s32.totalorder %s471, %s473
    %p477 = scmp.eq.s32.totalorder %s28, 0
    %p478 = por %p476, %p477
    %p479 = scmp.ne.s32.totalorder %s471, %s473
    %p480 = scmp.eq.s32.totalorder %s33, 1
    %p481 = por %p479, %p480
    %p482 = scmp.ne.s32.totalorder %s473, %s474
    %p483 = scmp.eq.s32.totalorder %s33, 0
    %p484 = por %p482, %p483
    %p485 = scmp.ne.s32.totalorder %s473, %s474
    %p486 = scmp.eq.s32.totalorder %s34, 1
    %p487 = por %p485, %p486
    %p489 = scmp.ne.s32.totalorder %s474, %s488
    %p490 = scmp.eq.s32.totalorder %s34, 0
    %p491 = por %p489, %p490
    %s493 = sadd.s32 %s492, 1
    %p496 = scmp.eq.s32.totalorder %s28, 1
    %p497 = scmp.ne.s32.totalorder %s492, %s494
    %p498 = scmp.eq.s32.totalorder %s28, 0
    %p499 = por %p497, %p498
    %p500 = scmp.ne.s32.totalorder %s492, %s494
    %p501 = scmp.eq.s32.totalorder %s33, 1
    %p502 = por %p500, %p501
    %p503 = scmp.ne.s32.totalorder %s494, %s495
    %p504 = scmp.eq.s32.totalorder %s33, 0
    %p505 = por %p503, %p504
    %p506 = scmp.ne.s32.totalorder %s494, %s495
    %p507 = scmp.eq.s32.totalorder %s34, 1
    %p508 = por %p506, %p507
    %p510 = scmp.ne.s32.totalorder %s495, %s509
    %p511 = scmp.eq.s32.totalorder %s34, 0
    %p512 = por %p510, %p511
    %s513 = ssub.s32 %s28, %s35
    %p514 = scmp.eq.s32.totalorder %s513, 0
    %s516 = sadd.s32 %s515, 1
    %s517 = scalar_select %p514, %s515, %s516
    %p520 = pneg %p514
    %p521 = scmp.eq.s32.totalorder %s28, 1
    %p522 = por %p520, %p521
    %p523 = scmp.ne.s32.totalorder %s515, %s518
    %p524 = scmp.eq.s32.totalorder %s28, 0
    %p525 = por %p523, %p524
    %p526 = scmp.ne.s32.totalorder %s515, %s518
    %p527 = scmp.eq.s32.totalorder %s33, 1
    %p528 = por %p526, %p527
    %p529 = scmp.ne.s32.totalorder %s518, %s519
    %p530 = scmp.eq.s32.totalorder %s33, 0
    %p531 = por %p529, %p530
    %p532 = scmp.ne.s32.totalorder %s518, %s519
    %p533 = scmp.eq.s32.totalorder %s34, 1
    %p534 = por %p532, %p533
    %p536 = scmp.ne.s32.totalorder %s519, %s535
    %p537 = scmp.eq.s32.totalorder %s34, 0
    %p538 = por %p536, %p537
    %p539 = scmp.le.s32.totalorder 1, %s28
    %p540 = scmp.lt.s32.totalorder %s28, 3
    %p541 = pnand %p539, %p540
    %p542 = pneg %p541
    // Predicated region
    $region9: #{dit_forward.1} parent=5 // pred_check
      _
    $region10: #{dit_forward.1} parent=5 // pred_check_branch
      %544 = sbr.rel (%p541) target = $region12
    $region11: #{dit_forward.1} parent=5 // pred_region
      %s545 = ssub.s32 %s28, 1
      // Predicated region
      $region13: #{dit_forward.1} parent=11 // pred_check
        %p546 = pneg %p127
      $region14: #{dit_forward.1} parent=11 // pred_check_branch
        %548 = sbr.rel (%p546) target = $region16
      $region15: #{dit_forward.1} parent=11 // pred_region
        _
      $region16: #{dit_forward.1} parent=11 // pred_fallthru
        _
      // Predicated region
      $region17: #{dit_forward.1} parent=11 // pred_check
        %p549 = pneg %p148
      $region18: #{dit_forward.1} parent=11 // pred_check_branch
        %551 = sbr.rel (%p549) target = $region20
      $region19: #{dit_forward.1} parent=11 // pred_region
        _
      $region20: #{dit_forward.1} parent=11 // pred_fallthru
        _
      // Predicated region
      $region21: #{dit_forward.1} parent=11 // pred_check
        %p552 = pneg %p169
      $region22: #{dit_forward.1} parent=11 // pred_check_branch
        %554 = sbr.rel (%p552) target = $region24
      $region23: #{dit_forward.1} parent=11 // pred_region
        _
      $region24: #{dit_forward.1} parent=11 // pred_fallthru
        _
      // Predicated region
      $region25: #{dit_forward.1} parent=11 // pred_check
        %p555 = pneg %p190
      $region26: #{dit_forward.1} parent=11 // pred_check_branch
        %557 = sbr.rel (%p555) target = $region28
      $region27: #{dit_forward.1} parent=11 // pred_region
        _
      $region28: #{dit_forward.1} parent=11 // pred_fallthru
        _
      // Predicated region
      $region29: #{dit_forward.1} parent=11 // pred_check
        %p558 = pneg %p211
      $region30: #{dit_forward.1} parent=11 // pred_check_branch
        %560 = sbr.rel (%p558) target = $region32
      $region31: #{dit_forward.1} parent=11 // pred_region
        _
      $region32: #{dit_forward.1} parent=11 // pred_fallthru
        _
      // Predicated region
      $region33: #{dit_forward.1} parent=11 // pred_check
        %p561 = pneg %p232
      $region34: #{dit_forward.1} parent=11 // pred_check_branch
        %563 = sbr.rel (%p561) target = $region36
      $region35: #{dit_forward.1} parent=11 // pred_region
        _
      $region36: #{dit_forward.1} parent=11 // pred_fallthru
        _
      // Predicated region
      $region37: #{dit_forward.1} parent=11 // pred_check
        %p564 = pneg %p253
      $region38: #{dit_forward.1} parent=11 // pred_check_branch
        %566 = sbr.rel (%p564) target = $region40
      $region39: #{dit_forward.1} parent=11 // pred_region
        _
      $region40: #{dit_forward.1} parent=11 // pred_fallthru
        _
      // Predicated region
      $region41: #{dit_forward.1} parent=11 // pred_check
        %p567 = pneg %p274
      $region42: #{dit_forward.1} parent=11 // pred_check_branch
        %569 = sbr.rel (%p567) target = $region44
      $region43: #{dit_forward.1} parent=11 // pred_region
        _
      $region44: #{dit_forward.1} parent=11 // pred_fallthru
        _
      // Predicated region
      $region45: #{dit_forward.1} parent=11 // pred_check
        %p570 = pneg %p295
      $region46: #{dit_forward.1} parent=11 // pred_check_branch
        %572 = sbr.rel (%p570) target = $region48
      $region47: #{dit_forward.1} parent=11 // pred_region
        _
      $region48: #{dit_forward.1} parent=11 // pred_fallthru
        _
      // Predicated region
      $region49: #{dit_forward.1} parent=11 // pred_check
        %p573 = pneg %p316
      $region50: #{dit_forward.1} parent=11 // pred_check_branch
        %575 = sbr.rel (%p573) target = $region52
      $region51: #{dit_forward.1} parent=11 // pred_region
        _
      $region52: #{dit_forward.1} parent=11 // pred_fallthru
        _
      // Predicated region
      $region53: #{dit_forward.1} parent=11 // pred_check
        %p576 = pneg %p337
      $region54: #{dit_forward.1} parent=11 // pred_check_branch
        %578 = sbr.rel (%p576) target = $region56
      $region55: #{dit_forward.1} parent=11 // pred_region
        _
      $region56: #{dit_forward.1} parent=11 // pred_fallthru
        _
      // Predicated region
      $region57: #{dit_forward.1} parent=11 // pred_check
        %p579 = pneg %p358
      $region58: #{dit_forward.1} parent=11 // pred_check_branch
        %581 = sbr.rel (%p579) target = $region60
      $region59: #{dit_forward.1} parent=11 // pred_region
        _
      $region60: #{dit_forward.1} parent=11 // pred_fallthru
        _
      // Predicated region
      $region61: #{dit_forward.1} parent=11 // pred_check
        %p582 = pneg %p379
      $region62: #{dit_forward.1} parent=11 // pred_check_branch
        %584 = sbr.rel (%p582) target = $region64
      $region63: #{dit_forward.1} parent=11 // pred_region
        _
      $region64: #{dit_forward.1} parent=11 // pred_fallthru
        _
      // Predicated region
      $region65: #{dit_forward.1} parent=11 // pred_check
        %p585 = pneg %p400
      $region66: #{dit_forward.1} parent=11 // pred_check_branch
        %587 = sbr.rel (%p585) target = $region68
      $region67: #{dit_forward.1} parent=11 // pred_region
        _
      $region68: #{dit_forward.1} parent=11 // pred_fallthru
        _
      // Predicated region
      $region69: #{dit_forward.1} parent=11 // pred_check
        %p588 = pneg %p421
      $region70: #{dit_forward.1} parent=11 // pred_check_branch
        %590 = sbr.rel (%p588) target = $region72
      $region71: #{dit_forward.1} parent=11 // pred_region
        _
      $region72: #{dit_forward.1} parent=11 // pred_fallthru
        _
      // Predicated region
      $region73: #{dit_forward.1} parent=11 // pred_check
        %p591 = pneg %p442
      $region74: #{dit_forward.1} parent=11 // pred_check_branch
        %593 = sbr.rel (%p591) target = $region76
      $region75: #{dit_forward.1} parent=11 // pred_region
        _
      $region76: #{dit_forward.1} parent=11 // pred_fallthru
        _
      // Predicated region
      $region77: #{dit_forward.1} parent=11 // pred_check
        %p594 = pneg %p463
      $region78: #{dit_forward.1} parent=11 // pred_check_branch
        %596 = sbr.rel (%p594) target = $region80
      $region79: #{dit_forward.1} parent=11 // pred_region
        _
      $region80: #{dit_forward.1} parent=11 // pred_fallthru
        _
      // Predicated region
      $region81: #{dit_forward.1} parent=11 // pred_check
        %p597 = pneg %p484
      $region82: #{dit_forward.1} parent=11 // pred_check_branch
        %599 = sbr.rel (%p597) target = $region84
      $region83: #{dit_forward.1} parent=11 // pred_region
        _
      $region84: #{dit_forward.1} parent=11 // pred_fallthru
        _
      // Predicated region
      $region85: #{dit_forward.1} parent=11 // pred_check
        %p600 = pneg %p505
      $region86: #{dit_forward.1} parent=11 // pred_check_branch
        %602 = sbr.rel (%p600) target = $region88
      $region87: #{dit_forward.1} parent=11 // pred_region
        _
      $region88: #{dit_forward.1} parent=11 // pred_fallthru
        _
    $region12: #{dit_forward.1} parent=5 // pred_fallthru
      _
    %p603 = scmp.lt.s32.totalorder %s28, 2
    // Predicated region
    $region89: #{dit_forward.1} parent=5 // pred_check
      %p604 = pneg %p603
    $region90: #{dit_forward.1} parent=5 // pred_check_branch
      %606 = sbr.rel (%p604) target = $region92
    $region91: #{dit_forward.1} parent=5 // pred_region
      // Predicated region
      $region93: #{dit_forward.1} parent=91 // pred_check
        %p607 = pneg %p48
      $region94: #{dit_forward.1} parent=91 // pred_check_branch
        %609 = sbr.rel (%p607) target = $region96
      $region95: #{dit_forward.1} parent=91 // pred_region
        %p610 = scmp.lt.s32.totalorder %s28, 1
        %s611 = scalar_select %p610, %s28, 1
        %s612 = smul.addr %s611, 2
        %s613 = scalar_lea.vmem %s0, %s612
      $region96: #{dit_forward.1} parent=91 // pred_fallthru
        _
      // Predicated region
      $region97: #{dit_forward.1} parent=91 // pred_check
        %p614 = pneg %p74
      $region98: #{dit_forward.1} parent=91 // pred_check_branch
        %616 = sbr.rel (%p614) target = $region100
      $region99: #{dit_forward.1} parent=91 // pred_region
        %p617 = scmp.lt.s32.totalorder %s28, 1
        %s618 = scalar_select %p617, %s28, 1
        %s619 = scalar_lea.vmem %s1, %s618
      $region100: #{dit_forward.1} parent=91 // pred_fallthru
        _
      // Predicated region
      $region101: #{dit_forward.1} parent=91 // pred_check
        %p620 = pneg %p100
      $region102: #{dit_forward.1} parent=91 // pred_check_branch
        %622 = sbr.rel (%p620) target = $region104
      $region103: #{dit_forward.1} parent=91 // pred_region
        %p623 = scmp.lt.s32.totalorder %s28, 1
        %s624 = scalar_select %p623, %s28, 1
        %s625 = smul.addr %s624, 16
        %s626 = smul.addr %s625, 8
        %s627 = scalar_lea.vmem %s2, %s626
      $region104: #{dit_forward.1} parent=91 // pred_fallthru
        _
    $region92: #{dit_forward.1} parent=5 // pred_fallthru
      _
    %p628 = scmp.le.s32.totalorder 1, %s28
    %p629 = scmp.lt.s32.totalorder %s28, 3
    %p630 = pnand %p628, %p629
    %p631 = pneg %p630
    // Predicated region
    $region105: #{dit_forward.1} parent=5 // pred_check
      _
    $region106: #{dit_forward.1} parent=5 // pred_check_branch
      %633 = sbr.rel (%p630) target = $region108
    $region107: #{dit_forward.1} parent=5 // pred_region
      %s634 = ssub.s32 %s28, 1
      %p635 = scmp.lt.s32.totalorder %s33, 1
      %s636 = scalar_select %p635, %s33, 1
      %s637 = smul.addr %s636, 2
      %s638 = scalar_lea.vmem %s0, %s637
      %p639 = pneg %p54
      %p640 = pneg %p51
      %p641 = scmp.lt.s32.totalorder %s33, 1
      %s642 = scalar_select %p641, %s33, 1
      %s643 = scalar_lea.vmem %s1, %s642
      %p644 = pneg %p80
      %p645 = pneg %p77
      %p646 = scmp.lt.s32.totalorder %s33, 1
      %s647 = scalar_select %p646, %s33, 1
      %s648 = smul.addr %s647, 16
      %s649 = smul.addr %s648, 8
      %s650 = scalar_lea.vmem %s2, %s649
      %p651 = pneg %p106
      %p652 = pneg %p103
      %p653 = pneg %p127
      %p654 = pneg %p124
      %p655 = pneg %p148
      %p656 = pneg %p145
      %p657 = pneg %p169
      %p658 = pneg %p166
      %p659 = pneg %p190
      %p660 = pneg %p187
      %p661 = pneg %p211
      %p662 = pneg %p208
      %p663 = pneg %p232
      %p664 = pneg %p229
      %p665 = pneg %p253
      %p666 = pneg %p250
      %p667 = pneg %p274
      %p668 = pneg %p271
      %p669 = pneg %p295
      %p670 = pneg %p292
      %p671 = pneg %p316
      %p672 = pneg %p313
      %p673 = pneg %p337
      %p674 = pneg %p334
      %p675 = pneg %p358
      %p676 = pneg %p355
      %p677 = pneg %p379
      %p678 = pneg %p376
      %p679 = pneg %p400
      %p680 = pneg %p397
      %p681 = pneg %p421
      %p682 = pneg %p418
      %p683 = pneg %p442
      %p684 = pneg %p439
      %p685 = pneg %p463
      %p686 = pneg %p460
      %p687 = pneg %p484
      %p688 = pneg %p481
      %p689 = pneg %p505
      %p690 = pneg %p502
      %p691 = pneg %p531
      %p692 = pneg %p528
      %p693 = scmp.lt.s32.totalorder %s33, 1
      %s694 = scalar_select %p693, %s33, 1
      %s695 = smul.addr %s694, 16
      %s696 = smul.addr %s695, 8
      %s697 = scalar_lea.vmem %s22, %s696
      %p698 = scmp.lt.s32.totalorder %s33, 1
      %s699 = scalar_select %p698, %s33, 1
      %s700 = smul.addr %s699, 2
      %s701 = scalar_lea.vmem %s0, %s700
      %p702 = scmp.lt.s32.totalorder %s33, 1
      %s703 = scalar_select %p702, %s33, 1
      %s704 = scalar_lea.vmem %s1, %s703
      %p705 = scmp.lt.s32.totalorder %s33, 1
      %s706 = scalar_select %p705, %s33, 1
      %s707 = smul.addr %s706, 16
      %s708 = smul.addr %s707, 8
      %s709 = scalar_lea.vmem %s2, %s708
      %p710 = scmp.lt.s32.totalorder %s33, 1
      %s711 = scalar_select %p710, %s33, 1
      %s712 = smul.addr %s711, 16
      %s713 = smul.addr %s712, 8
      %s714 = scalar_lea.vmem %s22, %s713
      %v716 = vld [vmem:[%s701] sm:$0x3]
      %v718 = vlaneseq
      %v719 = vshrl.u32 %v718, 7
      %v720 = vsub.s32 0, %v719
      %v721 = vrot.slane %v716, %v720
      %v722 = vlaneseq
      %v723 = vshrl.u32 %v722, 7
      %v724 = vsub.s32 1, %v723
      %v725 = vrot.slane %v716, %v724
      %v728 = vpack.c.bf16 %v721, %v721
      %v729 = vpack.c.bf16 %v725, %v725
      %v730 = vld [vmem:[%s6] sm:$0xf]
      %v731 = vld [vmem:[%s6 + $0x4] sm:$0xf]
      %v732 = vld [vmem:[%s6 + $0x8] sm:$0xf]
      %v733 = vld [vmem:[%s6 + $0xc] sm:$0xf]
      %v734 = vld [vmem:[%s6 + $0x10] sm:$0xf]
      %v735 = vld [vmem:[%s6 + $0x14] sm:$0xf]
      %v736 = vld [vmem:[%s6 + $0x18] sm:$0xf]
      %v737 = vld [vmem:[%s6 + $0x1c] sm:$0xf]
      %v738 = vld [vmem:[%s6 + $0x20] sm:$0xf]
      %v739 = vld [vmem:[%s6 + $0x24] sm:$0xf]
      %v740 = vld [vmem:[%s6 + $0x28] sm:$0xf]
      %v741 = vld [vmem:[%s6 + $0x2c] sm:$0xf]
      %v742 = vld [vmem:[%s6 + $0x30] sm:$0xf]
      %v743 = vld [vmem:[%s6 + $0x34] sm:$0xf]
      %v744 = vld [vmem:[%s6 + $0x38] sm:$0xf]
      %v745 = vld [vmem:[%s6 + $0x3c] sm:$0xf]
      %v746 = vld [vmem:[%s6 + $0x40] sm:$0xf]
      %v747 = vld [vmem:[%s6 + $0x44] sm:$0xf]
      %v748 = vld [vmem:[%s6 + $0x48] sm:$0xf]
      %v749 = vld [vmem:[%s6 + $0x4c] sm:$0xf]
      %v750 = vld [vmem:[%s6 + $0x50] sm:$0xf]
      %v751 = vld [vmem:[%s6 + $0x54] sm:$0xf]
      %v752 = vld [vmem:[%s6 + $0x58] sm:$0xf]
      %v753 = vld [vmem:[%s6 + $0x5c] sm:$0xf]
      %v754 = vld [vmem:[%s6 + $0x60] sm:$0xf]
      %v755 = vld [vmem:[%s6 + $0x64] sm:$0xf]
      %v756 = vld [vmem:[%s6 + $0x68] sm:$0xf]
      %v757 = vld [vmem:[%s6 + $0x6c] sm:$0xf]
      %v758 = vld [vmem:[%s6 + $0x70] sm:$0xf]
      %v759 = vld [vmem:[%s6 + $0x74] sm:$0xf]
      %v760 = vld [vmem:[%s6 + $0x78] sm:$0xf]
      %v761 = vld [vmem:[%s6 + $0x7c] sm:$0xf]
      %v762 = vld [vmem:[%s7] sm:$0x1]
      %v795 = vunpack.c.l.b16 %v730
      %v796 = vunpack.c.l.b16 %v731
      %v797 = vunpack.c.l.b16 %v732
      %v798 = vunpack.c.l.b16 %v733
      %v799 = vunpack.c.l.b16 %v734
      %v800 = vunpack.c.l.b16 %v735
      %v801 = vunpack.c.l.b16 %v736
      %v802 = vunpack.c.l.b16 %v737
      %v803 = vunpack.c.l.b16 %v738
      %v804 = vunpack.c.l.b16 %v739
      %v805 = vunpack.c.l.b16 %v740
      %v806 = vunpack.c.l.b16 %v741
      %v807 = vunpack.c.l.b16 %v742
      %v808 = vunpack.c.l.b16 %v743
      %v809 = vunpack.c.l.b16 %v744
      %v810 = vunpack.c.l.b16 %v745
      %v811 = vunpack.c.l.b16 %v746
      %v812 = vunpack.c.l.b16 %v747
      %v813 = vunpack.c.l.b16 %v748
      %v814 = vunpack.c.l.b16 %v749
      %v815 = vunpack.c.l.b16 %v750
      %v816 = vunpack.c.l.b16 %v751
      %v817 = vunpack.c.l.b16 %v752
      %v818 = vunpack.c.l.b16 %v753
      %v819 = vunpack.c.l.b16 %v754
      %v820 = vunpack.c.l.b16 %v755
      %v821 = vunpack.c.l.b16 %v756
      %v822 = vunpack.c.l.b16 %v757
      %v823 = vunpack.c.l.b16 %v758
      %v824 = vunpack.c.l.b16 %v759
      %v825 = vunpack.c.l.b16 %v760
      %v826 = vunpack.c.l.b16 %v761
      %v827 = vpack.c.b16 %v796, %v795
      %v828 = vpack.c.b16 %v798, %v797
      %v829 = vpack.c.b16 %v800, %v799
      %v830 = vpack.c.b16 %v802, %v801
      %v831 = vpack.c.b16 %v804, %v803
      %v832 = vpack.c.b16 %v806, %v805
      %v833 = vpack.c.b16 %v808, %v807
      %v834 = vpack.c.b16 %v810, %v809
      %v835 = vpack.c.b16 %v812, %v811
      %v836 = vpack.c.b16 %v814, %v813
      %v837 = vpack.c.b16 %v816, %v815
      %v838 = vpack.c.b16 %v818, %v817
      %v839 = vpack.c.b16 %v820, %v819
      %v840 = vpack.c.b16 %v822, %v821
      %v841 = vpack.c.b16 %v824, %v823
      %v842 = vpack.c.b16 %v826, %v825
      %859 = vmatprep.subr.bf16.mxu0 0
      %860 = vmatpush1.bf16.msra.mxu0 %v834
      %861 = vmatprep.subr.bf16.mxu0 0
      %862 = vmatpush1.bf16.msra.mxu0 %v833
      %863 = vmatprep.subr.bf16.mxu0 0
      %864 = vmatpush1.bf16.msra.mxu0 %v832
      %865 = vmatprep.subr.bf16.mxu0 0
      %866 = vmatpush1.bf16.msra.mxu0 %v831
      %867 = vmatprep.subr.bf16.mxu0 0
      %868 = vmatpush1.bf16.msra.mxu0 %v830
      %869 = vmatprep.subr.bf16.mxu0 0
      %870 = vmatpush1.bf16.msra.mxu0 %v829
      %871 = vmatprep.subr.bf16.mxu0 0
      %872 = vmatpush1.bf16.msra.mxu0 %v828
      %873 = vmatprep.subr.bf16.mxu0 0
      %874 = vmatpush1.bf16.msra.mxu0 %v827
      %875 = vmatprep.subr.bf16.mxu0 0
      %876 = vmatpush2.bf16.msra.mxu0 %v842
      %877 = vmatprep.subr.bf16.mxu0 0
      %878 = vmatpush2.bf16.msra.mxu0 %v841
      %879 = vmatprep.subr.bf16.mxu0 0
      %880 = vmatpush2.bf16.msra.mxu0 %v840
      %881 = vmatprep.subr.bf16.mxu0 0
      %882 = vmatpush2.bf16.msra.mxu0 %v839
      %883 = vmatprep.subr.bf16.mxu0 0
      %884 = vmatpush2.bf16.msra.mxu0 %v838
      %885 = vmatprep.subr.bf16.mxu0 0
      %886 = vmatpush2.bf16.msra.mxu0 %v837
      %887 = vmatprep.subr.bf16.mxu0 0
      %888 = vmatpush2.bf16.msra.mxu0 %v836
      %889 = vmatprep.subr.bf16.mxu0 0
      %890 = vmatpush2.bf16.msra.mxu0 %v835
      %891 = vmatprep.mubr.bf16.mxu0 %v729
      %892 = vmatmul.mubr.bf16.gmra.mxu0 %v728
      %v893 = vpop.f32.mrf.mxu0
      %v894 = vadd.f32 %v762, %v893
      %v895 = vpop.f32.mrf.mxu0
      %v896 = vpop.f32.mrf.mxu0
      %v897 = vpop.f32.mrf.mxu0
      %898 = vdwg.mxu0
      %v899 = vxor.u32 %v894, 2147483648
      %v900 = vmul.f32 %v899, 1.442695
      %v901 = vpow.pop %v900
      %v902 = vadd.f32 %v901, 1.0
      %v903 = vrcp.pop %v902
      %v904 = vmul.f32 1.0, %v903
      %v905 = vmul.f32 %v894, %v904
      %v906 = vpack.c.bf16 %v905, %v905
      %v907 = vld [vmem:[%s8] sm:$0xf]
      %v908 = vld [vmem:[%s8 + $0x4] sm:$0xf]
      %v909 = vld [vmem:[%s8 + $0x8] sm:$0xf]
      %v910 = vld [vmem:[%s8 + $0xc] sm:$0xf]
      %v911 = vld [vmem:[%s8 + $0x10] sm:$0xf]
      %v912 = vld [vmem:[%s8 + $0x14] sm:$0xf]
      %v913 = vld [vmem:[%s9] sm:$0x1]
      %v920 = vunpack.c.l.b16 %v907
      %v921 = vunpack.c.l.b16 %v908
      %v922 = vunpack.c.l.b16 %v909
      %v923 = vunpack.c.l.b16 %v910
      %v924 = vunpack.c.l.b16 %v911
      %v925 = vunpack.c.l.b16 %v912
      %v926 = vpack.c.b16 %v921, %v920
      %v927 = vpack.c.b16 %v923, %v922
      %v928 = vpack.c.b16 %v925, %v924
      %vm932 = vcmask 392192
      %v934 = vsel %vm932, %v906, 0
      %936 = vmatprep.subr.bf16.mxu0 0
      %937 = vmatpush1.bf16.msra.mxu0 0
      %938 = vmatprep.subr.bf16.mxu0 0
      %939 = vmatpush1.bf16.msra.mxu0 0
      %940 = vmatprep.subr.bf16.mxu0 0
      %941 = vmatpush1.bf16.msra.mxu0 0
      %942 = vmatprep.subr.bf16.mxu0 0
      %943 = vmatpush1.bf16.msra.mxu0 0
      %944 = vmatprep.subr.bf16.mxu0 0
      %945 = vmatpush1.bf16.msra.mxu0 0
      %946 = vmatprep.subr.bf16.mxu0 0
      %947 = vmatpush1.bf16.msra.mxu0 %v928
      %948 = vmatprep.subr.bf16.mxu0 0
      %949 = vmatpush1.bf16.msra.mxu0 %v927
      %950 = vmatprep.subr.bf16.mxu0 0
      %951 = vmatpush1.bf16.msra.mxu0 %v926
      %952 = vmatprep.subr.bf16.mxu0 0
      %953 = vmatpush2.bf16.msra.mxu0 0
      %954 = vmatprep.subr.bf16.mxu0 0
      %955 = vmatpush2.bf16.msra.mxu0 0
      %956 = vmatprep.subr.bf16.mxu0 0
      %957 = vmatpush2.bf16.msra.mxu0 0
      %958 = vmatprep.subr.bf16.mxu0 0
      %959 = vmatpush2.bf16.msra.mxu0 0
      %960 = vmatprep.subr.bf16.mxu0 0
      %961 = vmatpush2.bf16.msra.mxu0 0
      %962 = vmatprep.subr.bf16.mxu0 0
      %963 = vmatpush2.bf16.msra.mxu0 0
      %964 = vmatprep.subr.bf16.mxu0 0
      %965 = vmatpush2.bf16.msra.mxu0 0
      %966 = vmatprep.subr.bf16.mxu0 0
      %967 = vmatpush2.bf16.msra.mxu0 0
      %968 = vmatprep.mubr.bf16.mxu0 0
      %969 = vmatmul.mubr.bf16.gmra.mxu0 %v934
      %v970 = vpop.f32.mrf.mxu0
      %v971 = vadd.f32 %v913, %v970
      %v972 = vpop.f32.mrf.mxu0
      %v973 = vpop.f32.mrf.mxu0
      %v974 = vpop.f32.mrf.mxu0
      %975 = vdwg.mxu0
      %v976 = vld [vmem:[%s704] sm:$0x1]
      %v977 = vadd.f32 %v971, %v976
      %v978 = vxor.u32 %v977, 2147483648
      %v979 = vmul.f32 %v978, 1.442695
      %v980 = vpow.pop %v979
      %v981 = vadd.f32 %v980, 1.0
      %v982 = vrcp.pop %v981
      %v983 = vmul.f32 1.0, %v982
      %v984 = vmul.f32 %v977, %v983
      %v985 = vpack.c.bf16 %v984, %v984
      %v986 = vld [vmem:[%s709] sm:$0xff]
      %v987 = vld [vmem:[%s709 + $0x8] sm:$0xff]
      %v988 = vld [vmem:[%s709 + $0x10] sm:$0xff]
      %v989 = vld [vmem:[%s709 + $0x18] sm:$0xff]
      %v990 = vld [vmem:[%s709 + $0x20] sm:$0xff]
      %v991 = vld [vmem:[%s709 + $0x28] sm:$0xff]
      %v992 = vld [vmem:[%s709 + $0x30] sm:$0xff]
      %v993 = vld [vmem:[%s709 + $0x38] sm:$0xff]
      %v994 = vld [vmem:[%s709 + $0x40] sm:$0xff]
      %v995 = vld [vmem:[%s709 + $0x48] sm:$0xff]
      %v996 = vld [vmem:[%s709 + $0x50] sm:$0xff]
      %v997 = vld [vmem:[%s709 + $0x58] sm:$0xff]
      %v998 = vld [vmem:[%s709 + $0x60] sm:$0xff]
      %v999 = vld [vmem:[%s709 + $0x68] sm:$0xff]
      %v1000 = vld [vmem:[%s709 + $0x70] sm:$0xff]
      %v1001 = vld [vmem:[%s709 + $0x78] sm:$0xff]
      %v1002 = vpack.c.bf16 %v988, %v986
      %v1003 = vpack.c.bf16 %v989, %v987
      %v1004 = vpack.c.bf16 %v992, %v990
      %v1005 = vpack.c.bf16 %v993, %v991
      %v1006 = vpack.c.bf16 %v996, %v994
      %v1007 = vpack.c.bf16 %v997, %v995
      %v1008 = vpack.c.bf16 %v1000, %v998
      %v1009 = vpack.c.bf16 %v1001, %v999
      %v1010 = vld [vmem:[%s3] sm:$0xf]
      %v1011 = vld [vmem:[%s3 + $0x4] sm:$0xf]
      %v1012 = vld [vmem:[%s3 + $0x8] sm:$0xf]
      %v1013 = vld [vmem:[%s3 + $0xc] sm:$0xf]
      %v1014 = vld [vmem:[%s3 + $0x10] sm:$0xf]
      %v1015 = vld [vmem:[%s3 + $0x14] sm:$0xf]
      %v1016 = vld [vmem:[%s3 + $0x18] sm:$0xf]
      %v1017 = vld [vmem:[%s3 + $0x1c] sm:$0xf]
      %v1018 = vld [vmem:[%s3 + $0x20] sm:$0xf]
      %v1019 = vld [vmem:[%s3 + $0x24] sm:$0xf]
      %v1020 = vld [vmem:[%s3 + $0x28] sm:$0xf]
      %v1021 = vld [vmem:[%s3 + $0x2c] sm:$0xf]
      %v1022 = vld [vmem:[%s3 + $0x30] sm:$0xf]
      %v1023 = vld [vmem:[%s3 + $0x34] sm:$0xf]
      %v1024 = vld [vmem:[%s3 + $0x38] sm:$0xf]
      %v1025 = vld [vmem:[%s3 + $0x3c] sm:$0xf]
      %v1026 = vld [vmem:[%s3 + $0x40] sm:$0xf]
      %v1027 = vld [vmem:[%s3 + $0x44] sm:$0xf]
      %v1028 = vld [vmem:[%s3 + $0x48] sm:$0xf]
      %v1029 = vld [vmem:[%s3 + $0x4c] sm:$0xf]
      %v1030 = vld [vmem:[%s3 + $0x50] sm:$0xf]
      %v1031 = vld [vmem:[%s3 + $0x54] sm:$0xf]
      %v1032 = vld [vmem:[%s3 + $0x58] sm:$0xf]
      %v1033 = vld [vmem:[%s3 + $0x5c] sm:$0xf]
      %v1034 = vld [vmem:[%s4] sm:$0x1]
      %v1036 = vlaneseq
      %v1037 = vshrl.u32 %v1036, 7
      %v1038 = vsub.s32 0, %v1037
      %v1039 = vrot.slane %v1034, %v1038
      %v1065 = vunpack.c.l.b16 %v1010
      %v1066 = vunpack.c.l.b16 %v1011
      %v1067 = vunpack.c.l.b16 %v1012
      %v1068 = vunpack.c.l.b16 %v1013
      %v1069 = vunpack.c.l.b16 %v1014
      %v1070 = vunpack.c.l.b16 %v1015
      %v1071 = vunpack.c.l.b16 %v1016
      %v1072 = vunpack.c.l.b16 %v1017
      %v1073 = vunpack.c.l.b16 %v1018
      %v1074 = vunpack.c.l.b16 %v1019
      %v1075 = vunpack.c.l.b16 %v1020
      %v1076 = vunpack.c.l.b16 %v1021
      %v1077 = vunpack.c.l.b16 %v1022
      %v1078 = vunpack.c.l.b16 %v1023
      %v1079 = vunpack.c.l.b16 %v1024
      %v1080 = vunpack.c.l.b16 %v1025
      %v1081 = vunpack.c.l.b16 %v1026
      %v1082 = vunpack.c.l.b16 %v1027
      %v1083 = vunpack.c.l.b16 %v1028
      %v1084 = vunpack.c.l.b16 %v1029
      %v1085 = vunpack.c.l.b16 %v1030
      %v1086 = vunpack.c.l.b16 %v1031
      %v1087 = vunpack.c.l.b16 %v1032
      %v1088 = vunpack.c.l.b16 %v1033
      %v1089 = vpack.c.b16 %v1066, %v1065
      %v1090 = vpack.c.b16 %v1068, %v1067
      %v1091 = vpack.c.b16 %v1070, %v1069
      %v1092 = vpack.c.b16 %v1072, %v1071
      %v1093 = vpack.c.b16 %v1074, %v1073
      %v1094 = vpack.c.b16 %v1076, %v1075
      %v1095 = vpack.c.b16 %v1078, %v1077
      %v1096 = vpack.c.b16 %v1080, %v1079
      %v1097 = vpack.c.b16 %v1082, %v1081
      %v1098 = vpack.c.b16 %v1084, %v1083
      %v1099 = vpack.c.b16 %v1086, %v1085
      %v1100 = vpack.c.b16 %v1088, %v1087
      %vm1113 = vcmask 523264
      %v1115 = vsel %vm1113, %v1003, 0
      %v1118 = vsel %vm1113, %v1005, 0
      %v1121 = vsel %vm1113, %v1007, 0
      %v1124 = vsel %vm1113, %v1009, 0
      %1126 = vmatprep.subr.bf16.mxu0 0
      %1127 = vmatpush1.bf16.msra.mxu0 %v1096
      %1128 = vmatprep.subr.bf16.mxu0 0
      %1129 = vmatpush1.bf16.msra.mxu0 %v1095
      %1130 = vmatprep.subr.bf16.mxu0 0
      %1131 = vmatpush1.bf16.msra.mxu0 %v1094
      %1132 = vmatprep.subr.bf16.mxu0 0
      %1133 = vmatpush1.bf16.msra.mxu0 %v1093
      %1134 = vmatprep.subr.bf16.mxu0 0
      %1135 = vmatpush1.bf16.msra.mxu0 %v1092
      %1136 = vmatprep.subr.bf16.mxu0 0
      %1137 = vmatpush1.bf16.msra.mxu0 %v1091
      %1138 = vmatprep.subr.bf16.mxu0 0
      %1139 = vmatpush1.bf16.msra.mxu0 %v1090
      %1140 = vmatprep.subr.bf16.mxu0 0
      %1141 = vmatpush1.bf16.msra.mxu0 %v1089
      %1142 = vmatprep.subr.bf16.mxu0 0
      %1143 = vmatpush2.bf16.msra.mxu0 0
      %1144 = vmatprep.subr.bf16.mxu0 0
      %1145 = vmatpush2.bf16.msra.mxu0 0
      %1146 = vmatprep.subr.bf16.mxu0 0
      %1147 = vmatpush2.bf16.msra.mxu0 0
      %1148 = vmatprep.subr.bf16.mxu0 0
      %1149 = vmatpush2.bf16.msra.mxu0 0
      %1150 = vmatprep.subr.bf16.mxu0 0
      %1151 = vmatpush2.bf16.msra.mxu0 %v1100
      %1152 = vmatprep.subr.bf16.mxu0 0
      %1153 = vmatpush2.bf16.msra.mxu0 %v1099
      %1154 = vmatprep.subr.bf16.mxu0 0
      %1155 = vmatpush2.bf16.msra.mxu0 %v1098
      %1156 = vmatprep.subr.bf16.mxu0 0
      %1157 = vmatpush2.bf16.msra.mxu0 %v1097
      %1158 = vmatprep.mubr.bf16.mxu0 %v1115
      %1159 = vmatmul.mubr.bf16.gmra.mxu0 %v1002
      %v1160 = vpop.f32.mrf.mxu0
      %v1161 = vadd.f32 %v1039, %v1160
      %v1162 = vpop.f32.mrf.mxu0
      %v1163 = vpop.f32.mrf.mxu0
      %v1164 = vadd.f32 %v1039, %v1163
      %v1165 = vpop.f32.mrf.mxu0
      %1166 = vmatprep.mubr.bf16.mxu0 %v1118
      %1167 = vmatmul.mubr.bf16.gmra.mxu0 %v1004
      %v1168 = vpop.f32.mrf.mxu0
      %v1169 = vadd.f32 %v1039, %v1168
      %v1170 = vpop.f32.mrf.mxu0
      %v1171 = vpop.f32.mrf.mxu0
      %v1172 = vadd.f32 %v1039, %v1171
      %v1173 = vpop.f32.mrf.mxu0
      %1174 = vmatprep.mubr.bf16.mxu0 %v1121
      %1175 = vmatmul.mubr.bf16.gmra.mxu0 %v1006
      %v1176 = vpop.f32.mrf.mxu0
      %v1177 = vadd.f32 %v1039, %v1176
      %v1178 = vpop.f32.mrf.mxu0
      %v1179 = vpop.f32.mrf.mxu0
      %v1180 = vadd.f32 %v1039, %v1179
      %v1181 = vpop.f32.mrf.mxu0
      %1182 = vmatprep.mubr.bf16.mxu0 %v1124
      %1183 = vmatmul.mubr.bf16.gmra.mxu0 %v1008
      %v1184 = vpop.f32.mrf.mxu0
      %v1185 = vadd.f32 %v1039, %v1184
      %v1186 = vpop.f32.mrf.mxu0
      %v1187 = vpop.f32.mrf.mxu0
      %v1188 = vadd.f32 %v1039, %v1187
      %v1189 = vpop.f32.mrf.mxu0
      %1190 = vdwg.mxu0
      %v1191 = vld [vmem:[%s5] sm:$0xff]
      %v1192 = vld [vmem:[%s5 + $0x8] sm:$0xff]
      %v1193 = vld [vmem:[%s5 + $0x10] sm:$0xff]
      %v1194 = vld [vmem:[%s5 + $0x18] sm:$0xff]
      %v1195 = vld [vmem:[%s5 + $0x20] sm:$0xff]
      %v1196 = vld [vmem:[%s5 + $0x28] sm:$0xff]
      %v1197 = vld [vmem:[%s5 + $0x30] sm:$0xff]
      %v1198 = vld [vmem:[%s5 + $0x38] sm:$0xff]
      %v1199 = vadd.f32 %v1161, %v1191
      %v1200 = vadd.f32 %v1164, %v1192
      %v1201 = vadd.f32 %v1169, %v1193
      %v1202 = vadd.f32 %v1172, %v1194
      %v1203 = vadd.f32 %v1177, %v1195
      %v1204 = vadd.f32 %v1180, %v1196
      %v1205 = vadd.f32 %v1185, %v1197
      %v1206 = vadd.f32 %v1188, %v1198
      %v1207 = vld [vmem:[%s10] sm:$0xf]
      %v1208 = vld [vmem:[%s10 + $0x4] sm:$0xf]
      %v1209 = vld [vmem:[%s10 + $0x8] sm:$0xf]
      %v1210 = vld [vmem:[%s10 + $0xc] sm:$0xf]
      %v1211 = vld [vmem:[%s10 + $0x10] sm:$0xf]
      %v1212 = vld [vmem:[%s10 + $0x14] sm:$0xf]
      %v1213 = vld [vmem:[%s11] sm:$0x1]
      %v1220 = vunpack.c.l.b16 %v1207
      %v1221 = vunpack.c.l.b16 %v1208
      %v1222 = vunpack.c.l.b16 %v1209
      %v1223 = vunpack.c.l.b16 %v1210
      %v1224 = vunpack.c.l.b16 %v1211
      %v1225 = vunpack.c.l.b16 %v1212
      %v1226 = vpack.c.b16 %v1221, %v1220
      %v1227 = vpack.c.b16 %v1223, %v1222
      %v1228 = vpack.c.b16 %v1225, %v1224
      %v1233 = vsel %vm932, %v985, 0
      %1235 = vmatprep.subr.bf16.mxu0 0
      %1236 = vmatpush1.bf16.msra.mxu0 0
      %1237 = vmatprep.subr.bf16.mxu0 0
      %1238 = vmatpush1.bf16.msra.mxu0 0
      %1239 = vmatprep.subr.bf16.mxu0 0
      %1240 = vmatpush1.bf16.msra.mxu0 0
      %1241 = vmatprep.subr.bf16.mxu0 0
      %1242 = vmatpush1.bf16.msra.mxu0 0
      %1243 = vmatprep.subr.bf16.mxu0 0
      %1244 = vmatpush1.bf16.msra.mxu0 0
      %1245 = vmatprep.subr.bf16.mxu0 0
      %1246 = vmatpush1.bf16.msra.mxu0 %v1228
      %1247 = vmatprep.subr.bf16.mxu0 0
      %1248 = vmatpush1.bf16.msra.mxu0 %v1227
      %1249 = vmatprep.subr.bf16.mxu0 0
      %1250 = vmatpush1.bf16.msra.mxu0 %v1226
      %1251 = vmatprep.subr.bf16.mxu0 0
      %1252 = vmatpush2.bf16.msra.mxu0 0
      %1253 = vmatprep.subr.bf16.mxu0 0
      %1254 = vmatpush2.bf16.msra.mxu0 0
      %1255 = vmatprep.subr.bf16.mxu0 0
      %1256 = vmatpush2.bf16.msra.mxu0 0
      %1257 = vmatprep.subr.bf16.mxu0 0
      %1258 = vmatpush2.bf16.msra.mxu0 0
      %1259 = vmatprep.subr.bf16.mxu0 0
      %1260 = vmatpush2.bf16.msra.mxu0 0
      %1261 = vmatprep.subr.bf16.mxu0 0
      %1262 = vmatpush2.bf16.msra.mxu0 0
      %1263 = vmatprep.subr.bf16.mxu0 0
      %1264 = vmatpush2.bf16.msra.mxu0 0
      %1265 = vmatprep.subr.bf16.mxu0 0
      %1266 = vmatpush2.bf16.msra.mxu0 0
      %1267 = vmatprep.mubr.bf16.mxu0 0
      %1268 = vmatmul.mubr.bf16.gmra.mxu0 %v1233
      %v1269 = vpop.f32.mrf.mxu0
      %v1270 = vadd.f32 %v1213, %v1269
      %v1271 = vpop.f32.mrf.mxu0
      %v1272 = vpop.f32.mrf.mxu0
      %v1273 = vpop.f32.mrf.mxu0
      %1274 = vdwg.mxu0
      %s1275 = scalar_lea.vmem %s10, 24
      %v1276 = vld [vmem:[%s1275] sm:$0xf]
      %v1277 = vld [vmem:[%s1275 + $0x4] sm:$0xf]
      %v1278 = vld [vmem:[%s1275 + $0x8] sm:$0xf]
      %v1279 = vld [vmem:[%s1275 + $0xc] sm:$0xf]
      %v1280 = vld [vmem:[%s1275 + $0x10] sm:$0xf]
      %v1281 = vld [vmem:[%s1275 + $0x14] sm:$0xf]
      %s1282 = scalar_lea.vmem %s11, 1
      %v1283 = vld [vmem:[%s1282] sm:$0x1]
      %v1290 = vunpack.c.l.b16 %v1276
      %v1291 = vunpack.c.l.b16 %v1277
      %v1292 = vunpack.c.l.b16 %v1278
      %v1293 = vunpack.c.l.b16 %v1279
      %v1294 = vunpack.c.l.b16 %v1280
      %v1295 = vunpack.c.l.b16 %v1281
      %v1296 = vpack.c.b16 %v1291, %v1290
      %v1297 = vpack.c.b16 %v1293, %v1292
      %v1298 = vpack.c.b16 %v1295, %v1294
      %1302 = vmatprep.subr.bf16.mxu0 0
      %1303 = vmatpush1.bf16.msra.mxu0 0
      %1304 = vmatprep.subr.bf16.mxu0 0
      %1305 = vmatpush1.bf16.msra.mxu0 0
      %1306 = vmatprep.subr.bf16.mxu0 0
      %1307 = vmatpush1.bf16.msra.mxu0 0
      %1308 = vmatprep.subr.bf16.mxu0 0
      %1309 = vmatpush1.bf16.msra.mxu0 0
      %1310 = vmatprep.subr.bf16.mxu0 0
      %1311 = vmatpush1.bf16.msra.mxu0 0
      %1312 = vmatprep.subr.bf16.mxu0 0
      %1313 = vmatpush1.bf16.msra.mxu0 %v1298
      %1314 = vmatprep.subr.bf16.mxu0 0
      %1315 = vmatpush1.bf16.msra.mxu0 %v1297
      %1316 = vmatprep.subr.bf16.mxu0 0
      %1317 = vmatpush1.bf16.msra.mxu0 %v1296
      %1318 = vmatprep.subr.bf16.mxu0 0
      %1319 = vmatpush2.bf16.msra.mxu0 0
      %1320 = vmatprep.subr.bf16.mxu0 0
      %1321 = vmatpush2.bf16.msra.mxu0 0
      %1322 = vmatprep.subr.bf16.mxu0 0
      %1323 = vmatpush2.bf16.msra.mxu0 0
      %1324 = vmatprep.subr.bf16.mxu0 0
      %1325 = vmatpush2.bf16.msra.mxu0 0
      %1326 = vmatprep.subr.bf16.mxu0 0
      %1327 = vmatpush2.bf16.msra.mxu0 0
      %1328 = vmatprep.subr.bf16.mxu0 0
      %1329 = vmatpush2.bf16.msra.mxu0 0
      %1330 = vmatprep.subr.bf16.mxu0 0
      %1331 = vmatpush2.bf16.msra.mxu0 0
      %1332 = vmatprep.subr.bf16.mxu0 0
      %1333 = vmatpush2.bf16.msra.mxu0 0
      %1334 = vmatprep.mubr.bf16.mxu0 0
      %1335 = vmatmul.mubr.bf16.gmra.mxu0 %v1233
      %v1336 = vpop.f32.mrf.mxu0
      %v1337 = vadd.f32 %v1283, %v1336
      %v1338 = vpop.f32.mrf.mxu0
      %v1339 = vpop.f32.mrf.mxu0
      %v1340 = vpop.f32.mrf.mxu0
      %1341 = vdwg.mxu0
      %s1342 = scalar_lea.vmem %s10, 48
      %v1343 = vld [vmem:[%s1342] sm:$0xf]
      %v1344 = vld [vmem:[%s1342 + $0x4] sm:$0xf]
      %v1345 = vld [vmem:[%s1342 + $0x8] sm:$0xf]
      %v1346 = vld [vmem:[%s1342 + $0xc] sm:$0xf]
      %v1347 = vld [vmem:[%s1342 + $0x10] sm:$0xf]
      %v1348 = vld [vmem:[%s1342 + $0x14] sm:$0xf]
      %s1349 = scalar_lea.vmem %s11, 2
      %v1350 = vld [vmem:[%s1349] sm:$0x1]
      %v1357 = vunpack.c.l.b16 %v1343
      %v1358 = vunpack.c.l.b16 %v1344
      %v1359 = vunpack.c.l.b16 %v1345
      %v1360 = vunpack.c.l.b16 %v1346
      %v1361 = vunpack.c.l.b16 %v1347
      %v1362 = vunpack.c.l.b16 %v1348
      %v1363 = vpack.c.b16 %v1358, %v1357
      %v1364 = vpack.c.b16 %v1360, %v1359
      %v1365 = vpack.c.b16 %v1362, %v1361
      %1369 = vmatprep.subr.bf16.mxu0 0
      %1370 = vmatpush1.bf16.msra.mxu0 0
      %1371 = vmatprep.subr.bf16.mxu0 0
      %1372 = vmatpush1.bf16.msra.mxu0 0
      %1373 = vmatprep.subr.bf16.mxu0 0
      %1374 = vmatpush1.bf16.msra.mxu0 0
      %1375 = vmatprep.subr.bf16.mxu0 0
      %1376 = vmatpush1.bf16.msra.mxu0 0
      %1377 = vmatprep.subr.bf16.mxu0 0
      %1378 = vmatpush1.bf16.msra.mxu0 0
      %1379 = vmatprep.subr.bf16.mxu0 0
      %1380 = vmatpush1.bf16.msra.mxu0 %v1365
      %1381 = vmatprep.subr.bf16.mxu0 0
      %1382 = vmatpush1.bf16.msra.mxu0 %v1364
      %1383 = vmatprep.subr.bf16.mxu0 0
      %1384 = vmatpush1.bf16.msra.mxu0 %v1363
      %1385 = vmatprep.subr.bf16.mxu0 0
      %1386 = vmatpush2.bf16.msra.mxu0 0
      %1387 = vmatprep.subr.bf16.mxu0 0
      %1388 = vmatpush2.bf16.msra.mxu0 0
      %1389 = vmatprep.subr.bf16.mxu0 0
      %1390 = vmatpush2.bf16.msra.mxu0 0
      %1391 = vmatprep.subr.bf16.mxu0 0
      %1392 = vmatpush2.bf16.msra.mxu0 0
      %1393 = vmatprep.subr.bf16.mxu0 0
      %1394 = vmatpush2.bf16.msra.mxu0 0
      %1395 = vmatprep.subr.bf16.mxu0 0
      %1396 = vmatpush2.bf16.msra.mxu0 0
      %1397 = vmatprep.subr.bf16.mxu0 0
      %1398 = vmatpush2.bf16.msra.mxu0 0
      %1399 = vmatprep.subr.bf16.mxu0 0
      %1400 = vmatpush2.bf16.msra.mxu0 0
      %1401 = vmatprep.mubr.bf16.mxu0 0
      %1402 = vmatmul.mubr.bf16.gmra.mxu0 %v1233
      %v1403 = vpop.f32.mrf.mxu0
      %v1404 = vadd.f32 %v1350, %v1403
      %v1405 = vpop.f32.mrf.mxu0
      %v1406 = vpop.f32.mrf.mxu0
      %v1407 = vpop.f32.mrf.mxu0
      %1408 = vdwg.mxu0
      %s1409 = scalar_lea.vmem %s10, 72
      %v1410 = vld [vmem:[%s1409] sm:$0xf]
      %v1411 = vld [vmem:[%s1409 + $0x4] sm:$0xf]
      %v1412 = vld [vmem:[%s1409 + $0x8] sm:$0xf]
      %v1413 = vld [vmem:[%s1409 + $0xc] sm:$0xf]
      %v1414 = vld [vmem:[%s1409 + $0x10] sm:$0xf]
      %v1415 = vld [vmem:[%s1409 + $0x14] sm:$0xf]
      %s1416 = scalar_lea.vmem %s11, 3
      %v1417 = vld [vmem:[%s1416] sm:$0x1]
      %v1424 = vunpack.c.l.b16 %v1410
      %v1425 = vunpack.c.l.b16 %v1411
      %v1426 = vunpack.c.l.b16 %v1412
      %v1427 = vunpack.c.l.b16 %v1413
      %v1428 = vunpack.c.l.b16 %v1414
      %v1429 = vunpack.c.l.b16 %v1415
      %v1430 = vpack.c.b16 %v1425, %v1424
      %v1431 = vpack.c.b16 %v1427, %v1426
      %v1432 = vpack.c.b16 %v1429, %v1428
      %1436 = vmatprep.subr.bf16.mxu0 0
      %1437 = vmatpush1.bf16.msra.mxu0 0
      %1438 = vmatprep.subr.bf16.mxu0 0
      %1439 = vmatpush1.bf16.msra.mxu0 0
      %1440 = vmatprep.subr.bf16.mxu0 0
      %1441 = vmatpush1.bf16.msra.mxu0 0
      %1442 = vmatprep.subr.bf16.mxu0 0
      %1443 = vmatpush1.bf16.msra.mxu0 0
      %1444 = vmatprep.subr.bf16.mxu0 0
      %1445 = vmatpush1.bf16.msra.mxu0 0
      %1446 = vmatprep.subr.bf16.mxu0 0
      %1447 = vmatpush1.bf16.msra.mxu0 %v1432
      %1448 = vmatprep.subr.bf16.mxu0 0
      %1449 = vmatpush1.bf16.msra.mxu0 %v1431
      %1450 = vmatprep.subr.bf16.mxu0 0
      %1451 = vmatpush1.bf16.msra.mxu0 %v1430
      %1452 = vmatprep.subr.bf16.mxu0 0
      %1453 = vmatpush2.bf16.msra.mxu0 0
      %1454 = vmatprep.subr.bf16.mxu0 0
      %1455 = vmatpush2.bf16.msra.mxu0 0
      %1456 = vmatprep.subr.bf16.mxu0 0
      %1457 = vmatpush2.bf16.msra.mxu0 0
      %1458 = vmatprep.subr.bf16.mxu0 0
      %1459 = vmatpush2.bf16.msra.mxu0 0
      %1460 = vmatprep.subr.bf16.mxu0 0
      %1461 = vmatpush2.bf16.msra.mxu0 0
      %1462 = vmatprep.subr.bf16.mxu0 0
      %1463 = vmatpush2.bf16.msra.mxu0 0
      %1464 = vmatprep.subr.bf16.mxu0 0
      %1465 = vmatpush2.bf16.msra.mxu0 0
      %1466 = vmatprep.subr.bf16.mxu0 0
      %1467 = vmatpush2.bf16.msra.mxu0 0
      %1468 = vmatprep.mubr.bf16.mxu0 0
      %1469 = vmatmul.mubr.bf16.gmra.mxu0 %v1233
      %v1470 = vpop.f32.mrf.mxu0
      %v1471 = vadd.f32 %v1417, %v1470
      %v1472 = vpop.f32.mrf.mxu0
      %v1473 = vpop.f32.mrf.mxu0
      %v1474 = vpop.f32.mrf.mxu0
      %1475 = vdwg.mxu0
      %s1476 = scalar_lea.vmem %s10, 96
      %v1477 = vld [vmem:[%s1476] sm:$0xf]
      %v1478 = vld [vmem:[%s1476 + $0x4] sm:$0xf]
      %v1479 = vld [vmem:[%s1476 + $0x8] sm:$0xf]
      %v1480 = vld [vmem:[%s1476 + $0xc] sm:$0xf]
      %v1481 = vld [vmem:[%s1476 + $0x10] sm:$0xf]
      %v1482 = vld [vmem:[%s1476 + $0x14] sm:$0xf]
      %s1483 = scalar_lea.vmem %s11, 4
      %v1484 = vld [vmem:[%s1483] sm:$0x1]
      %v1491 = vunpack.c.l.b16 %v1477
      %v1492 = vunpack.c.l.b16 %v1478
      %v1493 = vunpack.c.l.b16 %v1479
      %v1494 = vunpack.c.l.b16 %v1480
      %v1495 = vunpack.c.l.b16 %v1481
      %v1496 = vunpack.c.l.b16 %v1482
      %v1497 = vpack.c.b16 %v1492, %v1491
      %v1498 = vpack.c.b16 %v1494, %v1493
      %v1499 = vpack.c.b16 %v1496, %v1495
      %1503 = vmatprep.subr.bf16.mxu0 0
      %1504 = vmatpush1.bf16.msra.mxu0 0
      %1505 = vmatprep.subr.bf16.mxu0 0
      %1506 = vmatpush1.bf16.msra.mxu0 0
      %1507 = vmatprep.subr.bf16.mxu0 0
      %1508 = vmatpush1.bf16.msra.mxu0 0
      %1509 = vmatprep.subr.bf16.mxu0 0
      %1510 = vmatpush1.bf16.msra.mxu0 0
      %1511 = vmatprep.subr.bf16.mxu0 0
      %1512 = vmatpush1.bf16.msra.mxu0 0
      %1513 = vmatprep.subr.bf16.mxu0 0
      %1514 = vmatpush1.bf16.msra.mxu0 %v1499
      %1515 = vmatprep.subr.bf16.mxu0 0
      %1516 = vmatpush1.bf16.msra.mxu0 %v1498
      %1517 = vmatprep.subr.bf16.mxu0 0
      %1518 = vmatpush1.bf16.msra.mxu0 %v1497
      %1519 = vmatprep.subr.bf16.mxu0 0
      %1520 = vmatpush2.bf16.msra.mxu0 0
      %1521 = vmatprep.subr.bf16.mxu0 0
      %1522 = vmatpush2.bf16.msra.mxu0 0
      %1523 = vmatprep.subr.bf16.mxu0 0
      %1524 = vmatpush2.bf16.msra.mxu0 0
      %1525 = vmatprep.subr.bf16.mxu0 0
      %1526 = vmatpush2.bf16.msra.mxu0 0
      %1527 = vmatprep.subr.bf16.mxu0 0
      %1528 = vmatpush2.bf16.msra.mxu0 0
      %1529 = vmatprep.subr.bf16.mxu0 0
      %1530 = vmatpush2.bf16.msra.mxu0 0
      %1531 = vmatprep.subr.bf16.mxu0 0
      %1532 = vmatpush2.bf16.msra.mxu0 0
      %1533 = vmatprep.subr.bf16.mxu0 0
      %1534 = vmatpush2.bf16.msra.mxu0 0
      %1535 = vmatprep.mubr.bf16.mxu0 0
      %1536 = vmatmul.mubr.bf16.gmra.mxu0 %v1233
      %v1537 = vpop.f32.mrf.mxu0
      %v1538 = vadd.f32 %v1484, %v1537
      %v1539 = vpop.f32.mrf.mxu0
      %v1540 = vpop.f32.mrf.mxu0
      %v1541 = vpop.f32.mrf.mxu0
      %1542 = vdwg.mxu0
      %s1543 = scalar_lea.vmem %s10, 120
      %v1544 = vld [vmem:[%s1543] sm:$0xf]
      %v1545 = vld [vmem:[%s1543 + $0x4] sm:$0xf]
      %v1546 = vld [vmem:[%s1543 + $0x8] sm:$0xf]
      %v1547 = vld [vmem:[%s1543 + $0xc] sm:$0xf]
      %v1548 = vld [vmem:[%s1543 + $0x10] sm:$0xf]
      %v1549 = vld [vmem:[%s1543 + $0x14] sm:$0xf]
      %s1550 = scalar_lea.vmem %s11, 5
      %v1551 = vld [vmem:[%s1550] sm:$0x1]
      %v1558 = vunpack.c.l.b16 %v1544
      %v1559 = vunpack.c.l.b16 %v1545
      %v1560 = vunpack.c.l.b16 %v1546
      %v1561 = vunpack.c.l.b16 %v1547
      %v1562 = vunpack.c.l.b16 %v1548
      %v1563 = vunpack.c.l.b16 %v1549
      %v1564 = vpack.c.b16 %v1559, %v1558
      %v1565 = vpack.c.b16 %v1561, %v1560
      %v1566 = vpack.c.b16 %v1563, %v1562
      %1570 = vmatprep.subr.bf16.mxu0 0
      %1571 = vmatpush1.bf16.msra.mxu0 0
      %1572 = vmatprep.subr.bf16.mxu0 0
      %1573 = vmatpush1.bf16.msra.mxu0 0
      %1574 = vmatprep.subr.bf16.mxu0 0
      %1575 = vmatpush1.bf16.msra.mxu0 0
      %1576 = vmatprep.subr.bf16.mxu0 0
      %1577 = vmatpush1.bf16.msra.mxu0 0
      %1578 = vmatprep.subr.bf16.mxu0 0
      %1579 = vmatpush1.bf16.msra.mxu0 0
      %1580 = vmatprep.subr.bf16.mxu0 0
      %1581 = vmatpush1.bf16.msra.mxu0 %v1566
      %1582 = vmatprep.subr.bf16.mxu0 0
      %1583 = vmatpush1.bf16.msra.mxu0 %v1565
      %1584 = vmatprep.subr.bf16.mxu0 0
      %1585 = vmatpush1.bf16.msra.mxu0 %v1564
      %1586 = vmatprep.subr.bf16.mxu0 0
      %1587 = vmatpush2.bf16.msra.mxu0 0
      %1588 = vmatprep.subr.bf16.mxu0 0
      %1589 = vmatpush2.bf16.msra.mxu0 0
      %1590 = vmatprep.subr.bf16.mxu0 0
      %1591 = vmatpush2.bf16.msra.mxu0 0
      %1592 = vmatprep.subr.bf16.mxu0 0
      %1593 = vmatpush2.bf16.msra.mxu0 0
      %1594 = vmatprep.subr.bf16.mxu0 0
      %1595 = vmatpush2.bf16.msra.mxu0 0
      %1596 = vmatprep.subr.bf16.mxu0 0
      %1597 = vmatpush2.bf16.msra.mxu0 0
      %1598 = vmatprep.subr.bf16.mxu0 0
      %1599 = vmatpush2.bf16.msra.mxu0 0
      %1600 = vmatprep.subr.bf16.mxu0 0
      %1601 = vmatpush2.bf16.msra.mxu0 0
      %1602 = vmatprep.mubr.bf16.mxu0 0
      %1603 = vmatmul.mubr.bf16.gmra.mxu0 %v1233
      %v1604 = vpop.f32.mrf.mxu0
      %v1605 = vadd.f32 %v1551, %v1604
      %v1606 = vpop.f32.mrf.mxu0
      %v1607 = vpop.f32.mrf.mxu0
      %v1608 = vpop.f32.mrf.mxu0
      %1609 = vdwg.mxu0
      %v1610 = vsel %vm932, %v1199, 0.0
      %1611 = vadd.xlane.f32.xlu0 %v1610
      %v1612 = vpop.xlane.xlu0 %1611
      %v1613 = vsel %vm932, %v1200, 0.0
      %1614 = vadd.xlane.f32.xlu0 %v1613
      %v1615 = vpop.xlane.xlu0 %1614
      %v1616 = vsel %vm932, %v1201, 0.0
      %1617 = vadd.xlane.f32.xlu0 %v1616
      %v1618 = vpop.xlane.xlu0 %1617
      %v1619 = vsel %vm932, %v1202, 0.0
      %1620 = vadd.xlane.f32.xlu0 %v1619
      %v1621 = vpop.xlane.xlu0 %1620
      %v1622 = vsel %vm932, %v1203, 0.0
      %1623 = vadd.xlane.f32.xlu0 %v1622
      %v1624 = vpop.xlane.xlu0 %1623
      %v1625 = vsel %vm932, %v1204, 0.0
      %1626 = vadd.xlane.f32.xlu0 %v1625
      %v1627 = vpop.xlane.xlu0 %1626
      %v1628 = vsel %vm932, %v1205, 0.0
      %1629 = vadd.xlane.f32.xlu0 %v1628
      %v1630 = vpop.xlane.xlu0 %1629
      %v1631 = vsel %vm932, %v1206, 0.0
      %1632 = vadd.xlane.f32.xlu0 %v1631
      %v1633 = vpop.xlane.xlu0 %1632
      %v1634 = vrcp.pop 48.0
      %v1635 = vmul.f32 %v1612, %v1634
      %v1636 = vmul.f32 %v1615, %v1634
      %v1637 = vmul.f32 %v1618, %v1634
      %v1638 = vmul.f32 %v1621, %v1634
      %v1639 = vmul.f32 %v1624, %v1634
      %v1640 = vmul.f32 %v1627, %v1634
      %v1641 = vmul.f32 %v1630, %v1634
      %v1642 = vmul.f32 %v1633, %v1634
      %v1643 = vsub.f32 %v1199, %v1635
      %v1644 = vsub.f32 %v1200, %v1636
      %v1645 = vsub.f32 %v1201, %v1637
      %v1646 = vsub.f32 %v1202, %v1638
      %v1647 = vsub.f32 %v1203, %v1639
      %v1648 = vsub.f32 %v1204, %v1640
      %v1649 = vsub.f32 %v1205, %v1641
      %v1650 = vsub.f32 %v1206, %v1642
      %v1651 = vmul.f32 %v1643, %v1643
      %v1652 = vmul.f32 %v1644, %v1644
      %v1653 = vmul.f32 %v1645, %v1645
      %v1654 = vmul.f32 %v1646, %v1646
      %v1655 = vmul.f32 %v1647, %v1647
      %v1656 = vmul.f32 %v1648, %v1648
      %v1657 = vmul.f32 %v1649, %v1649
      %v1658 = vmul.f32 %v1650, %v1650
      %v1659 = vsel %vm932, %v1651, 0.0
      %1660 = vadd.xlane.f32.xlu0 %v1659
      %v1661 = vpop.xlane.xlu0 %1660
      %v1662 = vsel %vm932, %v1652, 0.0
      %1663 = vadd.xlane.f32.xlu0 %v1662
      %v1664 = vpop.xlane.xlu0 %1663
      %v1665 = vsel %vm932, %v1653, 0.0
      %1666 = vadd.xlane.f32.xlu0 %v1665
      %v1667 = vpop.xlane.xlu0 %1666
      %v1668 = vsel %vm932, %v1654, 0.0
      %1669 = vadd.xlane.f32.xlu0 %v1668
      %v1670 = vpop.xlane.xlu0 %1669
      %v1671 = vsel %vm932, %v1655, 0.0
      %1672 = vadd.xlane.f32.xlu0 %v1671
      %v1673 = vpop.xlane.xlu0 %1672
      %v1674 = vsel %vm932, %v1656, 0.0
      %1675 = vadd.xlane.f32.xlu0 %v1674
      %v1676 = vpop.xlane.xlu0 %1675
      %v1677 = vsel %vm932, %v1657, 0.0
      %1678 = vadd.xlane.f32.xlu0 %v1677
      %v1679 = vpop.xlane.xlu0 %1678
      %v1680 = vsel %vm932, %v1658, 0.0
      %1681 = vadd.xlane.f32.xlu0 %v1680
      %v1682 = vpop.xlane.xlu0 %1681
      %v1683 = vmul.f32 %v1661, %v1634
      %v1684 = vmul.f32 %v1664, %v1634
      %v1685 = vmul.f32 %v1667, %v1634
      %v1686 = vmul.f32 %v1670, %v1634
      %v1687 = vmul.f32 %v1673, %v1634
      %v1688 = vmul.f32 %v1676, %v1634
      %v1689 = vmul.f32 %v1679, %v1634
      %v1690 = vmul.f32 %v1682, %v1634
      %v1691 = vadd.f32 %v1683, 1e-06
      %v1692 = vadd.f32 %v1684, 1e-06
      %v1693 = vadd.f32 %v1685, 1e-06
      %v1694 = vadd.f32 %v1686, 1e-06
      %v1695 = vadd.f32 %v1687, 1e-06
      %v1696 = vadd.f32 %v1688, 1e-06
      %v1697 = vadd.f32 %v1689, 1e-06
      %v1698 = vadd.f32 %v1690, 1e-06
      %v1699 = vrsqrt.pop %v1691
      %v1700 = vrsqrt.pop %v1692
      %v1701 = vrsqrt.pop %v1693
      %v1702 = vrsqrt.pop %v1694
      %v1703 = vrsqrt.pop %v1695
      %v1704 = vrsqrt.pop %v1696
      %v1705 = vrsqrt.pop %v1697
      %v1706 = vrsqrt.pop %v1698
      %v1707 = vmul.f32 %v1643, %v1699
      %v1708 = vmul.f32 %v1644, %v1700
      %v1709 = vmul.f32 %v1645, %v1701
      %v1710 = vmul.f32 %v1646, %v1702
      %v1711 = vmul.f32 %v1647, %v1703
      %v1712 = vmul.f32 %v1648, %v1704
      %v1713 = vmul.f32 %v1649, %v1705
      %v1714 = vmul.f32 %v1650, %v1706
      %v1715 = vadd.f32 %v1337, 1.0
      %v1716 = vlaneseq
      %v1717 = vshrl.u32 %v1716, 7
      %v1718 = vsub.s32 0, %v1717
      %v1719 = vrot.slane %v1715, %v1718
      %v1720 = vmul.f32 %v1707, %v1719
      %v1721 = vmul.f32 %v1708, %v1719
      %v1722 = vmul.f32 %v1709, %v1719
      %v1723 = vmul.f32 %v1710, %v1719
      %v1724 = vmul.f32 %v1711, %v1719
      %v1725 = vmul.f32 %v1712, %v1719
      %v1726 = vmul.f32 %v1713, %v1719
      %v1727 = vmul.f32 %v1714, %v1719
      %v1728 = vlaneseq
      %v1729 = vshrl.u32 %v1728, 7
      %v1730 = vsub.s32 0, %v1729
      %v1731 = vrot.slane %v1270, %v1730
      %v1732 = vadd.f32 %v1720, %v1731
      %v1733 = vadd.f32 %v1721, %v1731
      %v1734 = vadd.f32 %v1722, %v1731
      %v1735 = vadd.f32 %v1723, %v1731
      %v1736 = vadd.f32 %v1724, %v1731
      %v1737 = vadd.f32 %v1725, %v1731
      %v1738 = vadd.f32 %v1726, %v1731
      %v1739 = vadd.f32 %v1727, %v1731
      %v1740 = vpack.c.bf16 %v1733, %v1732
      %v1741 = vpack.c.bf16 %v1735, %v1734
      %v1742 = vpack.c.bf16 %v1737, %v1736
      %v1743 = vpack.c.bf16 %v1739, %v1738
      %v1744 = vld [vmem:[%s12] sm:$0xff]
      %v1745 = vld [vmem:[%s12 + $0x8] sm:$0xff]
      %v1746 = vld [vmem:[%s12 + $0x10] sm:$0xff]
      %v1747 = vld [vmem:[%s12 + $0x18] sm:$0xff]
      %v1748 = vld [vmem:[%s12 + $0x20] sm:$0xff]
      %v1749 = vld [vmem:[%s12 + $0x28] sm:$0xff]
      %v1750 = vld [vmem:[%s13] sm:$0x3]
      %v1752 = vlaneseq
      %v1753 = vshrl.u32 %v1752, 7
      %v1754 = vsub.s32 0, %v1753
      %v1755 = vrot.slane %v1750, %v1754
      %v1756 = vlaneseq
      %v1757 = vshrl.u32 %v1756, 7
      %v1758 = vsub.s32 1, %v1757
      %v1759 = vrot.slane %v1750, %v1758
      %v1768 = vunpack.c.l.b16 %v1744
      %v1769 = vunpack.c.h.b16 %v1744
      %v1770 = vunpack.c.l.b16 %v1745
      %v1771 = vunpack.c.h.b16 %v1745
      %v1772 = vunpack.c.l.b16 %v1746
      %v1773 = vunpack.c.h.b16 %v1746
      %v1774 = vunpack.c.l.b16 %v1747
      %v1775 = vunpack.c.h.b16 %v1747
      %v1776 = vunpack.c.l.b16 %v1748
      %v1777 = vunpack.c.h.b16 %v1748
      %v1778 = vunpack.c.l.b16 %v1749
      %v1779 = vunpack.c.h.b16 %v1749
      %v1780 = vpack.c.b16 %v1770, %v1768
      %v1781 = vpack.c.b16 %v1771, %v1769
      %v1782 = vpack.c.b16 %v1774, %v1772
      %v1783 = vpack.c.b16 %v1775, %v1773
      %v1784 = vpack.c.b16 %v1778, %v1776
      %v1785 = vpack.c.b16 %v1779, %v1777
      %v1793 = vsel %vm932, %v1740, 0
      %v1796 = vsel %vm932, %v1741, 0
      %v1799 = vsel %vm932, %v1742, 0
      %v1802 = vsel %vm932, %v1743, 0
      %1804 = vmatprep.subr.bf16.mxu0 0
      %1805 = vmatpush1.bf16.msra.mxu0 0
      %1806 = vmatprep.subr.bf16.mxu0 0
      %1807 = vmatpush1.bf16.msra.mxu0 0
      %1808 = vmatprep.subr.bf16.mxu0 0
      %1809 = vmatpush1.bf16.msra.mxu0 0
      %1810 = vmatprep.subr.bf16.mxu0 0
      %1811 = vmatpush1.bf16.msra.mxu0 0
      %1812 = vmatprep.subr.bf16.mxu0 0
      %1813 = vmatpush1.bf16.msra.mxu0 0
      %1814 = vmatprep.subr.bf16.mxu0 %v1785
      %1815 = vmatpush1.bf16.msra.mxu0 %v1784
      %1816 = vmatprep.subr.bf16.mxu0 %v1783
      %1817 = vmatpush1.bf16.msra.mxu0 %v1782
      %1818 = vmatprep.subr.bf16.mxu0 %v1781
      %1819 = vmatpush1.bf16.msra.mxu0 %v1780
      %1820 = vmatprep.subr.bf16.mxu0 0
      %1821 = vmatpush2.bf16.msra.mxu0 0
      %1822 = vmatprep.subr.bf16.mxu0 0
      %1823 = vmatpush2.bf16.msra.mxu0 0
      %1824 = vmatprep.subr.bf16.mxu0 0
      %1825 = vmatpush2.bf16.msra.mxu0 0
      %1826 = vmatprep.subr.bf16.mxu0 0
      %1827 = vmatpush2.bf16.msra.mxu0 0
      %1828 = vmatprep.subr.bf16.mxu0 0
      %1829 = vmatpush2.bf16.msra.mxu0 0
      %1830 = vmatprep.subr.bf16.mxu0 0
      %1831 = vmatpush2.bf16.msra.mxu0 0
      %1832 = vmatprep.subr.bf16.mxu0 0
      %1833 = vmatpush2.bf16.msra.mxu0 0
      %1834 = vmatprep.subr.bf16.mxu0 0
      %1835 = vmatpush2.bf16.msra.mxu0 0
      %1836 = vmatprep.mubr.bf16.mxu0 0
      %1837 = vmatmul.mubr.bf16.gmra.mxu0 %v1793
      %v1838 = vpop.f32.mrf.mxu0
      %v1839 = vadd.f32 %v1755, %v1838
      %v1840 = vpop.f32.mrf.mxu0
      %v1841 = vadd.f32 %v1759, %v1840
      %v1842 = vpop.f32.mrf.mxu0
      %v1843 = vadd.f32 %v1755, %v1842
      %v1844 = vpop.f32.mrf.mxu0
      %v1845 = vadd.f32 %v1759, %v1844
      %1846 = vmatprep.mubr.bf16.mxu0 0
      %1847 = vmatmul.mubr.bf16.gmra.mxu0 %v1796
      %v1848 = vpop.f32.mrf.mxu0
      %v1849 = vadd.f32 %v1755, %v1848
      %v1850 = vpop.f32.mrf.mxu0
      %v1851 = vadd.f32 %v1759, %v1850
      %v1852 = vpop.f32.mrf.mxu0
      %v1853 = vadd.f32 %v1755, %v1852
      %v1854 = vpop.f32.mrf.mxu0
      %v1855 = vadd.f32 %v1759, %v1854
      %1856 = vmatprep.mubr.bf16.mxu0 0
      %1857 = vmatmul.mubr.bf16.gmra.mxu0 %v1799
      %v1858 = vpop.f32.mrf.mxu0
      %v1859 = vadd.f32 %v1755, %v1858
      %v1860 = vpop.f32.mrf.mxu0
      %v1861 = vadd.f32 %v1759, %v1860
      %v1862 = vpop.f32.mrf.mxu0
      %v1863 = vadd.f32 %v1755, %v1862
      %v1864 = vpop.f32.mrf.mxu0
      %v1865 = vadd.f32 %v1759, %v1864
      %1866 = vmatprep.mubr.bf16.mxu0 0
      %1867 = vmatmul.mubr.bf16.gmra.mxu0 %v1802
      %v1868 = vpop.f32.mrf.mxu0
      %v1869 = vadd.f32 %v1755, %v1868
      %v1870 = vpop.f32.mrf.mxu0
      %v1871 = vadd.f32 %v1759, %v1870
      %v1872 = vpop.f32.mrf.mxu0
      %v1873 = vadd.f32 %v1755, %v1872
      %v1874 = vpop.f32.mrf.mxu0
      %v1875 = vadd.f32 %v1759, %v1874
      %1876 = vdwg.mxu0
      %v1877 = vmul.f32 %v1839, 0.28867513
      %v1878 = vmul.f32 %v1843, 0.28867513
      %v1879 = vmul.f32 %v1849, 0.28867513
      %v1880 = vmul.f32 %v1853, 0.28867513
      %v1881 = vmul.f32 %v1859, 0.28867513
      %v1882 = vmul.f32 %v1863, 0.28867513
      %v1883 = vmul.f32 %v1869, 0.28867513
      %v1884 = vmul.f32 %v1873, 0.28867513
      %v1885 = vpack.c.bf16 %v1878, %v1877
      %v1886 = vpack.c.bf16 %v1880, %v1879
      %v1887 = vpack.c.bf16 %v1882, %v1881
      %v1888 = vpack.c.bf16 %v1884, %v1883
      %v1889 = vpack.c.bf16 %v1843, %v1839
      %v1890 = vpack.c.bf16 %v1853, %v1849
      %v1891 = vpack.c.bf16 %v1863, %v1859
      %v1892 = vpack.c.bf16 %v1873, %v1869
      %1897 = vrot.lane.b32.xlu0 %v1889, 80
      %v1898 = vpop.permute.xlu0 %1897
      %1899 = vrot.lane.b32.xlu0 %v1890, 80
      %v1900 = vpop.permute.xlu0 %1899
      %1901 = vrot.lane.b32.xlu0 %v1891, 80
      %v1902 = vpop.permute.xlu0 %1901
      %1903 = vrot.lane.b32.xlu0 %v1892, 80
      %v1904 = vpop.permute.xlu0 %1903
      %vm1905 = vcmask 97280
      %v1907 = vsel %vm1905, %v1885, 0
      %v1910 = vsel %vm1905, %v1886, 0
      %v1913 = vsel %vm1905, %v1887, 0
      %v1916 = vsel %vm1905, %v1888, 0
      %v1919 = vsel %vm1905, %v1898, 0
      %v1922 = vsel %vm1905, %v1900, 0
      %v1925 = vsel %vm1905, %v1902, 0
      %v1928 = vsel %vm1905, %v1904, 0
      %1930 = vmatprep.subr.bf16.mxu0 0
      %1931 = vmatpush1.bf16.xpose.msra.mxu0 0
      %1932 = vmatprep.subr.bf16.mxu0 0
      %1933 = vmatpush1.bf16.xpose.msra.mxu0 0
      %1934 = vmatprep.subr.bf16.mxu0 0
      %1935 = vmatpush1.bf16.xpose.msra.mxu0 0
      %1936 = vmatprep.subr.bf16.mxu0 0
      %1937 = vmatpush1.bf16.xpose.msra.mxu0 0
      %1938 = vmatprep.subr.bf16.mxu0 0
      %1939 = vmatpush1.bf16.xpose.msra.mxu0 %v1928
      %1940 = vmatprep.subr.bf16.mxu0 0
      %1941 = vmatpush1.bf16.xpose.msra.mxu0 %v1925
      %1942 = vmatprep.subr.bf16.mxu0 0
      %1943 = vmatpush1.bf16.xpose.msra.mxu0 %v1922
      %1944 = vmatprep.subr.bf16.mxu0 0
      %1945 = vmatpush1.bf16.xpose.msra.mxu0 %v1919
      %1946 = vmatprep.subr.bf16.mxu0 0
      %1947 = vmatpush2.bf16.xpose.msra.mxu0 0
      %1948 = vmatprep.subr.bf16.mxu0 0
      %1949 = vmatpush2.bf16.xpose.msra.mxu0 0
      %1950 = vmatprep.subr.bf16.mxu0 0
      %1951 = vmatpush2.bf16.xpose.msra.mxu0 0
      %1952 = vmatprep.subr.bf16.mxu0 0
      %1953 = vmatpush2.bf16.xpose.msra.mxu0 0
      %1954 = vmatprep.subr.bf16.mxu0 0
      %1955 = vmatpush2.bf16.xpose.msra.mxu0 0
      %1956 = vmatprep.subr.bf16.mxu0 0
      %1957 = vmatpush2.bf16.xpose.msra.mxu0 0
      %1958 = vmatprep.subr.bf16.mxu0 0
      %1959 = vmatpush2.bf16.xpose.msra.mxu0 0
      %1960 = vmatprep.subr.bf16.mxu0 0
      %1961 = vmatpush2.bf16.xpose.msra.mxu0 0
      %1962 = vmatprep.mubr.bf16.mxu0 0
      %1963 = vmatmul.mubr.bf16.gmra.mxu0 %v1907
      %v1964 = vpop.f32.mrf.mxu0
      %v1965 = vadd.f32 0.0, %v1964
      %v1966 = vpop.f32.mrf.mxu0
      %v1967 = vpop.f32.mrf.mxu0
      %v1968 = vadd.f32 0.0, %v1967
      %v1969 = vpop.f32.mrf.mxu0
      %1970 = vmatprep.mubr.bf16.mxu0 0
      %1971 = vmatmul.mubr.bf16.gmra.mxu0 %v1910
      %v1972 = vpop.f32.mrf.mxu0
      %v1973 = vadd.f32 0.0, %v1972
      %v1974 = vpop.f32.mrf.mxu0
      %v1975 = vpop.f32.mrf.mxu0
      %v1976 = vadd.f32 0.0, %v1975
      %v1977 = vpop.f32.mrf.mxu0
      %1978 = vmatprep.mubr.bf16.mxu0 0
      %1979 = vmatmul.mubr.bf16.gmra.mxu0 %v1913
      %v1980 = vpop.f32.mrf.mxu0
      %v1981 = vadd.f32 0.0, %v1980
      %v1982 = vpop.f32.mrf.mxu0
      %v1983 = vpop.f32.mrf.mxu0
      %v1984 = vadd.f32 0.0, %v1983
      %v1985 = vpop.f32.mrf.mxu0
      %1986 = vmatprep.mubr.bf16.mxu0 0
      %1987 = vmatmul.mubr.bf16.gmra.mxu0 %v1916
      %v1988 = vpop.f32.mrf.mxu0
      %v1989 = vadd.f32 0.0, %v1988
      %v1990 = vpop.f32.mrf.mxu0
      %v1991 = vpop.f32.mrf.mxu0
      %v1992 = vadd.f32 0.0, %v1991
      %v1993 = vpop.f32.mrf.mxu0
      %1994 = vdwg.mxu0
      %v1995 = vsel %vm1113, %v1965, -inf
      %1996 = vmax.xlane.f32.xlu0 %v1995
      %v1997 = vpop.xlane.xlu0 %1996
      %v1998 = vsel %vm1113, %v1968, -inf
      %1999 = vmax.xlane.f32.xlu0 %v1998
      %v2000 = vpop.xlane.xlu0 %1999
      %v2001 = vsel %vm1113, %v1973, -inf
      %2002 = vmax.xlane.f32.xlu0 %v2001
      %v2003 = vpop.xlane.xlu0 %2002
      %v2004 = vsel %vm1113, %v1976, -inf
      %2005 = vmax.xlane.f32.xlu0 %v2004
      %v2006 = vpop.xlane.xlu0 %2005
      %v2007 = vsel %vm1113, %v1981, -inf
      %2008 = vmax.xlane.f32.xlu0 %v2007
      %v2009 = vpop.xlane.xlu0 %2008
      %v2010 = vsel %vm1113, %v1984, -inf
      %2011 = vmax.xlane.f32.xlu0 %v2010
      %v2012 = vpop.xlane.xlu0 %2011
      %v2013 = vsel %vm1113, %v1989, -inf
      %2014 = vmax.xlane.f32.xlu0 %v2013
      %v2015 = vpop.xlane.xlu0 %2014
      %v2016 = vsel %vm1113, %v1992, -inf
      %2017 = vmax.xlane.f32.xlu0 %v2016
      %v2018 = vpop.xlane.xlu0 %2017
      %v2019 = vsub.f32 %v1965, %v1997
      %v2020 = vsub.f32 %v1968, %v2000
      %v2021 = vsub.f32 %v1973, %v2003
      %v2022 = vsub.f32 %v1976, %v2006
      %v2023 = vsub.f32 %v1981, %v2009
      %v2024 = vsub.f32 %v1984, %v2012
      %v2025 = vsub.f32 %v1989, %v2015
      %v2026 = vsub.f32 %v1992, %v2018
      %v2027 = vmul.f32 %v2019, 1.442695
      %v2028 = vpow.pop %v2027
      %v2029 = vmul.f32 %v2020, 1.442695
      %v2030 = vpow.pop %v2029
      %v2031 = vmul.f32 %v2021, 1.442695
      %v2032 = vpow.pop %v2031
      %v2033 = vmul.f32 %v2022, 1.442695
      %v2034 = vpow.pop %v2033
      %v2035 = vmul.f32 %v2023, 1.442695
      %v2036 = vpow.pop %v2035
      %v2037 = vmul.f32 %v2024, 1.442695
      %v2038 = vpow.pop %v2037
      %v2039 = vmul.f32 %v2025, 1.442695
      %v2040 = vpow.pop %v2039
      %v2041 = vmul.f32 %v2026, 1.442695
      %v2042 = vpow.pop %v2041
      %v2043 = vsel %vm1113, %v2028, 0.0
      %2044 = vadd.xlane.f32.xlu0 %v2043
      %v2045 = vpop.xlane.xlu0 %2044
      %v2046 = vsel %vm1113, %v2030, 0.0
      %2047 = vadd.xlane.f32.xlu0 %v2046
      %v2048 = vpop.xlane.xlu0 %2047
      %v2049 = vsel %vm1113, %v2032, 0.0
      %2050 = vadd.xlane.f32.xlu0 %v2049
      %v2051 = vpop.xlane.xlu0 %2050
      %v2052 = vsel %vm1113, %v2034, 0.0
      %2053 = vadd.xlane.f32.xlu0 %v2052
      %v2054 = vpop.xlane.xlu0 %2053
      %v2055 = vsel %vm1113, %v2036, 0.0
      %2056 = vadd.xlane.f32.xlu0 %v2055
      %v2057 = vpop.xlane.xlu0 %2056
      %v2058 = vsel %vm1113, %v2038, 0.0
      %2059 = vadd.xlane.f32.xlu0 %v2058
      %v2060 = vpop.xlane.xlu0 %2059
      %v2061 = vsel %vm1113, %v2040, 0.0
      %2062 = vadd.xlane.f32.xlu0 %v2061
      %v2063 = vpop.xlane.xlu0 %2062
      %v2064 = vsel %vm1113, %v2042, 0.0
      %2065 = vadd.xlane.f32.xlu0 %v2064
      %v2066 = vpop.xlane.xlu0 %2065
      %v2067 = vrcp.pop %v2045
      %v2068 = vrcp.pop %v2048
      %v2069 = vrcp.pop %v2051
      %v2070 = vrcp.pop %v2054
      %v2071 = vrcp.pop %v2057
      %v2072 = vrcp.pop %v2060
      %v2073 = vrcp.pop %v2063
      %v2074 = vrcp.pop %v2066
      %v2075 = vmul.f32 %v2028, %v2067
      %v2076 = vmul.f32 %v2030, %v2068
      %v2077 = vmul.f32 %v2032, %v2069
      %v2078 = vmul.f32 %v2034, %v2070
      %v2079 = vmul.f32 %v2036, %v2071
      %v2080 = vmul.f32 %v2038, %v2072
      %v2081 = vmul.f32 %v2040, %v2073
      %v2082 = vmul.f32 %v2042, %v2074
      %v2083 = vpack.c.bf16 %v2076, %v2075
      %v2084 = vpack.c.bf16 %v2078, %v2077
      %v2085 = vpack.c.bf16 %v2080, %v2079
      %v2086 = vpack.c.bf16 %v2082, %v2081
      %2087 = vrot.lane.b32.xlu0 %v1889, 32
      %v2088 = vpop.permute.xlu0 %2087
      %2089 = vrot.lane.b32.xlu0 %v1890, 32
      %v2090 = vpop.permute.xlu0 %2089
      %2091 = vrot.lane.b32.xlu0 %v1891, 32
      %v2092 = vpop.permute.xlu0 %2091
      %2093 = vrot.lane.b32.xlu0 %v1892, 32
      %v2094 = vpop.permute.xlu0 %2093
      %v2100 = vsel %vm1113, %v2083, 0
      %v2103 = vsel %vm1113, %v2084, 0
      %v2106 = vsel %vm1113, %v2085, 0
      %v2109 = vsel %vm1113, %v2086, 0
      %2111 = vmatprep.subr.bf16.mxu0 0
      %2112 = vmatpush1.bf16.msra.mxu0 0
      %2113 = vmatprep.subr.bf16.mxu0 0
      %2114 = vmatpush1.bf16.msra.mxu0 0
      %2115 = vmatprep.subr.bf16.mxu0 0
      %2116 = vmatpush1.bf16.msra.mxu0 0
      %2117 = vmatprep.subr.bf16.mxu0 0
      %2118 = vmatpush1.bf16.msra.mxu0 0
      %2119 = vmatprep.subr.bf16.mxu0 0
      %2120 = vmatpush1.bf16.msra.mxu0 %v2094
      %2121 = vmatprep.subr.bf16.mxu0 0
      %2122 = vmatpush1.bf16.msra.mxu0 %v2092
      %2123 = vmatprep.subr.bf16.mxu0 0
      %2124 = vmatpush1.bf16.msra.mxu0 %v2090
      %2125 = vmatprep.subr.bf16.mxu0 0
      %2126 = vmatpush1.bf16.msra.mxu0 %v2088
      %2127 = vmatprep.subr.bf16.mxu0 0
      %2128 = vmatpush2.bf16.msra.mxu0 0
      %2129 = vmatprep.subr.bf16.mxu0 0
      %2130 = vmatpush2.bf16.msra.mxu0 0
      %2131 = vmatprep.subr.bf16.mxu0 0
      %2132 = vmatpush2.bf16.msra.mxu0 0
      %2133 = vmatprep.subr.bf16.mxu0 0
      %2134 = vmatpush2.bf16.msra.mxu0 0
      %2135 = vmatprep.subr.bf16.mxu0 0
      %2136 = vmatpush2.bf16.msra.mxu0 0
      %2137 = vmatprep.subr.bf16.mxu0 0
      %2138 = vmatpush2.bf16.msra.mxu0 0
      %2139 = vmatprep.subr.bf16.mxu0 0
      %2140 = vmatpush2.bf16.msra.mxu0 0
      %2141 = vmatprep.subr.bf16.mxu0 0
      %2142 = vmatpush2.bf16.msra.mxu0 0
      %2143 = vmatprep.mubr.bf16.mxu0 0
      %2144 = vmatmul.mubr.bf16.gmra.mxu0 %v2100
      %v2145 = vpop.f32.mrf.mxu0
      %v2146 = vadd.f32 0.0, %v2145
      %v2147 = vpop.f32.mrf.mxu0
      %v2148 = vpop.f32.mrf.mxu0
      %v2149 = vadd.f32 0.0, %v2148
      %v2150 = vpop.f32.mrf.mxu0
      %2151 = vmatprep.mubr.bf16.mxu0 0
      %2152 = vmatmul.mubr.bf16.gmra.mxu0 %v2103
      %v2153 = vpop.f32.mrf.mxu0
      %v2154 = vadd.f32 0.0, %v2153
      %v2155 = vpop.f32.mrf.mxu0
      %v2156 = vpop.f32.mrf.mxu0
      %v2157 = vadd.f32 0.0, %v2156
      %v2158 = vpop.f32.mrf.mxu0
      %2159 = vmatprep.mubr.bf16.mxu0 0
      %2160 = vmatmul.mubr.bf16.gmra.mxu0 %v2106
      %v2161 = vpop.f32.mrf.mxu0
      %v2162 = vadd.f32 0.0, %v2161
      %v2163 = vpop.f32.mrf.mxu0
      %v2164 = vpop.f32.mrf.mxu0
      %v2165 = vadd.f32 0.0, %v2164
      %v2166 = vpop.f32.mrf.mxu0
      %2167 = vmatprep.mubr.bf16.mxu0 0
      %2168 = vmatmul.mubr.bf16.gmra.mxu0 %v2109
      %v2169 = vpop.f32.mrf.mxu0
      %v2170 = vadd.f32 0.0, %v2169
      %v2171 = vpop.f32.mrf.mxu0
      %v2172 = vpop.f32.mrf.mxu0
      %v2173 = vadd.f32 0.0, %v2172
      %v2174 = vpop.f32.mrf.mxu0
      %2175 = vdwg.mxu0
      %v2176 = vpack.c.bf16 %v2149, %v2146
      %v2177 = vpack.c.bf16 %v2157, %v2154
      %v2178 = vpack.c.bf16 %v2165, %v2162
      %v2179 = vpack.c.bf16 %v2173, %v2170
      %v2180 = vld [vmem:[%s14] sm:$0xf]
      %v2181 = vld [vmem:[%s14 + $0x4] sm:$0x3]
      %2186 = vrot.lane.b32.xlu0 %v1885, 116
      %v2187 = vpop.permute.xlu0 %2186
      %2188 = vrot.lane.b32.xlu0 %v1886, 116
      %v2189 = vpop.permute.xlu0 %2188
      %2190 = vrot.lane.b32.xlu0 %v1887, 116
      %v2191 = vpop.permute.xlu0 %2190
      %2192 = vrot.lane.b32.xlu0 %v1888, 116
      %v2193 = vpop.permute.xlu0 %2192
      %2194 = vrot.lane.b32.xlu0 %v1889, 68
      %v2195 = vpop.permute.xlu0 %2194
      %2196 = vrot.lane.b32.xlu0 %v1890, 68
      %v2197 = vpop.permute.xlu0 %2196
      %2198 = vrot.lane.b32.xlu0 %v1891, 68
      %v2199 = vpop.permute.xlu0 %2198
      %2200 = vrot.lane.b32.xlu0 %v1892, 68
      %v2201 = vpop.permute.xlu0 %2200
      %v2203 = vsel %vm1905, %v2187, 0
      %v2206 = vsel %vm1905, %v2189, 0
      %v2209 = vsel %vm1905, %v2191, 0
      %v2212 = vsel %vm1905, %v2193, 0
      %v2215 = vsel %vm1905, %v2195, 0
      %v2218 = vsel %vm1905, %v2197, 0
      %v2221 = vsel %vm1905, %v2199, 0
      %v2224 = vsel %vm1905, %v2201, 0
      %2226 = vmatprep.subr.bf16.mxu0 0
      %2227 = vmatpush1.bf16.xpose.msra.mxu0 0
      %2228 = vmatprep.subr.bf16.mxu0 0
      %2229 = vmatpush1.bf16.xpose.msra.mxu0 0
      %2230 = vmatprep.subr.bf16.mxu0 0
      %2231 = vmatpush1.bf16.xpose.msra.mxu0 0
      %2232 = vmatprep.subr.bf16.mxu0 0
      %2233 = vmatpush1.bf16.xpose.msra.mxu0 0
      %2234 = vmatprep.subr.bf16.mxu0 0
      %2235 = vmatpush1.bf16.xpose.msra.mxu0 %v2224
      %2236 = vmatprep.subr.bf16.mxu0 0
      %2237 = vmatpush1.bf16.xpose.msra.mxu0 %v2221
      %2238 = vmatprep.subr.bf16.mxu0 0
      %2239 = vmatpush1.bf16.xpose.msra.mxu0 %v2218
      %2240 = vmatprep.subr.bf16.mxu0 0
      %2241 = vmatpush1.bf16.xpose.msra.mxu0 %v2215
      %2242 = vmatprep.subr.bf16.mxu0 0
      %2243 = vmatpush2.bf16.xpose.msra.mxu0 0
      %2244 = vmatprep.subr.bf16.mxu0 0
      %2245 = vmatpush2.bf16.xpose.msra.mxu0 0
      %2246 = vmatprep.subr.bf16.mxu0 0
      %2247 = vmatpush2.bf16.xpose.msra.mxu0 0
      %2248 = vmatprep.subr.bf16.mxu0 0
      %2249 = vmatpush2.bf16.xpose.msra.mxu0 0
      %2250 = vmatprep.subr.bf16.mxu0 0
      %2251 = vmatpush2.bf16.xpose.msra.mxu0 0
      %2252 = vmatprep.subr.bf16.mxu0 0
      %2253 = vmatpush2.bf16.xpose.msra.mxu0 0
      %2254 = vmatprep.subr.bf16.mxu0 0
      %2255 = vmatpush2.bf16.xpose.msra.mxu0 0
      %2256 = vmatprep.subr.bf16.mxu0 0
      %2257 = vmatpush2.bf16.xpose.msra.mxu0 0
      %2258 = vmatprep.mubr.bf16.mxu0 0
      %2259 = vmatmul.mubr.bf16.gmra.mxu0 %v2203
      %v2260 = vpop.f32.mrf.mxu0
      %v2261 = vadd.f32 0.0, %v2260
      %v2262 = vpop.f32.mrf.mxu0
      %v2263 = vpop.f32.mrf.mxu0
      %v2264 = vadd.f32 0.0, %v2263
      %v2265 = vpop.f32.mrf.mxu0
      %2266 = vmatprep.mubr.bf16.mxu0 0
      %2267 = vmatmul.mubr.bf16.gmra.mxu0 %v2206
      %v2268 = vpop.f32.mrf.mxu0
      %v2269 = vadd.f32 0.0, %v2268
      %v2270 = vpop.f32.mrf.mxu0
      %v2271 = vpop.f32.mrf.mxu0
      %v2272 = vadd.f32 0.0, %v2271
      %v2273 = vpop.f32.mrf.mxu0
      %2274 = vmatprep.mubr.bf16.mxu0 0
      %2275 = vmatmul.mubr.bf16.gmra.mxu0 %v2209
      %v2276 = vpop.f32.mrf.mxu0
      %v2277 = vadd.f32 0.0, %v2276
      %v2278 = vpop.f32.mrf.mxu0
      %v2279 = vpop.f32.mrf.mxu0
      %v2280 = vadd.f32 0.0, %v2279
      %v2281 = vpop.f32.mrf.mxu0
      %2282 = vmatprep.mubr.bf16.mxu0 0
      %2283 = vmatmul.mubr.bf16.gmra.mxu0 %v2212
      %v2284 = vpop.f32.mrf.mxu0
      %v2285 = vadd.f32 0.0, %v2284
      %v2286 = vpop.f32.mrf.mxu0
      %v2287 = vpop.f32.mrf.mxu0
      %v2288 = vadd.f32 0.0, %v2287
      %v2289 = vpop.f32.mrf.mxu0
      %2290 = vdwg.mxu0
      %v2291 = vsel %vm1113, %v2261, -inf
      %2292 = vmax.xlane.f32.xlu0 %v2291
      %v2293 = vpop.xlane.xlu0 %2292
      %v2294 = vsel %vm1113, %v2264, -inf
      %2295 = vmax.xlane.f32.xlu0 %v2294
      %v2296 = vpop.xlane.xlu0 %2295
      %v2297 = vsel %vm1113, %v2269, -inf
      %2298 = vmax.xlane.f32.xlu0 %v2297
      %v2299 = vpop.xlane.xlu0 %2298
      %v2300 = vsel %vm1113, %v2272, -inf
      %2301 = vmax.xlane.f32.xlu0 %v2300
      %v2302 = vpop.xlane.xlu0 %2301
      %v2303 = vsel %vm1113, %v2277, -inf
      %2304 = vmax.xlane.f32.xlu0 %v2303
      %v2305 = vpop.xlane.xlu0 %2304
      %v2306 = vsel %vm1113, %v2280, -inf
      %2307 = vmax.xlane.f32.xlu0 %v2306
      %v2308 = vpop.xlane.xlu0 %2307
      %v2309 = vsel %vm1113, %v2285, -inf
      %2310 = vmax.xlane.f32.xlu0 %v2309
      %v2311 = vpop.xlane.xlu0 %2310
      %v2312 = vsel %vm1113, %v2288, -inf
      %2313 = vmax.xlane.f32.xlu0 %v2312
      %v2314 = vpop.xlane.xlu0 %2313
      %v2315 = vsub.f32 %v2261, %v2293
      %v2316 = vsub.f32 %v2264, %v2296
      %v2317 = vsub.f32 %v2269, %v2299
      %v2318 = vsub.f32 %v2272, %v2302
      %v2319 = vsub.f32 %v2277, %v2305
      %v2320 = vsub.f32 %v2280, %v2308
      %v2321 = vsub.f32 %v2285, %v2311
      %v2322 = vsub.f32 %v2288, %v2314
      %v2323 = vmul.f32 %v2315, 1.442695
      %v2324 = vpow.pop %v2323
      %v2325 = vmul.f32 %v2316, 1.442695
      %v2326 = vpow.pop %v2325
      %v2327 = vmul.f32 %v2317, 1.442695
      %v2328 = vpow.pop %v2327
      %v2329 = vmul.f32 %v2318, 1.442695
      %v2330 = vpow.pop %v2329
      %v2331 = vmul.f32 %v2319, 1.442695
      %v2332 = vpow.pop %v2331
      %v2333 = vmul.f32 %v2320, 1.442695
      %v2334 = vpow.pop %v2333
      %v2335 = vmul.f32 %v2321, 1.442695
      %v2336 = vpow.pop %v2335
      %v2337 = vmul.f32 %v2322, 1.442695
      %v2338 = vpow.pop %v2337
      %v2339 = vsel %vm1113, %v2324, 0.0
      %2340 = vadd.xlane.f32.xlu0 %v2339
      %v2341 = vpop.xlane.xlu0 %2340
      %v2342 = vsel %vm1113, %v2326, 0.0
      %2343 = vadd.xlane.f32.xlu0 %v2342
      %v2344 = vpop.xlane.xlu0 %2343
      %v2345 = vsel %vm1113, %v2328, 0.0
      %2346 = vadd.xlane.f32.xlu0 %v2345
      %v2347 = vpop.xlane.xlu0 %2346
      %v2348 = vsel %vm1113, %v2330, 0.0
      %2349 = vadd.xlane.f32.xlu0 %v2348
      %v2350 = vpop.xlane.xlu0 %2349
      %v2351 = vsel %vm1113, %v2332, 0.0
      %2352 = vadd.xlane.f32.xlu0 %v2351
      %v2353 = vpop.xlane.xlu0 %2352
      %v2354 = vsel %vm1113, %v2334, 0.0
      %2355 = vadd.xlane.f32.xlu0 %v2354
      %v2356 = vpop.xlane.xlu0 %2355
      %v2357 = vsel %vm1113, %v2336, 0.0
      %2358 = vadd.xlane.f32.xlu0 %v2357
      %v2359 = vpop.xlane.xlu0 %2358
      %v2360 = vsel %vm1113, %v2338, 0.0
      %2361 = vadd.xlane.f32.xlu0 %v2360
      %v2362 = vpop.xlane.xlu0 %2361
      %v2363 = vrcp.pop %v2341
      %v2364 = vrcp.pop %v2344
      %v2365 = vrcp.pop %v2347
      %v2366 = vrcp.pop %v2350
      %v2367 = vrcp.pop %v2353
      %v2368 = vrcp.pop %v2356
      %v2369 = vrcp.pop %v2359
      %v2370 = vrcp.pop %v2362
      %v2371 = vmul.f32 %v2324, %v2363
      %v2372 = vmul.f32 %v2326, %v2364
      %v2373 = vmul.f32 %v2328, %v2365
      %v2374 = vmul.f32 %v2330, %v2366
      %v2375 = vmul.f32 %v2332, %v2367
      %v2376 = vmul.f32 %v2334, %v2368
      %v2377 = vmul.f32 %v2336, %v2369
      %v2378 = vmul.f32 %v2338, %v2370
      %v2379 = vpack.c.bf16 %v2372, %v2371
      %v2380 = vpack.c.bf16 %v2374, %v2373
      %v2381 = vpack.c.bf16 %v2376, %v2375
      %v2382 = vpack.c.bf16 %v2378, %v2377
      %2383 = vrot.lane.b32.xlu0 %v1889, 20
      %v2384 = vpop.permute.xlu0 %2383
      %2385 = vrot.lane.b32.xlu0 %v1890, 20
      %v2386 = vpop.permute.xlu0 %2385
      %2387 = vrot.lane.b32.xlu0 %v1891, 20
      %v2388 = vpop.permute.xlu0 %2387
      %2389 = vrot.lane.b32.xlu0 %v1892, 20
      %v2390 = vpop.permute.xlu0 %2389
      %v2396 = vsel %vm1113, %v2379, 0
      %v2399 = vsel %vm1113, %v2380, 0
      %v2402 = vsel %vm1113, %v2381, 0
      %v2405 = vsel %vm1113, %v2382, 0
      %2407 = vmatprep.subr.bf16.mxu0 0
      %2408 = vmatpush1.bf16.msra.mxu0 0
      %2409 = vmatprep.subr.bf16.mxu0 0
      %2410 = vmatpush1.bf16.msra.mxu0 0
      %2411 = vmatprep.subr.bf16.mxu0 0
      %2412 = vmatpush1.bf16.msra.mxu0 0
      %2413 = vmatprep.subr.bf16.mxu0 0
      %2414 = vmatpush1.bf16.msra.mxu0 0
      %2415 = vmatprep.subr.bf16.mxu0 0
      %2416 = vmatpush1.bf16.msra.mxu0 %v2390
      %2417 = vmatprep.subr.bf16.mxu0 0
      %2418 = vmatpush1.bf16.msra.mxu0 %v2388
      %2419 = vmatprep.subr.bf16.mxu0 0
      %2420 = vmatpush1.bf16.msra.mxu0 %v2386
      %2421 = vmatprep.subr.bf16.mxu0 0
      %2422 = vmatpush1.bf16.msra.mxu0 %v2384
      %2423 = vmatprep.subr.bf16.mxu0 0
      %2424 = vmatpush2.bf16.msra.mxu0 0
      %2425 = vmatprep.subr.bf16.mxu0 0
      %2426 = vmatpush2.bf16.msra.mxu0 0
      %2427 = vmatprep.subr.bf16.mxu0 0
      %2428 = vmatpush2.bf16.msra.mxu0 0
      %2429 = vmatprep.subr.bf16.mxu0 0
      %2430 = vmatpush2.bf16.msra.mxu0 0
      %2431 = vmatprep.subr.bf16.mxu0 0
      %2432 = vmatpush2.bf16.msra.mxu0 0
      %2433 = vmatprep.subr.bf16.mxu0 0
      %2434 = vmatpush2.bf16.msra.mxu0 0
      %2435 = vmatprep.subr.bf16.mxu0 0
      %2436 = vmatpush2.bf16.msra.mxu0 0
      %2437 = vmatprep.subr.bf16.mxu0 0
      %2438 = vmatpush2.bf16.msra.mxu0 0
      %2439 = vmatprep.mubr.bf16.mxu0 0
      %2440 = vmatmul.mubr.bf16.gmra.mxu0 %v2396
      %v2441 = vpop.f32.mrf.mxu0
      %v2442 = vadd.f32 0.0, %v2441
      %v2443 = vpop.f32.mrf.mxu0
      %v2444 = vpop.f32.mrf.mxu0
      %v2445 = vadd.f32 0.0, %v2444
      %v2446 = vpop.f32.mrf.mxu0
      %2447 = vmatprep.mubr.bf16.mxu0 0
      %2448 = vmatmul.mubr.bf16.gmra.mxu0 %v2399
      %v2449 = vpop.f32.mrf.mxu0
      %v2450 = vadd.f32 0.0, %v2449
      %v2451 = vpop.f32.mrf.mxu0
      %v2452 = vpop.f32.mrf.mxu0
      %v2453 = vadd.f32 0.0, %v2452
      %v2454 = vpop.f32.mrf.mxu0
      %2455 = vmatprep.mubr.bf16.mxu0 0
      %2456 = vmatmul.mubr.bf16.gmra.mxu0 %v2402
      %v2457 = vpop.f32.mrf.mxu0
      %v2458 = vadd.f32 0.0, %v2457
      %v2459 = vpop.f32.mrf.mxu0
      %v2460 = vpop.f32.mrf.mxu0
      %v2461 = vadd.f32 0.0, %v2460
      %v2462 = vpop.f32.mrf.mxu0
      %2463 = vmatprep.mubr.bf16.mxu0 0
      %2464 = vmatmul.mubr.bf16.gmra.mxu0 %v2405
      %v2465 = vpop.f32.mrf.mxu0
      %v2466 = vadd.f32 0.0, %v2465
      %v2467 = vpop.f32.mrf.mxu0
      %v2468 = vpop.f32.mrf.mxu0
      %v2469 = vadd.f32 0.0, %v2468
      %v2470 = vpop.f32.mrf.mxu0
      %2471 = vdwg.mxu0
      %v2472 = vpack.c.bf16 %v2445, %v2442
      %v2473 = vpack.c.bf16 %v2453, %v2450
      %v2474 = vpack.c.bf16 %v2461, %v2458
      %v2475 = vpack.c.bf16 %v2469, %v2466
      %s2476 = scalar_lea.vmem %s14, 8
      %v2477 = vld [vmem:[%s2476] sm:$0xf]
      %v2478 = vld [vmem:[%s2476 + $0x4] sm:$0x3]
      %v2481 = vunpack.c.l.b16 %v2477
      %v2482 = vunpack.c.l.b16 %v2478
      %v2483 = vpack.c.b16 %v2482, %v2481
      %v2485 = vsel %vm1905, %v2472, 0
      %v2488 = vsel %vm1905, %v2473, 0
      %v2491 = vsel %vm1905, %v2474, 0
      %v2494 = vsel %vm1905, %v2475, 0
      %vm2496 = vcmask 1045504
      %v2498 = vsel %vm2496, %v2483, 0
      %2500 = vmatprep.subr.bf16.mxu0 0
      %2501 = vmatpush1.bf16.msra.mxu0 0
      %2502 = vmatprep.subr.bf16.mxu0 0
      %2503 = vmatpush1.bf16.msra.mxu0 0
      %2504 = vmatprep.subr.bf16.mxu0 0
      %2505 = vmatpush1.bf16.msra.mxu0 0
      %2506 = vmatprep.subr.bf16.mxu0 0
      %2507 = vmatpush1.bf16.msra.mxu0 0
      %2508 = vmatprep.subr.bf16.mxu0 0
      %2509 = vmatpush1.bf16.msra.mxu0 0
      %2510 = vmatprep.subr.bf16.mxu0 0
      %2511 = vmatpush1.bf16.msra.mxu0 0
      %2512 = vmatprep.subr.bf16.mxu0 0
      %2513 = vmatpush1.bf16.msra.mxu0 0
      %2514 = vmatprep.subr.bf16.mxu0 0
      %2515 = vmatpush1.bf16.msra.mxu0 %v2498
      %2516 = vmatprep.subr.bf16.mxu0 0
      %2517 = vmatpush2.bf16.msra.mxu0 0
      %2518 = vmatprep.subr.bf16.mxu0 0
      %2519 = vmatpush2.bf16.msra.mxu0 0
      %2520 = vmatprep.subr.bf16.mxu0 0
      %2521 = vmatpush2.bf16.msra.mxu0 0
      %2522 = vmatprep.subr.bf16.mxu0 0
      %2523 = vmatpush2.bf16.msra.mxu0 0
      %2524 = vmatprep.subr.bf16.mxu0 0
      %2525 = vmatpush2.bf16.msra.mxu0 0
      %2526 = vmatprep.subr.bf16.mxu0 0
      %2527 = vmatpush2.bf16.msra.mxu0 0
      %2528 = vmatprep.subr.bf16.mxu0 0
      %2529 = vmatpush2.bf16.msra.mxu0 0
      %2530 = vmatprep.subr.bf16.mxu0 0
      %2531 = vmatpush2.bf16.msra.mxu0 0
      %2532 = vmatprep.mubr.bf16.mxu0 0
      %2533 = vmatmul.mubr.bf16.gmra.mxu0 %v2485
      %v2534 = vpop.f32.mrf.mxu0
      %v2535 = vadd.f32 0.0, %v2534
      %v2536 = vpop.f32.mrf.mxu0
      %v2537 = vpop.f32.mrf.mxu0
      %v2538 = vadd.f32 0.0, %v2537
      %v2539 = vpop.f32.mrf.mxu0
      %2540 = vmatprep.mubr.bf16.mxu0 0
      %2541 = vmatmul.mubr.bf16.gmra.mxu0 %v2488
      %v2542 = vpop.f32.mrf.mxu0
      %v2543 = vadd.f32 0.0, %v2542
      %v2544 = vpop.f32.mrf.mxu0
      %v2545 = vpop.f32.mrf.mxu0
      %v2546 = vadd.f32 0.0, %v2545
      %v2547 = vpop.f32.mrf.mxu0
      %2548 = vmatprep.mubr.bf16.mxu0 0
      %2549 = vmatmul.mubr.bf16.gmra.mxu0 %v2491
      %v2550 = vpop.f32.mrf.mxu0
      %v2551 = vadd.f32 0.0, %v2550
      %v2552 = vpop.f32.mrf.mxu0
      %v2553 = vpop.f32.mrf.mxu0
      %v2554 = vadd.f32 0.0, %v2553
      %v2555 = vpop.f32.mrf.mxu0
      %2556 = vmatprep.mubr.bf16.mxu0 0
      %2557 = vmatmul.mubr.bf16.gmra.mxu0 %v2494
      %v2558 = vpop.f32.mrf.mxu0
      %v2559 = vadd.f32 0.0, %v2558
      %v2560 = vpop.f32.mrf.mxu0
      %v2561 = vpop.f32.mrf.mxu0
      %v2562 = vadd.f32 0.0, %v2561
      %v2563 = vpop.f32.mrf.mxu0
      %2564 = vdwg.mxu0
      %v2567 = vunpack.c.l.b16 %v2180
      %v2568 = vunpack.c.l.b16 %v2181
      %v2569 = vpack.c.b16 %v2568, %v2567
      %v2571 = vsel %vm1905, %v2176, 0
      %v2574 = vsel %vm1905, %v2177, 0
      %v2577 = vsel %vm1905, %v2178, 0
      %v2580 = vsel %vm1905, %v2179, 0
      %v2583 = vsel %vm2496, %v2569, 0
      %2585 = vmatprep.subr.bf16.mxu0 0
      %2586 = vmatpush1.bf16.msra.mxu0 0
      %2587 = vmatprep.subr.bf16.mxu0 0
      %2588 = vmatpush1.bf16.msra.mxu0 0
      %2589 = vmatprep.subr.bf16.mxu0 0
      %2590 = vmatpush1.bf16.msra.mxu0 0
      %2591 = vmatprep.subr.bf16.mxu0 0
      %2592 = vmatpush1.bf16.msra.mxu0 0
      %2593 = vmatprep.subr.bf16.mxu0 0
      %2594 = vmatpush1.bf16.msra.mxu0 0
      %2595 = vmatprep.subr.bf16.mxu0 0
      %2596 = vmatpush1.bf16.msra.mxu0 0
      %2597 = vmatprep.subr.bf16.mxu0 0
      %2598 = vmatpush1.bf16.msra.mxu0 0
      %2599 = vmatprep.subr.bf16.mxu0 0
      %2600 = vmatpush1.bf16.msra.mxu0 %v2583
      %2601 = vmatprep.subr.bf16.mxu0 0
      %2602 = vmatpush2.bf16.msra.mxu0 0
      %2603 = vmatprep.subr.bf16.mxu0 0
      %2604 = vmatpush2.bf16.msra.mxu0 0
      %2605 = vmatprep.subr.bf16.mxu0 0
      %2606 = vmatpush2.bf16.msra.mxu0 0
      %2607 = vmatprep.subr.bf16.mxu0 0
      %2608 = vmatpush2.bf16.msra.mxu0 0
      %2609 = vmatprep.subr.bf16.mxu0 0
      %2610 = vmatpush2.bf16.msra.mxu0 0
      %2611 = vmatprep.subr.bf16.mxu0 0
      %2612 = vmatpush2.bf16.msra.mxu0 0
      %2613 = vmatprep.subr.bf16.mxu0 0
      %2614 = vmatpush2.bf16.msra.mxu0 0
      %2615 = vmatprep.subr.bf16.mxu0 0
      %2616 = vmatpush2.bf16.msra.mxu0 0
      %2617 = vmatprep.mubr.bf16.mxu0 0
      %2618 = vmatmul.mubr.bf16.gmra.mxu0 %v2571
      %v2619 = vpop.f32.mrf.mxu0
      %v2620 = vadd.f32 %v2535, %v2619
      %v2621 = vpop.f32.mrf.mxu0
      %v2622 = vpop.f32.mrf.mxu0
      %v2623 = vadd.f32 %v2538, %v2622
      %v2624 = vpop.f32.mrf.mxu0
      %2625 = vmatprep.mubr.bf16.mxu0 0
      %2626 = vmatmul.mubr.bf16.gmra.mxu0 %v2574
      %v2627 = vpop.f32.mrf.mxu0
      %v2628 = vadd.f32 %v2543, %v2627
      %v2629 = vpop.f32.mrf.mxu0
      %v2630 = vpop.f32.mrf.mxu0
      %v2631 = vadd.f32 %v2546, %v2630
      %v2632 = vpop.f32.mrf.mxu0
      %2633 = vmatprep.mubr.bf16.mxu0 0
      %2634 = vmatmul.mubr.bf16.gmra.mxu0 %v2577
      %v2635 = vpop.f32.mrf.mxu0
      %v2636 = vadd.f32 %v2551, %v2635
      %v2637 = vpop.f32.mrf.mxu0
      %v2638 = vpop.f32.mrf.mxu0
      %v2639 = vadd.f32 %v2554, %v2638
      %v2640 = vpop.f32.mrf.mxu0
      %2641 = vmatprep.mubr.bf16.mxu0 0
      %2642 = vmatmul.mubr.bf16.gmra.mxu0 %v2580
      %v2643 = vpop.f32.mrf.mxu0
      %v2644 = vadd.f32 %v2559, %v2643
      %v2645 = vpop.f32.mrf.mxu0
      %v2646 = vpop.f32.mrf.mxu0
      %v2647 = vadd.f32 %v2562, %v2646
      %v2648 = vpop.f32.mrf.mxu0
      %2649 = vdwg.mxu0
      %2650 = vrot.lane.b32.xlu0 %v1885, 104
      %v2651 = vpop.permute.xlu0 %2650
      %2652 = vrot.lane.b32.xlu0 %v1886, 104
      %v2653 = vpop.permute.xlu0 %2652
      %2654 = vrot.lane.b32.xlu0 %v1887, 104
      %v2655 = vpop.permute.xlu0 %2654
      %2656 = vrot.lane.b32.xlu0 %v1888, 104
      %v2657 = vpop.permute.xlu0 %2656
      %2658 = vrot.lane.b32.xlu0 %v1889, 56
      %v2659 = vpop.permute.xlu0 %2658
      %2660 = vrot.lane.b32.xlu0 %v1890, 56
      %v2661 = vpop.permute.xlu0 %2660
      %2662 = vrot.lane.b32.xlu0 %v1891, 56
      %v2663 = vpop.permute.xlu0 %2662
      %2664 = vrot.lane.b32.xlu0 %v1892, 56
      %v2665 = vpop.permute.xlu0 %2664
      %v2667 = vsel %vm1905, %v2651, 0
      %v2670 = vsel %vm1905, %v2653, 0
      %v2673 = vsel %vm1905, %v2655, 0
      %v2676 = vsel %vm1905, %v2657, 0
      %v2679 = vsel %vm1905, %v2659, 0
      %v2682 = vsel %vm1905, %v2661, 0
      %v2685 = vsel %vm1905, %v2663, 0
      %v2688 = vsel %vm1905, %v2665, 0
      %2690 = vmatprep.subr.bf16.mxu0 0
      %2691 = vmatpush1.bf16.xpose.msra.mxu0 0
      %2692 = vmatprep.subr.bf16.mxu0 0
      %2693 = vmatpush1.bf16.xpose.msra.mxu0 0
      %2694 = vmatprep.subr.bf16.mxu0 0
      %2695 = vmatpush1.bf16.xpose.msra.mxu0 0
      %2696 = vmatprep.subr.bf16.mxu0 0
      %2697 = vmatpush1.bf16.xpose.msra.mxu0 0
      %2698 = vmatprep.subr.bf16.mxu0 0
      %2699 = vmatpush1.bf16.xpose.msra.mxu0 %v2688
      %2700 = vmatprep.subr.bf16.mxu0 0
      %2701 = vmatpush1.bf16.xpose.msra.mxu0 %v2685
      %2702 = vmatprep.subr.bf16.mxu0 0
      %2703 = vmatpush1.bf16.xpose.msra.mxu0 %v2682
      %2704 = vmatprep.subr.bf16.mxu0 0
      %2705 = vmatpush1.bf16.xpose.msra.mxu0 %v2679
      %2706 = vmatprep.subr.bf16.mxu0 0
      %2707 = vmatpush2.bf16.xpose.msra.mxu0 0
      %2708 = vmatprep.subr.bf16.mxu0 0
      %2709 = vmatpush2.bf16.xpose.msra.mxu0 0
      %2710 = vmatprep.subr.bf16.mxu0 0
      %2711 = vmatpush2.bf16.xpose.msra.mxu0 0
      %2712 = vmatprep.subr.bf16.mxu0 0
      %2713 = vmatpush2.bf16.xpose.msra.mxu0 0
      %2714 = vmatprep.subr.bf16.mxu0 0
      %2715 = vmatpush2.bf16.xpose.msra.mxu0 0
      %2716 = vmatprep.subr.bf16.mxu0 0
      %2717 = vmatpush2.bf16.xpose.msra.mxu0 0
      %2718 = vmatprep.subr.bf16.mxu0 0
      %2719 = vmatpush2.bf16.xpose.msra.mxu0 0
      %2720 = vmatprep.subr.bf16.mxu0 0
      %2721 = vmatpush2.bf16.xpose.msra.mxu0 0
      %2722 = vmatprep.mubr.bf16.mxu0 0
      %2723 = vmatmul.mubr.bf16.gmra.mxu0 %v2667
      %v2724 = vpop.f32.mrf.mxu0
      %v2725 = vadd.f32 0.0, %v2724
      %v2726 = vpop.f32.mrf.mxu0
      %v2727 = vpop.f32.mrf.mxu0
      %v2728 = vadd.f32 0.0, %v2727
      %v2729 = vpop.f32.mrf.mxu0
      %2730 = vmatprep.mubr.bf16.mxu0 0
      %2731 = vmatmul.mubr.bf16.gmra.mxu0 %v2670
      %v2732 = vpop.f32.mrf.mxu0
      %v2733 = vadd.f32 0.0, %v2732
      %v2734 = vpop.f32.mrf.mxu0
      %v2735 = vpop.f32.mrf.mxu0
      %v2736 = vadd.f32 0.0, %v2735
      %v2737 = vpop.f32.mrf.mxu0
      %2738 = vmatprep.mubr.bf16.mxu0 0
      %2739 = vmatmul.mubr.bf16.gmra.mxu0 %v2673
      %v2740 = vpop.f32.mrf.mxu0
      %v2741 = vadd.f32 0.0, %v2740
      %v2742 = vpop.f32.mrf.mxu0
      %v2743 = vpop.f32.mrf.mxu0
      %v2744 = vadd.f32 0.0, %v2743
      %v2745 = vpop.f32.mrf.mxu0
      %2746 = vmatprep.mubr.bf16.mxu0 0
      %2747 = vmatmul.mubr.bf16.gmra.mxu0 %v2676
      %v2748 = vpop.f32.mrf.mxu0
      %v2749 = vadd.f32 0.0, %v2748
      %v2750 = vpop.f32.mrf.mxu0
      %v2751 = vpop.f32.mrf.mxu0
      %v2752 = vadd.f32 0.0, %v2751
      %v2753 = vpop.f32.mrf.mxu0
      %2754 = vdwg.mxu0
      %v2755 = vsel %vm1113, %v2725, -inf
      %2756 = vmax.xlane.f32.xlu0 %v2755
      %v2757 = vpop.xlane.xlu0 %2756
      %v2758 = vsel %vm1113, %v2728, -inf
      %2759 = vmax.xlane.f32.xlu0 %v2758
      %v2760 = vpop.xlane.xlu0 %2759
      %v2761 = vsel %vm1113, %v2733, -inf
      %2762 = vmax.xlane.f32.xlu0 %v2761
      %v2763 = vpop.xlane.xlu0 %2762
      %v2764 = vsel %vm1113, %v2736, -inf
      %2765 = vmax.xlane.f32.xlu0 %v2764
      %v2766 = vpop.xlane.xlu0 %2765
      %v2767 = vsel %vm1113, %v2741, -inf
      %2768 = vmax.xlane.f32.xlu0 %v2767
      %v2769 = vpop.xlane.xlu0 %2768
      %v2770 = vsel %vm1113, %v2744, -inf
      %2771 = vmax.xlane.f32.xlu0 %v2770
      %v2772 = vpop.xlane.xlu0 %2771
      %v2773 = vsel %vm1113, %v2749, -inf
      %2774 = vmax.xlane.f32.xlu0 %v2773
      %v2775 = vpop.xlane.xlu0 %2774
      %v2776 = vsel %vm1113, %v2752, -inf
      %2777 = vmax.xlane.f32.xlu0 %v2776
      %v2778 = vpop.xlane.xlu0 %2777
      %v2779 = vsub.f32 %v2725, %v2757
      %v2780 = vsub.f32 %v2728, %v2760
      %v2781 = vsub.f32 %v2733, %v2763
      %v2782 = vsub.f32 %v2736, %v2766
      %v2783 = vsub.f32 %v2741, %v2769
      %v2784 = vsub.f32 %v2744, %v2772
      %v2785 = vsub.f32 %v2749, %v2775
      %v2786 = vsub.f32 %v2752, %v2778
      %v2787 = vmul.f32 %v2779, 1.442695
      %v2788 = vpow.pop %v2787
      %v2789 = vmul.f32 %v2780, 1.442695
      %v2790 = vpow.pop %v2789
      %v2791 = vmul.f32 %v2781, 1.442695
      %v2792 = vpow.pop %v2791
      %v2793 = vmul.f32 %v2782, 1.442695
      %v2794 = vpow.pop %v2793
      %v2795 = vmul.f32 %v2783, 1.442695
      %v2796 = vpow.pop %v2795
      %v2797 = vmul.f32 %v2784, 1.442695
      %v2798 = vpow.pop %v2797
      %v2799 = vmul.f32 %v2785, 1.442695
      %v2800 = vpow.pop %v2799
      %v2801 = vmul.f32 %v2786, 1.442695
      %v2802 = vpow.pop %v2801
      %v2803 = vsel %vm1113, %v2788, 0.0
      %2804 = vadd.xlane.f32.xlu0 %v2803
      %v2805 = vpop.xlane.xlu0 %2804
      %v2806 = vsel %vm1113, %v2790, 0.0
      %2807 = vadd.xlane.f32.xlu0 %v2806
      %v2808 = vpop.xlane.xlu0 %2807
      %v2809 = vsel %vm1113, %v2792, 0.0
      %2810 = vadd.xlane.f32.xlu0 %v2809
      %v2811 = vpop.xlane.xlu0 %2810
      %v2812 = vsel %vm1113, %v2794, 0.0
      %2813 = vadd.xlane.f32.xlu0 %v2812
      %v2814 = vpop.xlane.xlu0 %2813
      %v2815 = vsel %vm1113, %v2796, 0.0
      %2816 = vadd.xlane.f32.xlu0 %v2815
      %v2817 = vpop.xlane.xlu0 %2816
      %v2818 = vsel %vm1113, %v2798, 0.0
      %2819 = vadd.xlane.f32.xlu0 %v2818
      %v2820 = vpop.xlane.xlu0 %2819
      %v2821 = vsel %vm1113, %v2800, 0.0
      %2822 = vadd.xlane.f32.xlu0 %v2821
      %v2823 = vpop.xlane.xlu0 %2822
      %v2824 = vsel %vm1113, %v2802, 0.0
      %2825 = vadd.xlane.f32.xlu0 %v2824
      %v2826 = vpop.xlane.xlu0 %2825
      %v2827 = vrcp.pop %v2805
      %v2828 = vrcp.pop %v2808
      %v2829 = vrcp.pop %v2811
      %v2830 = vrcp.pop %v2814
      %v2831 = vrcp.pop %v2817
      %v2832 = vrcp.pop %v2820
      %v2833 = vrcp.pop %v2823
      %v2834 = vrcp.pop %v2826
      %v2835 = vmul.f32 %v2788, %v2827
      %v2836 = vmul.f32 %v2790, %v2828
      %v2837 = vmul.f32 %v2792, %v2829
      %v2838 = vmul.f32 %v2794, %v2830
      %v2839 = vmul.f32 %v2796, %v2831
      %v2840 = vmul.f32 %v2798, %v2832
      %v2841 = vmul.f32 %v2800, %v2833
      %v2842 = vmul.f32 %v2802, %v2834
      %v2843 = vpack.c.bf16 %v2836, %v2835
      %v2844 = vpack.c.bf16 %v2838, %v2837
      %v2845 = vpack.c.bf16 %v2840, %v2839
      %v2846 = vpack.c.bf16 %v2842, %v2841
      %v2847 = vpack.c.bf16 %v1845, %v1841
      %v2848 = vpack.c.bf16 %v1855, %v1851
      %v2849 = vpack.c.bf16 %v1865, %v1861
      %v2850 = vpack.c.bf16 %v1875, %v1871
      %2855 = vrot.lane.b32.xlu0 %v1889, 8
      %v2856 = vpop.permute.xlu0 %2855
      %2857 = vrot.lane.b32.xlu0 %v2847, 8
      %v2858 = vpop.permute.xlu0 %2857
      %2859 = vrot.lane.b32.xlu0 %v1890, 8
      %v2860 = vpop.permute.xlu0 %2859
      %2861 = vrot.lane.b32.xlu0 %v2848, 8
      %v2862 = vpop.permute.xlu0 %2861
      %2863 = vrot.lane.b32.xlu0 %v1891, 8
      %v2864 = vpop.permute.xlu0 %2863
      %2865 = vrot.lane.b32.xlu0 %v2849, 8
      %v2866 = vpop.permute.xlu0 %2865
      %2867 = vrot.lane.b32.xlu0 %v1892, 8
      %v2868 = vpop.permute.xlu0 %2867
      %2869 = vrot.lane.b32.xlu0 %v2850, 8
      %v2870 = vpop.permute.xlu0 %2869
      %vm2871 = vcmask 64512
      %v2872 = vsel %vm2871, %v2856, %v2858
      %v2873 = vsel %vm2871, %v2860, %v2862
      %v2874 = vsel %vm2871, %v2864, %v2866
      %v2875 = vsel %vm2871, %v2868, %v2870
      %v2881 = vsel %vm1113, %v2843, 0
      %v2884 = vsel %vm1113, %v2844, 0
      %v2887 = vsel %vm1113, %v2845, 0
      %v2890 = vsel %vm1113, %v2846, 0
      %2892 = vmatprep.subr.bf16.mxu0 0
      %2893 = vmatpush1.bf16.msra.mxu0 0
      %2894 = vmatprep.subr.bf16.mxu0 0
      %2895 = vmatpush1.bf16.msra.mxu0 0
      %2896 = vmatprep.subr.bf16.mxu0 0
      %2897 = vmatpush1.bf16.msra.mxu0 0
      %2898 = vmatprep.subr.bf16.mxu0 0
      %2899 = vmatpush1.bf16.msra.mxu0 0
      %2900 = vmatprep.subr.bf16.mxu0 0
      %2901 = vmatpush1.bf16.msra.mxu0 %v2875
      %2902 = vmatprep.subr.bf16.mxu0 0
      %2903 = vmatpush1.bf16.msra.mxu0 %v2874
      %2904 = vmatprep.subr.bf16.mxu0 0
      %2905 = vmatpush1.bf16.msra.mxu0 %v2873
      %2906 = vmatprep.subr.bf16.mxu0 0
      %2907 = vmatpush1.bf16.msra.mxu0 %v2872
      %2908 = vmatprep.subr.bf16.mxu0 0
      %2909 = vmatpush2.bf16.msra.mxu0 0
      %2910 = vmatprep.subr.bf16.mxu0 0
      %2911 = vmatpush2.bf16.msra.mxu0 0
      %2912 = vmatprep.subr.bf16.mxu0 0
      %2913 = vmatpush2.bf16.msra.mxu0 0
      %2914 = vmatprep.subr.bf16.mxu0 0
      %2915 = vmatpush2.bf16.msra.mxu0 0
      %2916 = vmatprep.subr.bf16.mxu0 0
      %2917 = vmatpush2.bf16.msra.mxu0 0
      %2918 = vmatprep.subr.bf16.mxu0 0
      %2919 = vmatpush2.bf16.msra.mxu0 0
      %2920 = vmatprep.subr.bf16.mxu0 0
      %2921 = vmatpush2.bf16.msra.mxu0 0
      %2922 = vmatprep.subr.bf16.mxu0 0
      %2923 = vmatpush2.bf16.msra.mxu0 0
      %2924 = vmatprep.mubr.bf16.mxu0 0
      %2925 = vmatmul.mubr.bf16.gmra.mxu0 %v2881
      %v2926 = vpop.f32.mrf.mxu0
      %v2927 = vadd.f32 0.0, %v2926
      %v2928 = vpop.f32.mrf.mxu0
      %v2929 = vpop.f32.mrf.mxu0
      %v2930 = vadd.f32 0.0, %v2929
      %v2931 = vpop.f32.mrf.mxu0
      %2932 = vmatprep.mubr.bf16.mxu0 0
      %2933 = vmatmul.mubr.bf16.gmra.mxu0 %v2884
      %v2934 = vpop.f32.mrf.mxu0
      %v2935 = vadd.f32 0.0, %v2934
      %v2936 = vpop.f32.mrf.mxu0
      %v2937 = vpop.f32.mrf.mxu0
      %v2938 = vadd.f32 0.0, %v2937
      %v2939 = vpop.f32.mrf.mxu0
      %2940 = vmatprep.mubr.bf16.mxu0 0
      %2941 = vmatmul.mubr.bf16.gmra.mxu0 %v2887
      %v2942 = vpop.f32.mrf.mxu0
      %v2943 = vadd.f32 0.0, %v2942
      %v2944 = vpop.f32.mrf.mxu0
      %v2945 = vpop.f32.mrf.mxu0
      %v2946 = vadd.f32 0.0, %v2945
      %v2947 = vpop.f32.mrf.mxu0
      %2948 = vmatprep.mubr.bf16.mxu0 0
      %2949 = vmatmul.mubr.bf16.gmra.mxu0 %v2890
      %v2950 = vpop.f32.mrf.mxu0
      %v2951 = vadd.f32 0.0, %v2950
      %v2952 = vpop.f32.mrf.mxu0
      %v2953 = vpop.f32.mrf.mxu0
      %v2954 = vadd.f32 0.0, %v2953
      %v2955 = vpop.f32.mrf.mxu0
      %2956 = vdwg.mxu0
      %v2957 = vpack.c.bf16 %v2930, %v2927
      %v2958 = vpack.c.bf16 %v2938, %v2935
      %v2959 = vpack.c.bf16 %v2946, %v2943
      %v2960 = vpack.c.bf16 %v2954, %v2951
      %s2961 = scalar_lea.vmem %s14, 16
      %v2962 = vld [vmem:[%s2961] sm:$0xf]
      %v2963 = vld [vmem:[%s2961 + $0x4] sm:$0x3]
      %v2966 = vunpack.c.l.b16 %v2962
      %v2967 = vunpack.c.l.b16 %v2963
      %v2968 = vpack.c.b16 %v2967, %v2966
      %v2970 = vsel %vm1905, %v2957, 0
      %v2973 = vsel %vm1905, %v2958, 0
      %v2976 = vsel %vm1905, %v2959, 0
      %v2979 = vsel %vm1905, %v2960, 0
      %v2982 = vsel %vm2496, %v2968, 0
      %2984 = vmatprep.subr.bf16.mxu0 0
      %2985 = vmatpush1.bf16.msra.mxu0 0
      %2986 = vmatprep.subr.bf16.mxu0 0
      %2987 = vmatpush1.bf16.msra.mxu0 0
      %2988 = vmatprep.subr.bf16.mxu0 0
      %2989 = vmatpush1.bf16.msra.mxu0 0
      %2990 = vmatprep.subr.bf16.mxu0 0
      %2991 = vmatpush1.bf16.msra.mxu0 0
      %2992 = vmatprep.subr.bf16.mxu0 0
      %2993 = vmatpush1.bf16.msra.mxu0 0
      %2994 = vmatprep.subr.bf16.mxu0 0
      %2995 = vmatpush1.bf16.msra.mxu0 0
      %2996 = vmatprep.subr.bf16.mxu0 0
      %2997 = vmatpush1.bf16.msra.mxu0 0
      %2998 = vmatprep.subr.bf16.mxu0 0
      %2999 = vmatpush1.bf16.msra.mxu0 %v2982
      %3000 = vmatprep.subr.bf16.mxu0 0
      %3001 = vmatpush2.bf16.msra.mxu0 0
      %3002 = vmatprep.subr.bf16.mxu0 0
      %3003 = vmatpush2.bf16.msra.mxu0 0
      %3004 = vmatprep.subr.bf16.mxu0 0
      %3005 = vmatpush2.bf16.msra.mxu0 0
      %3006 = vmatprep.subr.bf16.mxu0 0
      %3007 = vmatpush2.bf16.msra.mxu0 0
      %3008 = vmatprep.subr.bf16.mxu0 0
      %3009 = vmatpush2.bf16.msra.mxu0 0
      %3010 = vmatprep.subr.bf16.mxu0 0
      %3011 = vmatpush2.bf16.msra.mxu0 0
      %3012 = vmatprep.subr.bf16.mxu0 0
      %3013 = vmatpush2.bf16.msra.mxu0 0
      %3014 = vmatprep.subr.bf16.mxu0 0
      %3015 = vmatpush2.bf16.msra.mxu0 0
      %3016 = vmatprep.mubr.bf16.mxu0 0
      %3017 = vmatmul.mubr.bf16.gmra.mxu0 %v2970
      %v3018 = vpop.f32.mrf.mxu0
      %v3019 = vadd.f32 0.0, %v3018
      %v3020 = vpop.f32.mrf.mxu0
      %v3021 = vpop.f32.mrf.mxu0
      %v3022 = vadd.f32 0.0, %v3021
      %v3023 = vpop.f32.mrf.mxu0
      %3024 = vmatprep.mubr.bf16.mxu0 0
      %3025 = vmatmul.mubr.bf16.gmra.mxu0 %v2973
      %v3026 = vpop.f32.mrf.mxu0
      %v3027 = vadd.f32 0.0, %v3026
      %v3028 = vpop.f32.mrf.mxu0
      %v3029 = vpop.f32.mrf.mxu0
      %v3030 = vadd.f32 0.0, %v3029
      %v3031 = vpop.f32.mrf.mxu0
      %3032 = vmatprep.mubr.bf16.mxu0 0
      %3033 = vmatmul.mubr.bf16.gmra.mxu0 %v2976
      %v3034 = vpop.f32.mrf.mxu0
      %v3035 = vadd.f32 0.0, %v3034
      %v3036 = vpop.f32.mrf.mxu0
      %v3037 = vpop.f32.mrf.mxu0
      %v3038 = vadd.f32 0.0, %v3037
      %v3039 = vpop.f32.mrf.mxu0
      %3040 = vmatprep.mubr.bf16.mxu0 0
      %3041 = vmatmul.mubr.bf16.gmra.mxu0 %v2979
      %v3042 = vpop.f32.mrf.mxu0
      %v3043 = vadd.f32 0.0, %v3042
      %v3044 = vpop.f32.mrf.mxu0
      %v3045 = vpop.f32.mrf.mxu0
      %v3046 = vadd.f32 0.0, %v3045
      %v3047 = vpop.f32.mrf.mxu0
      %3048 = vdwg.mxu0
      %v3049 = vadd.f32 %v2620, %v3019
      %v3050 = vadd.f32 %v2623, %v3022
      %v3051 = vadd.f32 %v2628, %v3027
      %v3052 = vadd.f32 %v2631, %v3030
      %v3053 = vadd.f32 %v2636, %v3035
      %v3054 = vadd.f32 %v2639, %v3038
      %v3055 = vadd.f32 %v2644, %v3043
      %v3056 = vadd.f32 %v2647, %v3046
      %3057 = vrot.lane.b32.xlu0 %v1885, 92
      %v3058 = vpop.permute.xlu0 %3057
      %3059 = vrot.lane.b32.xlu0 %v1886, 92
      %v3060 = vpop.permute.xlu0 %3059
      %3061 = vrot.lane.b32.xlu0 %v1887, 92
      %v3062 = vpop.permute.xlu0 %3061
      %3063 = vrot.lane.b32.xlu0 %v1888, 92
      %v3064 = vpop.permute.xlu0 %3063
      %3065 = vrot.lane.b32.xlu0 %v1889, 44
      %v3066 = vpop.permute.xlu0 %3065
      %3067 = vrot.lane.b32.xlu0 %v1890, 44
      %v3068 = vpop.permute.xlu0 %3067
      %3069 = vrot.lane.b32.xlu0 %v1891, 44
      %v3070 = vpop.permute.xlu0 %3069
      %3071 = vrot.lane.b32.xlu0 %v1892, 44
      %v3072 = vpop.permute.xlu0 %3071
      %v3074 = vsel %vm1905, %v3058, 0
      %v3077 = vsel %vm1905, %v3060, 0
      %v3080 = vsel %vm1905, %v3062, 0
      %v3083 = vsel %vm1905, %v3064, 0
      %v3086 = vsel %vm1905, %v3066, 0
      %v3089 = vsel %vm1905, %v3068, 0
      %v3092 = vsel %vm1905, %v3070, 0
      %v3095 = vsel %vm1905, %v3072, 0
      %3097 = vmatprep.subr.bf16.mxu0 0
      %3098 = vmatpush1.bf16.xpose.msra.mxu0 0
      %3099 = vmatprep.subr.bf16.mxu0 0
      %3100 = vmatpush1.bf16.xpose.msra.mxu0 0
      %3101 = vmatprep.subr.bf16.mxu0 0
      %3102 = vmatpush1.bf16.xpose.msra.mxu0 0
      %3103 = vmatprep.subr.bf16.mxu0 0
      %3104 = vmatpush1.bf16.xpose.msra.mxu0 0
      %3105 = vmatprep.subr.bf16.mxu0 0
      %3106 = vmatpush1.bf16.xpose.msra.mxu0 %v3095
      %3107 = vmatprep.subr.bf16.mxu0 0
      %3108 = vmatpush1.bf16.xpose.msra.mxu0 %v3092
      %3109 = vmatprep.subr.bf16.mxu0 0
      %3110 = vmatpush1.bf16.xpose.msra.mxu0 %v3089
      %3111 = vmatprep.subr.bf16.mxu0 0
      %3112 = vmatpush1.bf16.xpose.msra.mxu0 %v3086
      %3113 = vmatprep.subr.bf16.mxu0 0
      %3114 = vmatpush2.bf16.xpose.msra.mxu0 0
      %3115 = vmatprep.subr.bf16.mxu0 0
      %3116 = vmatpush2.bf16.xpose.msra.mxu0 0
      %3117 = vmatprep.subr.bf16.mxu0 0
      %3118 = vmatpush2.bf16.xpose.msra.mxu0 0
      %3119 = vmatprep.subr.bf16.mxu0 0
      %3120 = vmatpush2.bf16.xpose.msra.mxu0 0
      %3121 = vmatprep.subr.bf16.mxu0 0
      %3122 = vmatpush2.bf16.xpose.msra.mxu0 0
      %3123 = vmatprep.subr.bf16.mxu0 0
      %3124 = vmatpush2.bf16.xpose.msra.mxu0 0
      %3125 = vmatprep.subr.bf16.mxu0 0
      %3126 = vmatpush2.bf16.xpose.msra.mxu0 0
      %3127 = vmatprep.subr.bf16.mxu0 0
      %3128 = vmatpush2.bf16.xpose.msra.mxu0 0
      %3129 = vmatprep.mubr.bf16.mxu0 0
      %3130 = vmatmul.mubr.bf16.gmra.mxu0 %v3074
      %v3131 = vpop.f32.mrf.mxu0
      %v3132 = vadd.f32 0.0, %v3131
      %v3133 = vpop.f32.mrf.mxu0
      %v3134 = vpop.f32.mrf.mxu0
      %v3135 = vadd.f32 0.0, %v3134
      %v3136 = vpop.f32.mrf.mxu0
      %3137 = vmatprep.mubr.bf16.mxu0 0
      %3138 = vmatmul.mubr.bf16.gmra.mxu0 %v3077
      %v3139 = vpop.f32.mrf.mxu0
      %v3140 = vadd.f32 0.0, %v3139
      %v3141 = vpop.f32.mrf.mxu0
      %v3142 = vpop.f32.mrf.mxu0
      %v3143 = vadd.f32 0.0, %v3142
      %v3144 = vpop.f32.mrf.mxu0
      %3145 = vmatprep.mubr.bf16.mxu0 0
      %3146 = vmatmul.mubr.bf16.gmra.mxu0 %v3080
      %v3147 = vpop.f32.mrf.mxu0
      %v3148 = vadd.f32 0.0, %v3147
      %v3149 = vpop.f32.mrf.mxu0
      %v3150 = vpop.f32.mrf.mxu0
      %v3151 = vadd.f32 0.0, %v3150
      %v3152 = vpop.f32.mrf.mxu0
      %3153 = vmatprep.mubr.bf16.mxu0 0
      %3154 = vmatmul.mubr.bf16.gmra.mxu0 %v3083
      %v3155 = vpop.f32.mrf.mxu0
      %v3156 = vadd.f32 0.0, %v3155
      %v3157 = vpop.f32.mrf.mxu0
      %v3158 = vpop.f32.mrf.mxu0
      %v3159 = vadd.f32 0.0, %v3158
      %v3160 = vpop.f32.mrf.mxu0
      %3161 = vdwg.mxu0
      %v3162 = vsel %vm1113, %v3132, -inf
      %3163 = vmax.xlane.f32.xlu0 %v3162
      %v3164 = vpop.xlane.xlu0 %3163
      %v3165 = vsel %vm1113, %v3135, -inf
      %3166 = vmax.xlane.f32.xlu0 %v3165
      %v3167 = vpop.xlane.xlu0 %3166
      %v3168 = vsel %vm1113, %v3140, -inf
      %3169 = vmax.xlane.f32.xlu0 %v3168
      %v3170 = vpop.xlane.xlu0 %3169
      %v3171 = vsel %vm1113, %v3143, -inf
      %3172 = vmax.xlane.f32.xlu0 %v3171
      %v3173 = vpop.xlane.xlu0 %3172
      %v3174 = vsel %vm1113, %v3148, -inf
      %3175 = vmax.xlane.f32.xlu0 %v3174
      %v3176 = vpop.xlane.xlu0 %3175
      %v3177 = vsel %vm1113, %v3151, -inf
      %3178 = vmax.xlane.f32.xlu0 %v3177
      %v3179 = vpop.xlane.xlu0 %3178
      %v3180 = vsel %vm1113, %v3156, -inf
      %3181 = vmax.xlane.f32.xlu0 %v3180
      %v3182 = vpop.xlane.xlu0 %3181
      %v3183 = vsel %vm1113, %v3159, -inf
      %3184 = vmax.xlane.f32.xlu0 %v3183
      %v3185 = vpop.xlane.xlu0 %3184
      %v3186 = vsub.f32 %v3132, %v3164
      %v3187 = vsub.f32 %v3135, %v3167
      %v3188 = vsub.f32 %v3140, %v3170
      %v3189 = vsub.f32 %v3143, %v3173
      %v3190 = vsub.f32 %v3148, %v3176
      %v3191 = vsub.f32 %v3151, %v3179
      %v3192 = vsub.f32 %v3156, %v3182
      %v3193 = vsub.f32 %v3159, %v3185
      %v3194 = vmul.f32 %v3186, 1.442695
      %v3195 = vpow.pop %v3194
      %v3196 = vmul.f32 %v3187, 1.442695
      %v3197 = vpow.pop %v3196
      %v3198 = vmul.f32 %v3188, 1.442695
      %v3199 = vpow.pop %v3198
      %v3200 = vmul.f32 %v3189, 1.442695
      %v3201 = vpow.pop %v3200
      %v3202 = vmul.f32 %v3190, 1.442695
      %v3203 = vpow.pop %v3202
      %v3204 = vmul.f32 %v3191, 1.442695
      %v3205 = vpow.pop %v3204
      %v3206 = vmul.f32 %v3192, 1.442695
      %v3207 = vpow.pop %v3206
      %v3208 = vmul.f32 %v3193, 1.442695
      %v3209 = vpow.pop %v3208
      %v3210 = vsel %vm1113, %v3195, 0.0
      %3211 = vadd.xlane.f32.xlu0 %v3210
      %v3212 = vpop.xlane.xlu0 %3211
      %v3213 = vsel %vm1113, %v3197, 0.0
      %3214 = vadd.xlane.f32.xlu0 %v3213
      %v3215 = vpop.xlane.xlu0 %3214
      %v3216 = vsel %vm1113, %v3199, 0.0
      %3217 = vadd.xlane.f32.xlu0 %v3216
      %v3218 = vpop.xlane.xlu0 %3217
      %v3219 = vsel %vm1113, %v3201, 0.0
      %3220 = vadd.xlane.f32.xlu0 %v3219
      %v3221 = vpop.xlane.xlu0 %3220
      %v3222 = vsel %vm1113, %v3203, 0.0
      %3223 = vadd.xlane.f32.xlu0 %v3222
      %v3224 = vpop.xlane.xlu0 %3223
      %v3225 = vsel %vm1113, %v3205, 0.0
      %3226 = vadd.xlane.f32.xlu0 %v3225
      %v3227 = vpop.xlane.xlu0 %3226
      %v3228 = vsel %vm1113, %v3207, 0.0
      %3229 = vadd.xlane.f32.xlu0 %v3228
      %v3230 = vpop.xlane.xlu0 %3229
      %v3231 = vsel %vm1113, %v3209, 0.0
      %3232 = vadd.xlane.f32.xlu0 %v3231
      %v3233 = vpop.xlane.xlu0 %3232
      %v3234 = vrcp.pop %v3212
      %v3235 = vrcp.pop %v3215
      %v3236 = vrcp.pop %v3218
      %v3237 = vrcp.pop %v3221
      %v3238 = vrcp.pop %v3224
      %v3239 = vrcp.pop %v3227
      %v3240 = vrcp.pop %v3230
      %v3241 = vrcp.pop %v3233
      %v3242 = vmul.f32 %v3195, %v3234
      %v3243 = vmul.f32 %v3197, %v3235
      %v3244 = vmul.f32 %v3199, %v3236
      %v3245 = vmul.f32 %v3201, %v3237
      %v3246 = vmul.f32 %v3203, %v3238
      %v3247 = vmul.f32 %v3205, %v3239
      %v3248 = vmul.f32 %v3207, %v3240
      %v3249 = vmul.f32 %v3209, %v3241
      %v3250 = vpack.c.bf16 %v3243, %v3242
      %v3251 = vpack.c.bf16 %v3245, %v3244
      %v3252 = vpack.c.bf16 %v3247, %v3246
      %v3253 = vpack.c.bf16 %v3249, %v3248
      %3254 = vrot.lane.b32.xlu0 %v2847, 124
      %v3255 = vpop.permute.xlu0 %3254
      %3256 = vrot.lane.b32.xlu0 %v2848, 124
      %v3257 = vpop.permute.xlu0 %3256
      %3258 = vrot.lane.b32.xlu0 %v2849, 124
      %v3259 = vpop.permute.xlu0 %3258
      %3260 = vrot.lane.b32.xlu0 %v2850, 124
      %v3261 = vpop.permute.xlu0 %3260
      %v3267 = vsel %vm1113, %v3250, 0
      %v3270 = vsel %vm1113, %v3251, 0
      %v3273 = vsel %vm1113, %v3252, 0
      %v3276 = vsel %vm1113, %v3253, 0
      %3278 = vmatprep.subr.bf16.mxu0 0
      %3279 = vmatpush1.bf16.msra.mxu0 0
      %3280 = vmatprep.subr.bf16.mxu0 0
      %3281 = vmatpush1.bf16.msra.mxu0 0
      %3282 = vmatprep.subr.bf16.mxu0 0
      %3283 = vmatpush1.bf16.msra.mxu0 0
      %3284 = vmatprep.subr.bf16.mxu0 0
      %3285 = vmatpush1.bf16.msra.mxu0 0
      %3286 = vmatprep.subr.bf16.mxu0 0
      %3287 = vmatpush1.bf16.msra.mxu0 %v3261
      %3288 = vmatprep.subr.bf16.mxu0 0
      %3289 = vmatpush1.bf16.msra.mxu0 %v3259
      %3290 = vmatprep.subr.bf16.mxu0 0
      %3291 = vmatpush1.bf16.msra.mxu0 %v3257
      %3292 = vmatprep.subr.bf16.mxu0 0
      %3293 = vmatpush1.bf16.msra.mxu0 %v3255
      %3294 = vmatprep.subr.bf16.mxu0 0
      %3295 = vmatpush2.bf16.msra.mxu0 0
      %3296 = vmatprep.subr.bf16.mxu0 0
      %3297 = vmatpush2.bf16.msra.mxu0 0
      %3298 = vmatprep.subr.bf16.mxu0 0
      %3299 = vmatpush2.bf16.msra.mxu0 0
      %3300 = vmatprep.subr.bf16.mxu0 0
      %3301 = vmatpush2.bf16.msra.mxu0 0
      %3302 = vmatprep.subr.bf16.mxu0 0
      %3303 = vmatpush2.bf16.msra.mxu0 0
      %3304 = vmatprep.subr.bf16.mxu0 0
      %3305 = vmatpush2.bf16.msra.mxu0 0
      %3306 = vmatprep.subr.bf16.mxu0 0
      %3307 = vmatpush2.bf16.msra.mxu0 0
      %3308 = vmatprep.subr.bf16.mxu0 0
      %3309 = vmatpush2.bf16.msra.mxu0 0
      %3310 = vmatprep.mubr.bf16.mxu0 0
      %3311 = vmatmul.mubr.bf16.gmra.mxu0 %v3267
      %v3312 = vpop.f32.mrf.mxu0
      %v3313 = vadd.f32 0.0, %v3312
      %v3314 = vpop.f32.mrf.mxu0
      %v3315 = vpop.f32.mrf.mxu0
      %v3316 = vadd.f32 0.0, %v3315
      %v3317 = vpop.f32.mrf.mxu0
      %3318 = vmatprep.mubr.bf16.mxu0 0
      %3319 = vmatmul.mubr.bf16.gmra.mxu0 %v3270
      %v3320 = vpop.f32.mrf.mxu0
      %v3321 = vadd.f32 0.0, %v3320
      %v3322 = vpop.f32.mrf.mxu0
      %v3323 = vpop.f32.mrf.mxu0
      %v3324 = vadd.f32 0.0, %v3323
      %v3325 = vpop.f32.mrf.mxu0
      %3326 = vmatprep.mubr.bf16.mxu0 0
      %3327 = vmatmul.mubr.bf16.gmra.mxu0 %v3273
      %v3328 = vpop.f32.mrf.mxu0
      %v3329 = vadd.f32 0.0, %v3328
      %v3330 = vpop.f32.mrf.mxu0
      %v3331 = vpop.f32.mrf.mxu0
      %v3332 = vadd.f32 0.0, %v3331
      %v3333 = vpop.f32.mrf.mxu0
      %3334 = vmatprep.mubr.bf16.mxu0 0
      %3335 = vmatmul.mubr.bf16.gmra.mxu0 %v3276
      %v3336 = vpop.f32.mrf.mxu0
      %v3337 = vadd.f32 0.0, %v3336
      %v3338 = vpop.f32.mrf.mxu0
      %v3339 = vpop.f32.mrf.mxu0
      %v3340 = vadd.f32 0.0, %v3339
      %v3341 = vpop.f32.mrf.mxu0
      %3342 = vdwg.mxu0
      %v3343 = vpack.c.bf16 %v3316, %v3313
      %v3344 = vpack.c.bf16 %v3324, %v3321
      %v3345 = vpack.c.bf16 %v3332, %v3329
      %v3346 = vpack.c.bf16 %v3340, %v3337
      %s3347 = scalar_lea.vmem %s14, 24
      %v3348 = vld [vmem:[%s3347] sm:$0xf]
      %v3349 = vld [vmem:[%s3347 + $0x4] sm:$0x3]
      %v3352 = vunpack.c.l.b16 %v3348
      %v3353 = vunpack.c.l.b16 %v3349
      %v3354 = vpack.c.b16 %v3353, %v3352
      %v3356 = vsel %vm1905, %v3343, 0
      %v3359 = vsel %vm1905, %v3344, 0
      %v3362 = vsel %vm1905, %v3345, 0
      %v3365 = vsel %vm1905, %v3346, 0
      %v3368 = vsel %vm2496, %v3354, 0
      %3370 = vmatprep.subr.bf16.mxu0 0
      %3371 = vmatpush1.bf16.msra.mxu0 0
      %3372 = vmatprep.subr.bf16.mxu0 0
      %3373 = vmatpush1.bf16.msra.mxu0 0
      %3374 = vmatprep.subr.bf16.mxu0 0
      %3375 = vmatpush1.bf16.msra.mxu0 0
      %3376 = vmatprep.subr.bf16.mxu0 0
      %3377 = vmatpush1.bf16.msra.mxu0 0
      %3378 = vmatprep.subr.bf16.mxu0 0
      %3379 = vmatpush1.bf16.msra.mxu0 0
      %3380 = vmatprep.subr.bf16.mxu0 0
      %3381 = vmatpush1.bf16.msra.mxu0 0
      %3382 = vmatprep.subr.bf16.mxu0 0
      %3383 = vmatpush1.bf16.msra.mxu0 0
      %3384 = vmatprep.subr.bf16.mxu0 0
      %3385 = vmatpush1.bf16.msra.mxu0 %v3368
      %3386 = vmatprep.subr.bf16.mxu0 0
      %3387 = vmatpush2.bf16.msra.mxu0 0
      %3388 = vmatprep.subr.bf16.mxu0 0
      %3389 = vmatpush2.bf16.msra.mxu0 0
      %3390 = vmatprep.subr.bf16.mxu0 0
      %3391 = vmatpush2.bf16.msra.mxu0 0
      %3392 = vmatprep.subr.bf16.mxu0 0
      %3393 = vmatpush2.bf16.msra.mxu0 0
      %3394 = vmatprep.subr.bf16.mxu0 0
      %3395 = vmatpush2.bf16.msra.mxu0 0
      %3396 = vmatprep.subr.bf16.mxu0 0
      %3397 = vmatpush2.bf16.msra.mxu0 0
      %3398 = vmatprep.subr.bf16.mxu0 0
      %3399 = vmatpush2.bf16.msra.mxu0 0
      %3400 = vmatprep.subr.bf16.mxu0 0
      %3401 = vmatpush2.bf16.msra.mxu0 0
      %3402 = vmatprep.mubr.bf16.mxu0 0
      %3403 = vmatmul.mubr.bf16.gmra.mxu0 %v3356
      %v3404 = vpop.f32.mrf.mxu0
      %v3405 = vadd.f32 0.0, %v3404
      %v3406 = vpop.f32.mrf.mxu0
      %v3407 = vpop.f32.mrf.mxu0
      %v3408 = vadd.f32 0.0, %v3407
      %v3409 = vpop.f32.mrf.mxu0
      %3410 = vmatprep.mubr.bf16.mxu0 0
      %3411 = vmatmul.mubr.bf16.gmra.mxu0 %v3359
      %v3412 = vpop.f32.mrf.mxu0
      %v3413 = vadd.f32 0.0, %v3412
      %v3414 = vpop.f32.mrf.mxu0
      %v3415 = vpop.f32.mrf.mxu0
      %v3416 = vadd.f32 0.0, %v3415
      %v3417 = vpop.f32.mrf.mxu0
      %3418 = vmatprep.mubr.bf16.mxu0 0
      %3419 = vmatmul.mubr.bf16.gmra.mxu0 %v3362
      %v3420 = vpop.f32.mrf.mxu0
      %v3421 = vadd.f32 0.0, %v3420
      %v3422 = vpop.f32.mrf.mxu0
      %v3423 = vpop.f32.mrf.mxu0
      %v3424 = vadd.f32 0.0, %v3423
      %v3425 = vpop.f32.mrf.mxu0
      %3426 = vmatprep.mubr.bf16.mxu0 0
      %3427 = vmatmul.mubr.bf16.gmra.mxu0 %v3365
      %v3428 = vpop.f32.mrf.mxu0
      %v3429 = vadd.f32 0.0, %v3428
      %v3430 = vpop.f32.mrf.mxu0
      %v3431 = vpop.f32.mrf.mxu0
      %v3432 = vadd.f32 0.0, %v3431
      %v3433 = vpop.f32.mrf.mxu0
      %3434 = vdwg.mxu0
      %v3435 = vadd.f32 %v3049, %v3405
      %v3436 = vadd.f32 %v3050, %v3408
      %v3437 = vadd.f32 %v3051, %v3413
      %v3438 = vadd.f32 %v3052, %v3416
      %v3439 = vadd.f32 %v3053, %v3421
      %v3440 = vadd.f32 %v3054, %v3424
      %v3441 = vadd.f32 %v3055, %v3429
      %v3442 = vadd.f32 %v3056, %v3432
      %v3443 = vld [vmem:[%s15] sm:$0x1]
      %v3445 = vlaneseq
      %v3446 = vshrl.u32 %v3445, 7
      %v3447 = vsub.s32 0, %v3446
      %v3448 = vrot.slane %v3443, %v3447
      %v3450 = vadd.f32 %v3435, %v3448
      %v3451 = vadd.f32 %v3436, %v3448
      %v3452 = vadd.f32 %v3437, %v3448
      %v3453 = vadd.f32 %v3438, %v3448
      %v3454 = vadd.f32 %v3439, %v3448
      %v3455 = vadd.f32 %v3440, %v3448
      %v3456 = vadd.f32 %v3441, %v3448
      %v3457 = vadd.f32 %v3442, %v3448
      %v3458 = vlaneseq
      %v3459 = vshrl.u32 %v3458, 7
      %v3460 = vsub.s32 0, %v3459
      %v3461 = vrot.slane %v1404, %v3460
      %v3462 = vmul.f32 %v3461, %v3450
      %v3463 = vmul.f32 %v3461, %v3451
      %v3464 = vmul.f32 %v3461, %v3452
      %v3465 = vmul.f32 %v3461, %v3453
      %v3466 = vmul.f32 %v3461, %v3454
      %v3467 = vmul.f32 %v3461, %v3455
      %v3468 = vmul.f32 %v3461, %v3456
      %v3469 = vmul.f32 %v3461, %v3457
      %v3470 = vadd.f32 %v1199, %v3462
      %v3471 = vadd.f32 %v1200, %v3463
      %v3472 = vadd.f32 %v1201, %v3464
      %v3473 = vadd.f32 %v1202, %v3465
      %v3474 = vadd.f32 %v1203, %v3466
      %v3475 = vadd.f32 %v1204, %v3467
      %v3476 = vadd.f32 %v1205, %v3468
      %v3477 = vadd.f32 %v1206, %v3469
      %v3478 = vsel %vm932, %v3470, 0.0
      %3479 = vadd.xlane.f32.xlu0 %v3478
      %v3480 = vpop.xlane.xlu0 %3479
      %v3481 = vsel %vm932, %v3471, 0.0
      %3482 = vadd.xlane.f32.xlu0 %v3481
      %v3483 = vpop.xlane.xlu0 %3482
      %v3484 = vsel %vm932, %v3472, 0.0
      %3485 = vadd.xlane.f32.xlu0 %v3484
      %v3486 = vpop.xlane.xlu0 %3485
      %v3487 = vsel %vm932, %v3473, 0.0
      %3488 = vadd.xlane.f32.xlu0 %v3487
      %v3489 = vpop.xlane.xlu0 %3488
      %v3490 = vsel %vm932, %v3474, 0.0
      %3491 = vadd.xlane.f32.xlu0 %v3490
      %v3492 = vpop.xlane.xlu0 %3491
      %v3493 = vsel %vm932, %v3475, 0.0
      %3494 = vadd.xlane.f32.xlu0 %v3493
      %v3495 = vpop.xlane.xlu0 %3494
      %v3496 = vsel %vm932, %v3476, 0.0
      %3497 = vadd.xlane.f32.xlu0 %v3496
      %v3498 = vpop.xlane.xlu0 %3497
      %v3499 = vsel %vm932, %v3477, 0.0
      %3500 = vadd.xlane.f32.xlu0 %v3499
      %v3501 = vpop.xlane.xlu0 %3500
      %v3502 = vmul.f32 %v3480, %v1634
      %v3503 = vmul.f32 %v3483, %v1634
      %v3504 = vmul.f32 %v3486, %v1634
      %v3505 = vmul.f32 %v3489, %v1634
      %v3506 = vmul.f32 %v3492, %v1634
      %v3507 = vmul.f32 %v3495, %v1634
      %v3508 = vmul.f32 %v3498, %v1634
      %v3509 = vmul.f32 %v3501, %v1634
      %v3510 = vsub.f32 %v3470, %v3502
      %v3511 = vsub.f32 %v3471, %v3503
      %v3512 = vsub.f32 %v3472, %v3504
      %v3513 = vsub.f32 %v3473, %v3505
      %v3514 = vsub.f32 %v3474, %v3506
      %v3515 = vsub.f32 %v3475, %v3507
      %v3516 = vsub.f32 %v3476, %v3508
      %v3517 = vsub.f32 %v3477, %v3509
      %v3518 = vmul.f32 %v3510, %v3510
      %v3519 = vmul.f32 %v3511, %v3511
      %v3520 = vmul.f32 %v3512, %v3512
      %v3521 = vmul.f32 %v3513, %v3513
      %v3522 = vmul.f32 %v3514, %v3514
      %v3523 = vmul.f32 %v3515, %v3515
      %v3524 = vmul.f32 %v3516, %v3516
      %v3525 = vmul.f32 %v3517, %v3517
      %v3526 = vsel %vm932, %v3518, 0.0
      %3527 = vadd.xlane.f32.xlu0 %v3526
      %v3528 = vpop.xlane.xlu0 %3527
      %v3529 = vsel %vm932, %v3519, 0.0
      %3530 = vadd.xlane.f32.xlu0 %v3529
      %v3531 = vpop.xlane.xlu0 %3530
      %v3532 = vsel %vm932, %v3520, 0.0
      %3533 = vadd.xlane.f32.xlu0 %v3532
      %v3534 = vpop.xlane.xlu0 %3533
      %v3535 = vsel %vm932, %v3521, 0.0
      %3536 = vadd.xlane.f32.xlu0 %v3535
      %v3537 = vpop.xlane.xlu0 %3536
      %v3538 = vsel %vm932, %v3522, 0.0
      %3539 = vadd.xlane.f32.xlu0 %v3538
      %v3540 = vpop.xlane.xlu0 %3539
      %v3541 = vsel %vm932, %v3523, 0.0
      %3542 = vadd.xlane.f32.xlu0 %v3541
      %v3543 = vpop.xlane.xlu0 %3542
      %v3544 = vsel %vm932, %v3524, 0.0
      %3545 = vadd.xlane.f32.xlu0 %v3544
      %v3546 = vpop.xlane.xlu0 %3545
      %v3547 = vsel %vm932, %v3525, 0.0
      %3548 = vadd.xlane.f32.xlu0 %v3547
      %v3549 = vpop.xlane.xlu0 %3548
      %v3550 = vmul.f32 %v3528, %v1634
      %v3551 = vmul.f32 %v3531, %v1634
      %v3552 = vmul.f32 %v3534, %v1634
      %v3553 = vmul.f32 %v3537, %v1634
      %v3554 = vmul.f32 %v3540, %v1634
      %v3555 = vmul.f32 %v3543, %v1634
      %v3556 = vmul.f32 %v3546, %v1634
      %v3557 = vmul.f32 %v3549, %v1634
      %v3558 = vadd.f32 %v3550, 1e-06
      %v3559 = vadd.f32 %v3551, 1e-06
      %v3560 = vadd.f32 %v3552, 1e-06
      %v3561 = vadd.f32 %v3553, 1e-06
      %v3562 = vadd.f32 %v3554, 1e-06
      %v3563 = vadd.f32 %v3555, 1e-06
      %v3564 = vadd.f32 %v3556, 1e-06
      %v3565 = vadd.f32 %v3557, 1e-06
      %v3566 = vrsqrt.pop %v3558
      %v3567 = vrsqrt.pop %v3559
      %v3568 = vrsqrt.pop %v3560
      %v3569 = vrsqrt.pop %v3561
      %v3570 = vrsqrt.pop %v3562
      %v3571 = vrsqrt.pop %v3563
      %v3572 = vrsqrt.pop %v3564
      %v3573 = vrsqrt.pop %v3565
      %v3574 = vmul.f32 %v3510, %v3566
      %v3575 = vmul.f32 %v3511, %v3567
      %v3576 = vmul.f32 %v3512, %v3568
      %v3577 = vmul.f32 %v3513, %v3569
      %v3578 = vmul.f32 %v3514, %v3570
      %v3579 = vmul.f32 %v3515, %v3571
      %v3580 = vmul.f32 %v3516, %v3572
      %v3581 = vmul.f32 %v3517, %v3573
      %v3582 = vadd.f32 %v1538, 1.0
      %v3583 = vlaneseq
      %v3584 = vshrl.u32 %v3583, 7
      %v3585 = vsub.s32 0, %v3584
      %v3586 = vrot.slane %v3582, %v3585
      %v3587 = vmul.f32 %v3574, %v3586
      %v3588 = vmul.f32 %v3575, %v3586
      %v3589 = vmul.f32 %v3576, %v3586
      %v3590 = vmul.f32 %v3577, %v3586
      %v3591 = vmul.f32 %v3578, %v3586
      %v3592 = vmul.f32 %v3579, %v3586
      %v3593 = vmul.f32 %v3580, %v3586
      %v3594 = vmul.f32 %v3581, %v3586
      %v3595 = vlaneseq
      %v3596 = vshrl.u32 %v3595, 7
      %v3597 = vsub.s32 0, %v3596
      %v3598 = vrot.slane %v1471, %v3597
      %v3599 = vadd.f32 %v3587, %v3598
      %v3600 = vadd.f32 %v3588, %v3598
      %v3601 = vadd.f32 %v3589, %v3598
      %v3602 = vadd.f32 %v3590, %v3598
      %v3603 = vadd.f32 %v3591, %v3598
      %v3604 = vadd.f32 %v3592, %v3598
      %v3605 = vadd.f32 %v3593, %v3598
      %v3606 = vadd.f32 %v3594, %v3598
      %v3607 = vpack.c.bf16 %v3600, %v3599
      %v3608 = vpack.c.bf16 %v3602, %v3601
      %v3609 = vpack.c.bf16 %v3604, %v3603
      %v3610 = vpack.c.bf16 %v3606, %v3605
      %v3611 = vld [vmem:[%s16] sm:$0xff]
      %v3612 = vld [vmem:[%s16 + $0x8] sm:$0xff]
      %v3613 = vld [vmem:[%s16 + $0x10] sm:$0xff]
      %v3614 = vld [vmem:[%s16 + $0x18] sm:$0xff]
      %v3615 = vld [vmem:[%s16 + $0x20] sm:$0xff]
      %v3616 = vld [vmem:[%s16 + $0x28] sm:$0xff]
      %v3617 = vld [vmem:[%s17] sm:$0x3]
      %v3619 = vlaneseq
      %v3620 = vshrl.u32 %v3619, 7
      %v3621 = vsub.s32 0, %v3620
      %v3622 = vrot.slane %v3617, %v3621
      %v3623 = vlaneseq
      %v3624 = vshrl.u32 %v3623, 7
      %v3625 = vsub.s32 1, %v3624
      %v3626 = vrot.slane %v3617, %v3625
      %v3635 = vunpack.c.l.b16 %v3611
      %v3636 = vunpack.c.h.b16 %v3611
      %v3637 = vunpack.c.l.b16 %v3612
      %v3638 = vunpack.c.h.b16 %v3612
      %v3639 = vunpack.c.l.b16 %v3613
      %v3640 = vunpack.c.h.b16 %v3613
      %v3641 = vunpack.c.l.b16 %v3614
      %v3642 = vunpack.c.h.b16 %v3614
      %v3643 = vunpack.c.l.b16 %v3615
      %v3644 = vunpack.c.h.b16 %v3615
      %v3645 = vunpack.c.l.b16 %v3616
      %v3646 = vunpack.c.h.b16 %v3616
      %v3647 = vpack.c.b16 %v3637, %v3635
      %v3648 = vpack.c.b16 %v3638, %v3636
      %v3649 = vpack.c.b16 %v3641, %v3639
      %v3650 = vpack.c.b16 %v3642, %v3640
      %v3651 = vpack.c.b16 %v3645, %v3643
      %v3652 = vpack.c.b16 %v3646, %v3644
      %v3660 = vsel %vm932, %v3607, 0
      %v3663 = vsel %vm932, %v3608, 0
      %v3666 = vsel %vm932, %v3609, 0
      %v3669 = vsel %vm932, %v3610, 0
      %3671 = vmatprep.subr.bf16.mxu0 0
      %3672 = vmatpush1.bf16.msra.mxu0 0
      %3673 = vmatprep.subr.bf16.mxu0 0
      %3674 = vmatpush1.bf16.msra.mxu0 0
      %3675 = vmatprep.subr.bf16.mxu0 0
      %3676 = vmatpush1.bf16.msra.mxu0 0
      %3677 = vmatprep.subr.bf16.mxu0 0
      %3678 = vmatpush1.bf16.msra.mxu0 0
      %3679 = vmatprep.subr.bf16.mxu0 0
      %3680 = vmatpush1.bf16.msra.mxu0 0
      %3681 = vmatprep.subr.bf16.mxu0 %v3652
      %3682 = vmatpush1.bf16.msra.mxu0 %v3651
      %3683 = vmatprep.subr.bf16.mxu0 %v3650
      %3684 = vmatpush1.bf16.msra.mxu0 %v3649
      %3685 = vmatprep.subr.bf16.mxu0 %v3648
      %3686 = vmatpush1.bf16.msra.mxu0 %v3647
      %3687 = vmatprep.subr.bf16.mxu0 0
      %3688 = vmatpush2.bf16.msra.mxu0 0
      %3689 = vmatprep.subr.bf16.mxu0 0
      %3690 = vmatpush2.bf16.msra.mxu0 0
      %3691 = vmatprep.subr.bf16.mxu0 0
      %3692 = vmatpush2.bf16.msra.mxu0 0
      %3693 = vmatprep.subr.bf16.mxu0 0
      %3694 = vmatpush2.bf16.msra.mxu0 0
      %3695 = vmatprep.subr.bf16.mxu0 0
      %3696 = vmatpush2.bf16.msra.mxu0 0
      %3697 = vmatprep.subr.bf16.mxu0 0
      %3698 = vmatpush2.bf16.msra.mxu0 0
      %3699 = vmatprep.subr.bf16.mxu0 0
      %3700 = vmatpush2.bf16.msra.mxu0 0
      %3701 = vmatprep.subr.bf16.mxu0 0
      %3702 = vmatpush2.bf16.msra.mxu0 0
      %3703 = vmatprep.mubr.bf16.mxu0 0
      %3704 = vmatmul.mubr.bf16.gmra.mxu0 %v3660
      %v3705 = vpop.f32.mrf.mxu0
      %v3706 = vadd.f32 %v3622, %v3705
      %v3707 = vpop.f32.mrf.mxu0
      %v3708 = vadd.f32 %v3626, %v3707
      %v3709 = vpop.f32.mrf.mxu0
      %v3710 = vadd.f32 %v3622, %v3709
      %v3711 = vpop.f32.mrf.mxu0
      %v3712 = vadd.f32 %v3626, %v3711
      %3713 = vmatprep.mubr.bf16.mxu0 0
      %3714 = vmatmul.mubr.bf16.gmra.mxu0 %v3663
      %v3715 = vpop.f32.mrf.mxu0
      %v3716 = vadd.f32 %v3622, %v3715
      %v3717 = vpop.f32.mrf.mxu0
      %v3718 = vadd.f32 %v3626, %v3717
      %v3719 = vpop.f32.mrf.mxu0
      %v3720 = vadd.f32 %v3622, %v3719
      %v3721 = vpop.f32.mrf.mxu0
      %v3722 = vadd.f32 %v3626, %v3721
      %3723 = vmatprep.mubr.bf16.mxu0 0
      %3724 = vmatmul.mubr.bf16.gmra.mxu0 %v3666
      %v3725 = vpop.f32.mrf.mxu0
      %v3726 = vadd.f32 %v3622, %v3725
      %v3727 = vpop.f32.mrf.mxu0
      %v3728 = vadd.f32 %v3626, %v3727
      %v3729 = vpop.f32.mrf.mxu0
      %v3730 = vadd.f32 %v3622, %v3729
      %v3731 = vpop.f32.mrf.mxu0
      %v3732 = vadd.f32 %v3626, %v3731
      %3733 = vmatprep.mubr.bf16.mxu0 0
      %3734 = vmatmul.mubr.bf16.gmra.mxu0 %v3669
      %v3735 = vpop.f32.mrf.mxu0
      %v3736 = vadd.f32 %v3622, %v3735
      %v3737 = vpop.f32.mrf.mxu0
      %v3738 = vadd.f32 %v3626, %v3737
      %v3739 = vpop.f32.mrf.mxu0
      %v3740 = vadd.f32 %v3622, %v3739
      %v3741 = vpop.f32.mrf.mxu0
      %v3742 = vadd.f32 %v3626, %v3741
      %3743 = vdwg.mxu0
      %v3744 = vmul.f32 %v3706, %v3706
      %v3745 = vmul.f32 %v3708, %v3708
      %v3746 = vmul.f32 %v3710, %v3710
      %v3747 = vmul.f32 %v3712, %v3712
      %v3748 = vmul.f32 %v3716, %v3716
      %v3749 = vmul.f32 %v3718, %v3718
      %v3750 = vmul.f32 %v3720, %v3720
      %v3751 = vmul.f32 %v3722, %v3722
      %v3752 = vmul.f32 %v3726, %v3726
      %v3753 = vmul.f32 %v3728, %v3728
      %v3754 = vmul.f32 %v3730, %v3730
      %v3755 = vmul.f32 %v3732, %v3732
      %v3756 = vmul.f32 %v3736, %v3736
      %v3757 = vmul.f32 %v3738, %v3738
      %v3758 = vmul.f32 %v3740, %v3740
      %v3759 = vmul.f32 %v3742, %v3742
      %v3760 = vmul.f32 %v3706, %v3744
      %v3761 = vmul.f32 %v3708, %v3745
      %v3762 = vmul.f32 %v3710, %v3746
      %v3763 = vmul.f32 %v3712, %v3747
      %v3764 = vmul.f32 %v3716, %v3748
      %v3765 = vmul.f32 %v3718, %v3749
      %v3766 = vmul.f32 %v3720, %v3750
      %v3767 = vmul.f32 %v3722, %v3751
      %v3768 = vmul.f32 %v3726, %v3752
      %v3769 = vmul.f32 %v3728, %v3753
      %v3770 = vmul.f32 %v3730, %v3754
      %v3771 = vmul.f32 %v3732, %v3755
      %v3772 = vmul.f32 %v3736, %v3756
      %v3773 = vmul.f32 %v3738, %v3757
      %v3774 = vmul.f32 %v3740, %v3758
      %v3775 = vmul.f32 %v3742, %v3759
      %v3776 = vmul.f32 %v3760, 0.044715
      %v3777 = vmul.f32 %v3761, 0.044715
      %v3778 = vmul.f32 %v3762, 0.044715
      %v3779 = vmul.f32 %v3763, 0.044715
      %v3780 = vmul.f32 %v3764, 0.044715
      %v3781 = vmul.f32 %v3765, 0.044715
      %v3782 = vmul.f32 %v3766, 0.044715
      %v3783 = vmul.f32 %v3767, 0.044715
      %v3784 = vmul.f32 %v3768, 0.044715
      %v3785 = vmul.f32 %v3769, 0.044715
      %v3786 = vmul.f32 %v3770, 0.044715
      %v3787 = vmul.f32 %v3771, 0.044715
      %v3788 = vmul.f32 %v3772, 0.044715
      %v3789 = vmul.f32 %v3773, 0.044715
      %v3790 = vmul.f32 %v3774, 0.044715
      %v3791 = vmul.f32 %v3775, 0.044715
      %v3792 = vadd.f32 %v3706, %v3776
      %v3793 = vadd.f32 %v3708, %v3777
      %v3794 = vadd.f32 %v3710, %v3778
      %v3795 = vadd.f32 %v3712, %v3779
      %v3796 = vadd.f32 %v3716, %v3780
      %v3797 = vadd.f32 %v3718, %v3781
      %v3798 = vadd.f32 %v3720, %v3782
      %v3799 = vadd.f32 %v3722, %v3783
      %v3800 = vadd.f32 %v3726, %v3784
      %v3801 = vadd.f32 %v3728, %v3785
      %v3802 = vadd.f32 %v3730, %v3786
      %v3803 = vadd.f32 %v3732, %v3787
      %v3804 = vadd.f32 %v3736, %v3788
      %v3805 = vadd.f32 %v3738, %v3789
      %v3806 = vadd.f32 %v3740, %v3790
      %v3807 = vadd.f32 %v3742, %v3791
      %v3808 = vmul.f32 %v3792, 0.7978846
      %v3809 = vmul.f32 %v3793, 0.7978846
      %v3810 = vmul.f32 %v3794, 0.7978846
      %v3811 = vmul.f32 %v3795, 0.7978846
      %v3812 = vmul.f32 %v3796, 0.7978846
      %v3813 = vmul.f32 %v3797, 0.7978846
      %v3814 = vmul.f32 %v3798, 0.7978846
      %v3815 = vmul.f32 %v3799, 0.7978846
      %v3816 = vmul.f32 %v3800, 0.7978846
      %v3817 = vmul.f32 %v3801, 0.7978846
      %v3818 = vmul.f32 %v3802, 0.7978846
      %v3819 = vmul.f32 %v3803, 0.7978846
      %v3820 = vmul.f32 %v3804, 0.7978846
      %v3821 = vmul.f32 %v3805, 0.7978846
      %v3822 = vmul.f32 %v3806, 0.7978846
      %v3823 = vmul.f32 %v3807, 0.7978846
      %v3824 = vtanh.pop %v3808
      %v3825 = vtanh.pop %v3809
      %v3826 = vtanh.pop %v3810
      %v3827 = vtanh.pop %v3811
      %v3828 = vtanh.pop %v3812
      %v3829 = vtanh.pop %v3813
      %v3830 = vtanh.pop %v3814
      %v3831 = vtanh.pop %v3815
      %v3832 = vtanh.pop %v3816
      %v3833 = vtanh.pop %v3817
      %v3834 = vtanh.pop %v3818
      %v3835 = vtanh.pop %v3819
      %v3836 = vtanh.pop %v3820
      %v3837 = vtanh.pop %v3821
      %v3838 = vtanh.pop %v3822
      %v3839 = vtanh.pop %v3823
      %v3840 = vadd.f32 %v3824, 1.0
      %v3841 = vadd.f32 %v3825, 1.0
      %v3842 = vadd.f32 %v3826, 1.0
      %v3843 = vadd.f32 %v3827, 1.0
      %v3844 = vadd.f32 %v3828, 1.0
      %v3845 = vadd.f32 %v3829, 1.0
      %v3846 = vadd.f32 %v3830, 1.0
      %v3847 = vadd.f32 %v3831, 1.0
      %v3848 = vadd.f32 %v3832, 1.0
      %v3849 = vadd.f32 %v3833, 1.0
      %v3850 = vadd.f32 %v3834, 1.0
      %v3851 = vadd.f32 %v3835, 1.0
      %v3852 = vadd.f32 %v3836, 1.0
      %v3853 = vadd.f32 %v3837, 1.0
      %v3854 = vadd.f32 %v3838, 1.0
      %v3855 = vadd.f32 %v3839, 1.0
      %v3856 = vmul.f32 %v3840, 0.5
      %v3857 = vmul.f32 %v3841, 0.5
      %v3858 = vmul.f32 %v3842, 0.5
      %v3859 = vmul.f32 %v3843, 0.5
      %v3860 = vmul.f32 %v3844, 0.5
      %v3861 = vmul.f32 %v3845, 0.5
      %v3862 = vmul.f32 %v3846, 0.5
      %v3863 = vmul.f32 %v3847, 0.5
      %v3864 = vmul.f32 %v3848, 0.5
      %v3865 = vmul.f32 %v3849, 0.5
      %v3866 = vmul.f32 %v3850, 0.5
      %v3867 = vmul.f32 %v3851, 0.5
      %v3868 = vmul.f32 %v3852, 0.5
      %v3869 = vmul.f32 %v3853, 0.5
      %v3870 = vmul.f32 %v3854, 0.5
      %v3871 = vmul.f32 %v3855, 0.5
      %v3872 = vmul.f32 %v3706, %v3856
      %v3873 = vmul.f32 %v3708, %v3857
      %v3874 = vmul.f32 %v3710, %v3858
      %v3875 = vmul.f32 %v3712, %v3859
      %v3876 = vmul.f32 %v3716, %v3860
      %v3877 = vmul.f32 %v3718, %v3861
      %v3878 = vmul.f32 %v3720, %v3862
      %v3879 = vmul.f32 %v3722, %v3863
      %v3880 = vmul.f32 %v3726, %v3864
      %v3881 = vmul.f32 %v3728, %v3865
      %v3882 = vmul.f32 %v3730, %v3866
      %v3883 = vmul.f32 %v3732, %v3867
      %v3884 = vmul.f32 %v3736, %v3868
      %v3885 = vmul.f32 %v3738, %v3869
      %v3886 = vmul.f32 %v3740, %v3870
      %v3887 = vmul.f32 %v3742, %v3871
      %v3888 = vpack.c.bf16 %v3874, %v3872
      %v3889 = vpack.c.bf16 %v3875, %v3873
      %v3890 = vpack.c.bf16 %v3878, %v3876
      %v3891 = vpack.c.bf16 %v3879, %v3877
      %v3892 = vpack.c.bf16 %v3882, %v3880
      %v3893 = vpack.c.bf16 %v3883, %v3881
      %v3894 = vpack.c.bf16 %v3886, %v3884
      %v3895 = vpack.c.bf16 %v3887, %v3885
      %v3896 = vld [vmem:[%s18] sm:$0xf]
      %v3897 = vld [vmem:[%s18 + $0x4] sm:$0xf]
      %v3898 = vld [vmem:[%s18 + $0x8] sm:$0xf]
      %v3899 = vld [vmem:[%s18 + $0xc] sm:$0xf]
      %v3900 = vld [vmem:[%s18 + $0x10] sm:$0xf]
      %v3901 = vld [vmem:[%s18 + $0x14] sm:$0xf]
      %v3902 = vld [vmem:[%s18 + $0x18] sm:$0xf]
      %v3903 = vld [vmem:[%s18 + $0x1c] sm:$0xf]
      %v3904 = vld [vmem:[%s18 + $0x20] sm:$0xf]
      %v3905 = vld [vmem:[%s18 + $0x24] sm:$0xf]
      %v3906 = vld [vmem:[%s18 + $0x28] sm:$0xf]
      %v3907 = vld [vmem:[%s18 + $0x2c] sm:$0xf]
      %v3908 = vld [vmem:[%s18 + $0x30] sm:$0xf]
      %v3909 = vld [vmem:[%s18 + $0x34] sm:$0xf]
      %v3910 = vld [vmem:[%s18 + $0x38] sm:$0xf]
      %v3911 = vld [vmem:[%s18 + $0x3c] sm:$0xf]
      %v3912 = vld [vmem:[%s18 + $0x40] sm:$0xf]
      %v3913 = vld [vmem:[%s18 + $0x44] sm:$0xf]
      %v3914 = vld [vmem:[%s18 + $0x48] sm:$0xf]
      %v3915 = vld [vmem:[%s18 + $0x4c] sm:$0xf]
      %v3916 = vld [vmem:[%s18 + $0x50] sm:$0xf]
      %v3917 = vld [vmem:[%s18 + $0x54] sm:$0xf]
      %v3918 = vld [vmem:[%s18 + $0x58] sm:$0xf]
      %v3919 = vld [vmem:[%s18 + $0x5c] sm:$0xf]
      %v3920 = vld [vmem:[%s19] sm:$0x1]
      %v3922 = vlaneseq
      %v3923 = vshrl.u32 %v3922, 7
      %v3924 = vsub.s32 0, %v3923
      %v3925 = vrot.slane %v3920, %v3924
      %v3951 = vunpack.c.l.b16 %v3896
      %v3952 = vunpack.c.l.b16 %v3897
      %v3953 = vunpack.c.l.b16 %v3898
      %v3954 = vunpack.c.l.b16 %v3899
      %v3955 = vunpack.c.l.b16 %v3900
      %v3956 = vunpack.c.l.b16 %v3901
      %v3957 = vunpack.c.l.b16 %v3902
      %v3958 = vunpack.c.l.b16 %v3903
      %v3959 = vunpack.c.l.b16 %v3904
      %v3960 = vunpack.c.l.b16 %v3905
      %v3961 = vunpack.c.l.b16 %v3906
      %v3962 = vunpack.c.l.b16 %v3907
      %v3963 = vunpack.c.l.b16 %v3908
      %v3964 = vunpack.c.l.b16 %v3909
      %v3965 = vunpack.c.l.b16 %v3910
      %v3966 = vunpack.c.l.b16 %v3911
      %v3967 = vunpack.c.l.b16 %v3912
      %v3968 = vunpack.c.l.b16 %v3913
      %v3969 = vunpack.c.l.b16 %v3914
      %v3970 = vunpack.c.l.b16 %v3915
      %v3971 = vunpack.c.l.b16 %v3916
      %v3972 = vunpack.c.l.b16 %v3917
      %v3973 = vunpack.c.l.b16 %v3918
      %v3974 = vunpack.c.l.b16 %v3919
      %v3975 = vpack.c.b16 %v3952, %v3951
      %v3976 = vpack.c.b16 %v3954, %v3953
      %v3977 = vpack.c.b16 %v3956, %v3955
      %v3978 = vpack.c.b16 %v3958, %v3957
      %v3979 = vpack.c.b16 %v3960, %v3959
      %v3980 = vpack.c.b16 %v3962, %v3961
      %v3981 = vpack.c.b16 %v3964, %v3963
      %v3982 = vpack.c.b16 %v3966, %v3965
      %v3983 = vpack.c.b16 %v3968, %v3967
      %v3984 = vpack.c.b16 %v3970, %v3969
      %v3985 = vpack.c.b16 %v3972, %v3971
      %v3986 = vpack.c.b16 %v3974, %v3973
      %v4000 = vsel %vm1113, %v3889, 0
      %v4003 = vsel %vm1113, %v3891, 0
      %v4006 = vsel %vm1113, %v3893, 0
      %v4009 = vsel %vm1113, %v3895, 0
      %4011 = vmatprep.subr.bf16.mxu0 0
      %4012 = vmatpush1.bf16.msra.mxu0 %v3982
      %4013 = vmatprep.subr.bf16.mxu0 0
      %4014 = vmatpush1.bf16.msra.mxu0 %v3981
      %4015 = vmatprep.subr.bf16.mxu0 0
      %4016 = vmatpush1.bf16.msra.mxu0 %v3980
      %4017 = vmatprep.subr.bf16.mxu0 0
      %4018 = vmatpush1.bf16.msra.mxu0 %v3979
      %4019 = vmatprep.subr.bf16.mxu0 0
      %4020 = vmatpush1.bf16.msra.mxu0 %v3978
      %4021 = vmatprep.subr.bf16.mxu0 0
      %4022 = vmatpush1.bf16.msra.mxu0 %v3977
      %4023 = vmatprep.subr.bf16.mxu0 0
      %4024 = vmatpush1.bf16.msra.mxu0 %v3976
      %4025 = vmatprep.subr.bf16.mxu0 0
      %4026 = vmatpush1.bf16.msra.mxu0 %v3975
      %4027 = vmatprep.subr.bf16.mxu0 0
      %4028 = vmatpush2.bf16.msra.mxu0 0
      %4029 = vmatprep.subr.bf16.mxu0 0
      %4030 = vmatpush2.bf16.msra.mxu0 0
      %4031 = vmatprep.subr.bf16.mxu0 0
      %4032 = vmatpush2.bf16.msra.mxu0 0
      %4033 = vmatprep.subr.bf16.mxu0 0
      %4034 = vmatpush2.bf16.msra.mxu0 0
      %4035 = vmatprep.subr.bf16.mxu0 0
      %4036 = vmatpush2.bf16.msra.mxu0 %v3986
      %4037 = vmatprep.subr.bf16.mxu0 0
      %4038 = vmatpush2.bf16.msra.mxu0 %v3985
      %4039 = vmatprep.subr.bf16.mxu0 0
      %4040 = vmatpush2.bf16.msra.mxu0 %v3984
      %4041 = vmatprep.subr.bf16.mxu0 0
      %4042 = vmatpush2.bf16.msra.mxu0 %v3983
      %4043 = vmatprep.mubr.bf16.mxu0 %v4000
      %4044 = vmatmul.mubr.bf16.gmra.mxu0 %v3888
      %v4045 = vpop.f32.mrf.mxu0
      %v4046 = vadd.f32 %v3925, %v4045
      %v4047 = vpop.f32.mrf.mxu0
      %v4048 = vpop.f32.mrf.mxu0
      %v4049 = vadd.f32 %v3925, %v4048
      %v4050 = vpop.f32.mrf.mxu0
      %4051 = vmatprep.mubr.bf16.mxu0 %v4003
      %4052 = vmatmul.mubr.bf16.gmra.mxu0 %v3890
      %v4053 = vpop.f32.mrf.mxu0
      %v4054 = vadd.f32 %v3925, %v4053
      %v4055 = vpop.f32.mrf.mxu0
      %v4056 = vpop.f32.mrf.mxu0
      %v4057 = vadd.f32 %v3925, %v4056
      %v4058 = vpop.f32.mrf.mxu0
      %4059 = vmatprep.mubr.bf16.mxu0 %v4006
      %4060 = vmatmul.mubr.bf16.gmra.mxu0 %v3892
      %v4061 = vpop.f32.mrf.mxu0
      %v4062 = vadd.f32 %v3925, %v4061
      %v4063 = vpop.f32.mrf.mxu0
      %v4064 = vpop.f32.mrf.mxu0
      %v4065 = vadd.f32 %v3925, %v4064
      %v4066 = vpop.f32.mrf.mxu0
      %4067 = vmatprep.mubr.bf16.mxu0 %v4009
      %4068 = vmatmul.mubr.bf16.gmra.mxu0 %v3894
      %v4069 = vpop.f32.mrf.mxu0
      %v4070 = vadd.f32 %v3925, %v4069
      %v4071 = vpop.f32.mrf.mxu0
      %v4072 = vpop.f32.mrf.mxu0
      %v4073 = vadd.f32 %v3925, %v4072
      %v4074 = vpop.f32.mrf.mxu0
      %4075 = vdwg.mxu0
      %v4076 = vlaneseq
      %v4077 = vshrl.u32 %v4076, 7
      %v4078 = vsub.s32 0, %v4077
      %v4079 = vrot.slane %v1605, %v4078
      %v4080 = vmul.f32 %v4079, %v4046
      %v4081 = vmul.f32 %v4079, %v4049
      %v4082 = vmul.f32 %v4079, %v4054
      %v4083 = vmul.f32 %v4079, %v4057
      %v4084 = vmul.f32 %v4079, %v4062
      %v4085 = vmul.f32 %v4079, %v4065
      %v4086 = vmul.f32 %v4079, %v4070
      %v4087 = vmul.f32 %v4079, %v4073
      %v4088 = vadd.f32 %v3470, %v4080
      %v4089 = vadd.f32 %v3471, %v4081
      %v4090 = vadd.f32 %v3472, %v4082
      %v4091 = vadd.f32 %v3473, %v4083
      %v4092 = vadd.f32 %v3474, %v4084
      %v4093 = vadd.f32 %v3475, %v4085
      %v4094 = vadd.f32 %v3476, %v4086
      %v4095 = vadd.f32 %v3477, %v4087
      %s4096 = scalar_lea.vmem %s10, 144
      %v4097 = vld [vmem:[%s4096] sm:$0xf]
      %v4098 = vld [vmem:[%s4096 + $0x4] sm:$0xf]
      %v4099 = vld [vmem:[%s4096 + $0x8] sm:$0xf]
      %v4100 = vld [vmem:[%s4096 + $0xc] sm:$0xf]
      %v4101 = vld [vmem:[%s4096 + $0x10] sm:$0xf]
      %v4102 = vld [vmem:[%s4096 + $0x14] sm:$0xf]
      %s4103 = scalar_lea.vmem %s11, 6
      %v4104 = vld [vmem:[%s4103] sm:$0x1]
      %v4111 = vunpack.c.l.b16 %v4097
      %v4112 = vunpack.c.l.b16 %v4098
      %v4113 = vunpack.c.l.b16 %v4099
      %v4114 = vunpack.c.l.b16 %v4100
      %v4115 = vunpack.c.l.b16 %v4101
      %v4116 = vunpack.c.l.b16 %v4102
      %v4117 = vpack.c.b16 %v4112, %v4111
      %v4118 = vpack.c.b16 %v4114, %v4113
      %v4119 = vpack.c.b16 %v4116, %v4115
      %4123 = vmatprep.subr.bf16.mxu0 0
      %4124 = vmatpush1.bf16.msra.mxu0 0
      %4125 = vmatprep.subr.bf16.mxu0 0
      %4126 = vmatpush1.bf16.msra.mxu0 0
      %4127 = vmatprep.subr.bf16.mxu0 0
      %4128 = vmatpush1.bf16.msra.mxu0 0
      %4129 = vmatprep.subr.bf16.mxu0 0
      %4130 = vmatpush1.bf16.msra.mxu0 0
      %4131 = vmatprep.subr.bf16.mxu0 0
      %4132 = vmatpush1.bf16.msra.mxu0 0
      %4133 = vmatprep.subr.bf16.mxu0 0
      %4134 = vmatpush1.bf16.msra.mxu0 %v4119
      %4135 = vmatprep.subr.bf16.mxu0 0
      %4136 = vmatpush1.bf16.msra.mxu0 %v4118
      %4137 = vmatprep.subr.bf16.mxu0 0
      %4138 = vmatpush1.bf16.msra.mxu0 %v4117
      %4139 = vmatprep.subr.bf16.mxu0 0
      %4140 = vmatpush2.bf16.msra.mxu0 0
      %4141 = vmatprep.subr.bf16.mxu0 0
      %4142 = vmatpush2.bf16.msra.mxu0 0
      %4143 = vmatprep.subr.bf16.mxu0 0
      %4144 = vmatpush2.bf16.msra.mxu0 0
      %4145 = vmatprep.subr.bf16.mxu0 0
      %4146 = vmatpush2.bf16.msra.mxu0 0
      %4147 = vmatprep.subr.bf16.mxu0 0
      %4148 = vmatpush2.bf16.msra.mxu0 0
      %4149 = vmatprep.subr.bf16.mxu0 0
      %4150 = vmatpush2.bf16.msra.mxu0 0
      %4151 = vmatprep.subr.bf16.mxu0 0
      %4152 = vmatpush2.bf16.msra.mxu0 0
      %4153 = vmatprep.subr.bf16.mxu0 0
      %4154 = vmatpush2.bf16.msra.mxu0 0
      %4155 = vmatprep.mubr.bf16.mxu0 0
      %4156 = vmatmul.mubr.bf16.gmra.mxu0 %v1233
      %v4157 = vpop.f32.mrf.mxu0
      %v4158 = vadd.f32 %v4104, %v4157
      %v4159 = vpop.f32.mrf.mxu0
      %v4160 = vpop.f32.mrf.mxu0
      %v4161 = vpop.f32.mrf.mxu0
      %4162 = vdwg.mxu0
      %s4163 = scalar_lea.vmem %s10, 168
      %v4164 = vld [vmem:[%s4163] sm:$0xf]
      %v4165 = vld [vmem:[%s4163 + $0x4] sm:$0xf]
      %v4166 = vld [vmem:[%s4163 + $0x8] sm:$0xf]
      %v4167 = vld [vmem:[%s4163 + $0xc] sm:$0xf]
      %v4168 = vld [vmem:[%s4163 + $0x10] sm:$0xf]
      %v4169 = vld [vmem:[%s4163 + $0x14] sm:$0xf]
      %s4170 = scalar_lea.vmem %s11, 7
      %v4171 = vld [vmem:[%s4170] sm:$0x1]
      %v4178 = vunpack.c.l.b16 %v4164
      %v4179 = vunpack.c.l.b16 %v4165
      %v4180 = vunpack.c.l.b16 %v4166
      %v4181 = vunpack.c.l.b16 %v4167
      %v4182 = vunpack.c.l.b16 %v4168
      %v4183 = vunpack.c.l.b16 %v4169
      %v4184 = vpack.c.b16 %v4179, %v4178
      %v4185 = vpack.c.b16 %v4181, %v4180
      %v4186 = vpack.c.b16 %v4183, %v4182
      %4190 = vmatprep.subr.bf16.mxu0 0
      %4191 = vmatpush1.bf16.msra.mxu0 0
      %4192 = vmatprep.subr.bf16.mxu0 0
      %4193 = vmatpush1.bf16.msra.mxu0 0
      %4194 = vmatprep.subr.bf16.mxu0 0
      %4195 = vmatpush1.bf16.msra.mxu0 0
      %4196 = vmatprep.subr.bf16.mxu0 0
      %4197 = vmatpush1.bf16.msra.mxu0 0
      %4198 = vmatprep.subr.bf16.mxu0 0
      %4199 = vmatpush1.bf16.msra.mxu0 0
      %4200 = vmatprep.subr.bf16.mxu0 0
      %4201 = vmatpush1.bf16.msra.mxu0 %v4186
      %4202 = vmatprep.subr.bf16.mxu0 0
      %4203 = vmatpush1.bf16.msra.mxu0 %v4185
      %4204 = vmatprep.subr.bf16.mxu0 0
      %4205 = vmatpush1.bf16.msra.mxu0 %v4184
      %4206 = vmatprep.subr.bf16.mxu0 0
      %4207 = vmatpush2.bf16.msra.mxu0 0
      %4208 = vmatprep.subr.bf16.mxu0 0
      %4209 = vmatpush2.bf16.msra.mxu0 0
      %4210 = vmatprep.subr.bf16.mxu0 0
      %4211 = vmatpush2.bf16.msra.mxu0 0
      %4212 = vmatprep.subr.bf16.mxu0 0
      %4213 = vmatpush2.bf16.msra.mxu0 0
      %4214 = vmatprep.subr.bf16.mxu0 0
      %4215 = vmatpush2.bf16.msra.mxu0 0
      %4216 = vmatprep.subr.bf16.mxu0 0
      %4217 = vmatpush2.bf16.msra.mxu0 0
      %4218 = vmatprep.subr.bf16.mxu0 0
      %4219 = vmatpush2.bf16.msra.mxu0 0
      %4220 = vmatprep.subr.bf16.mxu0 0
      %4221 = vmatpush2.bf16.msra.mxu0 0
      %4222 = vmatprep.mubr.bf16.mxu0 0
      %4223 = vmatmul.mubr.bf16.gmra.mxu0 %v1233
      %v4224 = vpop.f32.mrf.mxu0
      %v4225 = vadd.f32 %v4171, %v4224
      %v4226 = vpop.f32.mrf.mxu0
      %v4227 = vpop.f32.mrf.mxu0
      %v4228 = vpop.f32.mrf.mxu0
      %4229 = vdwg.mxu0
      %s4230 = scalar_lea.vmem %s10, 192
      %v4231 = vld [vmem:[%s4230] sm:$0xf]
      %v4232 = vld [vmem:[%s4230 + $0x4] sm:$0xf]
      %v4233 = vld [vmem:[%s4230 + $0x8] sm:$0xf]
      %v4234 = vld [vmem:[%s4230 + $0xc] sm:$0xf]
      %v4235 = vld [vmem:[%s4230 + $0x10] sm:$0xf]
      %v4236 = vld [vmem:[%s4230 + $0x14] sm:$0xf]
      %s4237 = scalar_lea.vmem %s11, 8
      %v4238 = vld [vmem:[%s4237] sm:$0x1]
      %v4245 = vunpack.c.l.b16 %v4231
      %v4246 = vunpack.c.l.b16 %v4232
      %v4247 = vunpack.c.l.b16 %v4233
      %v4248 = vunpack.c.l.b16 %v4234
      %v4249 = vunpack.c.l.b16 %v4235
      %v4250 = vunpack.c.l.b16 %v4236
      %v4251 = vpack.c.b16 %v4246, %v4245
      %v4252 = vpack.c.b16 %v4248, %v4247
      %v4253 = vpack.c.b16 %v4250, %v4249
      %4257 = vmatprep.subr.bf16.mxu0 0
      %4258 = vmatpush1.bf16.msra.mxu0 0
      %4259 = vmatprep.subr.bf16.mxu0 0
      %4260 = vmatpush1.bf16.msra.mxu0 0
      %4261 = vmatprep.subr.bf16.mxu0 0
      %4262 = vmatpush1.bf16.msra.mxu0 0
      %4263 = vmatprep.subr.bf16.mxu0 0
      %4264 = vmatpush1.bf16.msra.mxu0 0
      %4265 = vmatprep.subr.bf16.mxu0 0
      %4266 = vmatpush1.bf16.msra.mxu0 0
      %4267 = vmatprep.subr.bf16.mxu0 0
      %4268 = vmatpush1.bf16.msra.mxu0 %v4253
      %4269 = vmatprep.subr.bf16.mxu0 0
      %4270 = vmatpush1.bf16.msra.mxu0 %v4252
      %4271 = vmatprep.subr.bf16.mxu0 0
      %4272 = vmatpush1.bf16.msra.mxu0 %v4251
      %4273 = vmatprep.subr.bf16.mxu0 0
      %4274 = vmatpush2.bf16.msra.mxu0 0
      %4275 = vmatprep.subr.bf16.mxu0 0
      %4276 = vmatpush2.bf16.msra.mxu0 0
      %4277 = vmatprep.subr.bf16.mxu0 0
      %4278 = vmatpush2.bf16.msra.mxu0 0
      %4279 = vmatprep.subr.bf16.mxu0 0
      %4280 = vmatpush2.bf16.msra.mxu0 0
      %4281 = vmatprep.subr.bf16.mxu0 0
      %4282 = vmatpush2.bf16.msra.mxu0 0
      %4283 = vmatprep.subr.bf16.mxu0 0
      %4284 = vmatpush2.bf16.msra.mxu0 0
      %4285 = vmatprep.subr.bf16.mxu0 0
      %4286 = vmatpush2.bf16.msra.mxu0 0
      %4287 = vmatprep.subr.bf16.mxu0 0
      %4288 = vmatpush2.bf16.msra.mxu0 0
      %4289 = vmatprep.mubr.bf16.mxu0 0
      %4290 = vmatmul.mubr.bf16.gmra.mxu0 %v1233
      %v4291 = vpop.f32.mrf.mxu0
      %v4292 = vadd.f32 %v4238, %v4291
      %v4293 = vpop.f32.mrf.mxu0
      %v4294 = vpop.f32.mrf.mxu0
      %v4295 = vpop.f32.mrf.mxu0
      %4296 = vdwg.mxu0
      %s4297 = scalar_lea.vmem %s10, 216
      %v4298 = vld [vmem:[%s4297] sm:$0xf]
      %v4299 = vld [vmem:[%s4297 + $0x4] sm:$0xf]
      %v4300 = vld [vmem:[%s4297 + $0x8] sm:$0xf]
      %v4301 = vld [vmem:[%s4297 + $0xc] sm:$0xf]
      %v4302 = vld [vmem:[%s4297 + $0x10] sm:$0xf]
      %v4303 = vld [vmem:[%s4297 + $0x14] sm:$0xf]
      %s4304 = scalar_lea.vmem %s11, 9
      %v4305 = vld [vmem:[%s4304] sm:$0x1]
      %v4312 = vunpack.c.l.b16 %v4298
      %v4313 = vunpack.c.l.b16 %v4299
      %v4314 = vunpack.c.l.b16 %v4300
      %v4315 = vunpack.c.l.b16 %v4301
      %v4316 = vunpack.c.l.b16 %v4302
      %v4317 = vunpack.c.l.b16 %v4303
      %v4318 = vpack.c.b16 %v4313, %v4312
      %v4319 = vpack.c.b16 %v4315, %v4314
      %v4320 = vpack.c.b16 %v4317, %v4316
      %4324 = vmatprep.subr.bf16.mxu0 0
      %4325 = vmatpush1.bf16.msra.mxu0 0
      %4326 = vmatprep.subr.bf16.mxu0 0
      %4327 = vmatpush1.bf16.msra.mxu0 0
      %4328 = vmatprep.subr.bf16.mxu0 0
      %4329 = vmatpush1.bf16.msra.mxu0 0
      %4330 = vmatprep.subr.bf16.mxu0 0
      %4331 = vmatpush1.bf16.msra.mxu0 0
      %4332 = vmatprep.subr.bf16.mxu0 0
      %4333 = vmatpush1.bf16.msra.mxu0 0
      %4334 = vmatprep.subr.bf16.mxu0 0
      %4335 = vmatpush1.bf16.msra.mxu0 %v4320
      %4336 = vmatprep.subr.bf16.mxu0 0
      %4337 = vmatpush1.bf16.msra.mxu0 %v4319
      %4338 = vmatprep.subr.bf16.mxu0 0
      %4339 = vmatpush1.bf16.msra.mxu0 %v4318
      %4340 = vmatprep.subr.bf16.mxu0 0
      %4341 = vmatpush2.bf16.msra.mxu0 0
      %4342 = vmatprep.subr.bf16.mxu0 0
      %4343 = vmatpush2.bf16.msra.mxu0 0
      %4344 = vmatprep.subr.bf16.mxu0 0
      %4345 = vmatpush2.bf16.msra.mxu0 0
      %4346 = vmatprep.subr.bf16.mxu0 0
      %4347 = vmatpush2.bf16.msra.mxu0 0
      %4348 = vmatprep.subr.bf16.mxu0 0
      %4349 = vmatpush2.bf16.msra.mxu0 0
      %4350 = vmatprep.subr.bf16.mxu0 0
      %4351 = vmatpush2.bf16.msra.mxu0 0
      %4352 = vmatprep.subr.bf16.mxu0 0
      %4353 = vmatpush2.bf16.msra.mxu0 0
      %4354 = vmatprep.subr.bf16.mxu0 0
      %4355 = vmatpush2.bf16.msra.mxu0 0
      %4356 = vmatprep.mubr.bf16.mxu0 0
      %4357 = vmatmul.mubr.bf16.gmra.mxu0 %v1233
      %v4358 = vpop.f32.mrf.mxu0
      %v4359 = vadd.f32 %v4305, %v4358
      %v4360 = vpop.f32.mrf.mxu0
      %v4361 = vpop.f32.mrf.mxu0
      %v4362 = vpop.f32.mrf.mxu0
      %4363 = vdwg.mxu0
      %s4364 = scalar_lea.vmem %s10, 240
      %v4365 = vld [vmem:[%s4364] sm:$0xf]
      %v4366 = vld [vmem:[%s4364 + $0x4] sm:$0xf]
      %v4367 = vld [vmem:[%s4364 + $0x8] sm:$0xf]
      %v4368 = vld [vmem:[%s4364 + $0xc] sm:$0xf]
      %v4369 = vld [vmem:[%s4364 + $0x10] sm:$0xf]
      %v4370 = vld [vmem:[%s4364 + $0x14] sm:$0xf]
      %s4371 = scalar_lea.vmem %s11, 10
      %v4372 = vld [vmem:[%s4371] sm:$0x1]
      %v4379 = vunpack.c.l.b16 %v4365
      %v4380 = vunpack.c.l.b16 %v4366
      %v4381 = vunpack.c.l.b16 %v4367
      %v4382 = vunpack.c.l.b16 %v4368
      %v4383 = vunpack.c.l.b16 %v4369
      %v4384 = vunpack.c.l.b16 %v4370
      %v4385 = vpack.c.b16 %v4380, %v4379
      %v4386 = vpack.c.b16 %v4382, %v4381
      %v4387 = vpack.c.b16 %v4384, %v4383
      %4391 = vmatprep.subr.bf16.mxu0 0
      %4392 = vmatpush1.bf16.msra.mxu0 0
      %4393 = vmatprep.subr.bf16.mxu0 0
      %4394 = vmatpush1.bf16.msra.mxu0 0
      %4395 = vmatprep.subr.bf16.mxu0 0
      %4396 = vmatpush1.bf16.msra.mxu0 0
      %4397 = vmatprep.subr.bf16.mxu0 0
      %4398 = vmatpush1.bf16.msra.mxu0 0
      %4399 = vmatprep.subr.bf16.mxu0 0
      %4400 = vmatpush1.bf16.msra.mxu0 0
      %4401 = vmatprep.subr.bf16.mxu0 0
      %4402 = vmatpush1.bf16.msra.mxu0 %v4387
      %4403 = vmatprep.subr.bf16.mxu0 0
      %4404 = vmatpush1.bf16.msra.mxu0 %v4386
      %4405 = vmatprep.subr.bf16.mxu0 0
      %4406 = vmatpush1.bf16.msra.mxu0 %v4385
      %4407 = vmatprep.subr.bf16.mxu0 0
      %4408 = vmatpush2.bf16.msra.mxu0 0
      %4409 = vmatprep.subr.bf16.mxu0 0
      %4410 = vmatpush2.bf16.msra.mxu0 0
      %4411 = vmatprep.subr.bf16.mxu0 0
      %4412 = vmatpush2.bf16.msra.mxu0 0
      %4413 = vmatprep.subr.bf16.mxu0 0
      %4414 = vmatpush2.bf16.msra.mxu0 0
      %4415 = vmatprep.subr.bf16.mxu0 0
      %4416 = vmatpush2.bf16.msra.mxu0 0
      %4417 = vmatprep.subr.bf16.mxu0 0
      %4418 = vmatpush2.bf16.msra.mxu0 0
      %4419 = vmatprep.subr.bf16.mxu0 0
      %4420 = vmatpush2.bf16.msra.mxu0 0
      %4421 = vmatprep.subr.bf16.mxu0 0
      %4422 = vmatpush2.bf16.msra.mxu0 0
      %4423 = vmatprep.mubr.bf16.mxu0 0
      %4424 = vmatmul.mubr.bf16.gmra.mxu0 %v1233
      %v4425 = vpop.f32.mrf.mxu0
      %v4426 = vadd.f32 %v4372, %v4425
      %v4427 = vpop.f32.mrf.mxu0
      %v4428 = vpop.f32.mrf.mxu0
      %v4429 = vpop.f32.mrf.mxu0
      %4430 = vdwg.mxu0
      %s4431 = scalar_lea.vmem %s10, 264
      %v4432 = vld [vmem:[%s4431] sm:$0xf]
      %v4433 = vld [vmem:[%s4431 + $0x4] sm:$0xf]
      %v4434 = vld [vmem:[%s4431 + $0x8] sm:$0xf]
      %v4435 = vld [vmem:[%s4431 + $0xc] sm:$0xf]
      %v4436 = vld [vmem:[%s4431 + $0x10] sm:$0xf]
      %v4437 = vld [vmem:[%s4431 + $0x14] sm:$0xf]
      %s4438 = scalar_lea.vmem %s11, 11
      %v4439 = vld [vmem:[%s4438] sm:$0x1]
      %v4446 = vunpack.c.l.b16 %v4432
      %v4447 = vunpack.c.l.b16 %v4433
      %v4448 = vunpack.c.l.b16 %v4434
      %v4449 = vunpack.c.l.b16 %v4435
      %v4450 = vunpack.c.l.b16 %v4436
      %v4451 = vunpack.c.l.b16 %v4437
      %v4452 = vpack.c.b16 %v4447, %v4446
      %v4453 = vpack.c.b16 %v4449, %v4448
      %v4454 = vpack.c.b16 %v4451, %v4450
      %4458 = vmatprep.subr.bf16.mxu0 0
      %4459 = vmatpush1.bf16.msra.mxu0 0
      %4460 = vmatprep.subr.bf16.mxu0 0
      %4461 = vmatpush1.bf16.msra.mxu0 0
      %4462 = vmatprep.subr.bf16.mxu0 0
      %4463 = vmatpush1.bf16.msra.mxu0 0
      %4464 = vmatprep.subr.bf16.mxu0 0
      %4465 = vmatpush1.bf16.msra.mxu0 0
      %4466 = vmatprep.subr.bf16.mxu0 0
      %4467 = vmatpush1.bf16.msra.mxu0 0
      %4468 = vmatprep.subr.bf16.mxu0 0
      %4469 = vmatpush1.bf16.msra.mxu0 %v4454
      %4470 = vmatprep.subr.bf16.mxu0 0
      %4471 = vmatpush1.bf16.msra.mxu0 %v4453
      %4472 = vmatprep.subr.bf16.mxu0 0
      %4473 = vmatpush1.bf16.msra.mxu0 %v4452
      %4474 = vmatprep.subr.bf16.mxu0 0
      %4475 = vmatpush2.bf16.msra.mxu0 0
      %4476 = vmatprep.subr.bf16.mxu0 0
      %4477 = vmatpush2.bf16.msra.mxu0 0
      %4478 = vmatprep.subr.bf16.mxu0 0
      %4479 = vmatpush2.bf16.msra.mxu0 0
      %4480 = vmatprep.subr.bf16.mxu0 0
      %4481 = vmatpush2.bf16.msra.mxu0 0
      %4482 = vmatprep.subr.bf16.mxu0 0
      %4483 = vmatpush2.bf16.msra.mxu0 0
      %4484 = vmatprep.subr.bf16.mxu0 0
      %4485 = vmatpush2.bf16.msra.mxu0 0
      %4486 = vmatprep.subr.bf16.mxu0 0
      %4487 = vmatpush2.bf16.msra.mxu0 0
      %4488 = vmatprep.subr.bf16.mxu0 0
      %4489 = vmatpush2.bf16.msra.mxu0 0
      %4490 = vmatprep.mubr.bf16.mxu0 0
      %4491 = vmatmul.mubr.bf16.gmra.mxu0 %v1233
      %v4492 = vpop.f32.mrf.mxu0
      %v4493 = vadd.f32 %v4439, %v4492
      %v4494 = vpop.f32.mrf.mxu0
      %v4495 = vpop.f32.mrf.mxu0
      %v4496 = vpop.f32.mrf.mxu0
      %4497 = vdwg.mxu0
      %v4498 = vsel %vm932, %v4088, 0.0
      %4499 = vadd.xlane.f32.xlu0 %v4498
      %v4500 = vpop.xlane.xlu0 %4499
      %v4501 = vsel %vm932, %v4089, 0.0
      %4502 = vadd.xlane.f32.xlu0 %v4501
      %v4503 = vpop.xlane.xlu0 %4502
      %v4504 = vsel %vm932, %v4090, 0.0
      %4505 = vadd.xlane.f32.xlu0 %v4504
      %v4506 = vpop.xlane.xlu0 %4505
      %v4507 = vsel %vm932, %v4091, 0.0
      %4508 = vadd.xlane.f32.xlu0 %v4507
      %v4509 = vpop.xlane.xlu0 %4508
      %v4510 = vsel %vm932, %v4092, 0.0
      %4511 = vadd.xlane.f32.xlu0 %v4510
      %v4512 = vpop.xlane.xlu0 %4511
      %v4513 = vsel %vm932, %v4093, 0.0
      %4514 = vadd.xlane.f32.xlu0 %v4513
      %v4515 = vpop.xlane.xlu0 %4514
      %v4516 = vsel %vm932, %v4094, 0.0
      %4517 = vadd.xlane.f32.xlu0 %v4516
      %v4518 = vpop.xlane.xlu0 %4517
      %v4519 = vsel %vm932, %v4095, 0.0
      %4520 = vadd.xlane.f32.xlu0 %v4519
      %v4521 = vpop.xlane.xlu0 %4520
      %v4522 = vmul.f32 %v4500, %v1634
      %v4523 = vmul.f32 %v4503, %v1634
      %v4524 = vmul.f32 %v4506, %v1634
      %v4525 = vmul.f32 %v4509, %v1634
      %v4526 = vmul.f32 %v4512, %v1634
      %v4527 = vmul.f32 %v4515, %v1634
      %v4528 = vmul.f32 %v4518, %v1634
      %v4529 = vmul.f32 %v4521, %v1634
      %v4530 = vsub.f32 %v4088, %v4522
      %v4531 = vsub.f32 %v4089, %v4523
      %v4532 = vsub.f32 %v4090, %v4524
      %v4533 = vsub.f32 %v4091, %v4525
      %v4534 = vsub.f32 %v4092, %v4526
      %v4535 = vsub.f32 %v4093, %v4527
      %v4536 = vsub.f32 %v4094, %v4528
      %v4537 = vsub.f32 %v4095, %v4529
      %v4538 = vmul.f32 %v4530, %v4530
      %v4539 = vmul.f32 %v4531, %v4531
      %v4540 = vmul.f32 %v4532, %v4532
      %v4541 = vmul.f32 %v4533, %v4533
      %v4542 = vmul.f32 %v4534, %v4534
      %v4543 = vmul.f32 %v4535, %v4535
      %v4544 = vmul.f32 %v4536, %v4536
      %v4545 = vmul.f32 %v4537, %v4537
      %v4546 = vsel %vm932, %v4538, 0.0
      %4547 = vadd.xlane.f32.xlu0 %v4546
      %v4548 = vpop.xlane.xlu0 %4547
      %v4549 = vsel %vm932, %v4539, 0.0
      %4550 = vadd.xlane.f32.xlu0 %v4549
      %v4551 = vpop.xlane.xlu0 %4550
      %v4552 = vsel %vm932, %v4540, 0.0
      %4553 = vadd.xlane.f32.xlu0 %v4552
      %v4554 = vpop.xlane.xlu0 %4553
      %v4555 = vsel %vm932, %v4541, 0.0
      %4556 = vadd.xlane.f32.xlu0 %v4555
      %v4557 = vpop.xlane.xlu0 %4556
      %v4558 = vsel %vm932, %v4542, 0.0
      %4559 = vadd.xlane.f32.xlu0 %v4558
      %v4560 = vpop.xlane.xlu0 %4559
      %v4561 = vsel %vm932, %v4543, 0.0
      %4562 = vadd.xlane.f32.xlu0 %v4561
      %v4563 = vpop.xlane.xlu0 %4562
      %v4564 = vsel %vm932, %v4544, 0.0
      %4565 = vadd.xlane.f32.xlu0 %v4564
      %v4566 = vpop.xlane.xlu0 %4565
      %v4567 = vsel %vm932, %v4545, 0.0
      %4568 = vadd.xlane.f32.xlu0 %v4567
      %v4569 = vpop.xlane.xlu0 %4568
      %v4570 = vmul.f32 %v4548, %v1634
      %v4571 = vmul.f32 %v4551, %v1634
      %v4572 = vmul.f32 %v4554, %v1634
      %v4573 = vmul.f32 %v4557, %v1634
      %v4574 = vmul.f32 %v4560, %v1634
      %v4575 = vmul.f32 %v4563, %v1634
      %v4576 = vmul.f32 %v4566, %v1634
      %v4577 = vmul.f32 %v4569, %v1634
      %v4578 = vadd.f32 %v4570, 1e-06
      %v4579 = vadd.f32 %v4571, 1e-06
      %v4580 = vadd.f32 %v4572, 1e-06
      %v4581 = vadd.f32 %v4573, 1e-06
      %v4582 = vadd.f32 %v4574, 1e-06
      %v4583 = vadd.f32 %v4575, 1e-06
      %v4584 = vadd.f32 %v4576, 1e-06
      %v4585 = vadd.f32 %v4577, 1e-06
      %v4586 = vrsqrt.pop %v4578
      %v4587 = vrsqrt.pop %v4579
      %v4588 = vrsqrt.pop %v4580
      %v4589 = vrsqrt.pop %v4581
      %v4590 = vrsqrt.pop %v4582
      %v4591 = vrsqrt.pop %v4583
      %v4592 = vrsqrt.pop %v4584
      %v4593 = vrsqrt.pop %v4585
      %v4594 = vmul.f32 %v4530, %v4586
      %v4595 = vmul.f32 %v4531, %v4587
      %v4596 = vmul.f32 %v4532, %v4588
      %v4597 = vmul.f32 %v4533, %v4589
      %v4598 = vmul.f32 %v4534, %v4590
      %v4599 = vmul.f32 %v4535, %v4591
      %v4600 = vmul.f32 %v4536, %v4592
      %v4601 = vmul.f32 %v4537, %v4593
      %v4602 = vadd.f32 %v4225, 1.0
      %v4603 = vlaneseq
      %v4604 = vshrl.u32 %v4603, 7
      %v4605 = vsub.s32 0, %v4604
      %v4606 = vrot.slane %v4602, %v4605
      %v4607 = vmul.f32 %v4594, %v4606
      %v4608 = vmul.f32 %v4595, %v4606
      %v4609 = vmul.f32 %v4596, %v4606
      %v4610 = vmul.f32 %v4597, %v4606
      %v4611 = vmul.f32 %v4598, %v4606
      %v4612 = vmul.f32 %v4599, %v4606
      %v4613 = vmul.f32 %v4600, %v4606
      %v4614 = vmul.f32 %v4601, %v4606
      %v4615 = vlaneseq
      %v4616 = vshrl.u32 %v4615, 7
      %v4617 = vsub.s32 0, %v4616
      %v4618 = vrot.slane %v4158, %v4617
      %v4619 = vadd.f32 %v4607, %v4618
      %v4620 = vadd.f32 %v4608, %v4618
      %v4621 = vadd.f32 %v4609, %v4618
      %v4622 = vadd.f32 %v4610, %v4618
      %v4623 = vadd.f32 %v4611, %v4618
      %v4624 = vadd.f32 %v4612, %v4618
      %v4625 = vadd.f32 %v4613, %v4618
      %v4626 = vadd.f32 %v4614, %v4618
      %v4627 = vpack.c.bf16 %v4620, %v4619
      %v4628 = vpack.c.bf16 %v4622, %v4621
      %v4629 = vpack.c.bf16 %v4624, %v4623
      %v4630 = vpack.c.bf16 %v4626, %v4625
      %s4631 = scalar_lea.vmem %s12, 48
      %v4632 = vld [vmem:[%s4631] sm:$0xff]
      %v4633 = vld [vmem:[%s4631 + $0x8] sm:$0xff]
      %v4634 = vld [vmem:[%s4631 + $0x10] sm:$0xff]
      %v4635 = vld [vmem:[%s4631 + $0x18] sm:$0xff]
      %v4636 = vld [vmem:[%s4631 + $0x20] sm:$0xff]
      %v4637 = vld [vmem:[%s4631 + $0x28] sm:$0xff]
      %s4638 = scalar_lea.vmem %s13, 2
      %v4639 = vld [vmem:[%s4638] sm:$0x3]
      %v4641 = vlaneseq
      %v4642 = vshrl.u32 %v4641, 7
      %v4643 = vsub.s32 0, %v4642
      %v4644 = vrot.slane %v4639, %v4643
      %v4645 = vlaneseq
      %v4646 = vshrl.u32 %v4645, 7
      %v4647 = vsub.s32 1, %v4646
      %v4648 = vrot.slane %v4639, %v4647
      %v4657 = vunpack.c.l.b16 %v4632
      %v4658 = vunpack.c.h.b16 %v4632
      %v4659 = vunpack.c.l.b16 %v4633
      %v4660 = vunpack.c.h.b16 %v4633
      %v4661 = vunpack.c.l.b16 %v4634
      %v4662 = vunpack.c.h.b16 %v4634
      %v4663 = vunpack.c.l.b16 %v4635
      %v4664 = vunpack.c.h.b16 %v4635
      %v4665 = vunpack.c.l.b16 %v4636
      %v4666 = vunpack.c.h.b16 %v4636
      %v4667 = vunpack.c.l.b16 %v4637
      %v4668 = vunpack.c.h.b16 %v4637
      %v4669 = vpack.c.b16 %v4659, %v4657
      %v4670 = vpack.c.b16 %v4660, %v4658
      %v4671 = vpack.c.b16 %v4663, %v4661
      %v4672 = vpack.c.b16 %v4664, %v4662
      %v4673 = vpack.c.b16 %v4667, %v4665
      %v4674 = vpack.c.b16 %v4668, %v4666
      %v4682 = vsel %vm932, %v4627, 0
      %v4685 = vsel %vm932, %v4628, 0
      %v4688 = vsel %vm932, %v4629, 0
      %v4691 = vsel %vm932, %v4630, 0
      %4693 = vmatprep.subr.bf16.mxu0 0
      %4694 = vmatpush1.bf16.msra.mxu0 0
      %4695 = vmatprep.subr.bf16.mxu0 0
      %4696 = vmatpush1.bf16.msra.mxu0 0
      %4697 = vmatprep.subr.bf16.mxu0 0
      %4698 = vmatpush1.bf16.msra.mxu0 0
      %4699 = vmatprep.subr.bf16.mxu0 0
      %4700 = vmatpush1.bf16.msra.mxu0 0
      %4701 = vmatprep.subr.bf16.mxu0 0
      %4702 = vmatpush1.bf16.msra.mxu0 0
      %4703 = vmatprep.subr.bf16.mxu0 %v4674
      %4704 = vmatpush1.bf16.msra.mxu0 %v4673
      %4705 = vmatprep.subr.bf16.mxu0 %v4672
      %4706 = vmatpush1.bf16.msra.mxu0 %v4671
      %4707 = vmatprep.subr.bf16.mxu0 %v4670
      %4708 = vmatpush1.bf16.msra.mxu0 %v4669
      %4709 = vmatprep.subr.bf16.mxu0 0
      %4710 = vmatpush2.bf16.msra.mxu0 0
      %4711 = vmatprep.subr.bf16.mxu0 0
      %4712 = vmatpush2.bf16.msra.mxu0 0
      %4713 = vmatprep.subr.bf16.mxu0 0
      %4714 = vmatpush2.bf16.msra.mxu0 0
      %4715 = vmatprep.subr.bf16.mxu0 0
      %4716 = vmatpush2.bf16.msra.mxu0 0
      %4717 = vmatprep.subr.bf16.mxu0 0
      %4718 = vmatpush2.bf16.msra.mxu0 0
      %4719 = vmatprep.subr.bf16.mxu0 0
      %4720 = vmatpush2.bf16.msra.mxu0 0
      %4721 = vmatprep.subr.bf16.mxu0 0
      %4722 = vmatpush2.bf16.msra.mxu0 0
      %4723 = vmatprep.subr.bf16.mxu0 0
      %4724 = vmatpush2.bf16.msra.mxu0 0
      %4725 = vmatprep.mubr.bf16.mxu0 0
      %4726 = vmatmul.mubr.bf16.gmra.mxu0 %v4682
      %v4727 = vpop.f32.mrf.mxu0
      %v4728 = vadd.f32 %v4644, %v4727
      %v4729 = vpop.f32.mrf.mxu0
      %v4730 = vadd.f32 %v4648, %v4729
      %v4731 = vpop.f32.mrf.mxu0
      %v4732 = vadd.f32 %v4644, %v4731
      %v4733 = vpop.f32.mrf.mxu0
      %v4734 = vadd.f32 %v4648, %v4733
      %4735 = vmatprep.mubr.bf16.mxu0 0
      %4736 = vmatmul.mubr.bf16.gmra.mxu0 %v4685
      %v4737 = vpop.f32.mrf.mxu0
      %v4738 = vadd.f32 %v4644, %v4737
      %v4739 = vpop.f32.mrf.mxu0
      %v4740 = vadd.f32 %v4648, %v4739
      %v4741 = vpop.f32.mrf.mxu0
      %v4742 = vadd.f32 %v4644, %v4741
      %v4743 = vpop.f32.mrf.mxu0
      %v4744 = vadd.f32 %v4648, %v4743
      %4745 = vmatprep.mubr.bf16.mxu0 0
      %4746 = vmatmul.mubr.bf16.gmra.mxu0 %v4688
      %v4747 = vpop.f32.mrf.mxu0
      %v4748 = vadd.f32 %v4644, %v4747
      %v4749 = vpop.f32.mrf.mxu0
      %v4750 = vadd.f32 %v4648, %v4749
      %v4751 = vpop.f32.mrf.mxu0
      %v4752 = vadd.f32 %v4644, %v4751
      %v4753 = vpop.f32.mrf.mxu0
      %v4754 = vadd.f32 %v4648, %v4753
      %4755 = vmatprep.mubr.bf16.mxu0 0
      %4756 = vmatmul.mubr.bf16.gmra.mxu0 %v4691
      %v4757 = vpop.f32.mrf.mxu0
      %v4758 = vadd.f32 %v4644, %v4757
      %v4759 = vpop.f32.mrf.mxu0
      %v4760 = vadd.f32 %v4648, %v4759
      %v4761 = vpop.f32.mrf.mxu0
      %v4762 = vadd.f32 %v4644, %v4761
      %v4763 = vpop.f32.mrf.mxu0
      %v4764 = vadd.f32 %v4648, %v4763
      %4765 = vdwg.mxu0
      %v4766 = vmul.f32 %v4728, 0.28867513
      %v4767 = vmul.f32 %v4732, 0.28867513
      %v4768 = vmul.f32 %v4738, 0.28867513
      %v4769 = vmul.f32 %v4742, 0.28867513
      %v4770 = vmul.f32 %v4748, 0.28867513
      %v4771 = vmul.f32 %v4752, 0.28867513
      %v4772 = vmul.f32 %v4758, 0.28867513
      %v4773 = vmul.f32 %v4762, 0.28867513
      %v4774 = vpack.c.bf16 %v4767, %v4766
      %v4775 = vpack.c.bf16 %v4769, %v4768
      %v4776 = vpack.c.bf16 %v4771, %v4770
      %v4777 = vpack.c.bf16 %v4773, %v4772
      %v4778 = vpack.c.bf16 %v4732, %v4728
      %v4779 = vpack.c.bf16 %v4742, %v4738
      %v4780 = vpack.c.bf16 %v4752, %v4748
      %v4781 = vpack.c.bf16 %v4762, %v4758
      %4786 = vrot.lane.b32.xlu0 %v4778, 80
      %v4787 = vpop.permute.xlu0 %4786
      %4788 = vrot.lane.b32.xlu0 %v4779, 80
      %v4789 = vpop.permute.xlu0 %4788
      %4790 = vrot.lane.b32.xlu0 %v4780, 80
      %v4791 = vpop.permute.xlu0 %4790
      %4792 = vrot.lane.b32.xlu0 %v4781, 80
      %v4793 = vpop.permute.xlu0 %4792
      %v4795 = vsel %vm1905, %v4774, 0
      %v4798 = vsel %vm1905, %v4775, 0
      %v4801 = vsel %vm1905, %v4776, 0
      %v4804 = vsel %vm1905, %v4777, 0
      %v4807 = vsel %vm1905, %v4787, 0
      %v4810 = vsel %vm1905, %v4789, 0
      %v4813 = vsel %vm1905, %v4791, 0
      %v4816 = vsel %vm1905, %v4793, 0
      %4818 = vmatprep.subr.bf16.mxu0 0
      %4819 = vmatpush1.bf16.xpose.msra.mxu0 0
      %4820 = vmatprep.subr.bf16.mxu0 0
      %4821 = vmatpush1.bf16.xpose.msra.mxu0 0
      %4822 = vmatprep.subr.bf16.mxu0 0
      %4823 = vmatpush1.bf16.xpose.msra.mxu0 0
      %4824 = vmatprep.subr.bf16.mxu0 0
      %4825 = vmatpush1.bf16.xpose.msra.mxu0 0
      %4826 = vmatprep.subr.bf16.mxu0 0
      %4827 = vmatpush1.bf16.xpose.msra.mxu0 %v4816
      %4828 = vmatprep.subr.bf16.mxu0 0
      %4829 = vmatpush1.bf16.xpose.msra.mxu0 %v4813
      %4830 = vmatprep.subr.bf16.mxu0 0
      %4831 = vmatpush1.bf16.xpose.msra.mxu0 %v4810
      %4832 = vmatprep.subr.bf16.mxu0 0
      %4833 = vmatpush1.bf16.xpose.msra.mxu0 %v4807
      %4834 = vmatprep.subr.bf16.mxu0 0
      %4835 = vmatpush2.bf16.xpose.msra.mxu0 0
      %4836 = vmatprep.subr.bf16.mxu0 0
      %4837 = vmatpush2.bf16.xpose.msra.mxu0 0
      %4838 = vmatprep.subr.bf16.mxu0 0
      %4839 = vmatpush2.bf16.xpose.msra.mxu0 0
      %4840 = vmatprep.subr.bf16.mxu0 0
      %4841 = vmatpush2.bf16.xpose.msra.mxu0 0
      %4842 = vmatprep.subr.bf16.mxu0 0
      %4843 = vmatpush2.bf16.xpose.msra.mxu0 0
      %4844 = vmatprep.subr.bf16.mxu0 0
      %4845 = vmatpush2.bf16.xpose.msra.mxu0 0
      %4846 = vmatprep.subr.bf16.mxu0 0
      %4847 = vmatpush2.bf16.xpose.msra.mxu0 0
      %4848 = vmatprep.subr.bf16.mxu0 0
      %4849 = vmatpush2.bf16.xpose.msra.mxu0 0
      %4850 = vmatprep.mubr.bf16.mxu0 0
      %4851 = vmatmul.mubr.bf16.gmra.mxu0 %v4795
      %v4852 = vpop.f32.mrf.mxu0
      %v4853 = vadd.f32 0.0, %v4852
      %v4854 = vpop.f32.mrf.mxu0
      %v4855 = vpop.f32.mrf.mxu0
      %v4856 = vadd.f32 0.0, %v4855
      %v4857 = vpop.f32.mrf.mxu0
      %4858 = vmatprep.mubr.bf16.mxu0 0
      %4859 = vmatmul.mubr.bf16.gmra.mxu0 %v4798
      %v4860 = vpop.f32.mrf.mxu0
      %v4861 = vadd.f32 0.0, %v4860
      %v4862 = vpop.f32.mrf.mxu0
      %v4863 = vpop.f32.mrf.mxu0
      %v4864 = vadd.f32 0.0, %v4863
      %v4865 = vpop.f32.mrf.mxu0
      %4866 = vmatprep.mubr.bf16.mxu0 0
      %4867 = vmatmul.mubr.bf16.gmra.mxu0 %v4801
      %v4868 = vpop.f32.mrf.mxu0
      %v4869 = vadd.f32 0.0, %v4868
      %v4870 = vpop.f32.mrf.mxu0
      %v4871 = vpop.f32.mrf.mxu0
      %v4872 = vadd.f32 0.0, %v4871
      %v4873 = vpop.f32.mrf.mxu0
      %4874 = vmatprep.mubr.bf16.mxu0 0
      %4875 = vmatmul.mubr.bf16.gmra.mxu0 %v4804
      %v4876 = vpop.f32.mrf.mxu0
      %v4877 = vadd.f32 0.0, %v4876
      %v4878 = vpop.f32.mrf.mxu0
      %v4879 = vpop.f32.mrf.mxu0
      %v4880 = vadd.f32 0.0, %v4879
      %v4881 = vpop.f32.mrf.mxu0
      %4882 = vdwg.mxu0
      %v4883 = vsel %vm1113, %v4853, -inf
      %4884 = vmax.xlane.f32.xlu0 %v4883
      %v4885 = vpop.xlane.xlu0 %4884
      %v4886 = vsel %vm1113, %v4856, -inf
      %4887 = vmax.xlane.f32.xlu0 %v4886
      %v4888 = vpop.xlane.xlu0 %4887
      %v4889 = vsel %vm1113, %v4861, -inf
      %4890 = vmax.xlane.f32.xlu0 %v4889
      %v4891 = vpop.xlane.xlu0 %4890
      %v4892 = vsel %vm1113, %v4864, -inf
      %4893 = vmax.xlane.f32.xlu0 %v4892
      %v4894 = vpop.xlane.xlu0 %4893
      %v4895 = vsel %vm1113, %v4869, -inf
      %4896 = vmax.xlane.f32.xlu0 %v4895
      %v4897 = vpop.xlane.xlu0 %4896
      %v4898 = vsel %vm1113, %v4872, -inf
      %4899 = vmax.xlane.f32.xlu0 %v4898
      %v4900 = vpop.xlane.xlu0 %4899
      %v4901 = vsel %vm1113, %v4877, -inf
      %4902 = vmax.xlane.f32.xlu0 %v4901
      %v4903 = vpop.xlane.xlu0 %4902
      %v4904 = vsel %vm1113, %v4880, -inf
      %4905 = vmax.xlane.f32.xlu0 %v4904
      %v4906 = vpop.xlane.xlu0 %4905
      %v4907 = vsub.f32 %v4853, %v4885
      %v4908 = vsub.f32 %v4856, %v4888
      %v4909 = vsub.f32 %v4861, %v4891
      %v4910 = vsub.f32 %v4864, %v4894
      %v4911 = vsub.f32 %v4869, %v4897
      %v4912 = vsub.f32 %v4872, %v4900
      %v4913 = vsub.f32 %v4877, %v4903
      %v4914 = vsub.f32 %v4880, %v4906
      %v4915 = vmul.f32 %v4907, 1.442695
      %v4916 = vpow.pop %v4915
      %v4917 = vmul.f32 %v4908, 1.442695
      %v4918 = vpow.pop %v4917
      %v4919 = vmul.f32 %v4909, 1.442695
      %v4920 = vpow.pop %v4919
      %v4921 = vmul.f32 %v4910, 1.442695
      %v4922 = vpow.pop %v4921
      %v4923 = vmul.f32 %v4911, 1.442695
      %v4924 = vpow.pop %v4923
      %v4925 = vmul.f32 %v4912, 1.442695
      %v4926 = vpow.pop %v4925
      %v4927 = vmul.f32 %v4913, 1.442695
      %v4928 = vpow.pop %v4927
      %v4929 = vmul.f32 %v4914, 1.442695
      %v4930 = vpow.pop %v4929
      %v4931 = vsel %vm1113, %v4916, 0.0
      %4932 = vadd.xlane.f32.xlu0 %v4931
      %v4933 = vpop.xlane.xlu0 %4932
      %v4934 = vsel %vm1113, %v4918, 0.0
      %4935 = vadd.xlane.f32.xlu0 %v4934
      %v4936 = vpop.xlane.xlu0 %4935
      %v4937 = vsel %vm1113, %v4920, 0.0
      %4938 = vadd.xlane.f32.xlu0 %v4937
      %v4939 = vpop.xlane.xlu0 %4938
      %v4940 = vsel %vm1113, %v4922, 0.0
      %4941 = vadd.xlane.f32.xlu0 %v4940
      %v4942 = vpop.xlane.xlu0 %4941
      %v4943 = vsel %vm1113, %v4924, 0.0
      %4944 = vadd.xlane.f32.xlu0 %v4943
      %v4945 = vpop.xlane.xlu0 %4944
      %v4946 = vsel %vm1113, %v4926, 0.0
      %4947 = vadd.xlane.f32.xlu0 %v4946
      %v4948 = vpop.xlane.xlu0 %4947
      %v4949 = vsel %vm1113, %v4928, 0.0
      %4950 = vadd.xlane.f32.xlu0 %v4949
      %v4951 = vpop.xlane.xlu0 %4950
      %v4952 = vsel %vm1113, %v4930, 0.0
      %4953 = vadd.xlane.f32.xlu0 %v4952
      %v4954 = vpop.xlane.xlu0 %4953
      %v4955 = vrcp.pop %v4933
      %v4956 = vrcp.pop %v4936
      %v4957 = vrcp.pop %v4939
      %v4958 = vrcp.pop %v4942
      %v4959 = vrcp.pop %v4945
      %v4960 = vrcp.pop %v4948
      %v4961 = vrcp.pop %v4951
      %v4962 = vrcp.pop %v4954
      %v4963 = vmul.f32 %v4916, %v4955
      %v4964 = vmul.f32 %v4918, %v4956
      %v4965 = vmul.f32 %v4920, %v4957
      %v4966 = vmul.f32 %v4922, %v4958
      %v4967 = vmul.f32 %v4924, %v4959
      %v4968 = vmul.f32 %v4926, %v4960
      %v4969 = vmul.f32 %v4928, %v4961
      %v4970 = vmul.f32 %v4930, %v4962
      %v4971 = vpack.c.bf16 %v4964, %v4963
      %v4972 = vpack.c.bf16 %v4966, %v4965
      %v4973 = vpack.c.bf16 %v4968, %v4967
      %v4974 = vpack.c.bf16 %v4970, %v4969
      %4975 = vrot.lane.b32.xlu0 %v4778, 32
      %v4976 = vpop.permute.xlu0 %4975
      %4977 = vrot.lane.b32.xlu0 %v4779, 32
      %v4978 = vpop.permute.xlu0 %4977
      %4979 = vrot.lane.b32.xlu0 %v4780, 32
      %v4980 = vpop.permute.xlu0 %4979
      %4981 = vrot.lane.b32.xlu0 %v4781, 32
      %v4982 = vpop.permute.xlu0 %4981
      %v4988 = vsel %vm1113, %v4971, 0
      %v4991 = vsel %vm1113, %v4972, 0
      %v4994 = vsel %vm1113, %v4973, 0
      %v4997 = vsel %vm1113, %v4974, 0
      %4999 = vmatprep.subr.bf16.mxu0 0
      %5000 = vmatpush1.bf16.msra.mxu0 0
      %5001 = vmatprep.subr.bf16.mxu0 0
      %5002 = vmatpush1.bf16.msra.mxu0 0
      %5003 = vmatprep.subr.bf16.mxu0 0
      %5004 = vmatpush1.bf16.msra.mxu0 0
      %5005 = vmatprep.subr.bf16.mxu0 0
      %5006 = vmatpush1.bf16.msra.mxu0 0
      %5007 = vmatprep.subr.bf16.mxu0 0
      %5008 = vmatpush1.bf16.msra.mxu0 %v4982
      %5009 = vmatprep.subr.bf16.mxu0 0
      %5010 = vmatpush1.bf16.msra.mxu0 %v4980
      %5011 = vmatprep.subr.bf16.mxu0 0
      %5012 = vmatpush1.bf16.msra.mxu0 %v4978
      %5013 = vmatprep.subr.bf16.mxu0 0
      %5014 = vmatpush1.bf16.msra.mxu0 %v4976
      %5015 = vmatprep.subr.bf16.mxu0 0
      %5016 = vmatpush2.bf16.msra.mxu0 0
      %5017 = vmatprep.subr.bf16.mxu0 0
      %5018 = vmatpush2.bf16.msra.mxu0 0
      %5019 = vmatprep.subr.bf16.mxu0 0
      %5020 = vmatpush2.bf16.msra.mxu0 0
      %5021 = vmatprep.subr.bf16.mxu0 0
      %5022 = vmatpush2.bf16.msra.mxu0 0
      %5023 = vmatprep.subr.bf16.mxu0 0
      %5024 = vmatpush2.bf16.msra.mxu0 0
      %5025 = vmatprep.subr.bf16.mxu0 0
      %5026 = vmatpush2.bf16.msra.mxu0 0
      %5027 = vmatprep.subr.bf16.mxu0 0
      %5028 = vmatpush2.bf16.msra.mxu0 0
      %5029 = vmatprep.subr.bf16.mxu0 0
      %5030 = vmatpush2.bf16.msra.mxu0 0
      %5031 = vmatprep.mubr.bf16.mxu0 0
      %5032 = vmatmul.mubr.bf16.gmra.mxu0 %v4988
      %v5033 = vpop.f32.mrf.mxu0
      %v5034 = vadd.f32 0.0, %v5033
      %v5035 = vpop.f32.mrf.mxu0
      %v5036 = vpop.f32.mrf.mxu0
      %v5037 = vadd.f32 0.0, %v5036
      %v5038 = vpop.f32.mrf.mxu0
      %5039 = vmatprep.mubr.bf16.mxu0 0
      %5040 = vmatmul.mubr.bf16.gmra.mxu0 %v4991
      %v5041 = vpop.f32.mrf.mxu0
      %v5042 = vadd.f32 0.0, %v5041
      %v5043 = vpop.f32.mrf.mxu0
      %v5044 = vpop.f32.mrf.mxu0
      %v5045 = vadd.f32 0.0, %v5044
      %v5046 = vpop.f32.mrf.mxu0
      %5047 = vmatprep.mubr.bf16.mxu0 0
      %5048 = vmatmul.mubr.bf16.gmra.mxu0 %v4994
      %v5049 = vpop.f32.mrf.mxu0
      %v5050 = vadd.f32 0.0, %v5049
      %v5051 = vpop.f32.mrf.mxu0
      %v5052 = vpop.f32.mrf.mxu0
      %v5053 = vadd.f32 0.0, %v5052
      %v5054 = vpop.f32.mrf.mxu0
      %5055 = vmatprep.mubr.bf16.mxu0 0
      %5056 = vmatmul.mubr.bf16.gmra.mxu0 %v4997
      %v5057 = vpop.f32.mrf.mxu0
      %v5058 = vadd.f32 0.0, %v5057
      %v5059 = vpop.f32.mrf.mxu0
      %v5060 = vpop.f32.mrf.mxu0
      %v5061 = vadd.f32 0.0, %v5060
      %v5062 = vpop.f32.mrf.mxu0
      %5063 = vdwg.mxu0
      %v5064 = vpack.c.bf16 %v5037, %v5034
      %v5065 = vpack.c.bf16 %v5045, %v5042
      %v5066 = vpack.c.bf16 %v5053, %v5050
      %v5067 = vpack.c.bf16 %v5061, %v5058
      %s5068 = scalar_lea.vmem %s14, 32
      %v5069 = vld [vmem:[%s5068] sm:$0xf]
      %v5070 = vld [vmem:[%s5068 + $0x4] sm:$0x3]
      %5075 = vrot.lane.b32.xlu0 %v4774, 116
      %v5076 = vpop.permute.xlu0 %5075
      %5077 = vrot.lane.b32.xlu0 %v4775, 116
      %v5078 = vpop.permute.xlu0 %5077
      %5079 = vrot.lane.b32.xlu0 %v4776, 116
      %v5080 = vpop.permute.xlu0 %5079
      %5081 = vrot.lane.b32.xlu0 %v4777, 116
      %v5082 = vpop.permute.xlu0 %5081
      %5083 = vrot.lane.b32.xlu0 %v4778, 68
      %v5084 = vpop.permute.xlu0 %5083
      %5085 = vrot.lane.b32.xlu0 %v4779, 68
      %v5086 = vpop.permute.xlu0 %5085
      %5087 = vrot.lane.b32.xlu0 %v4780, 68
      %v5088 = vpop.permute.xlu0 %5087
      %5089 = vrot.lane.b32.xlu0 %v4781, 68
      %v5090 = vpop.permute.xlu0 %5089
      %v5092 = vsel %vm1905, %v5076, 0
      %v5095 = vsel %vm1905, %v5078, 0
      %v5098 = vsel %vm1905, %v5080, 0
      %v5101 = vsel %vm1905, %v5082, 0
      %v5104 = vsel %vm1905, %v5084, 0
      %v5107 = vsel %vm1905, %v5086, 0
      %v5110 = vsel %vm1905, %v5088, 0
      %v5113 = vsel %vm1905, %v5090, 0
      %5115 = vmatprep.subr.bf16.mxu0 0
      %5116 = vmatpush1.bf16.xpose.msra.mxu0 0
      %5117 = vmatprep.subr.bf16.mxu0 0
      %5118 = vmatpush1.bf16.xpose.msra.mxu0 0
      %5119 = vmatprep.subr.bf16.mxu0 0
      %5120 = vmatpush1.bf16.xpose.msra.mxu0 0
      %5121 = vmatprep.subr.bf16.mxu0 0
      %5122 = vmatpush1.bf16.xpose.msra.mxu0 0
      %5123 = vmatprep.subr.bf16.mxu0 0
      %5124 = vmatpush1.bf16.xpose.msra.mxu0 %v5113
      %5125 = vmatprep.subr.bf16.mxu0 0
      %5126 = vmatpush1.bf16.xpose.msra.mxu0 %v5110
      %5127 = vmatprep.subr.bf16.mxu0 0
      %5128 = vmatpush1.bf16.xpose.msra.mxu0 %v5107
      %5129 = vmatprep.subr.bf16.mxu0 0
      %5130 = vmatpush1.bf16.xpose.msra.mxu0 %v5104
      %5131 = vmatprep.subr.bf16.mxu0 0
      %5132 = vmatpush2.bf16.xpose.msra.mxu0 0
      %5133 = vmatprep.subr.bf16.mxu0 0
      %5134 = vmatpush2.bf16.xpose.msra.mxu0 0
      %5135 = vmatprep.subr.bf16.mxu0 0
      %5136 = vmatpush2.bf16.xpose.msra.mxu0 0
      %5137 = vmatprep.subr.bf16.mxu0 0
      %5138 = vmatpush2.bf16.xpose.msra.mxu0 0
      %5139 = vmatprep.subr.bf16.mxu0 0
      %5140 = vmatpush2.bf16.xpose.msra.mxu0 0
      %5141 = vmatprep.subr.bf16.mxu0 0
      %5142 = vmatpush2.bf16.xpose.msra.mxu0 0
      %5143 = vmatprep.subr.bf16.mxu0 0
      %5144 = vmatpush2.bf16.xpose.msra.mxu0 0
      %5145 = vmatprep.subr.bf16.mxu0 0
      %5146 = vmatpush2.bf16.xpose.msra.mxu0 0
      %5147 = vmatprep.mubr.bf16.mxu0 0
      %5148 = vmatmul.mubr.bf16.gmra.mxu0 %v5092
      %v5149 = vpop.f32.mrf.mxu0
      %v5150 = vadd.f32 0.0, %v5149
      %v5151 = vpop.f32.mrf.mxu0
      %v5152 = vpop.f32.mrf.mxu0
      %v5153 = vadd.f32 0.0, %v5152
      %v5154 = vpop.f32.mrf.mxu0
      %5155 = vmatprep.mubr.bf16.mxu0 0
      %5156 = vmatmul.mubr.bf16.gmra.mxu0 %v5095
      %v5157 = vpop.f32.mrf.mxu0
      %v5158 = vadd.f32 0.0, %v5157
      %v5159 = vpop.f32.mrf.mxu0
      %v5160 = vpop.f32.mrf.mxu0
      %v5161 = vadd.f32 0.0, %v5160
      %v5162 = vpop.f32.mrf.mxu0
      %5163 = vmatprep.mubr.bf16.mxu0 0
      %5164 = vmatmul.mubr.bf16.gmra.mxu0 %v5098
      %v5165 = vpop.f32.mrf.mxu0
      %v5166 = vadd.f32 0.0, %v5165
      %v5167 = vpop.f32.mrf.mxu0
      %v5168 = vpop.f32.mrf.mxu0
      %v5169 = vadd.f32 0.0, %v5168
      %v5170 = vpop.f32.mrf.mxu0
      %5171 = vmatprep.mubr.bf16.mxu0 0
      %5172 = vmatmul.mubr.bf16.gmra.mxu0 %v5101
      %v5173 = vpop.f32.mrf.mxu0
      %v5174 = vadd.f32 0.0, %v5173
      %v5175 = vpop.f32.mrf.mxu0
      %v5176 = vpop.f32.mrf.mxu0
      %v5177 = vadd.f32 0.0, %v5176
      %v5178 = vpop.f32.mrf.mxu0
      %5179 = vdwg.mxu0
      %v5180 = vsel %vm1113, %v5150, -inf
      %5181 = vmax.xlane.f32.xlu0 %v5180
      %v5182 = vpop.xlane.xlu0 %5181
      %v5183 = vsel %vm1113, %v5153, -inf
      %5184 = vmax.xlane.f32.xlu0 %v5183
      %v5185 = vpop.xlane.xlu0 %5184
      %v5186 = vsel %vm1113, %v5158, -inf
      %5187 = vmax.xlane.f32.xlu0 %v5186
      %v5188 = vpop.xlane.xlu0 %5187
      %v5189 = vsel %vm1113, %v5161, -inf
      %5190 = vmax.xlane.f32.xlu0 %v5189
      %v5191 = vpop.xlane.xlu0 %5190
      %v5192 = vsel %vm1113, %v5166, -inf
      %5193 = vmax.xlane.f32.xlu0 %v5192
      %v5194 = vpop.xlane.xlu0 %5193
      %v5195 = vsel %vm1113, %v5169, -inf
      %5196 = vmax.xlane.f32.xlu0 %v5195
      %v5197 = vpop.xlane.xlu0 %5196
      %v5198 = vsel %vm1113, %v5174, -inf
      %5199 = vmax.xlane.f32.xlu0 %v5198
      %v5200 = vpop.xlane.xlu0 %5199
      %v5201 = vsel %vm1113, %v5177, -inf
      %5202 = vmax.xlane.f32.xlu0 %v5201
      %v5203 = vpop.xlane.xlu0 %5202
      %v5204 = vsub.f32 %v5150, %v5182
      %v5205 = vsub.f32 %v5153, %v5185
      %v5206 = vsub.f32 %v5158, %v5188
      %v5207 = vsub.f32 %v5161, %v5191
      %v5208 = vsub.f32 %v5166, %v5194
      %v5209 = vsub.f32 %v5169, %v5197
      %v5210 = vsub.f32 %v5174, %v5200
      %v5211 = vsub.f32 %v5177, %v5203
      %v5212 = vmul.f32 %v5204, 1.442695
      %v5213 = vpow.pop %v5212
      %v5214 = vmul.f32 %v5205, 1.442695
      %v5215 = vpow.pop %v5214
      %v5216 = vmul.f32 %v5206, 1.442695
      %v5217 = vpow.pop %v5216
      %v5218 = vmul.f32 %v5207, 1.442695
      %v5219 = vpow.pop %v5218
      %v5220 = vmul.f32 %v5208, 1.442695
      %v5221 = vpow.pop %v5220
      %v5222 = vmul.f32 %v5209, 1.442695
      %v5223 = vpow.pop %v5222
      %v5224 = vmul.f32 %v5210, 1.442695
      %v5225 = vpow.pop %v5224
      %v5226 = vmul.f32 %v5211, 1.442695
      %v5227 = vpow.pop %v5226
      %v5228 = vsel %vm1113, %v5213, 0.0
      %5229 = vadd.xlane.f32.xlu0 %v5228
      %v5230 = vpop.xlane.xlu0 %5229
      %v5231 = vsel %vm1113, %v5215, 0.0
      %5232 = vadd.xlane.f32.xlu0 %v5231
      %v5233 = vpop.xlane.xlu0 %5232
      %v5234 = vsel %vm1113, %v5217, 0.0
      %5235 = vadd.xlane.f32.xlu0 %v5234
      %v5236 = vpop.xlane.xlu0 %5235
      %v5237 = vsel %vm1113, %v5219, 0.0
      %5238 = vadd.xlane.f32.xlu0 %v5237
      %v5239 = vpop.xlane.xlu0 %5238
      %v5240 = vsel %vm1113, %v5221, 0.0
      %5241 = vadd.xlane.f32.xlu0 %v5240
      %v5242 = vpop.xlane.xlu0 %5241
      %v5243 = vsel %vm1113, %v5223, 0.0
      %5244 = vadd.xlane.f32.xlu0 %v5243
      %v5245 = vpop.xlane.xlu0 %5244
      %v5246 = vsel %vm1113, %v5225, 0.0
      %5247 = vadd.xlane.f32.xlu0 %v5246
      %v5248 = vpop.xlane.xlu0 %5247
      %v5249 = vsel %vm1113, %v5227, 0.0
      %5250 = vadd.xlane.f32.xlu0 %v5249
      %v5251 = vpop.xlane.xlu0 %5250
      %v5252 = vrcp.pop %v5230
      %v5253 = vrcp.pop %v5233
      %v5254 = vrcp.pop %v5236
      %v5255 = vrcp.pop %v5239
      %v5256 = vrcp.pop %v5242
      %v5257 = vrcp.pop %v5245
      %v5258 = vrcp.pop %v5248
      %v5259 = vrcp.pop %v5251
      %v5260 = vmul.f32 %v5213, %v5252
      %v5261 = vmul.f32 %v5215, %v5253
      %v5262 = vmul.f32 %v5217, %v5254
      %v5263 = vmul.f32 %v5219, %v5255
      %v5264 = vmul.f32 %v5221, %v5256
      %v5265 = vmul.f32 %v5223, %v5257
      %v5266 = vmul.f32 %v5225, %v5258
      %v5267 = vmul.f32 %v5227, %v5259
      %v5268 = vpack.c.bf16 %v5261, %v5260
      %v5269 = vpack.c.bf16 %v5263, %v5262
      %v5270 = vpack.c.bf16 %v5265, %v5264
      %v5271 = vpack.c.bf16 %v5267, %v5266
      %5272 = vrot.lane.b32.xlu0 %v4778, 20
      %v5273 = vpop.permute.xlu0 %5272
      %5274 = vrot.lane.b32.xlu0 %v4779, 20
      %v5275 = vpop.permute.xlu0 %5274
      %5276 = vrot.lane.b32.xlu0 %v4780, 20
      %v5277 = vpop.permute.xlu0 %5276
      %5278 = vrot.lane.b32.xlu0 %v4781, 20
      %v5279 = vpop.permute.xlu0 %5278
      %v5285 = vsel %vm1113, %v5268, 0
      %v5288 = vsel %vm1113, %v5269, 0
      %v5291 = vsel %vm1113, %v5270, 0
      %v5294 = vsel %vm1113, %v5271, 0
      %5296 = vmatprep.subr.bf16.mxu0 0
      %5297 = vmatpush1.bf16.msra.mxu0 0
      %5298 = vmatprep.subr.bf16.mxu0 0
      %5299 = vmatpush1.bf16.msra.mxu0 0
      %5300 = vmatprep.subr.bf16.mxu0 0
      %5301 = vmatpush1.bf16.msra.mxu0 0
      %5302 = vmatprep.subr.bf16.mxu0 0
      %5303 = vmatpush1.bf16.msra.mxu0 0
      %5304 = vmatprep.subr.bf16.mxu0 0
      %5305 = vmatpush1.bf16.msra.mxu0 %v5279
      %5306 = vmatprep.subr.bf16.mxu0 0
      %5307 = vmatpush1.bf16.msra.mxu0 %v5277
      %5308 = vmatprep.subr.bf16.mxu0 0
      %5309 = vmatpush1.bf16.msra.mxu0 %v5275
      %5310 = vmatprep.subr.bf16.mxu0 0
      %5311 = vmatpush1.bf16.msra.mxu0 %v5273
      %5312 = vmatprep.subr.bf16.mxu0 0
      %5313 = vmatpush2.bf16.msra.mxu0 0
      %5314 = vmatprep.subr.bf16.mxu0 0
      %5315 = vmatpush2.bf16.msra.mxu0 0
      %5316 = vmatprep.subr.bf16.mxu0 0
      %5317 = vmatpush2.bf16.msra.mxu0 0
      %5318 = vmatprep.subr.bf16.mxu0 0
      %5319 = vmatpush2.bf16.msra.mxu0 0
      %5320 = vmatprep.subr.bf16.mxu0 0
      %5321 = vmatpush2.bf16.msra.mxu0 0
      %5322 = vmatprep.subr.bf16.mxu0 0
      %5323 = vmatpush2.bf16.msra.mxu0 0
      %5324 = vmatprep.subr.bf16.mxu0 0
      %5325 = vmatpush2.bf16.msra.mxu0 0
      %5326 = vmatprep.subr.bf16.mxu0 0
      %5327 = vmatpush2.bf16.msra.mxu0 0
      %5328 = vmatprep.mubr.bf16.mxu0 0
      %5329 = vmatmul.mubr.bf16.gmra.mxu0 %v5285
      %v5330 = vpop.f32.mrf.mxu0
      %v5331 = vadd.f32 0.0, %v5330
      %v5332 = vpop.f32.mrf.mxu0
      %v5333 = vpop.f32.mrf.mxu0
      %v5334 = vadd.f32 0.0, %v5333
      %v5335 = vpop.f32.mrf.mxu0
      %5336 = vmatprep.mubr.bf16.mxu0 0
      %5337 = vmatmul.mubr.bf16.gmra.mxu0 %v5288
      %v5338 = vpop.f32.mrf.mxu0
      %v5339 = vadd.f32 0.0, %v5338
      %v5340 = vpop.f32.mrf.mxu0
      %v5341 = vpop.f32.mrf.mxu0
      %v5342 = vadd.f32 0.0, %v5341
      %v5343 = vpop.f32.mrf.mxu0
      %5344 = vmatprep.mubr.bf16.mxu0 0
      %5345 = vmatmul.mubr.bf16.gmra.mxu0 %v5291
      %v5346 = vpop.f32.mrf.mxu0
      %v5347 = vadd.f32 0.0, %v5346
      %v5348 = vpop.f32.mrf.mxu0
      %v5349 = vpop.f32.mrf.mxu0
      %v5350 = vadd.f32 0.0, %v5349
      %v5351 = vpop.f32.mrf.mxu0
      %5352 = vmatprep.mubr.bf16.mxu0 0
      %5353 = vmatmul.mubr.bf16.gmra.mxu0 %v5294
      %v5354 = vpop.f32.mrf.mxu0
      %v5355 = vadd.f32 0.0, %v5354
      %v5356 = vpop.f32.mrf.mxu0
      %v5357 = vpop.f32.mrf.mxu0
      %v5358 = vadd.f32 0.0, %v5357
      %v5359 = vpop.f32.mrf.mxu0
      %5360 = vdwg.mxu0
      %v5361 = vpack.c.bf16 %v5334, %v5331
      %v5362 = vpack.c.bf16 %v5342, %v5339
      %v5363 = vpack.c.bf16 %v5350, %v5347
      %v5364 = vpack.c.bf16 %v5358, %v5355
      %s5365 = scalar_lea.vmem %s14, 40
      %v5366 = vld [vmem:[%s5365] sm:$0xf]
      %v5367 = vld [vmem:[%s5365 + $0x4] sm:$0x3]
      %v5370 = vunpack.c.l.b16 %v5366
      %v5371 = vunpack.c.l.b16 %v5367
      %v5372 = vpack.c.b16 %v5371, %v5370
      %v5374 = vsel %vm1905, %v5361, 0
      %v5377 = vsel %vm1905, %v5362, 0
      %v5380 = vsel %vm1905, %v5363, 0
      %v5383 = vsel %vm1905, %v5364, 0
      %v5386 = vsel %vm2496, %v5372, 0
      %5388 = vmatprep.subr.bf16.mxu0 0
      %5389 = vmatpush1.bf16.msra.mxu0 0
      %5390 = vmatprep.subr.bf16.mxu0 0
      %5391 = vmatpush1.bf16.msra.mxu0 0
      %5392 = vmatprep.subr.bf16.mxu0 0
      %5393 = vmatpush1.bf16.msra.mxu0 0
      %5394 = vmatprep.subr.bf16.mxu0 0
      %5395 = vmatpush1.bf16.msra.mxu0 0
      %5396 = vmatprep.subr.bf16.mxu0 0
      %5397 = vmatpush1.bf16.msra.mxu0 0
      %5398 = vmatprep.subr.bf16.mxu0 0
      %5399 = vmatpush1.bf16.msra.mxu0 0
      %5400 = vmatprep.subr.bf16.mxu0 0
      %5401 = vmatpush1.bf16.msra.mxu0 0
      %5402 = vmatprep.subr.bf16.mxu0 0
      %5403 = vmatpush1.bf16.msra.mxu0 %v5386
      %5404 = vmatprep.subr.bf16.mxu0 0
      %5405 = vmatpush2.bf16.msra.mxu0 0
      %5406 = vmatprep.subr.bf16.mxu0 0
      %5407 = vmatpush2.bf16.msra.mxu0 0
      %5408 = vmatprep.subr.bf16.mxu0 0
      %5409 = vmatpush2.bf16.msra.mxu0 0
      %5410 = vmatprep.subr.bf16.mxu0 0
      %5411 = vmatpush2.bf16.msra.mxu0 0
      %5412 = vmatprep.subr.bf16.mxu0 0
      %5413 = vmatpush2.bf16.msra.mxu0 0
      %5414 = vmatprep.subr.bf16.mxu0 0
      %5415 = vmatpush2.bf16.msra.mxu0 0
      %5416 = vmatprep.subr.bf16.mxu0 0
      %5417 = vmatpush2.bf16.msra.mxu0 0
      %5418 = vmatprep.subr.bf16.mxu0 0
      %5419 = vmatpush2.bf16.msra.mxu0 0
      %5420 = vmatprep.mubr.bf16.mxu0 0
      %5421 = vmatmul.mubr.bf16.gmra.mxu0 %v5374
      %v5422 = vpop.f32.mrf.mxu0
      %v5423 = vadd.f32 0.0, %v5422
      %v5424 = vpop.f32.mrf.mxu0
      %v5425 = vpop.f32.mrf.mxu0
      %v5426 = vadd.f32 0.0, %v5425
      %v5427 = vpop.f32.mrf.mxu0
      %5428 = vmatprep.mubr.bf16.mxu0 0
      %5429 = vmatmul.mubr.bf16.gmra.mxu0 %v5377
      %v5430 = vpop.f32.mrf.mxu0
      %v5431 = vadd.f32 0.0, %v5430
      %v5432 = vpop.f32.mrf.mxu0
      %v5433 = vpop.f32.mrf.mxu0
      %v5434 = vadd.f32 0.0, %v5433
      %v5435 = vpop.f32.mrf.mxu0
      %5436 = vmatprep.mubr.bf16.mxu0 0
      %5437 = vmatmul.mubr.bf16.gmra.mxu0 %v5380
      %v5438 = vpop.f32.mrf.mxu0
      %v5439 = vadd.f32 0.0, %v5438
      %v5440 = vpop.f32.mrf.mxu0
      %v5441 = vpop.f32.mrf.mxu0
      %v5442 = vadd.f32 0.0, %v5441
      %v5443 = vpop.f32.mrf.mxu0
      %5444 = vmatprep.mubr.bf16.mxu0 0
      %5445 = vmatmul.mubr.bf16.gmra.mxu0 %v5383
      %v5446 = vpop.f32.mrf.mxu0
      %v5447 = vadd.f32 0.0, %v5446
      %v5448 = vpop.f32.mrf.mxu0
      %v5449 = vpop.f32.mrf.mxu0
      %v5450 = vadd.f32 0.0, %v5449
      %v5451 = vpop.f32.mrf.mxu0
      %5452 = vdwg.mxu0
      %v5455 = vunpack.c.l.b16 %v5069
      %v5456 = vunpack.c.l.b16 %v5070
      %v5457 = vpack.c.b16 %v5456, %v5455
      %v5459 = vsel %vm1905, %v5064, 0
      %v5462 = vsel %vm1905, %v5065, 0
      %v5465 = vsel %vm1905, %v5066, 0
      %v5468 = vsel %vm1905, %v5067, 0
      %v5471 = vsel %vm2496, %v5457, 0
      %5473 = vmatprep.subr.bf16.mxu0 0
      %5474 = vmatpush1.bf16.msra.mxu0 0
      %5475 = vmatprep.subr.bf16.mxu0 0
      %5476 = vmatpush1.bf16.msra.mxu0 0
      %5477 = vmatprep.subr.bf16.mxu0 0
      %5478 = vmatpush1.bf16.msra.mxu0 0
      %5479 = vmatprep.subr.bf16.mxu0 0
      %5480 = vmatpush1.bf16.msra.mxu0 0
      %5481 = vmatprep.subr.bf16.mxu0 0
      %5482 = vmatpush1.bf16.msra.mxu0 0
      %5483 = vmatprep.subr.bf16.mxu0 0
      %5484 = vmatpush1.bf16.msra.mxu0 0
      %5485 = vmatprep.subr.bf16.mxu0 0
      %5486 = vmatpush1.bf16.msra.mxu0 0
      %5487 = vmatprep.subr.bf16.mxu0 0
      %5488 = vmatpush1.bf16.msra.mxu0 %v5471
      %5489 = vmatprep.subr.bf16.mxu0 0
      %5490 = vmatpush2.bf16.msra.mxu0 0
      %5491 = vmatprep.subr.bf16.mxu0 0
      %5492 = vmatpush2.bf16.msra.mxu0 0
      %5493 = vmatprep.subr.bf16.mxu0 0
      %5494 = vmatpush2.bf16.msra.mxu0 0
      %5495 = vmatprep.subr.bf16.mxu0 0
      %5496 = vmatpush2.bf16.msra.mxu0 0
      %5497 = vmatprep.subr.bf16.mxu0 0
      %5498 = vmatpush2.bf16.msra.mxu0 0
      %5499 = vmatprep.subr.bf16.mxu0 0
      %5500 = vmatpush2.bf16.msra.mxu0 0
      %5501 = vmatprep.subr.bf16.mxu0 0
      %5502 = vmatpush2.bf16.msra.mxu0 0
      %5503 = vmatprep.subr.bf16.mxu0 0
      %5504 = vmatpush2.bf16.msra.mxu0 0
      %5505 = vmatprep.mubr.bf16.mxu0 0
      %5506 = vmatmul.mubr.bf16.gmra.mxu0 %v5459
      %v5507 = vpop.f32.mrf.mxu0
      %v5508 = vadd.f32 %v5423, %v5507
      %v5509 = vpop.f32.mrf.mxu0
      %v5510 = vpop.f32.mrf.mxu0
      %v5511 = vadd.f32 %v5426, %v5510
      %v5512 = vpop.f32.mrf.mxu0
      %5513 = vmatprep.mubr.bf16.mxu0 0
      %5514 = vmatmul.mubr.bf16.gmra.mxu0 %v5462
      %v5515 = vpop.f32.mrf.mxu0
      %v5516 = vadd.f32 %v5431, %v5515
      %v5517 = vpop.f32.mrf.mxu0
      %v5518 = vpop.f32.mrf.mxu0
      %v5519 = vadd.f32 %v5434, %v5518
      %v5520 = vpop.f32.mrf.mxu0
      %5521 = vmatprep.mubr.bf16.mxu0 0
      %5522 = vmatmul.mubr.bf16.gmra.mxu0 %v5465
      %v5523 = vpop.f32.mrf.mxu0
      %v5524 = vadd.f32 %v5439, %v5523
      %v5525 = vpop.f32.mrf.mxu0
      %v5526 = vpop.f32.mrf.mxu0
      %v5527 = vadd.f32 %v5442, %v5526
      %v5528 = vpop.f32.mrf.mxu0
      %5529 = vmatprep.mubr.bf16.mxu0 0
      %5530 = vmatmul.mubr.bf16.gmra.mxu0 %v5468
      %v5531 = vpop.f32.mrf.mxu0
      %v5532 = vadd.f32 %v5447, %v5531
      %v5533 = vpop.f32.mrf.mxu0
      %v5534 = vpop.f32.mrf.mxu0
      %v5535 = vadd.f32 %v5450, %v5534
      %v5536 = vpop.f32.mrf.mxu0
      %5537 = vdwg.mxu0
      %5538 = vrot.lane.b32.xlu0 %v4774, 104
      %v5539 = vpop.permute.xlu0 %5538
      %5540 = vrot.lane.b32.xlu0 %v4775, 104
      %v5541 = vpop.permute.xlu0 %5540
      %5542 = vrot.lane.b32.xlu0 %v4776, 104
      %v5543 = vpop.permute.xlu0 %5542
      %5544 = vrot.lane.b32.xlu0 %v4777, 104
      %v5545 = vpop.permute.xlu0 %5544
      %5546 = vrot.lane.b32.xlu0 %v4778, 56
      %v5547 = vpop.permute.xlu0 %5546
      %5548 = vrot.lane.b32.xlu0 %v4779, 56
      %v5549 = vpop.permute.xlu0 %5548
      %5550 = vrot.lane.b32.xlu0 %v4780, 56
      %v5551 = vpop.permute.xlu0 %5550
      %5552 = vrot.lane.b32.xlu0 %v4781, 56
      %v5553 = vpop.permute.xlu0 %5552
      %v5555 = vsel %vm1905, %v5539, 0
      %v5558 = vsel %vm1905, %v5541, 0
      %v5561 = vsel %vm1905, %v5543, 0
      %v5564 = vsel %vm1905, %v5545, 0
      %v5567 = vsel %vm1905, %v5547, 0
      %v5570 = vsel %vm1905, %v5549, 0
      %v5573 = vsel %vm1905, %v5551, 0
      %v5576 = vsel %vm1905, %v5553, 0
      %5578 = vmatprep.subr.bf16.mxu0 0
      %5579 = vmatpush1.bf16.xpose.msra.mxu0 0
      %5580 = vmatprep.subr.bf16.mxu0 0
      %5581 = vmatpush1.bf16.xpose.msra.mxu0 0
      %5582 = vmatprep.subr.bf16.mxu0 0
      %5583 = vmatpush1.bf16.xpose.msra.mxu0 0
      %5584 = vmatprep.subr.bf16.mxu0 0
      %5585 = vmatpush1.bf16.xpose.msra.mxu0 0
      %5586 = vmatprep.subr.bf16.mxu0 0
      %5587 = vmatpush1.bf16.xpose.msra.mxu0 %v5576
      %5588 = vmatprep.subr.bf16.mxu0 0
      %5589 = vmatpush1.bf16.xpose.msra.mxu0 %v5573
      %5590 = vmatprep.subr.bf16.mxu0 0
      %5591 = vmatpush1.bf16.xpose.msra.mxu0 %v5570
      %5592 = vmatprep.subr.bf16.mxu0 0
      %5593 = vmatpush1.bf16.xpose.msra.mxu0 %v5567
      %5594 = vmatprep.subr.bf16.mxu0 0
      %5595 = vmatpush2.bf16.xpose.msra.mxu0 0
      %5596 = vmatprep.subr.bf16.mxu0 0
      %5597 = vmatpush2.bf16.xpose.msra.mxu0 0
      %5598 = vmatprep.subr.bf16.mxu0 0
      %5599 = vmatpush2.bf16.xpose.msra.mxu0 0
      %5600 = vmatprep.subr.bf16.mxu0 0
      %5601 = vmatpush2.bf16.xpose.msra.mxu0 0
      %5602 = vmatprep.subr.bf16.mxu0 0
      %5603 = vmatpush2.bf16.xpose.msra.mxu0 0
      %5604 = vmatprep.subr.bf16.mxu0 0
      %5605 = vmatpush2.bf16.xpose.msra.mxu0 0
      %5606 = vmatprep.subr.bf16.mxu0 0
      %5607 = vmatpush2.bf16.xpose.msra.mxu0 0
      %5608 = vmatprep.subr.bf16.mxu0 0
      %5609 = vmatpush2.bf16.xpose.msra.mxu0 0
      %5610 = vmatprep.mubr.bf16.mxu0 0
      %5611 = vmatmul.mubr.bf16.gmra.mxu0 %v5555
      %v5612 = vpop.f32.mrf.mxu0
      %v5613 = vadd.f32 0.0, %v5612
      %v5614 = vpop.f32.mrf.mxu0
      %v5615 = vpop.f32.mrf.mxu0
      %v5616 = vadd.f32 0.0, %v5615
      %v5617 = vpop.f32.mrf.mxu0
      %5618 = vmatprep.mubr.bf16.mxu0 0
      %5619 = vmatmul.mubr.bf16.gmra.mxu0 %v5558
      %v5620 = vpop.f32.mrf.mxu0
      %v5621 = vadd.f32 0.0, %v5620
      %v5622 = vpop.f32.mrf.mxu0
      %v5623 = vpop.f32.mrf.mxu0
      %v5624 = vadd.f32 0.0, %v5623
      %v5625 = vpop.f32.mrf.mxu0
      %5626 = vmatprep.mubr.bf16.mxu0 0
      %5627 = vmatmul.mubr.bf16.gmra.mxu0 %v5561
      %v5628 = vpop.f32.mrf.mxu0
      %v5629 = vadd.f32 0.0, %v5628
      %v5630 = vpop.f32.mrf.mxu0
      %v5631 = vpop.f32.mrf.mxu0
      %v5632 = vadd.f32 0.0, %v5631
      %v5633 = vpop.f32.mrf.mxu0
      %5634 = vmatprep.mubr.bf16.mxu0 0
      %5635 = vmatmul.mubr.bf16.gmra.mxu0 %v5564
      %v5636 = vpop.f32.mrf.mxu0
      %v5637 = vadd.f32 0.0, %v5636
      %v5638 = vpop.f32.mrf.mxu0
      %v5639 = vpop.f32.mrf.mxu0
      %v5640 = vadd.f32 0.0, %v5639
      %v5641 = vpop.f32.mrf.mxu0
      %5642 = vdwg.mxu0
      %v5643 = vsel %vm1113, %v5613, -inf
      %5644 = vmax.xlane.f32.xlu0 %v5643
      %v5645 = vpop.xlane.xlu0 %5644
      %v5646 = vsel %vm1113, %v5616, -inf
      %5647 = vmax.xlane.f32.xlu0 %v5646
      %v5648 = vpop.xlane.xlu0 %5647
      %v5649 = vsel %vm1113, %v5621, -inf
      %5650 = vmax.xlane.f32.xlu0 %v5649
      %v5651 = vpop.xlane.xlu0 %5650
      %v5652 = vsel %vm1113, %v5624, -inf
      %5653 = vmax.xlane.f32.xlu0 %v5652
      %v5654 = vpop.xlane.xlu0 %5653
      %v5655 = vsel %vm1113, %v5629, -inf
      %5656 = vmax.xlane.f32.xlu0 %v5655
      %v5657 = vpop.xlane.xlu0 %5656
      %v5658 = vsel %vm1113, %v5632, -inf
      %5659 = vmax.xlane.f32.xlu0 %v5658
      %v5660 = vpop.xlane.xlu0 %5659
      %v5661 = vsel %vm1113, %v5637, -inf
      %5662 = vmax.xlane.f32.xlu0 %v5661
      %v5663 = vpop.xlane.xlu0 %5662
      %v5664 = vsel %vm1113, %v5640, -inf
      %5665 = vmax.xlane.f32.xlu0 %v5664
      %v5666 = vpop.xlane.xlu0 %5665
      %v5667 = vsub.f32 %v5613, %v5645
      %v5668 = vsub.f32 %v5616, %v5648
      %v5669 = vsub.f32 %v5621, %v5651
      %v5670 = vsub.f32 %v5624, %v5654
      %v5671 = vsub.f32 %v5629, %v5657
      %v5672 = vsub.f32 %v5632, %v5660
      %v5673 = vsub.f32 %v5637, %v5663
      %v5674 = vsub.f32 %v5640, %v5666
      %v5675 = vmul.f32 %v5667, 1.442695
      %v5676 = vpow.pop %v5675
      %v5677 = vmul.f32 %v5668, 1.442695
      %v5678 = vpow.pop %v5677
      %v5679 = vmul.f32 %v5669, 1.442695
      %v5680 = vpow.pop %v5679
      %v5681 = vmul.f32 %v5670, 1.442695
      %v5682 = vpow.pop %v5681
      %v5683 = vmul.f32 %v5671, 1.442695
      %v5684 = vpow.pop %v5683
      %v5685 = vmul.f32 %v5672, 1.442695
      %v5686 = vpow.pop %v5685
      %v5687 = vmul.f32 %v5673, 1.442695
      %v5688 = vpow.pop %v5687
      %v5689 = vmul.f32 %v5674, 1.442695
      %v5690 = vpow.pop %v5689
      %v5691 = vsel %vm1113, %v5676, 0.0
      %5692 = vadd.xlane.f32.xlu0 %v5691
      %v5693 = vpop.xlane.xlu0 %5692
      %v5694 = vsel %vm1113, %v5678, 0.0
      %5695 = vadd.xlane.f32.xlu0 %v5694
      %v5696 = vpop.xlane.xlu0 %5695
      %v5697 = vsel %vm1113, %v5680, 0.0
      %5698 = vadd.xlane.f32.xlu0 %v5697
      %v5699 = vpop.xlane.xlu0 %5698
      %v5700 = vsel %vm1113, %v5682, 0.0
      %5701 = vadd.xlane.f32.xlu0 %v5700
      %v5702 = vpop.xlane.xlu0 %5701
      %v5703 = vsel %vm1113, %v5684, 0.0
      %5704 = vadd.xlane.f32.xlu0 %v5703
      %v5705 = vpop.xlane.xlu0 %5704
      %v5706 = vsel %vm1113, %v5686, 0.0
      %5707 = vadd.xlane.f32.xlu0 %v5706
      %v5708 = vpop.xlane.xlu0 %5707
      %v5709 = vsel %vm1113, %v5688, 0.0
      %5710 = vadd.xlane.f32.xlu0 %v5709
      %v5711 = vpop.xlane.xlu0 %5710
      %v5712 = vsel %vm1113, %v5690, 0.0
      %5713 = vadd.xlane.f32.xlu0 %v5712
      %v5714 = vpop.xlane.xlu0 %5713
      %v5715 = vrcp.pop %v5693
      %v5716 = vrcp.pop %v5696
      %v5717 = vrcp.pop %v5699
      %v5718 = vrcp.pop %v5702
      %v5719 = vrcp.pop %v5705
      %v5720 = vrcp.pop %v5708
      %v5721 = vrcp.pop %v5711
      %v5722 = vrcp.pop %v5714
      %v5723 = vmul.f32 %v5676, %v5715
      %v5724 = vmul.f32 %v5678, %v5716
      %v5725 = vmul.f32 %v5680, %v5717
      %v5726 = vmul.f32 %v5682, %v5718
      %v5727 = vmul.f32 %v5684, %v5719
      %v5728 = vmul.f32 %v5686, %v5720
      %v5729 = vmul.f32 %v5688, %v5721
      %v5730 = vmul.f32 %v5690, %v5722
      %v5731 = vpack.c.bf16 %v5724, %v5723
      %v5732 = vpack.c.bf16 %v5726, %v5725
      %v5733 = vpack.c.bf16 %v5728, %v5727
      %v5734 = vpack.c.bf16 %v5730, %v5729
      %v5735 = vpack.c.bf16 %v4734, %v4730
      %v5736 = vpack.c.bf16 %v4744, %v4740
      %v5737 = vpack.c.bf16 %v4754, %v4750
      %v5738 = vpack.c.bf16 %v4764, %v4760
      %5743 = vrot.lane.b32.xlu0 %v4778, 8
      %v5744 = vpop.permute.xlu0 %5743
      %5745 = vrot.lane.b32.xlu0 %v5735, 8
      %v5746 = vpop.permute.xlu0 %5745
      %5747 = vrot.lane.b32.xlu0 %v4779, 8
      %v5748 = vpop.permute.xlu0 %5747
      %5749 = vrot.lane.b32.xlu0 %v5736, 8
      %v5750 = vpop.permute.xlu0 %5749
      %5751 = vrot.lane.b32.xlu0 %v4780, 8
      %v5752 = vpop.permute.xlu0 %5751
      %5753 = vrot.lane.b32.xlu0 %v5737, 8
      %v5754 = vpop.permute.xlu0 %5753
      %5755 = vrot.lane.b32.xlu0 %v4781, 8
      %v5756 = vpop.permute.xlu0 %5755
      %5757 = vrot.lane.b32.xlu0 %v5738, 8
      %v5758 = vpop.permute.xlu0 %5757
      %v5759 = vsel %vm2871, %v5744, %v5746
      %v5760 = vsel %vm2871, %v5748, %v5750
      %v5761 = vsel %vm2871, %v5752, %v5754
      %v5762 = vsel %vm2871, %v5756, %v5758
      %v5768 = vsel %vm1113, %v5731, 0
      %v5771 = vsel %vm1113, %v5732, 0
      %v5774 = vsel %vm1113, %v5733, 0
      %v5777 = vsel %vm1113, %v5734, 0
      %5779 = vmatprep.subr.bf16.mxu0 0
      %5780 = vmatpush1.bf16.msra.mxu0 0
      %5781 = vmatprep.subr.bf16.mxu0 0
      %5782 = vmatpush1.bf16.msra.mxu0 0
      %5783 = vmatprep.subr.bf16.mxu0 0
      %5784 = vmatpush1.bf16.msra.mxu0 0
      %5785 = vmatprep.subr.bf16.mxu0 0
      %5786 = vmatpush1.bf16.msra.mxu0 0
      %5787 = vmatprep.subr.bf16.mxu0 0
      %5788 = vmatpush1.bf16.msra.mxu0 %v5762
      %5789 = vmatprep.subr.bf16.mxu0 0
      %5790 = vmatpush1.bf16.msra.mxu0 %v5761
      %5791 = vmatprep.subr.bf16.mxu0 0
      %5792 = vmatpush1.bf16.msra.mxu0 %v5760
      %5793 = vmatprep.subr.bf16.mxu0 0
      %5794 = vmatpush1.bf16.msra.mxu0 %v5759
      %5795 = vmatprep.subr.bf16.mxu0 0
      %5796 = vmatpush2.bf16.msra.mxu0 0
      %5797 = vmatprep.subr.bf16.mxu0 0
      %5798 = vmatpush2.bf16.msra.mxu0 0
      %5799 = vmatprep.subr.bf16.mxu0 0
      %5800 = vmatpush2.bf16.msra.mxu0 0
      %5801 = vmatprep.subr.bf16.mxu0 0
      %5802 = vmatpush2.bf16.msra.mxu0 0
      %5803 = vmatprep.subr.bf16.mxu0 0
      %5804 = vmatpush2.bf16.msra.mxu0 0
      %5805 = vmatprep.subr.bf16.mxu0 0
      %5806 = vmatpush2.bf16.msra.mxu0 0
      %5807 = vmatprep.subr.bf16.mxu0 0
      %5808 = vmatpush2.bf16.msra.mxu0 0
      %5809 = vmatprep.subr.bf16.mxu0 0
      %5810 = vmatpush2.bf16.msra.mxu0 0
      %5811 = vmatprep.mubr.bf16.mxu0 0
      %5812 = vmatmul.mubr.bf16.gmra.mxu0 %v5768
      %v5813 = vpop.f32.mrf.mxu0
      %v5814 = vadd.f32 0.0, %v5813
      %v5815 = vpop.f32.mrf.mxu0
      %v5816 = vpop.f32.mrf.mxu0
      %v5817 = vadd.f32 0.0, %v5816
      %v5818 = vpop.f32.mrf.mxu0
      %5819 = vmatprep.mubr.bf16.mxu0 0
      %5820 = vmatmul.mubr.bf16.gmra.mxu0 %v5771
      %v5821 = vpop.f32.mrf.mxu0
      %v5822 = vadd.f32 0.0, %v5821
      %v5823 = vpop.f32.mrf.mxu0
      %v5824 = vpop.f32.mrf.mxu0
      %v5825 = vadd.f32 0.0, %v5824
      %v5826 = vpop.f32.mrf.mxu0
      %5827 = vmatprep.mubr.bf16.mxu0 0
      %5828 = vmatmul.mubr.bf16.gmra.mxu0 %v5774
      %v5829 = vpop.f32.mrf.mxu0
      %v5830 = vadd.f32 0.0, %v5829
      %v5831 = vpop.f32.mrf.mxu0
      %v5832 = vpop.f32.mrf.mxu0
      %v5833 = vadd.f32 0.0, %v5832
      %v5834 = vpop.f32.mrf.mxu0
      %5835 = vmatprep.mubr.bf16.mxu0 0
      %5836 = vmatmul.mubr.bf16.gmra.mxu0 %v5777
      %v5837 = vpop.f32.mrf.mxu0
      %v5838 = vadd.f32 0.0, %v5837
      %v5839 = vpop.f32.mrf.mxu0
      %v5840 = vpop.f32.mrf.mxu0
      %v5841 = vadd.f32 0.0, %v5840
      %v5842 = vpop.f32.mrf.mxu0
      %5843 = vdwg.mxu0
      %v5844 = vpack.c.bf16 %v5817, %v5814
      %v5845 = vpack.c.bf16 %v5825, %v5822
      %v5846 = vpack.c.bf16 %v5833, %v5830
      %v5847 = vpack.c.bf16 %v5841, %v5838
      %s5848 = scalar_lea.vmem %s14, 48
      %v5849 = vld [vmem:[%s5848] sm:$0xf]
      %v5850 = vld [vmem:[%s5848 + $0x4] sm:$0x3]
      %v5853 = vunpack.c.l.b16 %v5849
      %v5854 = vunpack.c.l.b16 %v5850
      %v5855 = vpack.c.b16 %v5854, %v5853
      %v5857 = vsel %vm1905, %v5844, 0
      %v5860 = vsel %vm1905, %v5845, 0
      %v5863 = vsel %vm1905, %v5846, 0
      %v5866 = vsel %vm1905, %v5847, 0
      %v5869 = vsel %vm2496, %v5855, 0
      %5871 = vmatprep.subr.bf16.mxu0 0
      %5872 = vmatpush1.bf16.msra.mxu0 0
      %5873 = vmatprep.subr.bf16.mxu0 0
      %5874 = vmatpush1.bf16.msra.mxu0 0
      %5875 = vmatprep.subr.bf16.mxu0 0
      %5876 = vmatpush1.bf16.msra.mxu0 0
      %5877 = vmatprep.subr.bf16.mxu0 0
      %5878 = vmatpush1.bf16.msra.mxu0 0
      %5879 = vmatprep.subr.bf16.mxu0 0
      %5880 = vmatpush1.bf16.msra.mxu0 0
      %5881 = vmatprep.subr.bf16.mxu0 0
      %5882 = vmatpush1.bf16.msra.mxu0 0
      %5883 = vmatprep.subr.bf16.mxu0 0
      %5884 = vmatpush1.bf16.msra.mxu0 0
      %5885 = vmatprep.subr.bf16.mxu0 0
      %5886 = vmatpush1.bf16.msra.mxu0 %v5869
      %5887 = vmatprep.subr.bf16.mxu0 0
      %5888 = vmatpush2.bf16.msra.mxu0 0
      %5889 = vmatprep.subr.bf16.mxu0 0
      %5890 = vmatpush2.bf16.msra.mxu0 0
      %5891 = vmatprep.subr.bf16.mxu0 0
      %5892 = vmatpush2.bf16.msra.mxu0 0
      %5893 = vmatprep.subr.bf16.mxu0 0
      %5894 = vmatpush2.bf16.msra.mxu0 0
      %5895 = vmatprep.subr.bf16.mxu0 0
      %5896 = vmatpush2.bf16.msra.mxu0 0
      %5897 = vmatprep.subr.bf16.mxu0 0
      %5898 = vmatpush2.bf16.msra.mxu0 0
      %5899 = vmatprep.subr.bf16.mxu0 0
      %5900 = vmatpush2.bf16.msra.mxu0 0
      %5901 = vmatprep.subr.bf16.mxu0 0
      %5902 = vmatpush2.bf16.msra.mxu0 0
      %5903 = vmatprep.mubr.bf16.mxu0 0
      %5904 = vmatmul.mubr.bf16.gmra.mxu0 %v5857
      %v5905 = vpop.f32.mrf.mxu0
      %v5906 = vadd.f32 0.0, %v5905
      %v5907 = vpop.f32.mrf.mxu0
      %v5908 = vpop.f32.mrf.mxu0
      %v5909 = vadd.f32 0.0, %v5908
      %v5910 = vpop.f32.mrf.mxu0
      %5911 = vmatprep.mubr.bf16.mxu0 0
      %5912 = vmatmul.mubr.bf16.gmra.mxu0 %v5860
      %v5913 = vpop.f32.mrf.mxu0
      %v5914 = vadd.f32 0.0, %v5913
      %v5915 = vpop.f32.mrf.mxu0
      %v5916 = vpop.f32.mrf.mxu0
      %v5917 = vadd.f32 0.0, %v5916
      %v5918 = vpop.f32.mrf.mxu0
      %5919 = vmatprep.mubr.bf16.mxu0 0
      %5920 = vmatmul.mubr.bf16.gmra.mxu0 %v5863
      %v5921 = vpop.f32.mrf.mxu0
      %v5922 = vadd.f32 0.0, %v5921
      %v5923 = vpop.f32.mrf.mxu0
      %v5924 = vpop.f32.mrf.mxu0
      %v5925 = vadd.f32 0.0, %v5924
      %v5926 = vpop.f32.mrf.mxu0
      %5927 = vmatprep.mubr.bf16.mxu0 0
      %5928 = vmatmul.mubr.bf16.gmra.mxu0 %v5866
      %v5929 = vpop.f32.mrf.mxu0
      %v5930 = vadd.f32 0.0, %v5929
      %v5931 = vpop.f32.mrf.mxu0
      %v5932 = vpop.f32.mrf.mxu0
      %v5933 = vadd.f32 0.0, %v5932
      %v5934 = vpop.f32.mrf.mxu0
      %5935 = vdwg.mxu0
      %v5936 = vadd.f32 %v5508, %v5906
      %v5937 = vadd.f32 %v5511, %v5909
      %v5938 = vadd.f32 %v5516, %v5914
      %v5939 = vadd.f32 %v5519, %v5917
      %v5940 = vadd.f32 %v5524, %v5922
      %v5941 = vadd.f32 %v5527, %v5925
      %v5942 = vadd.f32 %v5532, %v5930
      %v5943 = vadd.f32 %v5535, %v5933
      %5944 = vrot.lane.b32.xlu0 %v4774, 92
      %v5945 = vpop.permute.xlu0 %5944
      %5946 = vrot.lane.b32.xlu0 %v4775, 92
      %v5947 = vpop.permute.xlu0 %5946
      %5948 = vrot.lane.b32.xlu0 %v4776, 92
      %v5949 = vpop.permute.xlu0 %5948
      %5950 = vrot.lane.b32.xlu0 %v4777, 92
      %v5951 = vpop.permute.xlu0 %5950
      %5952 = vrot.lane.b32.xlu0 %v4778, 44
      %v5953 = vpop.permute.xlu0 %5952
      %5954 = vrot.lane.b32.xlu0 %v4779, 44
      %v5955 = vpop.permute.xlu0 %5954
      %5956 = vrot.lane.b32.xlu0 %v4780, 44
      %v5957 = vpop.permute.xlu0 %5956
      %5958 = vrot.lane.b32.xlu0 %v4781, 44
      %v5959 = vpop.permute.xlu0 %5958
      %v5961 = vsel %vm1905, %v5945, 0
      %v5964 = vsel %vm1905, %v5947, 0
      %v5967 = vsel %vm1905, %v5949, 0
      %v5970 = vsel %vm1905, %v5951, 0
      %v5973 = vsel %vm1905, %v5953, 0
      %v5976 = vsel %vm1905, %v5955, 0
      %v5979 = vsel %vm1905, %v5957, 0
      %v5982 = vsel %vm1905, %v5959, 0
      %5984 = vmatprep.subr.bf16.mxu0 0
      %5985 = vmatpush1.bf16.xpose.msra.mxu0 0
      %5986 = vmatprep.subr.bf16.mxu0 0
      %5987 = vmatpush1.bf16.xpose.msra.mxu0 0
      %5988 = vmatprep.subr.bf16.mxu0 0
      %5989 = vmatpush1.bf16.xpose.msra.mxu0 0
      %5990 = vmatprep.subr.bf16.mxu0 0
      %5991 = vmatpush1.bf16.xpose.msra.mxu0 0
      %5992 = vmatprep.subr.bf16.mxu0 0
      %5993 = vmatpush1.bf16.xpose.msra.mxu0 %v5982
      %5994 = vmatprep.subr.bf16.mxu0 0
      %5995 = vmatpush1.bf16.xpose.msra.mxu0 %v5979
      %5996 = vmatprep.subr.bf16.mxu0 0
      %5997 = vmatpush1.bf16.xpose.msra.mxu0 %v5976
      %5998 = vmatprep.subr.bf16.mxu0 0
      %5999 = vmatpush1.bf16.xpose.msra.mxu0 %v5973
      %6000 = vmatprep.subr.bf16.mxu0 0
      %6001 = vmatpush2.bf16.xpose.msra.mxu0 0
      %6002 = vmatprep.subr.bf16.mxu0 0
      %6003 = vmatpush2.bf16.xpose.msra.mxu0 0
      %6004 = vmatprep.subr.bf16.mxu0 0
      %6005 = vmatpush2.bf16.xpose.msra.mxu0 0
      %6006 = vmatprep.subr.bf16.mxu0 0
      %6007 = vmatpush2.bf16.xpose.msra.mxu0 0
      %6008 = vmatprep.subr.bf16.mxu0 0
      %6009 = vmatpush2.bf16.xpose.msra.mxu0 0
      %6010 = vmatprep.subr.bf16.mxu0 0
      %6011 = vmatpush2.bf16.xpose.msra.mxu0 0
      %6012 = vmatprep.subr.bf16.mxu0 0
      %6013 = vmatpush2.bf16.xpose.msra.mxu0 0
      %6014 = vmatprep.subr.bf16.mxu0 0
      %6015 = vmatpush2.bf16.xpose.msra.mxu0 0
      %6016 = vmatprep.mubr.bf16.mxu0 0
      %6017 = vmatmul.mubr.bf16.gmra.mxu0 %v5961
      %v6018 = vpop.f32.mrf.mxu0
      %v6019 = vadd.f32 0.0, %v6018
      %v6020 = vpop.f32.mrf.mxu0
      %v6021 = vpop.f32.mrf.mxu0
      %v6022 = vadd.f32 0.0, %v6021
      %v6023 = vpop.f32.mrf.mxu0
      %6024 = vmatprep.mubr.bf16.mxu0 0
      %6025 = vmatmul.mubr.bf16.gmra.mxu0 %v5964
      %v6026 = vpop.f32.mrf.mxu0
      %v6027 = vadd.f32 0.0, %v6026
      %v6028 = vpop.f32.mrf.mxu0
      %v6029 = vpop.f32.mrf.mxu0
      %v6030 = vadd.f32 0.0, %v6029
      %v6031 = vpop.f32.mrf.mxu0
      %6032 = vmatprep.mubr.bf16.mxu0 0
      %6033 = vmatmul.mubr.bf16.gmra.mxu0 %v5967
      %v6034 = vpop.f32.mrf.mxu0
      %v6035 = vadd.f32 0.0, %v6034
      %v6036 = vpop.f32.mrf.mxu0
      %v6037 = vpop.f32.mrf.mxu0
      %v6038 = vadd.f32 0.0, %v6037
      %v6039 = vpop.f32.mrf.mxu0
      %6040 = vmatprep.mubr.bf16.mxu0 0
      %6041 = vmatmul.mubr.bf16.gmra.mxu0 %v5970
      %v6042 = vpop.f32.mrf.mxu0
      %v6043 = vadd.f32 0.0, %v6042
      %v6044 = vpop.f32.mrf.mxu0
      %v6045 = vpop.f32.mrf.mxu0
      %v6046 = vadd.f32 0.0, %v6045
      %v6047 = vpop.f32.mrf.mxu0
      %6048 = vdwg.mxu0
      %v6049 = vsel %vm1113, %v6019, -inf
      %6050 = vmax.xlane.f32.xlu0 %v6049
      %v6051 = vpop.xlane.xlu0 %6050
      %v6052 = vsel %vm1113, %v6022, -inf
      %6053 = vmax.xlane.f32.xlu0 %v6052
      %v6054 = vpop.xlane.xlu0 %6053
      %v6055 = vsel %vm1113, %v6027, -inf
      %6056 = vmax.xlane.f32.xlu0 %v6055
      %v6057 = vpop.xlane.xlu0 %6056
      %v6058 = vsel %vm1113, %v6030, -inf
      %6059 = vmax.xlane.f32.xlu0 %v6058
      %v6060 = vpop.xlane.xlu0 %6059
      %v6061 = vsel %vm1113, %v6035, -inf
      %6062 = vmax.xlane.f32.xlu0 %v6061
      %v6063 = vpop.xlane.xlu0 %6062
      %v6064 = vsel %vm1113, %v6038, -inf
      %6065 = vmax.xlane.f32.xlu0 %v6064
      %v6066 = vpop.xlane.xlu0 %6065
      %v6067 = vsel %vm1113, %v6043, -inf
      %6068 = vmax.xlane.f32.xlu0 %v6067
      %v6069 = vpop.xlane.xlu0 %6068
      %v6070 = vsel %vm1113, %v6046, -inf
      %6071 = vmax.xlane.f32.xlu0 %v6070
      %v6072 = vpop.xlane.xlu0 %6071
      %v6073 = vsub.f32 %v6019, %v6051
      %v6074 = vsub.f32 %v6022, %v6054
      %v6075 = vsub.f32 %v6027, %v6057
      %v6076 = vsub.f32 %v6030, %v6060
      %v6077 = vsub.f32 %v6035, %v6063
      %v6078 = vsub.f32 %v6038, %v6066
      %v6079 = vsub.f32 %v6043, %v6069
      %v6080 = vsub.f32 %v6046, %v6072
      %v6081 = vmul.f32 %v6073, 1.442695
      %v6082 = vpow.pop %v6081
      %v6083 = vmul.f32 %v6074, 1.442695
      %v6084 = vpow.pop %v6083
      %v6085 = vmul.f32 %v6075, 1.442695
      %v6086 = vpow.pop %v6085
      %v6087 = vmul.f32 %v6076, 1.442695
      %v6088 = vpow.pop %v6087
      %v6089 = vmul.f32 %v6077, 1.442695
      %v6090 = vpow.pop %v6089
      %v6091 = vmul.f32 %v6078, 1.442695
      %v6092 = vpow.pop %v6091
      %v6093 = vmul.f32 %v6079, 1.442695
      %v6094 = vpow.pop %v6093
      %v6095 = vmul.f32 %v6080, 1.442695
      %v6096 = vpow.pop %v6095
      %v6097 = vsel %vm1113, %v6082, 0.0
      %6098 = vadd.xlane.f32.xlu0 %v6097
      %v6099 = vpop.xlane.xlu0 %6098
      %v6100 = vsel %vm1113, %v6084, 0.0
      %6101 = vadd.xlane.f32.xlu0 %v6100
      %v6102 = vpop.xlane.xlu0 %6101
      %v6103 = vsel %vm1113, %v6086, 0.0
      %6104 = vadd.xlane.f32.xlu0 %v6103
      %v6105 = vpop.xlane.xlu0 %6104
      %v6106 = vsel %vm1113, %v6088, 0.0
      %6107 = vadd.xlane.f32.xlu0 %v6106
      %v6108 = vpop.xlane.xlu0 %6107
      %v6109 = vsel %vm1113, %v6090, 0.0
      %6110 = vadd.xlane.f32.xlu0 %v6109
      %v6111 = vpop.xlane.xlu0 %6110
      %v6112 = vsel %vm1113, %v6092, 0.0
      %6113 = vadd.xlane.f32.xlu0 %v6112
      %v6114 = vpop.xlane.xlu0 %6113
      %v6115 = vsel %vm1113, %v6094, 0.0
      %6116 = vadd.xlane.f32.xlu0 %v6115
      %v6117 = vpop.xlane.xlu0 %6116
      %v6118 = vsel %vm1113, %v6096, 0.0
      %6119 = vadd.xlane.f32.xlu0 %v6118
      %v6120 = vpop.xlane.xlu0 %6119
      %v6121 = vrcp.pop %v6099
      %v6122 = vrcp.pop %v6102
      %v6123 = vrcp.pop %v6105
      %v6124 = vrcp.pop %v6108
      %v6125 = vrcp.pop %v6111
      %v6126 = vrcp.pop %v6114
      %v6127 = vrcp.pop %v6117
      %v6128 = vrcp.pop %v6120
      %v6129 = vmul.f32 %v6082, %v6121
      %v6130 = vmul.f32 %v6084, %v6122
      %v6131 = vmul.f32 %v6086, %v6123
      %v6132 = vmul.f32 %v6088, %v6124
      %v6133 = vmul.f32 %v6090, %v6125
      %v6134 = vmul.f32 %v6092, %v6126
      %v6135 = vmul.f32 %v6094, %v6127
      %v6136 = vmul.f32 %v6096, %v6128
      %v6137 = vpack.c.bf16 %v6130, %v6129
      %v6138 = vpack.c.bf16 %v6132, %v6131
      %v6139 = vpack.c.bf16 %v6134, %v6133
      %v6140 = vpack.c.bf16 %v6136, %v6135
      %6141 = vrot.lane.b32.xlu0 %v5735, 124
      %v6142 = vpop.permute.xlu0 %6141
      %6143 = vrot.lane.b32.xlu0 %v5736, 124
      %v6144 = vpop.permute.xlu0 %6143
      %6145 = vrot.lane.b32.xlu0 %v5737, 124
      %v6146 = vpop.permute.xlu0 %6145
      %6147 = vrot.lane.b32.xlu0 %v5738, 124
      %v6148 = vpop.permute.xlu0 %6147
      %v6154 = vsel %vm1113, %v6137, 0
      %v6157 = vsel %vm1113, %v6138, 0
      %v6160 = vsel %vm1113, %v6139, 0
      %v6163 = vsel %vm1113, %v6140, 0
      %6165 = vmatprep.subr.bf16.mxu0 0
      %6166 = vmatpush1.bf16.msra.mxu0 0
      %6167 = vmatprep.subr.bf16.mxu0 0
      %6168 = vmatpush1.bf16.msra.mxu0 0
      %6169 = vmatprep.subr.bf16.mxu0 0
      %6170 = vmatpush1.bf16.msra.mxu0 0
      %6171 = vmatprep.subr.bf16.mxu0 0
      %6172 = vmatpush1.bf16.msra.mxu0 0
      %6173 = vmatprep.subr.bf16.mxu0 0
      %6174 = vmatpush1.bf16.msra.mxu0 %v6148
      %6175 = vmatprep.subr.bf16.mxu0 0
      %6176 = vmatpush1.bf16.msra.mxu0 %v6146
      %6177 = vmatprep.subr.bf16.mxu0 0
      %6178 = vmatpush1.bf16.msra.mxu0 %v6144
      %6179 = vmatprep.subr.bf16.mxu0 0
      %6180 = vmatpush1.bf16.msra.mxu0 %v6142
      %6181 = vmatprep.subr.bf16.mxu0 0
      %6182 = vmatpush2.bf16.msra.mxu0 0
      %6183 = vmatprep.subr.bf16.mxu0 0
      %6184 = vmatpush2.bf16.msra.mxu0 0
      %6185 = vmatprep.subr.bf16.mxu0 0
      %6186 = vmatpush2.bf16.msra.mxu0 0
      %6187 = vmatprep.subr.bf16.mxu0 0
      %6188 = vmatpush2.bf16.msra.mxu0 0
      %6189 = vmatprep.subr.bf16.mxu0 0
      %6190 = vmatpush2.bf16.msra.mxu0 0
      %6191 = vmatprep.subr.bf16.mxu0 0
      %6192 = vmatpush2.bf16.msra.mxu0 0
      %6193 = vmatprep.subr.bf16.mxu0 0
      %6194 = vmatpush2.bf16.msra.mxu0 0
      %6195 = vmatprep.subr.bf16.mxu0 0
      %6196 = vmatpush2.bf16.msra.mxu0 0
      %6197 = vmatprep.mubr.bf16.mxu0 0
      %6198 = vmatmul.mubr.bf16.gmra.mxu0 %v6154
      %v6199 = vpop.f32.mrf.mxu0
      %v6200 = vadd.f32 0.0, %v6199
      %v6201 = vpop.f32.mrf.mxu0
      %v6202 = vpop.f32.mrf.mxu0
      %v6203 = vadd.f32 0.0, %v6202
      %v6204 = vpop.f32.mrf.mxu0
      %6205 = vmatprep.mubr.bf16.mxu0 0
      %6206 = vmatmul.mubr.bf16.gmra.mxu0 %v6157
      %v6207 = vpop.f32.mrf.mxu0
      %v6208 = vadd.f32 0.0, %v6207
      %v6209 = vpop.f32.mrf.mxu0
      %v6210 = vpop.f32.mrf.mxu0
      %v6211 = vadd.f32 0.0, %v6210
      %v6212 = vpop.f32.mrf.mxu0
      %6213 = vmatprep.mubr.bf16.mxu0 0
      %6214 = vmatmul.mubr.bf16.gmra.mxu0 %v6160
      %v6215 = vpop.f32.mrf.mxu0
      %v6216 = vadd.f32 0.0, %v6215
      %v6217 = vpop.f32.mrf.mxu0
      %v6218 = vpop.f32.mrf.mxu0
      %v6219 = vadd.f32 0.0, %v6218
      %v6220 = vpop.f32.mrf.mxu0
      %6221 = vmatprep.mubr.bf16.mxu0 0
      %6222 = vmatmul.mubr.bf16.gmra.mxu0 %v6163
      %v6223 = vpop.f32.mrf.mxu0
      %v6224 = vadd.f32 0.0, %v6223
      %v6225 = vpop.f32.mrf.mxu0
      %v6226 = vpop.f32.mrf.mxu0
      %v6227 = vadd.f32 0.0, %v6226
      %v6228 = vpop.f32.mrf.mxu0
      %6229 = vdwg.mxu0
      %v6230 = vpack.c.bf16 %v6203, %v6200
      %v6231 = vpack.c.bf16 %v6211, %v6208
      %v6232 = vpack.c.bf16 %v6219, %v6216
      %v6233 = vpack.c.bf16 %v6227, %v6224
      %s6234 = scalar_lea.vmem %s14, 56
      %v6235 = vld [vmem:[%s6234] sm:$0xf]
      %v6236 = vld [vmem:[%s6234 + $0x4] sm:$0x3]
      %v6239 = vunpack.c.l.b16 %v6235
      %v6240 = vunpack.c.l.b16 %v6236
      %v6241 = vpack.c.b16 %v6240, %v6239
      %v6243 = vsel %vm1905, %v6230, 0
      %v6246 = vsel %vm1905, %v6231, 0
      %v6249 = vsel %vm1905, %v6232, 0
      %v6252 = vsel %vm1905, %v6233, 0
      %v6255 = vsel %vm2496, %v6241, 0
      %6257 = vmatprep.subr.bf16.mxu0 0
      %6258 = vmatpush1.bf16.msra.mxu0 0
      %6259 = vmatprep.subr.bf16.mxu0 0
      %6260 = vmatpush1.bf16.msra.mxu0 0
      %6261 = vmatprep.subr.bf16.mxu0 0
      %6262 = vmatpush1.bf16.msra.mxu0 0
      %6263 = vmatprep.subr.bf16.mxu0 0
      %6264 = vmatpush1.bf16.msra.mxu0 0
      %6265 = vmatprep.subr.bf16.mxu0 0
      %6266 = vmatpush1.bf16.msra.mxu0 0
      %6267 = vmatprep.subr.bf16.mxu0 0
      %6268 = vmatpush1.bf16.msra.mxu0 0
      %6269 = vmatprep.subr.bf16.mxu0 0
      %6270 = vmatpush1.bf16.msra.mxu0 0
      %6271 = vmatprep.subr.bf16.mxu0 0
      %6272 = vmatpush1.bf16.msra.mxu0 %v6255
      %6273 = vmatprep.subr.bf16.mxu0 0
      %6274 = vmatpush2.bf16.msra.mxu0 0
      %6275 = vmatprep.subr.bf16.mxu0 0
      %6276 = vmatpush2.bf16.msra.mxu0 0
      %6277 = vmatprep.subr.bf16.mxu0 0
      %6278 = vmatpush2.bf16.msra.mxu0 0
      %6279 = vmatprep.subr.bf16.mxu0 0
      %6280 = vmatpush2.bf16.msra.mxu0 0
      %6281 = vmatprep.subr.bf16.mxu0 0
      %6282 = vmatpush2.bf16.msra.mxu0 0
      %6283 = vmatprep.subr.bf16.mxu0 0
      %6284 = vmatpush2.bf16.msra.mxu0 0
      %6285 = vmatprep.subr.bf16.mxu0 0
      %6286 = vmatpush2.bf16.msra.mxu0 0
      %6287 = vmatprep.subr.bf16.mxu0 0
      %6288 = vmatpush2.bf16.msra.mxu0 0
      %6289 = vmatprep.mubr.bf16.mxu0 0
      %6290 = vmatmul.mubr.bf16.gmra.mxu0 %v6243
      %v6291 = vpop.f32.mrf.mxu0
      %v6292 = vadd.f32 0.0, %v6291
      %v6293 = vpop.f32.mrf.mxu0
      %v6294 = vpop.f32.mrf.mxu0
      %v6295 = vadd.f32 0.0, %v6294
      %v6296 = vpop.f32.mrf.mxu0
      %6297 = vmatprep.mubr.bf16.mxu0 0
      %6298 = vmatmul.mubr.bf16.gmra.mxu0 %v6246
      %v6299 = vpop.f32.mrf.mxu0
      %v6300 = vadd.f32 0.0, %v6299
      %v6301 = vpop.f32.mrf.mxu0
      %v6302 = vpop.f32.mrf.mxu0
      %v6303 = vadd.f32 0.0, %v6302
      %v6304 = vpop.f32.mrf.mxu0
      %6305 = vmatprep.mubr.bf16.mxu0 0
      %6306 = vmatmul.mubr.bf16.gmra.mxu0 %v6249
      %v6307 = vpop.f32.mrf.mxu0
      %v6308 = vadd.f32 0.0, %v6307
      %v6309 = vpop.f32.mrf.mxu0
      %v6310 = vpop.f32.mrf.mxu0
      %v6311 = vadd.f32 0.0, %v6310
      %v6312 = vpop.f32.mrf.mxu0
      %6313 = vmatprep.mubr.bf16.mxu0 0
      %6314 = vmatmul.mubr.bf16.gmra.mxu0 %v6252
      %v6315 = vpop.f32.mrf.mxu0
      %v6316 = vadd.f32 0.0, %v6315
      %v6317 = vpop.f32.mrf.mxu0
      %v6318 = vpop.f32.mrf.mxu0
      %v6319 = vadd.f32 0.0, %v6318
      %v6320 = vpop.f32.mrf.mxu0
      %6321 = vdwg.mxu0
      %v6322 = vadd.f32 %v5936, %v6292
      %v6323 = vadd.f32 %v5937, %v6295
      %v6324 = vadd.f32 %v5938, %v6300
      %v6325 = vadd.f32 %v5939, %v6303
      %v6326 = vadd.f32 %v5940, %v6308
      %v6327 = vadd.f32 %v5941, %v6311
      %v6328 = vadd.f32 %v5942, %v6316
      %v6329 = vadd.f32 %v5943, %v6319
      %s6330 = scalar_lea.vmem %s15, 1
      %v6331 = vld [vmem:[%s6330] sm:$0x1]
      %v6333 = vlaneseq
      %v6334 = vshrl.u32 %v6333, 7
      %v6335 = vsub.s32 0, %v6334
      %v6336 = vrot.slane %v6331, %v6335
      %v6338 = vadd.f32 %v6322, %v6336
      %v6339 = vadd.f32 %v6323, %v6336
      %v6340 = vadd.f32 %v6324, %v6336
      %v6341 = vadd.f32 %v6325, %v6336
      %v6342 = vadd.f32 %v6326, %v6336
      %v6343 = vadd.f32 %v6327, %v6336
      %v6344 = vadd.f32 %v6328, %v6336
      %v6345 = vadd.f32 %v6329, %v6336
      %v6346 = vlaneseq
      %v6347 = vshrl.u32 %v6346, 7
      %v6348 = vsub.s32 0, %v6347
      %v6349 = vrot.slane %v4292, %v6348
      %v6350 = vmul.f32 %v6349, %v6338
      %v6351 = vmul.f32 %v6349, %v6339
      %v6352 = vmul.f32 %v6349, %v6340
      %v6353 = vmul.f32 %v6349, %v6341
      %v6354 = vmul.f32 %v6349, %v6342
      %v6355 = vmul.f32 %v6349, %v6343
      %v6356 = vmul.f32 %v6349, %v6344
      %v6357 = vmul.f32 %v6349, %v6345
      %v6358 = vadd.f32 %v4088, %v6350
      %v6359 = vadd.f32 %v4089, %v6351
      %v6360 = vadd.f32 %v4090, %v6352
      %v6361 = vadd.f32 %v4091, %v6353
      %v6362 = vadd.f32 %v4092, %v6354
      %v6363 = vadd.f32 %v4093, %v6355
      %v6364 = vadd.f32 %v4094, %v6356
      %v6365 = vadd.f32 %v4095, %v6357
      %v6366 = vsel %vm932, %v6358, 0.0
      %6367 = vadd.xlane.f32.xlu0 %v6366
      %v6368 = vpop.xlane.xlu0 %6367
      %v6369 = vsel %vm932, %v6359, 0.0
      %6370 = vadd.xlane.f32.xlu0 %v6369
      %v6371 = vpop.xlane.xlu0 %6370
      %v6372 = vsel %vm932, %v6360, 0.0
      %6373 = vadd.xlane.f32.xlu0 %v6372
      %v6374 = vpop.xlane.xlu0 %6373
      %v6375 = vsel %vm932, %v6361, 0.0
      %6376 = vadd.xlane.f32.xlu0 %v6375
      %v6377 = vpop.xlane.xlu0 %6376
      %v6378 = vsel %vm932, %v6362, 0.0
      %6379 = vadd.xlane.f32.xlu0 %v6378
      %v6380 = vpop.xlane.xlu0 %6379
      %v6381 = vsel %vm932, %v6363, 0.0
      %6382 = vadd.xlane.f32.xlu0 %v6381
      %v6383 = vpop.xlane.xlu0 %6382
      %v6384 = vsel %vm932, %v6364, 0.0
      %6385 = vadd.xlane.f32.xlu0 %v6384
      %v6386 = vpop.xlane.xlu0 %6385
      %v6387 = vsel %vm932, %v6365, 0.0
      %6388 = vadd.xlane.f32.xlu0 %v6387
      %v6389 = vpop.xlane.xlu0 %6388
      %v6390 = vmul.f32 %v6368, %v1634
      %v6391 = vmul.f32 %v6371, %v1634
      %v6392 = vmul.f32 %v6374, %v1634
      %v6393 = vmul.f32 %v6377, %v1634
      %v6394 = vmul.f32 %v6380, %v1634
      %v6395 = vmul.f32 %v6383, %v1634
      %v6396 = vmul.f32 %v6386, %v1634
      %v6397 = vmul.f32 %v6389, %v1634
      %v6398 = vsub.f32 %v6358, %v6390
      %v6399 = vsub.f32 %v6359, %v6391
      %v6400 = vsub.f32 %v6360, %v6392
      %v6401 = vsub.f32 %v6361, %v6393
      %v6402 = vsub.f32 %v6362, %v6394
      %v6403 = vsub.f32 %v6363, %v6395
      %v6404 = vsub.f32 %v6364, %v6396
      %v6405 = vsub.f32 %v6365, %v6397
      %v6406 = vmul.f32 %v6398, %v6398
      %v6407 = vmul.f32 %v6399, %v6399
      %v6408 = vmul.f32 %v6400, %v6400
      %v6409 = vmul.f32 %v6401, %v6401
      %v6410 = vmul.f32 %v6402, %v6402
      %v6411 = vmul.f32 %v6403, %v6403
      %v6412 = vmul.f32 %v6404, %v6404
      %v6413 = vmul.f32 %v6405, %v6405
      %v6414 = vsel %vm932, %v6406, 0.0
      %6415 = vadd.xlane.f32.xlu0 %v6414
      %v6416 = vpop.xlane.xlu0 %6415
      %v6417 = vsel %vm932, %v6407, 0.0
      %6418 = vadd.xlane.f32.xlu0 %v6417
      %v6419 = vpop.xlane.xlu0 %6418
      %v6420 = vsel %vm932, %v6408, 0.0
      %6421 = vadd.xlane.f32.xlu0 %v6420
      %v6422 = vpop.xlane.xlu0 %6421
      %v6423 = vsel %vm932, %v6409, 0.0
      %6424 = vadd.xlane.f32.xlu0 %v6423
      %v6425 = vpop.xlane.xlu0 %6424
      %v6426 = vsel %vm932, %v6410, 0.0
      %6427 = vadd.xlane.f32.xlu0 %v6426
      %v6428 = vpop.xlane.xlu0 %6427
      %v6429 = vsel %vm932, %v6411, 0.0
      %6430 = vadd.xlane.f32.xlu0 %v6429
      %v6431 = vpop.xlane.xlu0 %6430
      %v6432 = vsel %vm932, %v6412, 0.0
      %6433 = vadd.xlane.f32.xlu0 %v6432
      %v6434 = vpop.xlane.xlu0 %6433
      %v6435 = vsel %vm932, %v6413, 0.0
      %6436 = vadd.xlane.f32.xlu0 %v6435
      %v6437 = vpop.xlane.xlu0 %6436
      %v6438 = vmul.f32 %v6416, %v1634
      %v6439 = vmul.f32 %v6419, %v1634
      %v6440 = vmul.f32 %v6422, %v1634
      %v6441 = vmul.f32 %v6425, %v1634
      %v6442 = vmul.f32 %v6428, %v1634
      %v6443 = vmul.f32 %v6431, %v1634
      %v6444 = vmul.f32 %v6434, %v1634
      %v6445 = vmul.f32 %v6437, %v1634
      %v6446 = vadd.f32 %v6438, 1e-06
      %v6447 = vadd.f32 %v6439, 1e-06
      %v6448 = vadd.f32 %v6440, 1e-06
      %v6449 = vadd.f32 %v6441, 1e-06
      %v6450 = vadd.f32 %v6442, 1e-06
      %v6451 = vadd.f32 %v6443, 1e-06
      %v6452 = vadd.f32 %v6444, 1e-06
      %v6453 = vadd.f32 %v6445, 1e-06
      %v6454 = vrsqrt.pop %v6446
      %v6455 = vrsqrt.pop %v6447
      %v6456 = vrsqrt.pop %v6448
      %v6457 = vrsqrt.pop %v6449
      %v6458 = vrsqrt.pop %v6450
      %v6459 = vrsqrt.pop %v6451
      %v6460 = vrsqrt.pop %v6452
      %v6461 = vrsqrt.pop %v6453
      %v6462 = vmul.f32 %v6398, %v6454
      %v6463 = vmul.f32 %v6399, %v6455
      %v6464 = vmul.f32 %v6400, %v6456
      %v6465 = vmul.f32 %v6401, %v6457
      %v6466 = vmul.f32 %v6402, %v6458
      %v6467 = vmul.f32 %v6403, %v6459
      %v6468 = vmul.f32 %v6404, %v6460
      %v6469 = vmul.f32 %v6405, %v6461
      %v6470 = vadd.f32 %v4426, 1.0
      %v6471 = vlaneseq
      %v6472 = vshrl.u32 %v6471, 7
      %v6473 = vsub.s32 0, %v6472
      %v6474 = vrot.slane %v6470, %v6473
      %v6475 = vmul.f32 %v6462, %v6474
      %v6476 = vmul.f32 %v6463, %v6474
      %v6477 = vmul.f32 %v6464, %v6474
      %v6478 = vmul.f32 %v6465, %v6474
      %v6479 = vmul.f32 %v6466, %v6474
      %v6480 = vmul.f32 %v6467, %v6474
      %v6481 = vmul.f32 %v6468, %v6474
      %v6482 = vmul.f32 %v6469, %v6474
      %v6483 = vlaneseq
      %v6484 = vshrl.u32 %v6483, 7
      %v6485 = vsub.s32 0, %v6484
      %v6486 = vrot.slane %v4359, %v6485
      %v6487 = vadd.f32 %v6475, %v6486
      %v6488 = vadd.f32 %v6476, %v6486
      %v6489 = vadd.f32 %v6477, %v6486
      %v6490 = vadd.f32 %v6478, %v6486
      %v6491 = vadd.f32 %v6479, %v6486
      %v6492 = vadd.f32 %v6480, %v6486
      %v6493 = vadd.f32 %v6481, %v6486
      %v6494 = vadd.f32 %v6482, %v6486
      %v6495 = vpack.c.bf16 %v6488, %v6487
      %v6496 = vpack.c.bf16 %v6490, %v6489
      %v6497 = vpack.c.bf16 %v6492, %v6491
      %v6498 = vpack.c.bf16 %v6494, %v6493
      %s6499 = scalar_lea.vmem %s16, 48
      %v6500 = vld [vmem:[%s6499] sm:$0xff]
      %v6501 = vld [vmem:[%s6499 + $0x8] sm:$0xff]
      %v6502 = vld [vmem:[%s6499 + $0x10] sm:$0xff]
      %v6503 = vld [vmem:[%s6499 + $0x18] sm:$0xff]
      %v6504 = vld [vmem:[%s6499 + $0x20] sm:$0xff]
      %v6505 = vld [vmem:[%s6499 + $0x28] sm:$0xff]
      %s6506 = scalar_lea.vmem %s17, 2
      %v6507 = vld [vmem:[%s6506] sm:$0x3]
      %v6509 = vlaneseq
      %v6510 = vshrl.u32 %v6509, 7
      %v6511 = vsub.s32 0, %v6510
      %v6512 = vrot.slane %v6507, %v6511
      %v6513 = vlaneseq
      %v6514 = vshrl.u32 %v6513, 7
      %v6515 = vsub.s32 1, %v6514
      %v6516 = vrot.slane %v6507, %v6515
      %v6525 = vunpack.c.l.b16 %v6500
      %v6526 = vunpack.c.h.b16 %v6500
      %v6527 = vunpack.c.l.b16 %v6501
      %v6528 = vunpack.c.h.b16 %v6501
      %v6529 = vunpack.c.l.b16 %v6502
      %v6530 = vunpack.c.h.b16 %v6502
      %v6531 = vunpack.c.l.b16 %v6503
      %v6532 = vunpack.c.h.b16 %v6503
      %v6533 = vunpack.c.l.b16 %v6504
      %v6534 = vunpack.c.h.b16 %v6504
      %v6535 = vunpack.c.l.b16 %v6505
      %v6536 = vunpack.c.h.b16 %v6505
      %v6537 = vpack.c.b16 %v6527, %v6525
      %v6538 = vpack.c.b16 %v6528, %v6526
      %v6539 = vpack.c.b16 %v6531, %v6529
      %v6540 = vpack.c.b16 %v6532, %v6530
      %v6541 = vpack.c.b16 %v6535, %v6533
      %v6542 = vpack.c.b16 %v6536, %v6534
      %v6550 = vsel %vm932, %v6495, 0
      %v6553 = vsel %vm932, %v6496, 0
      %v6556 = vsel %vm932, %v6497, 0
      %v6559 = vsel %vm932, %v6498, 0
      %6561 = vmatprep.subr.bf16.mxu0 0
      %6562 = vmatpush1.bf16.msra.mxu0 0
      %6563 = vmatprep.subr.bf16.mxu0 0
      %6564 = vmatpush1.bf16.msra.mxu0 0
      %6565 = vmatprep.subr.bf16.mxu0 0
      %6566 = vmatpush1.bf16.msra.mxu0 0
      %6567 = vmatprep.subr.bf16.mxu0 0
      %6568 = vmatpush1.bf16.msra.mxu0 0
      %6569 = vmatprep.subr.bf16.mxu0 0
      %6570 = vmatpush1.bf16.msra.mxu0 0
      %6571 = vmatprep.subr.bf16.mxu0 %v6542
      %6572 = vmatpush1.bf16.msra.mxu0 %v6541
      %6573 = vmatprep.subr.bf16.mxu0 %v6540
      %6574 = vmatpush1.bf16.msra.mxu0 %v6539
      %6575 = vmatprep.subr.bf16.mxu0 %v6538
      %6576 = vmatpush1.bf16.msra.mxu0 %v6537
      %6577 = vmatprep.subr.bf16.mxu0 0
      %6578 = vmatpush2.bf16.msra.mxu0 0
      %6579 = vmatprep.subr.bf16.mxu0 0
      %6580 = vmatpush2.bf16.msra.mxu0 0
      %6581 = vmatprep.subr.bf16.mxu0 0
      %6582 = vmatpush2.bf16.msra.mxu0 0
      %6583 = vmatprep.subr.bf16.mxu0 0
      %6584 = vmatpush2.bf16.msra.mxu0 0
      %6585 = vmatprep.subr.bf16.mxu0 0
      %6586 = vmatpush2.bf16.msra.mxu0 0
      %6587 = vmatprep.subr.bf16.mxu0 0
      %6588 = vmatpush2.bf16.msra.mxu0 0
      %6589 = vmatprep.subr.bf16.mxu0 0
      %6590 = vmatpush2.bf16.msra.mxu0 0
      %6591 = vmatprep.subr.bf16.mxu0 0
      %6592 = vmatpush2.bf16.msra.mxu0 0
      %6593 = vmatprep.mubr.bf16.mxu0 0
      %6594 = vmatmul.mubr.bf16.gmra.mxu0 %v6550
      %v6595 = vpop.f32.mrf.mxu0
      %v6596 = vadd.f32 %v6512, %v6595
      %v6597 = vpop.f32.mrf.mxu0
      %v6598 = vadd.f32 %v6516, %v6597
      %v6599 = vpop.f32.mrf.mxu0
      %v6600 = vadd.f32 %v6512, %v6599
      %v6601 = vpop.f32.mrf.mxu0
      %v6602 = vadd.f32 %v6516, %v6601
      %6603 = vmatprep.mubr.bf16.mxu0 0
      %6604 = vmatmul.mubr.bf16.gmra.mxu0 %v6553
      %v6605 = vpop.f32.mrf.mxu0
      %v6606 = vadd.f32 %v6512, %v6605
      %v6607 = vpop.f32.mrf.mxu0
      %v6608 = vadd.f32 %v6516, %v6607
      %v6609 = vpop.f32.mrf.mxu0
      %v6610 = vadd.f32 %v6512, %v6609
      %v6611 = vpop.f32.mrf.mxu0
      %v6612 = vadd.f32 %v6516, %v6611
      %6613 = vmatprep.mubr.bf16.mxu0 0
      %6614 = vmatmul.mubr.bf16.gmra.mxu0 %v6556
      %v6615 = vpop.f32.mrf.mxu0
      %v6616 = vadd.f32 %v6512, %v6615
      %v6617 = vpop.f32.mrf.mxu0
      %v6618 = vadd.f32 %v6516, %v6617
      %v6619 = vpop.f32.mrf.mxu0
      %v6620 = vadd.f32 %v6512, %v6619
      %v6621 = vpop.f32.mrf.mxu0
      %v6622 = vadd.f32 %v6516, %v6621
      %6623 = vmatprep.mubr.bf16.mxu0 0
      %6624 = vmatmul.mubr.bf16.gmra.mxu0 %v6559
      %v6625 = vpop.f32.mrf.mxu0
      %v6626 = vadd.f32 %v6512, %v6625
      %v6627 = vpop.f32.mrf.mxu0
      %v6628 = vadd.f32 %v6516, %v6627
      %v6629 = vpop.f32.mrf.mxu0
      %v6630 = vadd.f32 %v6512, %v6629
      %v6631 = vpop.f32.mrf.mxu0
      %v6632 = vadd.f32 %v6516, %v6631
      %6633 = vdwg.mxu0
      %v6634 = vmul.f32 %v6596, %v6596
      %v6635 = vmul.f32 %v6598, %v6598
      %v6636 = vmul.f32 %v6600, %v6600
      %v6637 = vmul.f32 %v6602, %v6602
      %v6638 = vmul.f32 %v6606, %v6606
      %v6639 = vmul.f32 %v6608, %v6608
      %v6640 = vmul.f32 %v6610, %v6610
      %v6641 = vmul.f32 %v6612, %v6612
      %v6642 = vmul.f32 %v6616, %v6616
      %v6643 = vmul.f32 %v6618, %v6618
      %v6644 = vmul.f32 %v6620, %v6620
      %v6645 = vmul.f32 %v6622, %v6622
      %v6646 = vmul.f32 %v6626, %v6626
      %v6647 = vmul.f32 %v6628, %v6628
      %v6648 = vmul.f32 %v6630, %v6630
      %v6649 = vmul.f32 %v6632, %v6632
      %v6650 = vmul.f32 %v6596, %v6634
      %v6651 = vmul.f32 %v6598, %v6635
      %v6652 = vmul.f32 %v6600, %v6636
      %v6653 = vmul.f32 %v6602, %v6637
      %v6654 = vmul.f32 %v6606, %v6638
      %v6655 = vmul.f32 %v6608, %v6639
      %v6656 = vmul.f32 %v6610, %v6640
      %v6657 = vmul.f32 %v6612, %v6641
      %v6658 = vmul.f32 %v6616, %v6642
      %v6659 = vmul.f32 %v6618, %v6643
      %v6660 = vmul.f32 %v6620, %v6644
      %v6661 = vmul.f32 %v6622, %v6645
      %v6662 = vmul.f32 %v6626, %v6646
      %v6663 = vmul.f32 %v6628, %v6647
      %v6664 = vmul.f32 %v6630, %v6648
      %v6665 = vmul.f32 %v6632, %v6649
      %v6666 = vmul.f32 %v6650, 0.044715
      %v6667 = vmul.f32 %v6651, 0.044715
      %v6668 = vmul.f32 %v6652, 0.044715
      %v6669 = vmul.f32 %v6653, 0.044715
      %v6670 = vmul.f32 %v6654, 0.044715
      %v6671 = vmul.f32 %v6655, 0.044715
      %v6672 = vmul.f32 %v6656, 0.044715
      %v6673 = vmul.f32 %v6657, 0.044715
      %v6674 = vmul.f32 %v6658, 0.044715
      %v6675 = vmul.f32 %v6659, 0.044715
      %v6676 = vmul.f32 %v6660, 0.044715
      %v6677 = vmul.f32 %v6661, 0.044715
      %v6678 = vmul.f32 %v6662, 0.044715
      %v6679 = vmul.f32 %v6663, 0.044715
      %v6680 = vmul.f32 %v6664, 0.044715
      %v6681 = vmul.f32 %v6665, 0.044715
      %v6682 = vadd.f32 %v6596, %v6666
      %v6683 = vadd.f32 %v6598, %v6667
      %v6684 = vadd.f32 %v6600, %v6668
      %v6685 = vadd.f32 %v6602, %v6669
      %v6686 = vadd.f32 %v6606, %v6670
      %v6687 = vadd.f32 %v6608, %v6671
      %v6688 = vadd.f32 %v6610, %v6672
      %v6689 = vadd.f32 %v6612, %v6673
      %v6690 = vadd.f32 %v6616, %v6674
      %v6691 = vadd.f32 %v6618, %v6675
      %v6692 = vadd.f32 %v6620, %v6676
      %v6693 = vadd.f32 %v6622, %v6677
      %v6694 = vadd.f32 %v6626, %v6678
      %v6695 = vadd.f32 %v6628, %v6679
      %v6696 = vadd.f32 %v6630, %v6680
      %v6697 = vadd.f32 %v6632, %v6681
      %v6698 = vmul.f32 %v6682, 0.7978846
      %v6699 = vmul.f32 %v6683, 0.7978846
      %v6700 = vmul.f32 %v6684, 0.7978846
      %v6701 = vmul.f32 %v6685, 0.7978846
      %v6702 = vmul.f32 %v6686, 0.7978846
      %v6703 = vmul.f32 %v6687, 0.7978846
      %v6704 = vmul.f32 %v6688, 0.7978846
      %v6705 = vmul.f32 %v6689, 0.7978846
      %v6706 = vmul.f32 %v6690, 0.7978846
      %v6707 = vmul.f32 %v6691, 0.7978846
      %v6708 = vmul.f32 %v6692, 0.7978846
      %v6709 = vmul.f32 %v6693, 0.7978846
      %v6710 = vmul.f32 %v6694, 0.7978846
      %v6711 = vmul.f32 %v6695, 0.7978846
      %v6712 = vmul.f32 %v6696, 0.7978846
      %v6713 = vmul.f32 %v6697, 0.7978846
      %v6714 = vtanh.pop %v6698
      %v6715 = vtanh.pop %v6699
      %v6716 = vtanh.pop %v6700
      %v6717 = vtanh.pop %v6701
      %v6718 = vtanh.pop %v6702
      %v6719 = vtanh.pop %v6703
      %v6720 = vtanh.pop %v6704
      %v6721 = vtanh.pop %v6705
      %v6722 = vtanh.pop %v6706
      %v6723 = vtanh.pop %v6707
      %v6724 = vtanh.pop %v6708
      %v6725 = vtanh.pop %v6709
      %v6726 = vtanh.pop %v6710
      %v6727 = vtanh.pop %v6711
      %v6728 = vtanh.pop %v6712
      %v6729 = vtanh.pop %v6713
      %v6730 = vadd.f32 %v6714, 1.0
      %v6731 = vadd.f32 %v6715, 1.0
      %v6732 = vadd.f32 %v6716, 1.0
      %v6733 = vadd.f32 %v6717, 1.0
      %v6734 = vadd.f32 %v6718, 1.0
      %v6735 = vadd.f32 %v6719, 1.0
      %v6736 = vadd.f32 %v6720, 1.0
      %v6737 = vadd.f32 %v6721, 1.0
      %v6738 = vadd.f32 %v6722, 1.0
      %v6739 = vadd.f32 %v6723, 1.0
      %v6740 = vadd.f32 %v6724, 1.0
      %v6741 = vadd.f32 %v6725, 1.0
      %v6742 = vadd.f32 %v6726, 1.0
      %v6743 = vadd.f32 %v6727, 1.0
      %v6744 = vadd.f32 %v6728, 1.0
      %v6745 = vadd.f32 %v6729, 1.0
      %v6746 = vmul.f32 %v6730, 0.5
      %v6747 = vmul.f32 %v6731, 0.5
      %v6748 = vmul.f32 %v6732, 0.5
      %v6749 = vmul.f32 %v6733, 0.5
      %v6750 = vmul.f32 %v6734, 0.5
      %v6751 = vmul.f32 %v6735, 0.5
      %v6752 = vmul.f32 %v6736, 0.5
      %v6753 = vmul.f32 %v6737, 0.5
      %v6754 = vmul.f32 %v6738, 0.5
      %v6755 = vmul.f32 %v6739, 0.5
      %v6756 = vmul.f32 %v6740, 0.5
      %v6757 = vmul.f32 %v6741, 0.5
      %v6758 = vmul.f32 %v6742, 0.5
      %v6759 = vmul.f32 %v6743, 0.5
      %v6760 = vmul.f32 %v6744, 0.5
      %v6761 = vmul.f32 %v6745, 0.5
      %v6762 = vmul.f32 %v6596, %v6746
      %v6763 = vmul.f32 %v6598, %v6747
      %v6764 = vmul.f32 %v6600, %v6748
      %v6765 = vmul.f32 %v6602, %v6749
      %v6766 = vmul.f32 %v6606, %v6750
      %v6767 = vmul.f32 %v6608, %v6751
      %v6768 = vmul.f32 %v6610, %v6752
      %v6769 = vmul.f32 %v6612, %v6753
      %v6770 = vmul.f32 %v6616, %v6754
      %v6771 = vmul.f32 %v6618, %v6755
      %v6772 = vmul.f32 %v6620, %v6756
      %v6773 = vmul.f32 %v6622, %v6757
      %v6774 = vmul.f32 %v6626, %v6758
      %v6775 = vmul.f32 %v6628, %v6759
      %v6776 = vmul.f32 %v6630, %v6760
      %v6777 = vmul.f32 %v6632, %v6761
      %v6778 = vpack.c.bf16 %v6764, %v6762
      %v6779 = vpack.c.bf16 %v6765, %v6763
      %v6780 = vpack.c.bf16 %v6768, %v6766
      %v6781 = vpack.c.bf16 %v6769, %v6767
      %v6782 = vpack.c.bf16 %v6772, %v6770
      %v6783 = vpack.c.bf16 %v6773, %v6771
      %v6784 = vpack.c.bf16 %v6776, %v6774
      %v6785 = vpack.c.bf16 %v6777, %v6775
      %s6786 = scalar_lea.vmem %s18, 96
      %v6787 = vld [vmem:[%s6786] sm:$0xf]
      %v6788 = vld [vmem:[%s6786 + $0x4] sm:$0xf]
      %v6789 = vld [vmem:[%s6786 + $0x8] sm:$0xf]
      %v6790 = vld [vmem:[%s6786 + $0xc] sm:$0xf]
      %v6791 = vld [vmem:[%s6786 + $0x10] sm:$0xf]
      %v6792 = vld [vmem:[%s6786 + $0x14] sm:$0xf]
      %v6793 = vld [vmem:[%s6786 + $0x18] sm:$0xf]
      %v6794 = vld [vmem:[%s6786 + $0x1c] sm:$0xf]
      %v6795 = vld [vmem:[%s6786 + $0x20] sm:$0xf]
      %v6796 = vld [vmem:[%s6786 + $0x24] sm:$0xf]
      %v6797 = vld [vmem:[%s6786 + $0x28] sm:$0xf]
      %v6798 = vld [vmem:[%s6786 + $0x2c] sm:$0xf]
      %v6799 = vld [vmem:[%s6786 + $0x30] sm:$0xf]
      %v6800 = vld [vmem:[%s6786 + $0x34] sm:$0xf]
      %v6801 = vld [vmem:[%s6786 + $0x38] sm:$0xf]
      %v6802 = vld [vmem:[%s6786 + $0x3c] sm:$0xf]
      %v6803 = vld [vmem:[%s6786 + $0x40] sm:$0xf]
      %v6804 = vld [vmem:[%s6786 + $0x44] sm:$0xf]
      %v6805 = vld [vmem:[%s6786 + $0x48] sm:$0xf]
      %v6806 = vld [vmem:[%s6786 + $0x4c] sm:$0xf]
      %v6807 = vld [vmem:[%s6786 + $0x50] sm:$0xf]
      %v6808 = vld [vmem:[%s6786 + $0x54] sm:$0xf]
      %v6809 = vld [vmem:[%s6786 + $0x58] sm:$0xf]
      %v6810 = vld [vmem:[%s6786 + $0x5c] sm:$0xf]
      %s6811 = scalar_lea.vmem %s19, 1
      %v6812 = vld [vmem:[%s6811] sm:$0x1]
      %v6814 = vlaneseq
      %v6815 = vshrl.u32 %v6814, 7
      %v6816 = vsub.s32 0, %v6815
      %v6817 = vrot.slane %v6812, %v6816
      %v6843 = vunpack.c.l.b16 %v6787
      %v6844 = vunpack.c.l.b16 %v6788
      %v6845 = vunpack.c.l.b16 %v6789
      %v6846 = vunpack.c.l.b16 %v6790
      %v6847 = vunpack.c.l.b16 %v6791
      %v6848 = vunpack.c.l.b16 %v6792
      %v6849 = vunpack.c.l.b16 %v6793
      %v6850 = vunpack.c.l.b16 %v6794
      %v6851 = vunpack.c.l.b16 %v6795
      %v6852 = vunpack.c.l.b16 %v6796
      %v6853 = vunpack.c.l.b16 %v6797
      %v6854 = vunpack.c.l.b16 %v6798
      %v6855 = vunpack.c.l.b16 %v6799
      %v6856 = vunpack.c.l.b16 %v6800
      %v6857 = vunpack.c.l.b16 %v6801
      %v6858 = vunpack.c.l.b16 %v6802
      %v6859 = vunpack.c.l.b16 %v6803
      %v6860 = vunpack.c.l.b16 %v6804
      %v6861 = vunpack.c.l.b16 %v6805
      %v6862 = vunpack.c.l.b16 %v6806
      %v6863 = vunpack.c.l.b16 %v6807
      %v6864 = vunpack.c.l.b16 %v6808
      %v6865 = vunpack.c.l.b16 %v6809
      %v6866 = vunpack.c.l.b16 %v6810
      %v6867 = vpack.c.b16 %v6844, %v6843
      %v6868 = vpack.c.b16 %v6846, %v6845
      %v6869 = vpack.c.b16 %v6848, %v6847
      %v6870 = vpack.c.b16 %v6850, %v6849
      %v6871 = vpack.c.b16 %v6852, %v6851
      %v6872 = vpack.c.b16 %v6854, %v6853
      %v6873 = vpack.c.b16 %v6856, %v6855
      %v6874 = vpack.c.b16 %v6858, %v6857
      %v6875 = vpack.c.b16 %v6860, %v6859
      %v6876 = vpack.c.b16 %v6862, %v6861
      %v6877 = vpack.c.b16 %v6864, %v6863
      %v6878 = vpack.c.b16 %v6866, %v6865
      %v6892 = vsel %vm1113, %v6779, 0
      %v6895 = vsel %vm1113, %v6781, 0
      %v6898 = vsel %vm1113, %v6783, 0
      %v6901 = vsel %vm1113, %v6785, 0
      %6903 = vmatprep.subr.bf16.mxu0 0
      %6904 = vmatpush1.bf16.msra.mxu0 %v6874
      %6905 = vmatprep.subr.bf16.mxu0 0
      %6906 = vmatpush1.bf16.msra.mxu0 %v6873
      %6907 = vmatprep.subr.bf16.mxu0 0
      %6908 = vmatpush1.bf16.msra.mxu0 %v6872
      %6909 = vmatprep.subr.bf16.mxu0 0
      %6910 = vmatpush1.bf16.msra.mxu0 %v6871
      %6911 = vmatprep.subr.bf16.mxu0 0
      %6912 = vmatpush1.bf16.msra.mxu0 %v6870
      %6913 = vmatprep.subr.bf16.mxu0 0
      %6914 = vmatpush1.bf16.msra.mxu0 %v6869
      %6915 = vmatprep.subr.bf16.mxu0 0
      %6916 = vmatpush1.bf16.msra.mxu0 %v6868
      %6917 = vmatprep.subr.bf16.mxu0 0
      %6918 = vmatpush1.bf16.msra.mxu0 %v6867
      %6919 = vmatprep.subr.bf16.mxu0 0
      %6920 = vmatpush2.bf16.msra.mxu0 0
      %6921 = vmatprep.subr.bf16.mxu0 0
      %6922 = vmatpush2.bf16.msra.mxu0 0
      %6923 = vmatprep.subr.bf16.mxu0 0
      %6924 = vmatpush2.bf16.msra.mxu0 0
      %6925 = vmatprep.subr.bf16.mxu0 0
      %6926 = vmatpush2.bf16.msra.mxu0 0
      %6927 = vmatprep.subr.bf16.mxu0 0
      %6928 = vmatpush2.bf16.msra.mxu0 %v6878
      %6929 = vmatprep.subr.bf16.mxu0 0
      %6930 = vmatpush2.bf16.msra.mxu0 %v6877
      %6931 = vmatprep.subr.bf16.mxu0 0
      %6932 = vmatpush2.bf16.msra.mxu0 %v6876
      %6933 = vmatprep.subr.bf16.mxu0 0
      %6934 = vmatpush2.bf16.msra.mxu0 %v6875
      %6935 = vmatprep.mubr.bf16.mxu0 %v6892
      %6936 = vmatmul.mubr.bf16.gmra.mxu0 %v6778
      %v6937 = vpop.f32.mrf.mxu0
      %v6938 = vadd.f32 %v6817, %v6937
      %v6939 = vpop.f32.mrf.mxu0
      %v6940 = vpop.f32.mrf.mxu0
      %v6941 = vadd.f32 %v6817, %v6940
      %v6942 = vpop.f32.mrf.mxu0
      %6943 = vmatprep.mubr.bf16.mxu0 %v6895
      %6944 = vmatmul.mubr.bf16.gmra.mxu0 %v6780
      %v6945 = vpop.f32.mrf.mxu0
      %v6946 = vadd.f32 %v6817, %v6945
      %v6947 = vpop.f32.mrf.mxu0
      %v6948 = vpop.f32.mrf.mxu0
      %v6949 = vadd.f32 %v6817, %v6948
      %v6950 = vpop.f32.mrf.mxu0
      %6951 = vmatprep.mubr.bf16.mxu0 %v6898
      %6952 = vmatmul.mubr.bf16.gmra.mxu0 %v6782
      %v6953 = vpop.f32.mrf.mxu0
      %v6954 = vadd.f32 %v6817, %v6953
      %v6955 = vpop.f32.mrf.mxu0
      %v6956 = vpop.f32.mrf.mxu0
      %v6957 = vadd.f32 %v6817, %v6956
      %v6958 = vpop.f32.mrf.mxu0
      %6959 = vmatprep.mubr.bf16.mxu0 %v6901
      %6960 = vmatmul.mubr.bf16.gmra.mxu0 %v6784
      %v6961 = vpop.f32.mrf.mxu0
      %v6962 = vadd.f32 %v6817, %v6961
      %v6963 = vpop.f32.mrf.mxu0
      %v6964 = vpop.f32.mrf.mxu0
      %v6965 = vadd.f32 %v6817, %v6964
      %v6966 = vpop.f32.mrf.mxu0
      %6967 = vdwg.mxu0
      %v6968 = vlaneseq
      %v6969 = vshrl.u32 %v6968, 7
      %v6970 = vsub.s32 0, %v6969
      %v6971 = vrot.slane %v4493, %v6970
      %v6972 = vmul.f32 %v6971, %v6938
      %v6973 = vmul.f32 %v6971, %v6941
      %v6974 = vmul.f32 %v6971, %v6946
      %v6975 = vmul.f32 %v6971, %v6949
      %v6976 = vmul.f32 %v6971, %v6954
      %v6977 = vmul.f32 %v6971, %v6957
      %v6978 = vmul.f32 %v6971, %v6962
      %v6979 = vmul.f32 %v6971, %v6965
      %v6980 = vadd.f32 %v6358, %v6972
      %v6981 = vadd.f32 %v6359, %v6973
      %v6982 = vadd.f32 %v6360, %v6974
      %v6983 = vadd.f32 %v6361, %v6975
      %v6984 = vadd.f32 %v6362, %v6976
      %v6985 = vadd.f32 %v6363, %v6977
      %v6986 = vadd.f32 %v6364, %v6978
      %v6987 = vadd.f32 %v6365, %v6979
      %s6988 = scalar_lea.vmem %s10, 288
      %v6989 = vld [vmem:[%s6988] sm:$0xf]
      %v6990 = vld [vmem:[%s6988 + $0x4] sm:$0xf]
      %v6991 = vld [vmem:[%s6988 + $0x8] sm:$0xf]
      %v6992 = vld [vmem:[%s6988 + $0xc] sm:$0xf]
      %v6993 = vld [vmem:[%s6988 + $0x10] sm:$0xf]
      %v6994 = vld [vmem:[%s6988 + $0x14] sm:$0xf]
      %s6995 = scalar_lea.vmem %s11, 12
      %v6996 = vld [vmem:[%s6995] sm:$0x1]
      %v7003 = vunpack.c.l.b16 %v6989
      %v7004 = vunpack.c.l.b16 %v6990
      %v7005 = vunpack.c.l.b16 %v6991
      %v7006 = vunpack.c.l.b16 %v6992
      %v7007 = vunpack.c.l.b16 %v6993
      %v7008 = vunpack.c.l.b16 %v6994
      %v7009 = vpack.c.b16 %v7004, %v7003
      %v7010 = vpack.c.b16 %v7006, %v7005
      %v7011 = vpack.c.b16 %v7008, %v7007
      %7015 = vmatprep.subr.bf16.mxu0 0
      %7016 = vmatpush1.bf16.msra.mxu0 0
      %7017 = vmatprep.subr.bf16.mxu0 0
      %7018 = vmatpush1.bf16.msra.mxu0 0
      %7019 = vmatprep.subr.bf16.mxu0 0
      %7020 = vmatpush1.bf16.msra.mxu0 0
      %7021 = vmatprep.subr.bf16.mxu0 0
      %7022 = vmatpush1.bf16.msra.mxu0 0
      %7023 = vmatprep.subr.bf16.mxu0 0
      %7024 = vmatpush1.bf16.msra.mxu0 0
      %7025 = vmatprep.subr.bf16.mxu0 0
      %7026 = vmatpush1.bf16.msra.mxu0 %v7011
      %7027 = vmatprep.subr.bf16.mxu0 0
      %7028 = vmatpush1.bf16.msra.mxu0 %v7010
      %7029 = vmatprep.subr.bf16.mxu0 0
      %7030 = vmatpush1.bf16.msra.mxu0 %v7009
      %7031 = vmatprep.subr.bf16.mxu0 0
      %7032 = vmatpush2.bf16.msra.mxu0 0
      %7033 = vmatprep.subr.bf16.mxu0 0
      %7034 = vmatpush2.bf16.msra.mxu0 0
      %7035 = vmatprep.subr.bf16.mxu0 0
      %7036 = vmatpush2.bf16.msra.mxu0 0
      %7037 = vmatprep.subr.bf16.mxu0 0
      %7038 = vmatpush2.bf16.msra.mxu0 0
      %7039 = vmatprep.subr.bf16.mxu0 0
      %7040 = vmatpush2.bf16.msra.mxu0 0
      %7041 = vmatprep.subr.bf16.mxu0 0
      %7042 = vmatpush2.bf16.msra.mxu0 0
      %7043 = vmatprep.subr.bf16.mxu0 0
      %7044 = vmatpush2.bf16.msra.mxu0 0
      %7045 = vmatprep.subr.bf16.mxu0 0
      %7046 = vmatpush2.bf16.msra.mxu0 0
      %7047 = vmatprep.mubr.bf16.mxu0 0
      %7048 = vmatmul.mubr.bf16.gmra.mxu0 %v1233
      %v7049 = vpop.f32.mrf.mxu0
      %v7050 = vadd.f32 %v6996, %v7049
      %v7051 = vpop.f32.mrf.mxu0
      %v7052 = vpop.f32.mrf.mxu0
      %v7053 = vpop.f32.mrf.mxu0
      %7054 = vdwg.mxu0
      %s7055 = scalar_lea.vmem %s10, 312
      %v7056 = vld [vmem:[%s7055] sm:$0xf]
      %v7057 = vld [vmem:[%s7055 + $0x4] sm:$0xf]
      %v7058 = vld [vmem:[%s7055 + $0x8] sm:$0xf]
      %v7059 = vld [vmem:[%s7055 + $0xc] sm:$0xf]
      %v7060 = vld [vmem:[%s7055 + $0x10] sm:$0xf]
      %v7061 = vld [vmem:[%s7055 + $0x14] sm:$0xf]
      %s7062 = scalar_lea.vmem %s11, 13
      %v7063 = vld [vmem:[%s7062] sm:$0x1]
      %v7070 = vunpack.c.l.b16 %v7056
      %v7071 = vunpack.c.l.b16 %v7057
      %v7072 = vunpack.c.l.b16 %v7058
      %v7073 = vunpack.c.l.b16 %v7059
      %v7074 = vunpack.c.l.b16 %v7060
      %v7075 = vunpack.c.l.b16 %v7061
      %v7076 = vpack.c.b16 %v7071, %v7070
      %v7077 = vpack.c.b16 %v7073, %v7072
      %v7078 = vpack.c.b16 %v7075, %v7074
      %7082 = vmatprep.subr.bf16.mxu0 0
      %7083 = vmatpush1.bf16.msra.mxu0 0
      %7084 = vmatprep.subr.bf16.mxu0 0
      %7085 = vmatpush1.bf16.msra.mxu0 0
      %7086 = vmatprep.subr.bf16.mxu0 0
      %7087 = vmatpush1.bf16.msra.mxu0 0
      %7088 = vmatprep.subr.bf16.mxu0 0
      %7089 = vmatpush1.bf16.msra.mxu0 0
      %7090 = vmatprep.subr.bf16.mxu0 0
      %7091 = vmatpush1.bf16.msra.mxu0 0
      %7092 = vmatprep.subr.bf16.mxu0 0
      %7093 = vmatpush1.bf16.msra.mxu0 %v7078
      %7094 = vmatprep.subr.bf16.mxu0 0
      %7095 = vmatpush1.bf16.msra.mxu0 %v7077
      %7096 = vmatprep.subr.bf16.mxu0 0
      %7097 = vmatpush1.bf16.msra.mxu0 %v7076
      %7098 = vmatprep.subr.bf16.mxu0 0
      %7099 = vmatpush2.bf16.msra.mxu0 0
      %7100 = vmatprep.subr.bf16.mxu0 0
      %7101 = vmatpush2.bf16.msra.mxu0 0
      %7102 = vmatprep.subr.bf16.mxu0 0
      %7103 = vmatpush2.bf16.msra.mxu0 0
      %7104 = vmatprep.subr.bf16.mxu0 0
      %7105 = vmatpush2.bf16.msra.mxu0 0
      %7106 = vmatprep.subr.bf16.mxu0 0
      %7107 = vmatpush2.bf16.msra.mxu0 0
      %7108 = vmatprep.subr.bf16.mxu0 0
      %7109 = vmatpush2.bf16.msra.mxu0 0
      %7110 = vmatprep.subr.bf16.mxu0 0
      %7111 = vmatpush2.bf16.msra.mxu0 0
      %7112 = vmatprep.subr.bf16.mxu0 0
      %7113 = vmatpush2.bf16.msra.mxu0 0
      %7114 = vmatprep.mubr.bf16.mxu0 0
      %7115 = vmatmul.mubr.bf16.gmra.mxu0 %v1233
      %v7116 = vpop.f32.mrf.mxu0
      %v7117 = vadd.f32 %v7063, %v7116
      %v7118 = vpop.f32.mrf.mxu0
      %v7119 = vpop.f32.mrf.mxu0
      %v7120 = vpop.f32.mrf.mxu0
      %7121 = vdwg.mxu0
      %v7122 = vsel %vm932, %v6980, 0.0
      %7123 = vadd.xlane.f32.xlu0 %v7122
      %v7124 = vpop.xlane.xlu0 %7123
      %v7125 = vsel %vm932, %v6981, 0.0
      %7126 = vadd.xlane.f32.xlu0 %v7125
      %v7127 = vpop.xlane.xlu0 %7126
      %v7128 = vsel %vm932, %v6982, 0.0
      %7129 = vadd.xlane.f32.xlu0 %v7128
      %v7130 = vpop.xlane.xlu0 %7129
      %v7131 = vsel %vm932, %v6983, 0.0
      %7132 = vadd.xlane.f32.xlu0 %v7131
      %v7133 = vpop.xlane.xlu0 %7132
      %v7134 = vsel %vm932, %v6984, 0.0
      %7135 = vadd.xlane.f32.xlu0 %v7134
      %v7136 = vpop.xlane.xlu0 %7135
      %v7137 = vsel %vm932, %v6985, 0.0
      %7138 = vadd.xlane.f32.xlu0 %v7137
      %v7139 = vpop.xlane.xlu0 %7138
      %v7140 = vsel %vm932, %v6986, 0.0
      %7141 = vadd.xlane.f32.xlu0 %v7140
      %v7142 = vpop.xlane.xlu0 %7141
      %v7143 = vsel %vm932, %v6987, 0.0
      %7144 = vadd.xlane.f32.xlu0 %v7143
      %v7145 = vpop.xlane.xlu0 %7144
      %v7146 = vmul.f32 %v7124, %v1634
      %v7147 = vmul.f32 %v7127, %v1634
      %v7148 = vmul.f32 %v7130, %v1634
      %v7149 = vmul.f32 %v7133, %v1634
      %v7150 = vmul.f32 %v7136, %v1634
      %v7151 = vmul.f32 %v7139, %v1634
      %v7152 = vmul.f32 %v7142, %v1634
      %v7153 = vmul.f32 %v7145, %v1634
      %v7154 = vsub.f32 %v6980, %v7146
      %v7155 = vsub.f32 %v6981, %v7147
      %v7156 = vsub.f32 %v6982, %v7148
      %v7157 = vsub.f32 %v6983, %v7149
      %v7158 = vsub.f32 %v6984, %v7150
      %v7159 = vsub.f32 %v6985, %v7151
      %v7160 = vsub.f32 %v6986, %v7152
      %v7161 = vsub.f32 %v6987, %v7153
      %v7162 = vmul.f32 %v7154, %v7154
      %v7163 = vmul.f32 %v7155, %v7155
      %v7164 = vmul.f32 %v7156, %v7156
      %v7165 = vmul.f32 %v7157, %v7157
      %v7166 = vmul.f32 %v7158, %v7158
      %v7167 = vmul.f32 %v7159, %v7159
      %v7168 = vmul.f32 %v7160, %v7160
      %v7169 = vmul.f32 %v7161, %v7161
      %v7170 = vsel %vm932, %v7162, 0.0
      %7171 = vadd.xlane.f32.xlu0 %v7170
      %v7172 = vpop.xlane.xlu0 %7171
      %v7173 = vsel %vm932, %v7163, 0.0
      %7174 = vadd.xlane.f32.xlu0 %v7173
      %v7175 = vpop.xlane.xlu0 %7174
      %v7176 = vsel %vm932, %v7164, 0.0
      %7177 = vadd.xlane.f32.xlu0 %v7176
      %v7178 = vpop.xlane.xlu0 %7177
      %v7179 = vsel %vm932, %v7165, 0.0
      %7180 = vadd.xlane.f32.xlu0 %v7179
      %v7181 = vpop.xlane.xlu0 %7180
      %v7182 = vsel %vm932, %v7166, 0.0
      %7183 = vadd.xlane.f32.xlu0 %v7182
      %v7184 = vpop.xlane.xlu0 %7183
      %v7185 = vsel %vm932, %v7167, 0.0
      %7186 = vadd.xlane.f32.xlu0 %v7185
      %v7187 = vpop.xlane.xlu0 %7186
      %v7188 = vsel %vm932, %v7168, 0.0
      %7189 = vadd.xlane.f32.xlu0 %v7188
      %v7190 = vpop.xlane.xlu0 %7189
      %v7191 = vsel %vm932, %v7169, 0.0
      %7192 = vadd.xlane.f32.xlu0 %v7191
      %v7193 = vpop.xlane.xlu0 %7192
      %v7194 = vmul.f32 %v7172, %v1634
      %v7195 = vmul.f32 %v7175, %v1634
      %v7196 = vmul.f32 %v7178, %v1634
      %v7197 = vmul.f32 %v7181, %v1634
      %v7198 = vmul.f32 %v7184, %v1634
      %v7199 = vmul.f32 %v7187, %v1634
      %v7200 = vmul.f32 %v7190, %v1634
      %v7201 = vmul.f32 %v7193, %v1634
      %v7202 = vadd.f32 %v7194, 1e-06
      %v7203 = vadd.f32 %v7195, 1e-06
      %v7204 = vadd.f32 %v7196, 1e-06
      %v7205 = vadd.f32 %v7197, 1e-06
      %v7206 = vadd.f32 %v7198, 1e-06
      %v7207 = vadd.f32 %v7199, 1e-06
      %v7208 = vadd.f32 %v7200, 1e-06
      %v7209 = vadd.f32 %v7201, 1e-06
      %v7210 = vrsqrt.pop %v7202
      %v7211 = vrsqrt.pop %v7203
      %v7212 = vrsqrt.pop %v7204
      %v7213 = vrsqrt.pop %v7205
      %v7214 = vrsqrt.pop %v7206
      %v7215 = vrsqrt.pop %v7207
      %v7216 = vrsqrt.pop %v7208
      %v7217 = vrsqrt.pop %v7209
      %v7218 = vmul.f32 %v7154, %v7210
      %v7219 = vmul.f32 %v7155, %v7211
      %v7220 = vmul.f32 %v7156, %v7212
      %v7221 = vmul.f32 %v7157, %v7213
      %v7222 = vmul.f32 %v7158, %v7214
      %v7223 = vmul.f32 %v7159, %v7215
      %v7224 = vmul.f32 %v7160, %v7216
      %v7225 = vmul.f32 %v7161, %v7217
      %v7226 = vadd.f32 %v7117, 1.0
      %v7227 = vlaneseq
      %v7228 = vshrl.u32 %v7227, 7
      %v7229 = vsub.s32 0, %v7228
      %v7230 = vrot.slane %v7226, %v7229
      %v7231 = vmul.f32 %v7218, %v7230
      %v7232 = vmul.f32 %v7219, %v7230
      %v7233 = vmul.f32 %v7220, %v7230
      %v7234 = vmul.f32 %v7221, %v7230
      %v7235 = vmul.f32 %v7222, %v7230
      %v7236 = vmul.f32 %v7223, %v7230
      %v7237 = vmul.f32 %v7224, %v7230
      %v7238 = vmul.f32 %v7225, %v7230
      %v7239 = vlaneseq
      %v7240 = vshrl.u32 %v7239, 7
      %v7241 = vsub.s32 0, %v7240
      %v7242 = vrot.slane %v7050, %v7241
      %v7243 = vadd.f32 %v7231, %v7242
      %v7244 = vadd.f32 %v7232, %v7242
      %v7245 = vadd.f32 %v7233, %v7242
      %v7246 = vadd.f32 %v7234, %v7242
      %v7247 = vadd.f32 %v7235, %v7242
      %v7248 = vadd.f32 %v7236, %v7242
      %v7249 = vadd.f32 %v7237, %v7242
      %v7250 = vadd.f32 %v7238, %v7242
      %v7251 = vpack.c.bf16 %v7244, %v7243
      %v7252 = vpack.c.bf16 %v7246, %v7245
      %v7253 = vpack.c.bf16 %v7248, %v7247
      %v7254 = vpack.c.bf16 %v7250, %v7249
      %v7255 = vld [vmem:[%s20] sm:$0xff]
      %v7256 = vld [vmem:[%s20 + $0x8] sm:$0xff]
      %v7257 = vld [vmem:[%s20 + $0x10] sm:$0xff]
      %v7258 = vld [vmem:[%s20 + $0x18] sm:$0xff]
      %v7259 = vld [vmem:[%s20 + $0x20] sm:$0xff]
      %v7260 = vld [vmem:[%s20 + $0x28] sm:$0xff]
      %v7261 = vld [vmem:[%s21] sm:$0x3]
      %v7263 = vlaneseq
      %v7264 = vshrl.u32 %v7263, 7
      %v7265 = vsub.s32 0, %v7264
      %v7266 = vrot.slane %v7261, %v7265
      %v7267 = vlaneseq
      %v7268 = vshrl.u32 %v7267, 7
      %v7269 = vsub.s32 1, %v7268
      %v7270 = vrot.slane %v7261, %v7269
      %v7279 = vunpack.c.l.b16 %v7255
      %v7280 = vunpack.c.h.b16 %v7255
      %v7281 = vunpack.c.l.b16 %v7256
      %v7282 = vunpack.c.h.b16 %v7256
      %v7283 = vunpack.c.l.b16 %v7257
      %v7284 = vunpack.c.h.b16 %v7257
      %v7285 = vunpack.c.l.b16 %v7258
      %v7286 = vunpack.c.h.b16 %v7258
      %v7287 = vunpack.c.l.b16 %v7259
      %v7288 = vunpack.c.h.b16 %v7259
      %v7289 = vunpack.c.l.b16 %v7260
      %v7290 = vunpack.c.h.b16 %v7260
      %v7291 = vpack.c.b16 %v7281, %v7279
      %v7292 = vpack.c.b16 %v7282, %v7280
      %v7293 = vpack.c.b16 %v7285, %v7283
      %v7294 = vpack.c.b16 %v7286, %v7284
      %v7295 = vpack.c.b16 %v7289, %v7287
      %v7296 = vpack.c.b16 %v7290, %v7288
      %v7304 = vsel %vm932, %v7251, 0
      %v7307 = vsel %vm932, %v7252, 0
      %v7310 = vsel %vm932, %v7253, 0
      %v7313 = vsel %vm932, %v7254, 0
      %7315 = vmatprep.subr.bf16.mxu0 0
      %7316 = vmatpush1.bf16.msra.mxu0 0
      %7317 = vmatprep.subr.bf16.mxu0 0
      %7318 = vmatpush1.bf16.msra.mxu0 0
      %7319 = vmatprep.subr.bf16.mxu0 0
      %7320 = vmatpush1.bf16.msra.mxu0 0
      %7321 = vmatprep.subr.bf16.mxu0 0
      %7322 = vmatpush1.bf16.msra.mxu0 0
      %7323 = vmatprep.subr.bf16.mxu0 0
      %7324 = vmatpush1.bf16.msra.mxu0 0
      %7325 = vmatprep.subr.bf16.mxu0 %v7296
      %7326 = vmatpush1.bf16.msra.mxu0 %v7295
      %7327 = vmatprep.subr.bf16.mxu0 %v7294
      %7328 = vmatpush1.bf16.msra.mxu0 %v7293
      %7329 = vmatprep.subr.bf16.mxu0 %v7292
      %7330 = vmatpush1.bf16.msra.mxu0 %v7291
      %7331 = vmatprep.subr.bf16.mxu0 0
      %7332 = vmatpush2.bf16.msra.mxu0 0
      %7333 = vmatprep.subr.bf16.mxu0 0
      %7334 = vmatpush2.bf16.msra.mxu0 0
      %7335 = vmatprep.subr.bf16.mxu0 0
      %7336 = vmatpush2.bf16.msra.mxu0 0
      %7337 = vmatprep.subr.bf16.mxu0 0
      %7338 = vmatpush2.bf16.msra.mxu0 0
      %7339 = vmatprep.subr.bf16.mxu0 0
      %7340 = vmatpush2.bf16.msra.mxu0 0
      %7341 = vmatprep.subr.bf16.mxu0 0
      %7342 = vmatpush2.bf16.msra.mxu0 0
      %7343 = vmatprep.subr.bf16.mxu0 0
      %7344 = vmatpush2.bf16.msra.mxu0 0
      %7345 = vmatprep.subr.bf16.mxu0 0
      %7346 = vmatpush2.bf16.msra.mxu0 0
      %7347 = vmatprep.mubr.bf16.mxu0 0
      %7348 = vmatmul.mubr.bf16.gmra.mxu0 %v7304
      %v7349 = vpop.f32.mrf.mxu0
      %v7350 = vadd.f32 %v7266, %v7349
      %v7351 = vpop.f32.mrf.mxu0
      %v7352 = vadd.f32 %v7270, %v7351
      %v7353 = vpop.f32.mrf.mxu0
      %v7354 = vadd.f32 %v7266, %v7353
      %v7355 = vpop.f32.mrf.mxu0
      %v7356 = vadd.f32 %v7270, %v7355
      %7357 = vmatprep.mubr.bf16.mxu0 0
      %7358 = vmatmul.mubr.bf16.gmra.mxu0 %v7307
      %v7359 = vpop.f32.mrf.mxu0
      %v7360 = vadd.f32 %v7266, %v7359
      %v7361 = vpop.f32.mrf.mxu0
      %v7362 = vadd.f32 %v7270, %v7361
      %v7363 = vpop.f32.mrf.mxu0
      %v7364 = vadd.f32 %v7266, %v7363
      %v7365 = vpop.f32.mrf.mxu0
      %v7366 = vadd.f32 %v7270, %v7365
      %7367 = vmatprep.mubr.bf16.mxu0 0
      %7368 = vmatmul.mubr.bf16.gmra.mxu0 %v7310
      %v7369 = vpop.f32.mrf.mxu0
      %v7370 = vadd.f32 %v7266, %v7369
      %v7371 = vpop.f32.mrf.mxu0
      %v7372 = vadd.f32 %v7270, %v7371
      %v7373 = vpop.f32.mrf.mxu0
      %v7374 = vadd.f32 %v7266, %v7373
      %v7375 = vpop.f32.mrf.mxu0
      %v7376 = vadd.f32 %v7270, %v7375
      %7377 = vmatprep.mubr.bf16.mxu0 0
      %7378 = vmatmul.mubr.bf16.gmra.mxu0 %v7313
      %v7379 = vpop.f32.mrf.mxu0
      %v7380 = vadd.f32 %v7266, %v7379
      %v7381 = vpop.f32.mrf.mxu0
      %v7382 = vadd.f32 %v7270, %v7381
      %v7383 = vpop.f32.mrf.mxu0
      %v7384 = vadd.f32 %v7266, %v7383
      %v7385 = vpop.f32.mrf.mxu0
      %v7386 = vadd.f32 %v7270, %v7385
      %7387 = vdwg.mxu0
      %7388 = vst [vmem:[%s714] sm:$0xff] %v7350
      %7389 = vst [vmem:[%s714 + $0x8] sm:$0xff] %v7352
      %7390 = vst [vmem:[%s714 + $0x10] sm:$0xff] %v7354
      %7391 = vst [vmem:[%s714 + $0x18] sm:$0xff] %v7356
      %7392 = vst [vmem:[%s714 + $0x20] sm:$0xff] %v7360
      %7393 = vst [vmem:[%s714 + $0x28] sm:$0xff] %v7362
      %7394 = vst [vmem:[%s714 + $0x30] sm:$0xff] %v7364
      %7395 = vst [vmem:[%s714 + $0x38] sm:$0xff] %v7366
      %7396 = vst [vmem:[%s714 + $0x40] sm:$0xff] %v7370
      %7397 = vst [vmem:[%s714 + $0x48] sm:$0xff] %v7372
      %7398 = vst [vmem:[%s714 + $0x50] sm:$0xff] %v7374
      %7399 = vst [vmem:[%s714 + $0x58] sm:$0xff] %v7376
      %7400 = vst [vmem:[%s714 + $0x60] sm:$0xff] %v7380
      %7401 = vst [vmem:[%s714 + $0x68] sm:$0xff] %v7382
      %7402 = vst [vmem:[%s714 + $0x70] sm:$0xff] %v7384
      %7403 = vst [vmem:[%s714 + $0x78] sm:$0xff] %v7386
      %p7404 = scmp.lt.s32.totalorder %s33, 1
      %s7405 = scalar_select %p7404, %s33, 1
      %s7406 = smul.addr %s7405, 16
      %s7407 = smul.addr %s7406, 8
      %s7408 = scalar_lea.vmem %s22, %s7407
      // Predicated region
      $region109: #{dit_forward.1} parent=107 // pred_check
        %p7409 = pneg %p528
      $region110: #{dit_forward.1} parent=107 // pred_check_branch
        %7411 = sbr.rel (%p7409) target = $region112
      $region111: #{dit_forward.1} parent=107 // pred_region
        _
      $region112: #{dit_forward.1} parent=107 // pred_fallthru
        _
    $region108: #{dit_forward.1} parent=5 // pred_fallthru
      _
    %p7412 = scmp.le.s32.totalorder 2, %s28
    // Predicated region
    $region113: #{dit_forward.1} parent=5 // pred_check
      %p7413 = pneg %p7412
    $region114: #{dit_forward.1} parent=5 // pred_check_branch
      %7415 = sbr.rel (%p7413) target = $region116
    $region115: #{dit_forward.1} parent=5 // pred_region
      %s7416 = ssub.s32 %s28, 2
      // Predicated region
      $region117: #{dit_forward.1} parent=115 // pred_check
        %p7417 = pneg %p534
      $region118: #{dit_forward.1} parent=115 // pred_check_branch
        %7419 = sbr.rel (%p7417) target = $region120
      $region119: #{dit_forward.1} parent=115 // pred_region
        %p7420 = scmp.lt.s32.totalorder %s34, 1
        %s7421 = scalar_select %p7420, %s34, 1
        %s7422 = smul.addr %s7421, 16
        %s7423 = smul.addr %s7422, 8
        %s7424 = scalar_lea.vmem %s22, %s7423
      $region120: #{dit_forward.1} parent=115 // pred_fallthru
        _
    $region116: #{dit_forward.1} parent=5 // pred_fallthru
      _
  $region6: #{dit_forward.1} parent=0 // loop_footer
    %s32 = sadd.s32 1, %s28
  $region7: #{dit_forward.1} parent=0 // loop_footer_branch
    %27 = sbr.rel target = $region3
  $region8: #{dit_forward.1} parent=0 // loop_exit
    _

</llo_original>
